<compile_context>
chip_gen: v7x
topology: tpu7x:2x2x1
jax: 0.10.0
libtpu: 0.0.40
codegen_flags: <defaults>
</compile_context>

<pallas_src>
import jax
import jax.numpy as jnp
import numpy as np
from jax.experimental import pallas as pl
from jax.experimental.pallas import tpu as pltpu

# ----------------------------- model configuration -----------------------------
HIDDEN = 32           # hidden_size
NUM_HEADS = 4
HEAD_DIM = HIDDEN // NUM_HEADS          # 8
MLP_RATIO = 4.0
MLP_HIDDEN = int(HIDDEN * MLP_RATIO)    # 128
DEPTH = 2
NUM_PATCHES = 4       # tokens per frame
MAX_T = 2             # max_temporal_length
MAX_TOKENS = MAX_T * NUM_PATCHES        # 8
OUT_CHANNELS = 4
LEARN_SIGMA = True
OC = OUT_CHANNELS * (2 if LEARN_SIGMA else 1)   # 8
LANE = 128            # TPU lane width; all packed layouts are aligned to this
OC_PAD = LANE         # lane-dense padded output width (unmasked store), sliced in wrapper
LN_EPS = 1e-6

MOD_W = 6 * LANE                 # padded adaLN modulation width (one lane tile per chunk)
QKV_W = 3 * NUM_HEADS * LANE     # padded qkv width (one lane tile per head per q/k/v)
FMOD_W = 2 * LANE                # padded final-layer modulation width


# ----------------------------- in-kernel math helpers -----------------------------
def _layernorm(x):
    # LayerNorm without affine params (elementwise_affine=False), eps=1e-6.
    mu = jnp.mean(x, axis=-1, keepdims=True)
    xc = x - mu
    var = jnp.mean(xc * xc, axis=-1, keepdims=True)
    return xc * jax.lax.rsqrt(var + LN_EPS)


def _silu(x):
    return x * (1.0 / (1.0 + jnp.exp(-x)))


def _gelu_tanh(x):
    c = 0.7978845608028654  # sqrt(2/pi)
    return 0.5 * x * (1.0 + jnp.tanh(c * (x + 0.044715 * x * x * x)))


# ----------------------------- fused DiTBase forward kernel -----------------------------
def fused_dit_kernel(x_ref, c_ref, pos_ref,
                     wmod_ref, wqkv_ref, wproj_ref, w1_ref, w2_ref,
                     bmod_ref, bqkv_ref, bproj_ref, b1_ref, b2_ref,
                     wfmod_ref, bfmod_ref, wfout_ref, bfout_ref,
                     o_ref):
    B, N, D = x_ref.shape
    BN = B * N

    # learned_1d positional embedding fused into the kernel (broadcast over batch).
    x = (x_ref[...] + pos_ref[...]).reshape(BN, D)          # residual stream, stays resident
    # SiLU(c) feeds the adaLN modulation of every block AND the final layer: hoist once.
    silu_c = _silu(c_ref[...].reshape(BN, D))

    for d in range(DEPTH):                                  # static unroll (DEPTH=2)
        # adaLN modulation: each D-wide chunk lives at a 128-lane tile boundary.
        mod = jnp.dot(silu_c, wmod_ref[d], preferred_element_type=jnp.float32) + bmod_ref[d]
        shift_msa = mod[:, 0 * LANE:0 * LANE + D]
        scale_msa = mod[:, 1 * LANE:1 * LANE + D]
        gate_msa  = mod[:, 2 * LANE:2 * LANE + D]
        shift_mlp = mod[:, 3 * LANE:3 * LANE + D]
        scale_mlp = mod[:, 4 * LANE:4 * LANE + D]
        gate_mlp  = mod[:, 5 * LANE:5 * LANE + D]

        # ---- multi-head self-attention branch ----
        h = _layernorm(x) * (1.0 + scale_msa) + shift_msa
        # qkv is head-major padded: head hh -> q tile hh, k tile NUM_HEADS+hh, v tile 2*NUM_HEADS+hh.
        # 1/sqrt(head_dim) is folded into the q tiles at pack time; padding lanes are exactly zero.
        qkv = (jnp.dot(h, wqkv_ref[d], preferred_element_type=jnp.float32) + bqkv_ref[d]
               ).reshape(B, N, QKV_W)

        # attention accumulator initialized with the broadcast projection bias (saves one add).
        attn = jnp.broadcast_to(bproj_ref[d], (BN, D))
        for hh in range(NUM_HEADS):                         # static loop; math batched over B
            q_h = qkv[:, :, hh * LANE:(hh + 1) * LANE]                              # (B,N,128)
            k_h = qkv[:, :, (NUM_HEADS + hh) * LANE:(NUM_HEADS + hh + 1) * LANE]    # (B,N,128)
            v_h = qkv[:, :, (2 * NUM_HEADS + hh) * LANE:(2 * NUM_HEADS + hh + 1) * LANE]
            # contraction over zero-padded lanes is a no-op numerically; MXU is idle anyway.
            s = jnp.einsum('bqd,bkd->bqk', q_h, k_h,
                           preferred_element_type=jnp.float32)          # (B, N, N)
            s = s - jnp.max(s, axis=-1, keepdims=True)
            p = jnp.exp(s)
            p = p * pl.reciprocal(jnp.sum(p, axis=-1, keepdims=True), approx=True)
            o_h = jnp.einsum('bqk,bkd->bqd', p, v_h,
                             preferred_element_type=jnp.float32)        # (B, N, 128)
            # per-head output projection (row-padded weight tile), accumulated -> no concat
            attn = attn + jnp.dot(o_h.reshape(BN, LANE),
                                  wproj_ref[d, hh * LANE:(hh + 1) * LANE, :],
                                  preferred_element_type=jnp.float32)
        x = x + gate_msa * attn

        # ---- MLP branch ----
        h2 = _layernorm(x) * (1.0 + scale_mlp) + shift_mlp
        h2 = _gelu_tanh(jnp.dot(h2, w1_ref[d], preferred_element_type=jnp.float32) + b1_ref[d])
        h2 = jnp.dot(h2, w2_ref[d], preferred_element_type=jnp.float32) + b2_ref[d]
        x = x + gate_mlp * h2

    # ---- final adaLN layer (shift tile 0, scale tile 1; output lane-padded -> unmasked store) ----
    mod = jnp.dot(silu_c, wfmod_ref[...], preferred_element_type=jnp.float32) + bfmod_ref[...]
    shift = mod[:, 0:D]
    scale = mod[:, LANE:LANE + D]
    hf = _layernorm(x) * (1.0 + scale) + shift
    out = jnp.dot(hf, wfout_ref[...], preferred_element_type=jnp.float32) + bfout_ref[...]
    o_ref[...] = out.reshape(B, N, OC_PAD)


# ----------------------------- pallas_call wrapper -----------------------------
def dit_base_forward(x, c, reference, params, t=None, height=None, width=None):
    """x: (B, N, HIDDEN), c: (B, N, HIDDEN), reference: (B, P, HIDDEN) -> (B, N, OC)."""
    B, N, D = x.shape
    assert N <= MAX_TOKENS, "Input sequence length exceeds the maximum length"
    pk = params["packed"]
    pos = params["pos_emb"][:, :N]                           # (1, N, D)

    operands = (x, c, pos,
                pk["w_mod"], pk["w_qkv"], pk["w_proj"], pk["w1"], pk["w2"],
                pk["b_mod"], pk["b_qkv"], pk["b_proj"], pk["b1"], pk["b2"],
                pk["wf_mod"], pk["bf_mod"], pk["wf_out"], pk["bf_out"])

    # Advisory cost estimate (kernel is launch/latency-bound; helps XLA schedule around it).
    BN = B * N
    flops = int(
        DEPTH * (2 * BN * D * MOD_W                           # adaLN modulation
                 + 2 * BN * D * QKV_W                         # qkv
                 + NUM_HEADS * (4 * B * N * N * LANE          # per-head s and o
                                + 2 * BN * LANE * D)          # per-head output projection
                 + 2 * BN * D * MLP_HIDDEN + 2 * BN * MLP_HIDDEN * D)
        + 2 * BN * D * FMOD_W + 2 * BN * D * OC_PAD)
    transcendentals = int(BN * D                              # silu
                          + DEPTH * (NUM_HEADS * B * N * N    # softmax exp
                                     + BN * MLP_HIDDEN        # gelu tanh
                                     + 2 * BN) + BN)          # layernorm rsqrt
    bytes_accessed = int(sum(int(np.prod(a.shape)) * a.dtype.itemsize for a in operands)
                         + B * N * OC_PAD * 4)

    vmem_spec = pl.BlockSpec(memory_space=pltpu.MemorySpace.VMEM)

    # Single grid-free invocation: whole batch per step (< 1 MiB resident, MXU idle; a batch/token
    # grid or megacore split would be pure fixed-cost overhead at these sizes — revisit on v7x
    # only once B*N grows enough to feed both TensorCores).
    out_padded = pl.pallas_call(
        fused_dit_kernel,
        out_shape=jax.ShapeDtypeStruct((B, N, OC_PAD), jnp.float32),
        in_specs=[vmem_spec] * len(operands),
        out_specs=vmem_spec,
        cost_estimate=pl.CostEstimate(flops=flops,
                                      transcendentals=transcendentals,
                                      bytes_accessed=bytes_accessed),
    )(*operands)

    return out_padded[:, :, :OC]                              # lazy slice only; no reshape needed


# ----------------------------- parameter init (deterministic) -----------------------------
def _w(key, shape, std=0.02):
    return (jax.random.normal(key, shape, dtype=jnp.float32) * std).astype(jnp.float32)


def init_params(key):
    keys = jax.random.split(key, 2 + DEPTH)
    params = {"pos_emb": _w(keys[0], (1, MAX_TOKENS, HIDDEN), std=0.02)}

    blocks = []
    for i in range(DEPTH):
        bk = jax.random.split(keys[2 + i], 12)
        blocks.append({
            "w_mod": _w(bk[0], (HIDDEN, 6 * HIDDEN)),
            "b_mod": _w(bk[1], (1, 6 * HIDDEN)),
            "w_qkv": _w(bk[2], (HIDDEN, 3 * HIDDEN)),
            "b_qkv": _w(bk[3], (1, 3 * HIDDEN)),
            "w_proj": _w(bk[4], (HIDDEN, HIDDEN)),
            "b_proj": _w(bk[5], (1, HIDDEN)),
            "w1": _w(bk[6], (HIDDEN, MLP_HIDDEN)),
            "b1": _w(bk[7], (1, MLP_HIDDEN)),
            "w2": _w(bk[8], (MLP_HIDDEN, HIDDEN)),
            "b2": _w(bk[9], (1, HIDDEN)),
        })
    params["blocks"] = blocks

    fk = jax.random.split(keys[1], 4)
    params["final"] = {
        "w_mod": _w(fk[0], (HIDDEN, 2 * HIDDEN)),
        "b_mod": _w(fk[1], (1, 2 * HIDDEN)),
        "w_out": _w(fk[2], (HIDDEN, OC)),
        "b_out": _w(fk[3], (1, OC)),
    }
    return params


# ----------------------------- one-time host-side packing (128-lane aligned) -----------------------------
def pack_params(params):
    """Depth-stack block weights with every in-kernel slice placed at a 128-lane tile boundary:
    adaLN chunks one tile each, qkv head-major one tile per head per q/k/v (q scaled by
    1/sqrt(head_dim)), projection rows padded per head, final layer shift/scale one tile each and
    the output projection lane-padded to OC_PAD columns.  Zero padding everywhere it is read."""
    D = HIDDEN
    scale = 1.0 / float(np.sqrt(HEAD_DIM))
    blocks = params["blocks"]

    w_mod = np.zeros((DEPTH, D, MOD_W), np.float32)
    b_mod = np.zeros((DEPTH, 1, MOD_W), np.float32)
    w_qkv = np.zeros((DEPTH, D, QKV_W), np.float32)
    b_qkv = np.zeros((DEPTH, 1, QKV_W), np.float32)
    w_proj = np.zeros((DEPTH, NUM_HEADS * LANE, D), np.float32)
    b_proj = np.zeros((DEPTH, 1, D), np.float32)
    w1 = np.zeros((DEPTH, D, MLP_HIDDEN), np.float32)
    b1 = np.zeros((DEPTH, 1, MLP_HIDDEN), np.float32)
    w2 = np.zeros((DEPTH, MLP_HIDDEN, D), np.float32)
    b2 = np.zeros((DEPTH, 1, D), np.float32)

    for i, blk in enumerate(blocks):
        wm, bm = np.asarray(blk["w_mod"]), np.asarray(blk["b_mod"])
        for k in range(6):
            w_mod[i, :, k * LANE:k * LANE + D] = wm[:, k * D:(k + 1) * D]
            b_mod[i, :, k * LANE:k * LANE + D] = bm[:, k * D:(k + 1) * D]

        wq, bq = np.asarray(blk["w_qkv"]), np.asarray(blk["b_qkv"])
        for h in range(NUM_HEADS):
            cq = slice(h * HEAD_DIM, (h + 1) * HEAD_DIM)
            ck = slice(D + h * HEAD_DIM, D + (h + 1) * HEAD_DIM)
            cv = slice(2 * D + h * HEAD_DIM, 2 * D + (h + 1) * HEAD_DIM)
            tq = h * LANE
            tk = (NUM_HEADS + h) * LANE
            tv = (2 * NUM_HEADS + h) * LANE
            w_qkv[i, :, tq:tq + HEAD_DIM] = wq[:, cq] * scale   # fold 1/sqrt(head_dim) into q
            b_qkv[i, :, tq:tq + HEAD_DIM] = bq[:, cq] * scale
            w_qkv[i, :, tk:tk + HEAD_DIM] = wq[:, ck]
            b_qkv[i, :, tk:tk + HEAD_DIM] = bq[:, ck]
            w_qkv[i, :, tv:tv + HEAD_DIM] = wq[:, cv]
            b_qkv[i, :, tv:tv + HEAD_DIM] = bq[:, cv]

        wp = np.asarray(blk["w_proj"])
        for h in range(NUM_HEADS):
            w_proj[i, h * LANE:h * LANE + HEAD_DIM, :] = wp[h * HEAD_DIM:(h + 1) * HEAD_DIM, :]
        b_proj[i] = np.asarray(blk["b_proj"])
        w1[i] = np.asarray(blk["w1"]); b1[i] = np.asarray(blk["b1"])
        w2[i] = np.asarray(blk["w2"]); b2[i] = np.asarray(blk["b2"])

    fin = params["final"]
    wfm, bfm = np.asarray(fin["w_mod"]), np.asarray(fin["b_mod"])
    wf_mod = np.zeros((D, FMOD_W), np.float32)
    bf_mod = np.zeros((1, FMOD_W), np.float32)
    wf_mod[:, 0:D] = wfm[:, 0:D]
    wf_mod[:, LANE:LANE + D] = wfm[:, D:2 * D]
    bf_mod[:, 0:D] = bfm[:, 0:D]
    bf_mod[:, LANE:LANE + D] = bfm[:, D:2 * D]
    wf_out = np.zeros((D, OC_PAD), np.float32); wf_out[:, :OC] = np.asarray(fin["w_out"])
    bf_out = np.zeros((1, OC_PAD), np.float32); bf_out[:, :OC] = np.asarray(fin["b_out"])

    packed = dict(w_mod=w_mod, w_qkv=w_qkv, w_proj=w_proj, w1=w1, w2=w2,
                  b_mod=b_mod, b_qkv=b_qkv, b_proj=b_proj, b1=b1, b2=b2,
                  wf_mod=wf_mod, bf_mod=bf_mod, wf_out=wf_out, bf_out=bf_out)
    return {k: jnp.asarray(v) for k, v in packed.items()}


# ----------------------------- pure-JAX reference (correctness check) -----------------------------
def _ref_forward(x, c, params):
    def ln(v):
        mu = jnp.mean(v, -1, keepdims=True)
        var = jnp.mean((v - mu) ** 2, -1, keepdims=True)
        return (v - mu) * jax.lax.rsqrt(var + LN_EPS)

    def silu(v):
        return v * jax.nn.sigmoid(v)

    def gelu(v):
        cst = 0.7978845608028654
        return 0.5 * v * (1.0 + jnp.tanh(cst * (v + 0.044715 * v ** 3)))

    B, N, D = x.shape
    x = x + params["pos_emb"][:, :N]
    for blk in params["blocks"]:
        mod = silu(c) @ blk["w_mod"] + blk["b_mod"]
        sh_m, sc_m, g_m, sh_p, sc_p, g_p = jnp.split(mod, 6, axis=-1)
        h = ln(x) * (1 + sc_m) + sh_m
        qkv = h @ blk["w_qkv"] + blk["b_qkv"]
        q, k, v = jnp.split(qkv, 3, axis=-1)
        q = q.reshape(B, N, NUM_HEADS, HEAD_DIM).transpose(0, 2, 1, 3)
        k = k.reshape(B, N, NUM_HEADS, HEAD_DIM).transpose(0, 2, 1, 3)
        v = v.reshape(B, N, NUM_HEADS, HEAD_DIM).transpose(0, 2, 1, 3)
        s = jnp.einsum('bhqd,bhkd->bhqk', q, k) / np.sqrt(HEAD_DIM)
        p = jax.nn.softmax(s, axis=-1)
        o = jnp.einsum('bhqk,bhkd->bhqd', p, v).transpose(0, 2, 1, 3).reshape(B, N, D)
        x = x + g_m * (o @ blk["w_proj"] + blk["b_proj"])
        h2 = ln(x) * (1 + sc_p) + sh_p
        h2 = gelu(h2 @ blk["w1"] + blk["b1"])
        x = x + g_p * (h2 @ blk["w2"] + blk["b2"])
    fin = params["final"]
    mod = silu(c) @ fin["w_mod"] + fin["b_mod"]
    shift, scale = jnp.split(mod, 2, axis=-1)
    return (ln(x) * (1 + scale) + shift) @ fin["w_out"] + fin["b_out"]


# ----------------------------- main -----------------------------
if __name__ == "__main__":
    key = jax.random.PRNGKey(0)
    kp, kx, kc, kr = jax.random.split(key, 4)

    params = init_params(kp)
    params["packed"] = pack_params(params)

    B = 2
    N = MAX_TOKENS  # 8 = n_frames(2) * n_token_per_frame(4)
    x = jax.random.normal(kx, (B, N, HIDDEN), dtype=jnp.float32)
    c = jax.random.normal(kc, (B, N, HIDDEN), dtype=jnp.float32)
    reference = jax.random.normal(kr, (B, NUM_PATCHES, HIDDEN), dtype=jnp.float32)

    out = dit_base_forward(x, c, reference, params)
    out = jax.block_until_ready(out)

    assert out.shape == (B, N, OC), out.shape
    assert out.dtype == jnp.float32
    assert bool(jnp.all(jnp.isfinite(out)))

    # numerical check against a pure-JAX reference (loose tol covers approx reciprocal)
    ref_out = _ref_forward(x, c, params)
    max_err = float(jnp.max(jnp.abs(out - ref_out)))
    assert bool(jnp.allclose(out, ref_out, rtol=1e-3, atol=1e-3)), max_err

    print("KERNEL_OK")
</pallas_src>

<mosaic_0001>
module attributes {stable_mosaic.version = 11 : i64} {
  func.func @fused_dit_kernel(%arg0: memref<2x8x32xf32, #tpu.memory_space<vmem>>, %arg1: memref<2x8x32xf32, #tpu.memory_space<vmem>>, %arg2: memref<1x8x32xf32, #tpu.memory_space<vmem>>, %arg3: memref<2x32x768xf32, #tpu.memory_space<vmem>>, %arg4: memref<2x32x1536xf32, #tpu.memory_space<vmem>>, %arg5: memref<2x512x32xf32, #tpu.memory_space<vmem>>, %arg6: memref<2x32x128xf32, #tpu.memory_space<vmem>>, %arg7: memref<2x128x32xf32, #tpu.memory_space<vmem>>, %arg8: memref<2x1x768xf32, #tpu.memory_space<vmem>>, %arg9: memref<2x1x1536xf32, #tpu.memory_space<vmem>>, %arg10: memref<2x1x32xf32, #tpu.memory_space<vmem>>, %arg11: memref<2x1x128xf32, #tpu.memory_space<vmem>>, %arg12: memref<2x1x32xf32, #tpu.memory_space<vmem>>, %arg13: memref<32x256xf32, #tpu.memory_space<vmem>>, %arg14: memref<1x256xf32, #tpu.memory_space<vmem>>, %arg15: memref<32x128xf32, #tpu.memory_space<vmem>>, %arg16: memref<1x128xf32, #tpu.memory_space<vmem>>, %arg17: memref<2x8x128xf32, #tpu.memory_space<vmem>>) attributes {dimension_semantics = [], scalar_prefetch = 0 : i64, scratch_operands = 0 : i64, tpu.core_type = #tpu.core_type<tc>} {
    %c0 = arith.constant 0 : index
    %c0_0 = arith.constant 0 : index
    %c0_1 = arith.constant 0 : index
    %0 = vector.load %arg0[%c0, %c0_0, %c0_1] : memref<2x8x32xf32, #tpu.memory_space<vmem>>, vector<2x8x32xf32>
    %c0_2 = arith.constant 0 : index
    %c0_3 = arith.constant 0 : index
    %c0_4 = arith.constant 0 : index
    %1 = vector.load %arg2[%c0_2, %c0_3, %c0_4] : memref<1x8x32xf32, #tpu.memory_space<vmem>>, vector<1x8x32xf32>
    %2 = vector.broadcast %1 : vector<1x8x32xf32> to vector<2x8x32xf32>
    %3 = arith.addf %0, %2 : vector<2x8x32xf32>
    %4 = vector.shape_cast %3 : vector<2x8x32xf32> to vector<16x32xf32>
    %c0_5 = arith.constant 0 : index
    %c0_6 = arith.constant 0 : index
    %c0_7 = arith.constant 0 : index
    %5 = vector.load %arg1[%c0_5, %c0_6, %c0_7] : memref<2x8x32xf32, #tpu.memory_space<vmem>>, vector<2x8x32xf32>
    %6 = vector.shape_cast %5 : vector<2x8x32xf32> to vector<16x32xf32>
    %cst = arith.constant 0.000000e+00 : f32
    %7 = vector.broadcast %cst : f32 to vector<16x32xf32>
    %8 = arith.subf %7, %6 : vector<16x32xf32>
    %9 = math.exp %8 : vector<16x32xf32>
    %cst_8 = arith.constant 1.000000e+00 : f32
    %10 = vector.broadcast %cst_8 : f32 to vector<16x32xf32>
    %11 = arith.addf %10, %9 : vector<16x32xf32>
    %cst_9 = arith.constant 1.000000e+00 : f32
    %12 = vector.broadcast %cst_9 : f32 to vector<16x32xf32>
    %13 = arith.divf %12, %11 : vector<16x32xf32>
    %14 = arith.mulf %6, %13 : vector<16x32xf32>
    %c0_10 = arith.constant 0 : index
    %c0_11 = arith.constant 0 : index
    %c0_12 = arith.constant 0 : index
    %15 = vector.load %arg3[%c0_10, %c0_11, %c0_12] : memref<2x32x768xf32, #tpu.memory_space<vmem>>, vector<1x32x768xf32>
    %16 = vector.shape_cast %15 : vector<1x32x768xf32> to vector<32x768xf32>
    %cst_13 = arith.constant dense<0.000000e+00> : vector<16x768xf32>
    %17 = tpu.matmul %14, %16, %cst_13 {dimension_numbers = #tpu.dot_dimension_numbers<[1], [0], [0], [1], [0, 0, 1, 1], [], []>} : vector<16x32xf32>, vector<32x768xf32>, vector<16x768xf32> -> vector<16x768xf32>
    %c0_14 = arith.constant 0 : index
    %c0_15 = arith.constant 0 : index
    %c0_16 = arith.constant 0 : index
    %18 = vector.load %arg8[%c0_14, %c0_15, %c0_16] : memref<2x1x768xf32, #tpu.memory_space<vmem>>, vector<1x1x768xf32>
    %19 = vector.shape_cast %18 : vector<1x1x768xf32> to vector<1x768xf32>
    %20 = vector.broadcast %19 : vector<1x768xf32> to vector<16x768xf32>
    %21 = arith.addf %17, %20 : vector<16x768xf32>
    %22 = vector.extract_strided_slice %21 {offsets = [0, 0], sizes = [16, 32], strides = [1, 1]} : vector<16x768xf32> to vector<16x32xf32>
    %23 = vector.extract_strided_slice %21 {offsets = [0, 128], sizes = [16, 32], strides = [1, 1]} : vector<16x768xf32> to vector<16x32xf32>
    %24 = vector.extract_strided_slice %21 {offsets = [0, 256], sizes = [16, 32], strides = [1, 1]} : vector<16x768xf32> to vector<16x32xf32>
    %25 = vector.extract_strided_slice %21 {offsets = [0, 384], sizes = [16, 32], strides = [1, 1]} : vector<16x768xf32> to vector<16x32xf32>
    %26 = vector.extract_strided_slice %21 {offsets = [0, 512], sizes = [16, 32], strides = [1, 1]} : vector<16x768xf32> to vector<16x32xf32>
    %27 = vector.extract_strided_slice %21 {offsets = [0, 640], sizes = [16, 32], strides = [1, 1]} : vector<16x768xf32> to vector<16x32xf32>
    %cst_17 = arith.constant dense<0.000000e+00> : vector<16xf32>
    %28 = vector.multi_reduction <add>, %4, %cst_17 [1] : vector<16x32xf32> to vector<16xf32>
    %29 = vector.shape_cast %28 : vector<16xf32> to vector<16x1xf32>
    %cst_18 = arith.constant 3.200000e+01 : f32
    %30 = vector.broadcast %cst_18 : f32 to vector<16x1xf32>
    %31 = arith.divf %29, %30 : vector<16x1xf32>
    %32 = vector.broadcast %31 : vector<16x1xf32> to vector<16x32xf32>
    %33 = arith.subf %4, %32 : vector<16x32xf32>
    %34 = arith.mulf %33, %33 : vector<16x32xf32>
    %cst_19 = arith.constant dense<0.000000e+00> : vector<16xf32>
    %35 = vector.multi_reduction <add>, %34, %cst_19 [1] : vector<16x32xf32> to vector<16xf32>
    %36 = vector.shape_cast %35 : vector<16xf32> to vector<16x1xf32>
    %cst_20 = arith.constant 3.200000e+01 : f32
    %37 = vector.broadcast %cst_20 : f32 to vector<16x1xf32>
    %38 = arith.divf %36, %37 : vector<16x1xf32>
    %cst_21 = arith.constant 9.99999997E-7 : f32
    %39 = vector.broadcast %cst_21 : f32 to vector<16x1xf32>
    %40 = arith.addf %38, %39 : vector<16x1xf32>
    %41 = math.rsqrt %40 : vector<16x1xf32>
    %42 = vector.broadcast %41 : vector<16x1xf32> to vector<16x32xf32>
    %43 = arith.mulf %33, %42 : vector<16x32xf32>
    %cst_22 = arith.constant 1.000000e+00 : f32
    %44 = vector.broadcast %cst_22 : f32 to vector<16x32xf32>
    %45 = arith.addf %44, %23 : vector<16x32xf32>
    %46 = arith.mulf %43, %45 : vector<16x32xf32>
    %47 = arith.addf %46, %22 : vector<16x32xf32>
    %c0_23 = arith.constant 0 : index
    %c0_24 = arith.constant 0 : index
    %c0_25 = arith.constant 0 : index
    %48 = vector.load %arg4[%c0_23, %c0_24, %c0_25] : memref<2x32x1536xf32, #tpu.memory_space<vmem>>, vector<1x32x1536xf32>
    %49 = vector.shape_cast %48 : vector<1x32x1536xf32> to vector<32x1536xf32>
    %cst_26 = arith.constant dense<0.000000e+00> : vector<16x1536xf32>
    %50 = tpu.matmul %47, %49, %cst_26 {dimension_numbers = #tpu.dot_dimension_numbers<[1], [0], [0], [1], [0, 0, 1, 1], [], []>} : vector<16x32xf32>, vector<32x1536xf32>, vector<16x1536xf32> -> vector<16x1536xf32>
    %c0_27 = arith.constant 0 : index
    %c0_28 = arith.constant 0 : index
    %c0_29 = arith.constant 0 : index
    %51 = vector.load %arg9[%c0_27, %c0_28, %c0_29] : memref<2x1x1536xf32, #tpu.memory_space<vmem>>, vector<1x1x1536xf32>
    %52 = vector.shape_cast %51 : vector<1x1x1536xf32> to vector<1x1536xf32>
    %53 = vector.broadcast %52 : vector<1x1536xf32> to vector<16x1536xf32>
    %54 = arith.addf %50, %53 : vector<16x1536xf32>
    %55 = vector.shape_cast %54 : vector<16x1536xf32> to vector<2x8x1536xf32>
    %c0_30 = arith.constant 0 : index
    %c0_31 = arith.constant 0 : index
    %c0_32 = arith.constant 0 : index
    %56 = vector.load %arg10[%c0_30, %c0_31, %c0_32] : memref<2x1x32xf32, #tpu.memory_space<vmem>>, vector<1x1x32xf32>
    %57 = vector.shape_cast %56 : vector<1x1x32xf32> to vector<1x32xf32>
    %58 = vector.shape_cast %57 : vector<1x32xf32> to vector<1x32xf32>
    %59 = vector.broadcast %58 : vector<1x32xf32> to vector<16x32xf32>
    %60 = vector.extract_strided_slice %55 {offsets = [0, 0, 0], sizes = [2, 8, 128], strides = [1, 1, 1]} : vector<2x8x1536xf32> to vector<2x8x128xf32>
    %61 = vector.extract_strided_slice %55 {offsets = [0, 0, 512], sizes = [2, 8, 128], strides = [1, 1, 1]} : vector<2x8x1536xf32> to vector<2x8x128xf32>
    %62 = vector.extract_strided_slice %55 {offsets = [0, 0, 1024], sizes = [2, 8, 128], strides = [1, 1, 1]} : vector<2x8x1536xf32> to vector<2x8x128xf32>
    "tpu.trace_start"() <{level = 10 : i32, message = "bqd,bkd->bqk"}> : () -> ()
    %cst_33 = arith.constant dense<0.000000e+00> : vector<2x8x8xf32>
    %63 = tpu.matmul %60, %61, %cst_33 {dimension_numbers = #tpu.dot_dimension_numbers<[2], [2], [1], [1], [0, 0, 0, 1, 1, 1], [0], [0]>} : vector<2x8x128xf32>, vector<2x8x128xf32>, vector<2x8x8xf32> -> vector<2x8x8xf32>
    "tpu.trace_stop"() : () -> ()
    %cst_34 = arith.constant dense<0xFF800000> : vector<2x8xf32>
    %64 = vector.multi_reduction <maximumf>, %63, %cst_34 [2] : vector<2x8x8xf32> to vector<2x8xf32>
    %65 = vector.shape_cast %64 : vector<2x8xf32> to vector<2x8x1xf32>
    %66 = vector.broadcast %65 : vector<2x8x1xf32> to vector<2x8x8xf32>
    %67 = arith.subf %63, %66 : vector<2x8x8xf32>
    %68 = math.exp %67 : vector<2x8x8xf32>
    %cst_35 = arith.constant dense<0.000000e+00> : vector<2x8xf32>
    %69 = vector.multi_reduction <add>, %68, %cst_35 [2] : vector<2x8x8xf32> to vector<2x8xf32>
    %70 = vector.shape_cast %69 : vector<2x8xf32> to vector<2x8x1xf32>
    %71 = tpu.reciprocal %70 {approx = true} : vector<2x8x1xf32> -> vector<2x8x1xf32>
    %72 = vector.broadcast %71 : vector<2x8x1xf32> to vector<2x8x8xf32>
    %73 = arith.mulf %68, %72 : vector<2x8x8xf32>
    "tpu.trace_start"() <{level = 10 : i32, message = "bqk,bkd->bqd"}> : () -> ()
    %cst_36 = arith.constant dense<0.000000e+00> : vector<2x8x128xf32>
    %74 = tpu.matmul %73, %62, %cst_36 {dimension_numbers = #tpu.dot_dimension_numbers<[2], [1], [1], [2], [0, 0, 0, 1, 1, 2], [0], [0]>} : vector<2x8x8xf32>, vector<2x8x128xf32>, vector<2x8x128xf32> -> vector<2x8x128xf32>
    "tpu.trace_stop"() : () -> ()
    %75 = vector.shape_cast %74 : vector<2x8x128xf32> to vector<16x128xf32>
    %c0_37 = arith.constant 0 : index
    %c0_38 = arith.constant 0 : index
    %c0_39 = arith.constant 0 : index
    %76 = vector.load %arg5[%c0_37, %c0_38, %c0_39] : memref<2x512x32xf32, #tpu.memory_space<vmem>>, vector<1x128x32xf32>
    %77 = vector.shape_cast %76 : vector<1x128x32xf32> to vector<128x32xf32>
    %cst_40 = arith.constant dense<0.000000e+00> : vector<16x32xf32>
    %78 = tpu.matmul %75, %77, %cst_40 {dimension_numbers = #tpu.dot_dimension_numbers<[1], [0], [0], [1], [0, 0, 1, 1], [], []>} : vector<16x128xf32>, vector<128x32xf32>, vector<16x32xf32> -> vector<16x32xf32>
    %79 = arith.addf %59, %78 : vector<16x32xf32>
    %80 = vector.extract_strided_slice %55 {offsets = [0, 0, 128], sizes = [2, 8, 128], strides = [1, 1, 1]} : vector<2x8x1536xf32> to vector<2x8x128xf32>
    %81 = vector.extract_strided_slice %55 {offsets = [0, 0, 640], sizes = [2, 8, 128], strides = [1, 1, 1]} : vector<2x8x1536xf32> to vector<2x8x128xf32>
    %82 = vector.extract_strided_slice %55 {offsets = [0, 0, 1152], sizes = [2, 8, 128], strides = [1, 1, 1]} : vector<2x8x1536xf32> to vector<2x8x128xf32>
    "tpu.trace_start"() <{level = 10 : i32, message = "bqd,bkd->bqk"}> : () -> ()
    %cst_41 = arith.constant dense<0.000000e+00> : vector<2x8x8xf32>
    %83 = tpu.matmul %80, %81, %cst_41 {dimension_numbers = #tpu.dot_dimension_numbers<[2], [2], [1], [1], [0, 0, 0, 1, 1, 1], [0], [0]>} : vector<2x8x128xf32>, vector<2x8x128xf32>, vector<2x8x8xf32> -> vector<2x8x8xf32>
    "tpu.trace_stop"() : () -> ()
    %cst_42 = arith.constant dense<0xFF800000> : vector<2x8xf32>
    %84 = vector.multi_reduction <maximumf>, %83, %cst_42 [2] : vector<2x8x8xf32> to vector<2x8xf32>
    %85 = vector.shape_cast %84 : vector<2x8xf32> to vector<2x8x1xf32>
    %86 = vector.broadcast %85 : vector<2x8x1xf32> to vector<2x8x8xf32>
    %87 = arith.subf %83, %86 : vector<2x8x8xf32>
    %88 = math.exp %87 : vector<2x8x8xf32>
    %cst_43 = arith.constant dense<0.000000e+00> : vector<2x8xf32>
    %89 = vector.multi_reduction <add>, %88, %cst_43 [2] : vector<2x8x8xf32> to vector<2x8xf32>
    %90 = vector.shape_cast %89 : vector<2x8xf32> to vector<2x8x1xf32>
    %91 = tpu.reciprocal %90 {approx = true} : vector<2x8x1xf32> -> vector<2x8x1xf32>
    %92 = vector.broadcast %91 : vector<2x8x1xf32> to vector<2x8x8xf32>
    %93 = arith.mulf %88, %92 : vector<2x8x8xf32>
    "tpu.trace_start"() <{level = 10 : i32, message = "bqk,bkd->bqd"}> : () -> ()
    %cst_44 = arith.constant dense<0.000000e+00> : vector<2x8x128xf32>
    %94 = tpu.matmul %93, %82, %cst_44 {dimension_numbers = #tpu.dot_dimension_numbers<[2], [1], [1], [2], [0, 0, 0, 1, 1, 2], [0], [0]>} : vector<2x8x8xf32>, vector<2x8x128xf32>, vector<2x8x128xf32> -> vector<2x8x128xf32>
    "tpu.trace_stop"() : () -> ()
    %95 = vector.shape_cast %94 : vector<2x8x128xf32> to vector<16x128xf32>
    %c0_45 = arith.constant 0 : index
    %c128 = arith.constant 128 : index
    %c0_46 = arith.constant 0 : index
    %96 = vector.load %arg5[%c0_45, %c128, %c0_46] : memref<2x512x32xf32, #tpu.memory_space<vmem>>, vector<1x128x32xf32>
    %97 = vector.shape_cast %96 : vector<1x128x32xf32> to vector<128x32xf32>
    %cst_47 = arith.constant dense<0.000000e+00> : vector<16x32xf32>
    %98 = tpu.matmul %95, %97, %cst_47 {dimension_numbers = #tpu.dot_dimension_numbers<[1], [0], [0], [1], [0, 0, 1, 1], [], []>} : vector<16x128xf32>, vector<128x32xf32>, vector<16x32xf32> -> vector<16x32xf32>
    %99 = arith.addf %79, %98 : vector<16x32xf32>
    %100 = vector.extract_strided_slice %55 {offsets = [0, 0, 256], sizes = [2, 8, 128], strides = [1, 1, 1]} : vector<2x8x1536xf32> to vector<2x8x128xf32>
    %101 = vector.extract_strided_slice %55 {offsets = [0, 0, 768], sizes = [2, 8, 128], strides = [1, 1, 1]} : vector<2x8x1536xf32> to vector<2x8x128xf32>
    %102 = vector.extract_strided_slice %55 {offsets = [0, 0, 1280], sizes = [2, 8, 128], strides = [1, 1, 1]} : vector<2x8x1536xf32> to vector<2x8x128xf32>
    "tpu.trace_start"() <{level = 10 : i32, message = "bqd,bkd->bqk"}> : () -> ()
    %cst_48 = arith.constant dense<0.000000e+00> : vector<2x8x8xf32>
    %103 = tpu.matmul %100, %101, %cst_48 {dimension_numbers = #tpu.dot_dimension_numbers<[2], [2], [1], [1], [0, 0, 0, 1, 1, 1], [0], [0]>} : vector<2x8x128xf32>, vector<2x8x128xf32>, vector<2x8x8xf32> -> vector<2x8x8xf32>
    "tpu.trace_stop"() : () -> ()
    %cst_49 = arith.constant dense<0xFF800000> : vector<2x8xf32>
    %104 = vector.multi_reduction <maximumf>, %103, %cst_49 [2] : vector<2x8x8xf32> to vector<2x8xf32>
    %105 = vector.shape_cast %104 : vector<2x8xf32> to vector<2x8x1xf32>
    %106 = vector.broadcast %105 : vector<2x8x1xf32> to vector<2x8x8xf32>
    %107 = arith.subf %103, %106 : vector<2x8x8xf32>
    %108 = math.exp %107 : vector<2x8x8xf32>
    %cst_50 = arith.constant dense<0.000000e+00> : vector<2x8xf32>
    %109 = vector.multi_reduction <add>, %108, %cst_50 [2] : vector<2x8x8xf32> to vector<2x8xf32>
    %110 = vector.shape_cast %109 : vector<2x8xf32> to vector<2x8x1xf32>
    %111 = tpu.reciprocal %110 {approx = true} : vector<2x8x1xf32> -> vector<2x8x1xf32>
    %112 = vector.broadcast %111 : vector<2x8x1xf32> to vector<2x8x8xf32>
    %113 = arith.mulf %108, %112 : vector<2x8x8xf32>
    "tpu.trace_start"() <{level = 10 : i32, message = "bqk,bkd->bqd"}> : () -> ()
    %cst_51 = arith.constant dense<0.000000e+00> : vector<2x8x128xf32>
    %114 = tpu.matmul %113, %102, %cst_51 {dimension_numbers = #tpu.dot_dimension_numbers<[2], [1], [1], [2], [0, 0, 0, 1, 1, 2], [0], [0]>} : vector<2x8x8xf32>, vector<2x8x128xf32>, vector<2x8x128xf32> -> vector<2x8x128xf32>
    "tpu.trace_stop"() : () -> ()
    %115 = vector.shape_cast %114 : vector<2x8x128xf32> to vector<16x128xf32>
    %c0_52 = arith.constant 0 : index
    %c256 = arith.constant 256 : index
    %c0_53 = arith.constant 0 : index
    %116 = vector.load %arg5[%c0_52, %c256, %c0_53] : memref<2x512x32xf32, #tpu.memory_space<vmem>>, vector<1x128x32xf32>
    %117 = vector.shape_cast %116 : vector<1x128x32xf32> to vector<128x32xf32>
    %cst_54 = arith.constant dense<0.000000e+00> : vector<16x32xf32>
    %118 = tpu.matmul %115, %117, %cst_54 {dimension_numbers = #tpu.dot_dimension_numbers<[1], [0], [0], [1], [0, 0, 1, 1], [], []>} : vector<16x128xf32>, vector<128x32xf32>, vector<16x32xf32> -> vector<16x32xf32>
    %119 = arith.addf %99, %118 : vector<16x32xf32>
    %120 = vector.extract_strided_slice %55 {offsets = [0, 0, 384], sizes = [2, 8, 128], strides = [1, 1, 1]} : vector<2x8x1536xf32> to vector<2x8x128xf32>
    %121 = vector.extract_strided_slice %55 {offsets = [0, 0, 896], sizes = [2, 8, 128], strides = [1, 1, 1]} : vector<2x8x1536xf32> to vector<2x8x128xf32>
    %122 = vector.extract_strided_slice %55 {offsets = [0, 0, 1408], sizes = [2, 8, 128], strides = [1, 1, 1]} : vector<2x8x1536xf32> to vector<2x8x128xf32>
    "tpu.trace_start"() <{level = 10 : i32, message = "bqd,bkd->bqk"}> : () -> ()
    %cst_55 = arith.constant dense<0.000000e+00> : vector<2x8x8xf32>
    %123 = tpu.matmul %120, %121, %cst_55 {dimension_numbers = #tpu.dot_dimension_numbers<[2], [2], [1], [1], [0, 0, 0, 1, 1, 1], [0], [0]>} : vector<2x8x128xf32>, vector<2x8x128xf32>, vector<2x8x8xf32> -> vector<2x8x8xf32>
    "tpu.trace_stop"() : () -> ()
    %cst_56 = arith.constant dense<0xFF800000> : vector<2x8xf32>
    %124 = vector.multi_reduction <maximumf>, %123, %cst_56 [2] : vector<2x8x8xf32> to vector<2x8xf32>
    %125 = vector.shape_cast %124 : vector<2x8xf32> to vector<2x8x1xf32>
    %126 = vector.broadcast %125 : vector<2x8x1xf32> to vector<2x8x8xf32>
    %127 = arith.subf %123, %126 : vector<2x8x8xf32>
    %128 = math.exp %127 : vector<2x8x8xf32>
    %cst_57 = arith.constant dense<0.000000e+00> : vector<2x8xf32>
    %129 = vector.multi_reduction <add>, %128, %cst_57 [2] : vector<2x8x8xf32> to vector<2x8xf32>
    %130 = vector.shape_cast %129 : vector<2x8xf32> to vector<2x8x1xf32>
    %131 = tpu.reciprocal %130 {approx = true} : vector<2x8x1xf32> -> vector<2x8x1xf32>
    %132 = vector.broadcast %131 : vector<2x8x1xf32> to vector<2x8x8xf32>
    %133 = arith.mulf %128, %132 : vector<2x8x8xf32>
    "tpu.trace_start"() <{level = 10 : i32, message = "bqk,bkd->bqd"}> : () -> ()
    %cst_58 = arith.constant dense<0.000000e+00> : vector<2x8x128xf32>
    %134 = tpu.matmul %133, %122, %cst_58 {dimension_numbers = #tpu.dot_dimension_numbers<[2], [1], [1], [2], [0, 0, 0, 1, 1, 2], [0], [0]>} : vector<2x8x8xf32>, vector<2x8x128xf32>, vector<2x8x128xf32> -> vector<2x8x128xf32>
    "tpu.trace_stop"() : () -> ()
    %135 = vector.shape_cast %134 : vector<2x8x128xf32> to vector<16x128xf32>
    %c0_59 = arith.constant 0 : index
    %c384 = arith.constant 384 : index
    %c0_60 = arith.constant 0 : index
    %136 = vector.load %arg5[%c0_59, %c384, %c0_60] : memref<2x512x32xf32, #tpu.memory_space<vmem>>, vector<1x128x32xf32>
    %137 = vector.shape_cast %136 : vector<1x128x32xf32> to vector<128x32xf32>
    %cst_61 = arith.constant dense<0.000000e+00> : vector<16x32xf32>
    %138 = tpu.matmul %135, %137, %cst_61 {dimension_numbers = #tpu.dot_dimension_numbers<[1], [0], [0], [1], [0, 0, 1, 1], [], []>} : vector<16x128xf32>, vector<128x32xf32>, vector<16x32xf32> -> vector<16x32xf32>
    %139 = arith.addf %119, %138 : vector<16x32xf32>
    %140 = arith.mulf %24, %139 : vector<16x32xf32>
    %141 = arith.addf %4, %140 : vector<16x32xf32>
    %cst_62 = arith.constant dense<0.000000e+00> : vector<16xf32>
    %142 = vector.multi_reduction <add>, %141, %cst_62 [1] : vector<16x32xf32> to vector<16xf32>
    %143 = vector.shape_cast %142 : vector<16xf32> to vector<16x1xf32>
    %cst_63 = arith.constant 3.200000e+01 : f32
    %144 = vector.broadcast %cst_63 : f32 to vector<16x1xf32>
    %145 = arith.divf %143, %144 : vector<16x1xf32>
    %146 = vector.broadcast %145 : vector<16x1xf32> to vector<16x32xf32>
    %147 = arith.subf %141, %146 : vector<16x32xf32>
    %148 = arith.mulf %147, %147 : vector<16x32xf32>
    %cst_64 = arith.constant dense<0.000000e+00> : vector<16xf32>
    %149 = vector.multi_reduction <add>, %148, %cst_64 [1] : vector<16x32xf32> to vector<16xf32>
    %150 = vector.shape_cast %149 : vector<16xf32> to vector<16x1xf32>
    %cst_65 = arith.constant 3.200000e+01 : f32
    %151 = vector.broadcast %cst_65 : f32 to vector<16x1xf32>
    %152 = arith.divf %150, %151 : vector<16x1xf32>
    %cst_66 = arith.constant 9.99999997E-7 : f32
    %153 = vector.broadcast %cst_66 : f32 to vector<16x1xf32>
    %154 = arith.addf %152, %153 : vector<16x1xf32>
    %155 = math.rsqrt %154 : vector<16x1xf32>
    %156 = vector.broadcast %155 : vector<16x1xf32> to vector<16x32xf32>
    %157 = arith.mulf %147, %156 : vector<16x32xf32>
    %cst_67 = arith.constant 1.000000e+00 : f32
    %158 = vector.broadcast %cst_67 : f32 to vector<16x32xf32>
    %159 = arith.addf %158, %26 : vector<16x32xf32>
    %160 = arith.mulf %157, %159 : vector<16x32xf32>
    %161 = arith.addf %160, %25 : vector<16x32xf32>
    %c0_68 = arith.constant 0 : index
    %c0_69 = arith.constant 0 : index
    %c0_70 = arith.constant 0 : index
    %162 = vector.load %arg6[%c0_68, %c0_69, %c0_70] : memref<2x32x128xf32, #tpu.memory_space<vmem>>, vector<1x32x128xf32>
    %163 = vector.shape_cast %162 : vector<1x32x128xf32> to vector<32x128xf32>
    %cst_71 = arith.constant dense<0.000000e+00> : vector<16x128xf32>
    %164 = tpu.matmul %161, %163, %cst_71 {dimension_numbers = #tpu.dot_dimension_numbers<[1], [0], [0], [1], [0, 0, 1, 1], [], []>} : vector<16x32xf32>, vector<32x128xf32>, vector<16x128xf32> -> vector<16x128xf32>
    %c0_72 = arith.constant 0 : index
    %c0_73 = arith.constant 0 : index
    %c0_74 = arith.constant 0 : index
    %165 = vector.load %arg11[%c0_72, %c0_73, %c0_74] : memref<2x1x128xf32, #tpu.memory_space<vmem>>, vector<1x1x128xf32>
    %166 = vector.shape_cast %165 : vector<1x1x128xf32> to vector<1x128xf32>
    %167 = vector.broadcast %166 : vector<1x128xf32> to vector<16x128xf32>
    %168 = arith.addf %164, %167 : vector<16x128xf32>
    %cst_75 = arith.constant 5.000000e-01 : f32
    %169 = vector.broadcast %cst_75 : f32 to vector<16x128xf32>
    %170 = arith.mulf %169, %168 : vector<16x128xf32>
    %cst_76 = arith.constant 4.471500e-02 : f32
    %171 = vector.broadcast %cst_76 : f32 to vector<16x128xf32>
    %172 = arith.mulf %171, %168 : vector<16x128xf32>
    %173 = arith.mulf %172, %168 : vector<16x128xf32>
    %174 = arith.mulf %173, %168 : vector<16x128xf32>
    %175 = arith.addf %168, %174 : vector<16x128xf32>
    %cst_77 = arith.constant 0.797884583 : f32
    %176 = vector.broadcast %cst_77 : f32 to vector<16x128xf32>
    %177 = arith.mulf %176, %175 : vector<16x128xf32>
    %178 = math.tanh %177 : vector<16x128xf32>
    %cst_78 = arith.constant 1.000000e+00 : f32
    %179 = vector.broadcast %cst_78 : f32 to vector<16x128xf32>
    %180 = arith.addf %179, %178 : vector<16x128xf32>
    %181 = arith.mulf %170, %180 : vector<16x128xf32>
    %c0_79 = arith.constant 0 : index
    %c0_80 = arith.constant 0 : index
    %c0_81 = arith.constant 0 : index
    %182 = vector.load %arg7[%c0_79, %c0_80, %c0_81] : memref<2x128x32xf32, #tpu.memory_space<vmem>>, vector<1x128x32xf32>
    %183 = vector.shape_cast %182 : vector<1x128x32xf32> to vector<128x32xf32>
    %cst_82 = arith.constant dense<0.000000e+00> : vector<16x32xf32>
    %184 = tpu.matmul %181, %183, %cst_82 {dimension_numbers = #tpu.dot_dimension_numbers<[1], [0], [0], [1], [0, 0, 1, 1], [], []>} : vector<16x128xf32>, vector<128x32xf32>, vector<16x32xf32> -> vector<16x32xf32>
    %c0_83 = arith.constant 0 : index
    %c0_84 = arith.constant 0 : index
    %c0_85 = arith.constant 0 : index
    %185 = vector.load %arg12[%c0_83, %c0_84, %c0_85] : memref<2x1x32xf32, #tpu.memory_space<vmem>>, vector<1x1x32xf32>
    %186 = vector.shape_cast %185 : vector<1x1x32xf32> to vector<1x32xf32>
    %187 = vector.broadcast %186 : vector<1x32xf32> to vector<16x32xf32>
    %188 = arith.addf %184, %187 : vector<16x32xf32>
    %189 = arith.mulf %27, %188 : vector<16x32xf32>
    %190 = arith.addf %141, %189 : vector<16x32xf32>
    %c1 = arith.constant 1 : index
    %c0_86 = arith.constant 0 : index
    %c0_87 = arith.constant 0 : index
    %191 = vector.load %arg3[%c1, %c0_86, %c0_87] : memref<2x32x768xf32, #tpu.memory_space<vmem>>, vector<1x32x768xf32>
    %192 = vector.shape_cast %191 : vector<1x32x768xf32> to vector<32x768xf32>
    %cst_88 = arith.constant dense<0.000000e+00> : vector<16x768xf32>
    %193 = tpu.matmul %14, %192, %cst_88 {dimension_numbers = #tpu.dot_dimension_numbers<[1], [0], [0], [1], [0, 0, 1, 1], [], []>} : vector<16x32xf32>, vector<32x768xf32>, vector<16x768xf32> -> vector<16x768xf32>
    %c1_89 = arith.constant 1 : index
    %c0_90 = arith.constant 0 : index
    %c0_91 = arith.constant 0 : index
    %194 = vector.load %arg8[%c1_89, %c0_90, %c0_91] : memref<2x1x768xf32, #tpu.memory_space<vmem>>, vector<1x1x768xf32>
    %195 = vector.shape_cast %194 : vector<1x1x768xf32> to vector<1x768xf32>
    %196 = vector.broadcast %195 : vector<1x768xf32> to vector<16x768xf32>
    %197 = arith.addf %193, %196 : vector<16x768xf32>
    %198 = vector.extract_strided_slice %197 {offsets = [0, 0], sizes = [16, 32], strides = [1, 1]} : vector<16x768xf32> to vector<16x32xf32>
    %199 = vector.extract_strided_slice %197 {offsets = [0, 128], sizes = [16, 32], strides = [1, 1]} : vector<16x768xf32> to vector<16x32xf32>
    %200 = vector.extract_strided_slice %197 {offsets = [0, 256], sizes = [16, 32], strides = [1, 1]} : vector<16x768xf32> to vector<16x32xf32>
    %201 = vector.extract_strided_slice %197 {offsets = [0, 384], sizes = [16, 32], strides = [1, 1]} : vector<16x768xf32> to vector<16x32xf32>
    %202 = vector.extract_strided_slice %197 {offsets = [0, 512], sizes = [16, 32], strides = [1, 1]} : vector<16x768xf32> to vector<16x32xf32>
    %203 = vector.extract_strided_slice %197 {offsets = [0, 640], sizes = [16, 32], strides = [1, 1]} : vector<16x768xf32> to vector<16x32xf32>
    %cst_92 = arith.constant dense<0.000000e+00> : vector<16xf32>
    %204 = vector.multi_reduction <add>, %190, %cst_92 [1] : vector<16x32xf32> to vector<16xf32>
    %205 = vector.shape_cast %204 : vector<16xf32> to vector<16x1xf32>
    %cst_93 = arith.constant 3.200000e+01 : f32
    %206 = vector.broadcast %cst_93 : f32 to vector<16x1xf32>
    %207 = arith.divf %205, %206 : vector<16x1xf32>
    %208 = vector.broadcast %207 : vector<16x1xf32> to vector<16x32xf32>
    %209 = arith.subf %190, %208 : vector<16x32xf32>
    %210 = arith.mulf %209, %209 : vector<16x32xf32>
    %cst_94 = arith.constant dense<0.000000e+00> : vector<16xf32>
    %211 = vector.multi_reduction <add>, %210, %cst_94 [1] : vector<16x32xf32> to vector<16xf32>
    %212 = vector.shape_cast %211 : vector<16xf32> to vector<16x1xf32>
    %cst_95 = arith.constant 3.200000e+01 : f32
    %213 = vector.broadcast %cst_95 : f32 to vector<16x1xf32>
    %214 = arith.divf %212, %213 : vector<16x1xf32>
    %cst_96 = arith.constant 9.99999997E-7 : f32
    %215 = vector.broadcast %cst_96 : f32 to vector<16x1xf32>
    %216 = arith.addf %214, %215 : vector<16x1xf32>
    %217 = math.rsqrt %216 : vector<16x1xf32>
    %218 = vector.broadcast %217 : vector<16x1xf32> to vector<16x32xf32>
    %219 = arith.mulf %209, %218 : vector<16x32xf32>
    %cst_97 = arith.constant 1.000000e+00 : f32
    %220 = vector.broadcast %cst_97 : f32 to vector<16x32xf32>
    %221 = arith.addf %220, %199 : vector<16x32xf32>
    %222 = arith.mulf %219, %221 : vector<16x32xf32>
    %223 = arith.addf %222, %198 : vector<16x32xf32>
    %c1_98 = arith.constant 1 : index
    %c0_99 = arith.constant 0 : index
    %c0_100 = arith.constant 0 : index
    %224 = vector.load %arg4[%c1_98, %c0_99, %c0_100] : memref<2x32x1536xf32, #tpu.memory_space<vmem>>, vector<1x32x1536xf32>
    %225 = vector.shape_cast %224 : vector<1x32x1536xf32> to vector<32x1536xf32>
    %cst_101 = arith.constant dense<0.000000e+00> : vector<16x1536xf32>
    %226 = tpu.matmul %223, %225, %cst_101 {dimension_numbers = #tpu.dot_dimension_numbers<[1], [0], [0], [1], [0, 0, 1, 1], [], []>} : vector<16x32xf32>, vector<32x1536xf32>, vector<16x1536xf32> -> vector<16x1536xf32>
    %c1_102 = arith.constant 1 : index
    %c0_103 = arith.constant 0 : index
    %c0_104 = arith.constant 0 : index
    %227 = vector.load %arg9[%c1_102, %c0_103, %c0_104] : memref<2x1x1536xf32, #tpu.memory_space<vmem>>, vector<1x1x1536xf32>
    %228 = vector.shape_cast %227 : vector<1x1x1536xf32> to vector<1x1536xf32>
    %229 = vector.broadcast %228 : vector<1x1536xf32> to vector<16x1536xf32>
    %230 = arith.addf %226, %229 : vector<16x1536xf32>
    %231 = vector.shape_cast %230 : vector<16x1536xf32> to vector<2x8x1536xf32>
    %c1_105 = arith.constant 1 : index
    %c0_106 = arith.constant 0 : index
    %c0_107 = arith.constant 0 : index
    %232 = vector.load %arg10[%c1_105, %c0_106, %c0_107] : memref<2x1x32xf32, #tpu.memory_space<vmem>>, vector<1x1x32xf32>
    %233 = vector.shape_cast %232 : vector<1x1x32xf32> to vector<1x32xf32>
    %234 = vector.shape_cast %233 : vector<1x32xf32> to vector<1x32xf32>
    %235 = vector.broadcast %234 : vector<1x32xf32> to vector<16x32xf32>
    %236 = vector.extract_strided_slice %231 {offsets = [0, 0, 0], sizes = [2, 8, 128], strides = [1, 1, 1]} : vector<2x8x1536xf32> to vector<2x8x128xf32>
    %237 = vector.extract_strided_slice %231 {offsets = [0, 0, 512], sizes = [2, 8, 128], strides = [1, 1, 1]} : vector<2x8x1536xf32> to vector<2x8x128xf32>
    %238 = vector.extract_strided_slice %231 {offsets = [0, 0, 1024], sizes = [2, 8, 128], strides = [1, 1, 1]} : vector<2x8x1536xf32> to vector<2x8x128xf32>
    "tpu.trace_start"() <{level = 10 : i32, message = "bqd,bkd->bqk"}> : () -> ()
    %cst_108 = arith.constant dense<0.000000e+00> : vector<2x8x8xf32>
    %239 = tpu.matmul %236, %237, %cst_108 {dimension_numbers = #tpu.dot_dimension_numbers<[2], [2], [1], [1], [0, 0, 0, 1, 1, 1], [0], [0]>} : vector<2x8x128xf32>, vector<2x8x128xf32>, vector<2x8x8xf32> -> vector<2x8x8xf32>
    "tpu.trace_stop"() : () -> ()
    %cst_109 = arith.constant dense<0xFF800000> : vector<2x8xf32>
    %240 = vector.multi_reduction <maximumf>, %239, %cst_109 [2] : vector<2x8x8xf32> to vector<2x8xf32>
    %241 = vector.shape_cast %240 : vector<2x8xf32> to vector<2x8x1xf32>
    %242 = vector.broadcast %241 : vector<2x8x1xf32> to vector<2x8x8xf32>
    %243 = arith.subf %239, %242 : vector<2x8x8xf32>
    %244 = math.exp %243 : vector<2x8x8xf32>
    %cst_110 = arith.constant dense<0.000000e+00> : vector<2x8xf32>
    %245 = vector.multi_reduction <add>, %244, %cst_110 [2] : vector<2x8x8xf32> to vector<2x8xf32>
    %246 = vector.shape_cast %245 : vector<2x8xf32> to vector<2x8x1xf32>
    %247 = tpu.reciprocal %246 {approx = true} : vector<2x8x1xf32> -> vector<2x8x1xf32>
    %248 = vector.broadcast %247 : vector<2x8x1xf32> to vector<2x8x8xf32>
    %249 = arith.mulf %244, %248 : vector<2x8x8xf32>
    "tpu.trace_start"() <{level = 10 : i32, message = "bqk,bkd->bqd"}> : () -> ()
    %cst_111 = arith.constant dense<0.000000e+00> : vector<2x8x128xf32>
    %250 = tpu.matmul %249, %238, %cst_111 {dimension_numbers = #tpu.dot_dimension_numbers<[2], [1], [1], [2], [0, 0, 0, 1, 1, 2], [0], [0]>} : vector<2x8x8xf32>, vector<2x8x128xf32>, vector<2x8x128xf32> -> vector<2x8x128xf32>
    "tpu.trace_stop"() : () -> ()
    %251 = vector.shape_cast %250 : vector<2x8x128xf32> to vector<16x128xf32>
    %c1_112 = arith.constant 1 : index
    %c0_113 = arith.constant 0 : index
    %c0_114 = arith.constant 0 : index
    %252 = vector.load %arg5[%c1_112, %c0_113, %c0_114] : memref<2x512x32xf32, #tpu.memory_space<vmem>>, vector<1x128x32xf32>
    %253 = vector.shape_cast %252 : vector<1x128x32xf32> to vector<128x32xf32>
    %cst_115 = arith.constant dense<0.000000e+00> : vector<16x32xf32>
    %254 = tpu.matmul %251, %253, %cst_115 {dimension_numbers = #tpu.dot_dimension_numbers<[1], [0], [0], [1], [0, 0, 1, 1], [], []>} : vector<16x128xf32>, vector<128x32xf32>, vector<16x32xf32> -> vector<16x32xf32>
    %255 = arith.addf %235, %254 : vector<16x32xf32>
    %256 = vector.extract_strided_slice %231 {offsets = [0, 0, 128], sizes = [2, 8, 128], strides = [1, 1, 1]} : vector<2x8x1536xf32> to vector<2x8x128xf32>
    %257 = vector.extract_strided_slice %231 {offsets = [0, 0, 640], sizes = [2, 8, 128], strides = [1, 1, 1]} : vector<2x8x1536xf32> to vector<2x8x128xf32>
    %258 = vector.extract_strided_slice %231 {offsets = [0, 0, 1152], sizes = [2, 8, 128], strides = [1, 1, 1]} : vector<2x8x1536xf32> to vector<2x8x128xf32>
    "tpu.trace_start"() <{level = 10 : i32, message = "bqd,bkd->bqk"}> : () -> ()
    %cst_116 = arith.constant dense<0.000000e+00> : vector<2x8x8xf32>
    %259 = tpu.matmul %256, %257, %cst_116 {dimension_numbers = #tpu.dot_dimension_numbers<[2], [2], [1], [1], [0, 0, 0, 1, 1, 1], [0], [0]>} : vector<2x8x128xf32>, vector<2x8x128xf32>, vector<2x8x8xf32> -> vector<2x8x8xf32>
    "tpu.trace_stop"() : () -> ()
    %cst_117 = arith.constant dense<0xFF800000> : vector<2x8xf32>
    %260 = vector.multi_reduction <maximumf>, %259, %cst_117 [2] : vector<2x8x8xf32> to vector<2x8xf32>
    %261 = vector.shape_cast %260 : vector<2x8xf32> to vector<2x8x1xf32>
    %262 = vector.broadcast %261 : vector<2x8x1xf32> to vector<2x8x8xf32>
    %263 = arith.subf %259, %262 : vector<2x8x8xf32>
    %264 = math.exp %263 : vector<2x8x8xf32>
    %cst_118 = arith.constant dense<0.000000e+00> : vector<2x8xf32>
    %265 = vector.multi_reduction <add>, %264, %cst_118 [2] : vector<2x8x8xf32> to vector<2x8xf32>
    %266 = vector.shape_cast %265 : vector<2x8xf32> to vector<2x8x1xf32>
    %267 = tpu.reciprocal %266 {approx = true} : vector<2x8x1xf32> -> vector<2x8x1xf32>
    %268 = vector.broadcast %267 : vector<2x8x1xf32> to vector<2x8x8xf32>
    %269 = arith.mulf %264, %268 : vector<2x8x8xf32>
    "tpu.trace_start"() <{level = 10 : i32, message = "bqk,bkd->bqd"}> : () -> ()
    %cst_119 = arith.constant dense<0.000000e+00> : vector<2x8x128xf32>
    %270 = tpu.matmul %269, %258, %cst_119 {dimension_numbers = #tpu.dot_dimension_numbers<[2], [1], [1], [2], [0, 0, 0, 1, 1, 2], [0], [0]>} : vector<2x8x8xf32>, vector<2x8x128xf32>, vector<2x8x128xf32> -> vector<2x8x128xf32>
    "tpu.trace_stop"() : () -> ()
    %271 = vector.shape_cast %270 : vector<2x8x128xf32> to vector<16x128xf32>
    %c1_120 = arith.constant 1 : index
    %c128_121 = arith.constant 128 : index
    %c0_122 = arith.constant 0 : index
    %272 = vector.load %arg5[%c1_120, %c128_121, %c0_122] : memref<2x512x32xf32, #tpu.memory_space<vmem>>, vector<1x128x32xf32>
    %273 = vector.shape_cast %272 : vector<1x128x32xf32> to vector<128x32xf32>
    %cst_123 = arith.constant dense<0.000000e+00> : vector<16x32xf32>
    %274 = tpu.matmul %271, %273, %cst_123 {dimension_numbers = #tpu.dot_dimension_numbers<[1], [0], [0], [1], [0, 0, 1, 1], [], []>} : vector<16x128xf32>, vector<128x32xf32>, vector<16x32xf32> -> vector<16x32xf32>
    %275 = arith.addf %255, %274 : vector<16x32xf32>
    %276 = vector.extract_strided_slice %231 {offsets = [0, 0, 256], sizes = [2, 8, 128], strides = [1, 1, 1]} : vector<2x8x1536xf32> to vector<2x8x128xf32>
    %277 = vector.extract_strided_slice %231 {offsets = [0, 0, 768], sizes = [2, 8, 128], strides = [1, 1, 1]} : vector<2x8x1536xf32> to vector<2x8x128xf32>
    %278 = vector.extract_strided_slice %231 {offsets = [0, 0, 1280], sizes = [2, 8, 128], strides = [1, 1, 1]} : vector<2x8x1536xf32> to vector<2x8x128xf32>
    "tpu.trace_start"() <{level = 10 : i32, message = "bqd,bkd->bqk"}> : () -> ()
    %cst_124 = arith.constant dense<0.000000e+00> : vector<2x8x8xf32>
    %279 = tpu.matmul %276, %277, %cst_124 {dimension_numbers = #tpu.dot_dimension_numbers<[2], [2], [1], [1], [0, 0, 0, 1, 1, 1], [0], [0]>} : vector<2x8x128xf32>, vector<2x8x128xf32>, vector<2x8x8xf32> -> vector<2x8x8xf32>
    "tpu.trace_stop"() : () -> ()
    %cst_125 = arith.constant dense<0xFF800000> : vector<2x8xf32>
    %280 = vector.multi_reduction <maximumf>, %279, %cst_125 [2] : vector<2x8x8xf32> to vector<2x8xf32>
    %281 = vector.shape_cast %280 : vector<2x8xf32> to vector<2x8x1xf32>
    %282 = vector.broadcast %281 : vector<2x8x1xf32> to vector<2x8x8xf32>
    %283 = arith.subf %279, %282 : vector<2x8x8xf32>
    %284 = math.exp %283 : vector<2x8x8xf32>
    %cst_126 = arith.constant dense<0.000000e+00> : vector<2x8xf32>
    %285 = vector.multi_reduction <add>, %284, %cst_126 [2] : vector<2x8x8xf32> to vector<2x8xf32>
    %286 = vector.shape_cast %285 : vector<2x8xf32> to vector<2x8x1xf32>
    %287 = tpu.reciprocal %286 {approx = true} : vector<2x8x1xf32> -> vector<2x8x1xf32>
    %288 = vector.broadcast %287 : vector<2x8x1xf32> to vector<2x8x8xf32>
    %289 = arith.mulf %284, %288 : vector<2x8x8xf32>
    "tpu.trace_start"() <{level = 10 : i32, message = "bqk,bkd->bqd"}> : () -> ()
    %cst_127 = arith.constant dense<0.000000e+00> : vector<2x8x128xf32>
    %290 = tpu.matmul %289, %278, %cst_127 {dimension_numbers = #tpu.dot_dimension_numbers<[2], [1], [1], [2], [0, 0, 0, 1, 1, 2], [0], [0]>} : vector<2x8x8xf32>, vector<2x8x128xf32>, vector<2x8x128xf32> -> vector<2x8x128xf32>
    "tpu.trace_stop"() : () -> ()
    %291 = vector.shape_cast %290 : vector<2x8x128xf32> to vector<16x128xf32>
    %c1_128 = arith.constant 1 : index
    %c256_129 = arith.constant 256 : index
    %c0_130 = arith.constant 0 : index
    %292 = vector.load %arg5[%c1_128, %c256_129, %c0_130] : memref<2x512x32xf32, #tpu.memory_space<vmem>>, vector<1x128x32xf32>
    %293 = vector.shape_cast %292 : vector<1x128x32xf32> to vector<128x32xf32>
    %cst_131 = arith.constant dense<0.000000e+00> : vector<16x32xf32>
    %294 = tpu.matmul %291, %293, %cst_131 {dimension_numbers = #tpu.dot_dimension_numbers<[1], [0], [0], [1], [0, 0, 1, 1], [], []>} : vector<16x128xf32>, vector<128x32xf32>, vector<16x32xf32> -> vector<16x32xf32>
    %295 = arith.addf %275, %294 : vector<16x32xf32>
    %296 = vector.extract_strided_slice %231 {offsets = [0, 0, 384], sizes = [2, 8, 128], strides = [1, 1, 1]} : vector<2x8x1536xf32> to vector<2x8x128xf32>
    %297 = vector.extract_strided_slice %231 {offsets = [0, 0, 896], sizes = [2, 8, 128], strides = [1, 1, 1]} : vector<2x8x1536xf32> to vector<2x8x128xf32>
    %298 = vector.extract_strided_slice %231 {offsets = [0, 0, 1408], sizes = [2, 8, 128], strides = [1, 1, 1]} : vector<2x8x1536xf32> to vector<2x8x128xf32>
    "tpu.trace_start"() <{level = 10 : i32, message = "bqd,bkd->bqk"}> : () -> ()
    %cst_132 = arith.constant dense<0.000000e+00> : vector<2x8x8xf32>
    %299 = tpu.matmul %296, %297, %cst_132 {dimension_numbers = #tpu.dot_dimension_numbers<[2], [2], [1], [1], [0, 0, 0, 1, 1, 1], [0], [0]>} : vector<2x8x128xf32>, vector<2x8x128xf32>, vector<2x8x8xf32> -> vector<2x8x8xf32>
    "tpu.trace_stop"() : () -> ()
    %cst_133 = arith.constant dense<0xFF800000> : vector<2x8xf32>
    %300 = vector.multi_reduction <maximumf>, %299, %cst_133 [2] : vector<2x8x8xf32> to vector<2x8xf32>
    %301 = vector.shape_cast %300 : vector<2x8xf32> to vector<2x8x1xf32>
    %302 = vector.broadcast %301 : vector<2x8x1xf32> to vector<2x8x8xf32>
    %303 = arith.subf %299, %302 : vector<2x8x8xf32>
    %304 = math.exp %303 : vector<2x8x8xf32>
    %cst_134 = arith.constant dense<0.000000e+00> : vector<2x8xf32>
    %305 = vector.multi_reduction <add>, %304, %cst_134 [2] : vector<2x8x8xf32> to vector<2x8xf32>
    %306 = vector.shape_cast %305 : vector<2x8xf32> to vector<2x8x1xf32>
    %307 = tpu.reciprocal %306 {approx = true} : vector<2x8x1xf32> -> vector<2x8x1xf32>
    %308 = vector.broadcast %307 : vector<2x8x1xf32> to vector<2x8x8xf32>
    %309 = arith.mulf %304, %308 : vector<2x8x8xf32>
    "tpu.trace_start"() <{level = 10 : i32, message = "bqk,bkd->bqd"}> : () -> ()
    %cst_135 = arith.constant dense<0.000000e+00> : vector<2x8x128xf32>
    %310 = tpu.matmul %309, %298, %cst_135 {dimension_numbers = #tpu.dot_dimension_numbers<[2], [1], [1], [2], [0, 0, 0, 1, 1, 2], [0], [0]>} : vector<2x8x8xf32>, vector<2x8x128xf32>, vector<2x8x128xf32> -> vector<2x8x128xf32>
    "tpu.trace_stop"() : () -> ()
    %311 = vector.shape_cast %310 : vector<2x8x128xf32> to vector<16x128xf32>
    %c1_136 = arith.constant 1 : index
    %c384_137 = arith.constant 384 : index
    %c0_138 = arith.constant 0 : index
    %312 = vector.load %arg5[%c1_136, %c384_137, %c0_138] : memref<2x512x32xf32, #tpu.memory_space<vmem>>, vector<1x128x32xf32>
    %313 = vector.shape_cast %312 : vector<1x128x32xf32> to vector<128x32xf32>
    %cst_139 = arith.constant dense<0.000000e+00> : vector<16x32xf32>
    %314 = tpu.matmul %311, %313, %cst_139 {dimension_numbers = #tpu.dot_dimension_numbers<[1], [0], [0], [1], [0, 0, 1, 1], [], []>} : vector<16x128xf32>, vector<128x32xf32>, vector<16x32xf32> -> vector<16x32xf32>
    %315 = arith.addf %295, %314 : vector<16x32xf32>
    %316 = arith.mulf %200, %315 : vector<16x32xf32>
    %317 = arith.addf %190, %316 : vector<16x32xf32>
    %cst_140 = arith.constant dense<0.000000e+00> : vector<16xf32>
    %318 = vector.multi_reduction <add>, %317, %cst_140 [1] : vector<16x32xf32> to vector<16xf32>
    %319 = vector.shape_cast %318 : vector<16xf32> to vector<16x1xf32>
    %cst_141 = arith.constant 3.200000e+01 : f32
    %320 = vector.broadcast %cst_141 : f32 to vector<16x1xf32>
    %321 = arith.divf %319, %320 : vector<16x1xf32>
    %322 = vector.broadcast %321 : vector<16x1xf32> to vector<16x32xf32>
    %323 = arith.subf %317, %322 : vector<16x32xf32>
    %324 = arith.mulf %323, %323 : vector<16x32xf32>
    %cst_142 = arith.constant dense<0.000000e+00> : vector<16xf32>
    %325 = vector.multi_reduction <add>, %324, %cst_142 [1] : vector<16x32xf32> to vector<16xf32>
    %326 = vector.shape_cast %325 : vector<16xf32> to vector<16x1xf32>
    %cst_143 = arith.constant 3.200000e+01 : f32
    %327 = vector.broadcast %cst_143 : f32 to vector<16x1xf32>
    %328 = arith.divf %326, %327 : vector<16x1xf32>
    %cst_144 = arith.constant 9.99999997E-7 : f32
    %329 = vector.broadcast %cst_144 : f32 to vector<16x1xf32>
    %330 = arith.addf %328, %329 : vector<16x1xf32>
    %331 = math.rsqrt %330 : vector<16x1xf32>
    %332 = vector.broadcast %331 : vector<16x1xf32> to vector<16x32xf32>
    %333 = arith.mulf %323, %332 : vector<16x32xf32>
    %cst_145 = arith.constant 1.000000e+00 : f32
    %334 = vector.broadcast %cst_145 : f32 to vector<16x32xf32>
    %335 = arith.addf %334, %202 : vector<16x32xf32>
    %336 = arith.mulf %333, %335 : vector<16x32xf32>
    %337 = arith.addf %336, %201 : vector<16x32xf32>
    %c1_146 = arith.constant 1 : index
    %c0_147 = arith.constant 0 : index
    %c0_148 = arith.constant 0 : index
    %338 = vector.load %arg6[%c1_146, %c0_147, %c0_148] : memref<2x32x128xf32, #tpu.memory_space<vmem>>, vector<1x32x128xf32>
    %339 = vector.shape_cast %338 : vector<1x32x128xf32> to vector<32x128xf32>
    %cst_149 = arith.constant dense<0.000000e+00> : vector<16x128xf32>
    %340 = tpu.matmul %337, %339, %cst_149 {dimension_numbers = #tpu.dot_dimension_numbers<[1], [0], [0], [1], [0, 0, 1, 1], [], []>} : vector<16x32xf32>, vector<32x128xf32>, vector<16x128xf32> -> vector<16x128xf32>
    %c1_150 = arith.constant 1 : index
    %c0_151 = arith.constant 0 : index
    %c0_152 = arith.constant 0 : index
    %341 = vector.load %arg11[%c1_150, %c0_151, %c0_152] : memref<2x1x128xf32, #tpu.memory_space<vmem>>, vector<1x1x128xf32>
    %342 = vector.shape_cast %341 : vector<1x1x128xf32> to vector<1x128xf32>
    %343 = vector.broadcast %342 : vector<1x128xf32> to vector<16x128xf32>
    %344 = arith.addf %340, %343 : vector<16x128xf32>
    %cst_153 = arith.constant 5.000000e-01 : f32
    %345 = vector.broadcast %cst_153 : f32 to vector<16x128xf32>
    %346 = arith.mulf %345, %344 : vector<16x128xf32>
    %cst_154 = arith.constant 4.471500e-02 : f32
    %347 = vector.broadcast %cst_154 : f32 to vector<16x128xf32>
    %348 = arith.mulf %347, %344 : vector<16x128xf32>
    %349 = arith.mulf %348, %344 : vector<16x128xf32>
    %350 = arith.mulf %349, %344 : vector<16x128xf32>
    %351 = arith.addf %344, %350 : vector<16x128xf32>
    %cst_155 = arith.constant 0.797884583 : f32
    %352 = vector.broadcast %cst_155 : f32 to vector<16x128xf32>
    %353 = arith.mulf %352, %351 : vector<16x128xf32>
    %354 = math.tanh %353 : vector<16x128xf32>
    %cst_156 = arith.constant 1.000000e+00 : f32
    %355 = vector.broadcast %cst_156 : f32 to vector<16x128xf32>
    %356 = arith.addf %355, %354 : vector<16x128xf32>
    %357 = arith.mulf %346, %356 : vector<16x128xf32>
    %c1_157 = arith.constant 1 : index
    %c0_158 = arith.constant 0 : index
    %c0_159 = arith.constant 0 : index
    %358 = vector.load %arg7[%c1_157, %c0_158, %c0_159] : memref<2x128x32xf32, #tpu.memory_space<vmem>>, vector<1x128x32xf32>
    %359 = vector.shape_cast %358 : vector<1x128x32xf32> to vector<128x32xf32>
    %cst_160 = arith.constant dense<0.000000e+00> : vector<16x32xf32>
    %360 = tpu.matmul %357, %359, %cst_160 {dimension_numbers = #tpu.dot_dimension_numbers<[1], [0], [0], [1], [0, 0, 1, 1], [], []>} : vector<16x128xf32>, vector<128x32xf32>, vector<16x32xf32> -> vector<16x32xf32>
    %c1_161 = arith.constant 1 : index
    %c0_162 = arith.constant 0 : index
    %c0_163 = arith.constant 0 : index
    %361 = vector.load %arg12[%c1_161, %c0_162, %c0_163] : memref<2x1x32xf32, #tpu.memory_space<vmem>>, vector<1x1x32xf32>
    %362 = vector.shape_cast %361 : vector<1x1x32xf32> to vector<1x32xf32>
    %363 = vector.broadcast %362 : vector<1x32xf32> to vector<16x32xf32>
    %364 = arith.addf %360, %363 : vector<16x32xf32>
    %365 = arith.mulf %203, %364 : vector<16x32xf32>
    %366 = arith.addf %317, %365 : vector<16x32xf32>
    %c0_164 = arith.constant 0 : index
    %c0_165 = arith.constant 0 : index
    %367 = vector.load %arg13[%c0_164, %c0_165] : memref<32x256xf32, #tpu.memory_space<vmem>>, vector<32x256xf32>
    %cst_166 = arith.constant dense<0.000000e+00> : vector<16x256xf32>
    %368 = tpu.matmul %14, %367, %cst_166 {dimension_numbers = #tpu.dot_dimension_numbers<[1], [0], [0], [1], [0, 0, 1, 1], [], []>} : vector<16x32xf32>, vector<32x256xf32>, vector<16x256xf32> -> vector<16x256xf32>
    %c0_167 = arith.constant 0 : index
    %c0_168 = arith.constant 0 : index
    %369 = vector.load %arg14[%c0_167, %c0_168] : memref<1x256xf32, #tpu.memory_space<vmem>>, vector<1x256xf32>
    %370 = vector.broadcast %369 : vector<1x256xf32> to vector<16x256xf32>
    %371 = arith.addf %368, %370 : vector<16x256xf32>
    %372 = vector.extract_strided_slice %371 {offsets = [0, 0], sizes = [16, 32], strides = [1, 1]} : vector<16x256xf32> to vector<16x32xf32>
    %373 = vector.extract_strided_slice %371 {offsets = [0, 128], sizes = [16, 32], strides = [1, 1]} : vector<16x256xf32> to vector<16x32xf32>
    %cst_169 = arith.constant dense<0.000000e+00> : vector<16xf32>
    %374 = vector.multi_reduction <add>, %366, %cst_169 [1] : vector<16x32xf32> to vector<16xf32>
    %375 = vector.shape_cast %374 : vector<16xf32> to vector<16x1xf32>
    %cst_170 = arith.constant 3.200000e+01 : f32
    %376 = vector.broadcast %cst_170 : f32 to vector<16x1xf32>
    %377 = arith.divf %375, %376 : vector<16x1xf32>
    %378 = vector.broadcast %377 : vector<16x1xf32> to vector<16x32xf32>
    %379 = arith.subf %366, %378 : vector<16x32xf32>
    %380 = arith.mulf %379, %379 : vector<16x32xf32>
    %cst_171 = arith.constant dense<0.000000e+00> : vector<16xf32>
    %381 = vector.multi_reduction <add>, %380, %cst_171 [1] : vector<16x32xf32> to vector<16xf32>
    %382 = vector.shape_cast %381 : vector<16xf32> to vector<16x1xf32>
    %cst_172 = arith.constant 3.200000e+01 : f32
    %383 = vector.broadcast %cst_172 : f32 to vector<16x1xf32>
    %384 = arith.divf %382, %383 : vector<16x1xf32>
    %cst_173 = arith.constant 9.99999997E-7 : f32
    %385 = vector.broadcast %cst_173 : f32 to vector<16x1xf32>
    %386 = arith.addf %384, %385 : vector<16x1xf32>
    %387 = math.rsqrt %386 : vector<16x1xf32>
    %388 = vector.broadcast %387 : vector<16x1xf32> to vector<16x32xf32>
    %389 = arith.mulf %379, %388 : vector<16x32xf32>
    %cst_174 = arith.constant 1.000000e+00 : f32
    %390 = vector.broadcast %cst_174 : f32 to vector<16x32xf32>
    %391 = arith.addf %390, %373 : vector<16x32xf32>
    %392 = arith.mulf %389, %391 : vector<16x32xf32>
    %393 = arith.addf %392, %372 : vector<16x32xf32>
    %c0_175 = arith.constant 0 : index
    %c0_176 = arith.constant 0 : index
    %394 = vector.load %arg15[%c0_175, %c0_176] : memref<32x128xf32, #tpu.memory_space<vmem>>, vector<32x128xf32>
    %cst_177 = arith.constant dense<0.000000e+00> : vector<16x128xf32>
    %395 = tpu.matmul %393, %394, %cst_177 {dimension_numbers = #tpu.dot_dimension_numbers<[1], [0], [0], [1], [0, 0, 1, 1], [], []>} : vector<16x32xf32>, vector<32x128xf32>, vector<16x128xf32> -> vector<16x128xf32>
    %c0_178 = arith.constant 0 : index
    %c0_179 = arith.constant 0 : index
    %396 = vector.load %arg16[%c0_178, %c0_179] : memref<1x128xf32, #tpu.memory_space<vmem>>, vector<1x128xf32>
    %397 = vector.broadcast %396 : vector<1x128xf32> to vector<16x128xf32>
    %398 = arith.addf %395, %397 : vector<16x128xf32>
    %399 = vector.shape_cast %398 : vector<16x128xf32> to vector<2x8x128xf32>
    %c0_180 = arith.constant 0 : index
    %c0_181 = arith.constant 0 : index
    %c0_182 = arith.constant 0 : index
    %400 = vector.load %arg17[%c0_180, %c0_181, %c0_182] : memref<2x8x128xf32, #tpu.memory_space<vmem>>, vector<2x8x128xf32>
    tpu.vector_store %arg17[%c0_180, %c0_181, %c0_182], %399 {strides = array<i32>} : memref<2x8x128xf32, #tpu.memory_space<vmem>>, vector<2x8x128xf32>,
    return
  }
}

</mosaic_0001>

<llo_original>
// kernel: tpu_custom_call.1
$region0: #{tpu_custom_call.1}
  #allocation0 [shape = 'u32[]', space=smem, size = 0x4, offset = 0x4, fixed_abs, tag = 'smem constant byte address 0x4 - core index']
  #allocation1 [shape = 'u32[144,128]{1,0:T(1,128)}', space=vmem, size = 0x12000, scoped, tag = 'internal scratch']
  %s0 = inlined_call_operand.vmem [shape: f32[2,8,32], index: 0, kind: input, shape index: {}]
  %s1 = inlined_call_operand.hbm [shape: f32[2,8,32], index: 1, kind: input, shape index: {}]
  %s2 = inlined_call_operand.vmem [shape: f32[1,8,32], index: 2, kind: input, shape index: {}]
  %s3 = inlined_call_operand.vmem [shape: f32[2,32,768], index: 3, kind: input, shape index: {}]
  %s4 = inlined_call_operand.vmem [shape: f32[2,32,1536], index: 4, kind: input, shape index: {}]
  %s5 = inlined_call_operand.vmem [shape: f32[2,512,32], index: 5, kind: input, shape index: {}]
  %s6 = inlined_call_operand.vmem [shape: f32[2,32,128], index: 6, kind: input, shape index: {}]
  %s7 = inlined_call_operand.vmem [shape: f32[2,128,32], index: 7, kind: input, shape index: {}]
  %s8 = inlined_call_operand.hbm [shape: f32[2,1,768], index: 8, kind: input, shape index: {}]
  %s9 = inlined_call_operand.vmem [shape: f32[2,1,1536], index: 9, kind: input, shape index: {}]
  %s10 = inlined_call_operand.vmem [shape: f32[2,1,32], index: 10, kind: input, shape index: {}]
  %s11 = inlined_call_operand.vmem [shape: f32[2,1,128], index: 11, kind: input, shape index: {}]
  %s12 = inlined_call_operand.vmem [shape: f32[2,1,32], index: 12, kind: input, shape index: {}]
  %s13 = inlined_call_operand.vmem [shape: f32[32,256], index: 13, kind: input, shape index: {}]
  %s14 = inlined_call_operand.vmem [shape: f32[1,256], index: 14, kind: input, shape index: {}]
  %s15 = inlined_call_operand.vmem [shape: f32[32,128], index: 15, kind: input, shape index: {}]
  %s16 = inlined_call_operand.vmem [shape: f32[1,128], index: 16, kind: input, shape index: {}]
  %s17 = inlined_call_operand.hbm [shape: f32[2,8,128], index: 17, kind: output, shape index: {}]
  %s18 = sld [smem:[#allocation0]]
  $region86: #{tpu_custom_call.1} parent=0
    _
  %s20 = ssub.s32 1, %s18
  %s21 = scalar_select 0, %s20, %s18
  $region1: #{tpu_custom_call.1} parent=0
    #allocation2 [shape = 'u8[8192]{0}', space=vmem, size = 0x2000, scoped, tag = 'input window, operand 1, single buffered']
    #allocation3 [shape = 's32[1]{0}', space=sflag, size = 0x4, scoped, tag = 'scoped memory for tpu_custom_call.1']
    #allocation4 [shape = 's32[1]{0}', space=sflag, size = 0x4, scoped, tag = 'scoped memory for tpu_custom_call.1']
    #allocation5 [shape = 'u8[6144]{0}', space=vmem, size = 0x1800, scoped, tag = 'input window, operand 8, single buffered']
    #allocation6 [shape = 's32[1]{0}', space=sflag, size = 0x4, scoped, tag = 'scoped memory for tpu_custom_call.1']
    #allocation7 [shape = 'u8[8192]{0}', space=vmem, size = 0x2000, scoped, tag = 'output window, operand 0, single buffered']
    %22 = vsyncpa [#allocation3], 0
    %23 = vsyncpa [#allocation6], 0
    %24 = vsyncpa [#allocation4], 0
    // Predicated region
    $region2: #{tpu_custom_call.1} parent=1 // pred_check
      _
    $region3: #{tpu_custom_call.1} parent=1 // pred_check_branch
      %26 = sbr.rel (0) target = $region5
    $region4: #{tpu_custom_call.1} parent=1 // pred_region
      _
    $region5: #{tpu_custom_call.1} parent=1 // pred_fallthru
      _
    // Predicated region
    $region6: #{tpu_custom_call.1} parent=1 // pred_check
      _
    $region7: #{tpu_custom_call.1} parent=1 // pred_check_branch
      %28 = sbr.rel (0) target = $region9
    $region8: #{tpu_custom_call.1} parent=1 // pred_region
      %s30 = ssub.s32 256, 256
      %31 = vsyncadd [#allocation3], %s30
      %s32 = sshll.u32 [#allocation2], 4
      %s33 = int_to_ptr.vmem [resolvable:$true] %s32
      %38 = dma.hbm_to_vmem [thread:$0]  %s1, 256, %s33, [#allocation3], 128, 128, 8
    $region9: #{tpu_custom_call.1} parent=1 // pred_fallthru
      _
    // Predicated region
    $region10: #{tpu_custom_call.1} parent=1 // pred_check
      _
    $region11: #{tpu_custom_call.1} parent=1 // pred_check_branch
      %40 = sbr.rel (0) target = $region13
    $region12: #{tpu_custom_call.1} parent=1 // pred_region
      _
    $region13: #{tpu_custom_call.1} parent=1 // pred_fallthru
      _
    // Predicated region
    $region14: #{tpu_custom_call.1} parent=1 // pred_check
      _
    $region15: #{tpu_custom_call.1} parent=1 // pred_check_branch
      %42 = sbr.rel (0) target = $region17
    $region16: #{tpu_custom_call.1} parent=1 // pred_region
      _
    $region17: #{tpu_custom_call.1} parent=1 // pred_fallthru
      _
    // Predicated region
    $region18: #{tpu_custom_call.1} parent=1 // pred_check
      _
    $region19: #{tpu_custom_call.1} parent=1 // pred_check_branch
      %44 = sbr.rel (0) target = $region21
    $region20: #{tpu_custom_call.1} parent=1 // pred_region
      _
    $region21: #{tpu_custom_call.1} parent=1 // pred_fallthru
      _
    // Predicated region
    $region22: #{tpu_custom_call.1} parent=1 // pred_check
      _
    $region23: #{tpu_custom_call.1} parent=1 // pred_check_branch
      %46 = sbr.rel (0) target = $region25
    $region24: #{tpu_custom_call.1} parent=1 // pred_region
      _
    $region25: #{tpu_custom_call.1} parent=1 // pred_fallthru
      _
    // Predicated region
    $region26: #{tpu_custom_call.1} parent=1 // pred_check
      _
    $region27: #{tpu_custom_call.1} parent=1 // pred_check_branch
      %48 = sbr.rel (0) target = $region29
    $region28: #{tpu_custom_call.1} parent=1 // pred_region
      _
    $region29: #{tpu_custom_call.1} parent=1 // pred_fallthru
      _
    // Predicated region
    $region30: #{tpu_custom_call.1} parent=1 // pred_check
      _
    $region31: #{tpu_custom_call.1} parent=1 // pred_check_branch
      %50 = sbr.rel (0) target = $region33
    $region32: #{tpu_custom_call.1} parent=1 // pred_region
      _
    $region33: #{tpu_custom_call.1} parent=1 // pred_fallthru
      _
    // Predicated region
    $region34: #{tpu_custom_call.1} parent=1 // pred_check
      _
    $region35: #{tpu_custom_call.1} parent=1 // pred_check_branch
      %52 = sbr.rel (0) target = $region37
    $region36: #{tpu_custom_call.1} parent=1 // pred_region
      %s54 = ssub.s32 192, 192
      %55 = vsyncadd [#allocation6], %s54
      %s56 = sshll.u32 [#allocation5], 4
      %s57 = int_to_ptr.vmem [resolvable:$true] %s56
      %62 = dma.hbm_to_vmem [thread:$0]  %s8, 192, %s57, [#allocation6], 96, 96, 6
    $region37: #{tpu_custom_call.1} parent=1 // pred_fallthru
      _
    // Predicated region
    $region38: #{tpu_custom_call.1} parent=1 // pred_check
      _
    $region39: #{tpu_custom_call.1} parent=1 // pred_check_branch
      %64 = sbr.rel (0) target = $region41
    $region40: #{tpu_custom_call.1} parent=1 // pred_region
      _
    $region41: #{tpu_custom_call.1} parent=1 // pred_fallthru
      _
    // Predicated region
    $region42: #{tpu_custom_call.1} parent=1 // pred_check
      _
    $region43: #{tpu_custom_call.1} parent=1 // pred_check_branch
      %66 = sbr.rel (0) target = $region45
    $region44: #{tpu_custom_call.1} parent=1 // pred_region
      _
    $region45: #{tpu_custom_call.1} parent=1 // pred_fallthru
      _
    // Predicated region
    $region46: #{tpu_custom_call.1} parent=1 // pred_check
      _
    $region47: #{tpu_custom_call.1} parent=1 // pred_check_branch
      %68 = sbr.rel (0) target = $region49
    $region48: #{tpu_custom_call.1} parent=1 // pred_region
      _
    $region49: #{tpu_custom_call.1} parent=1 // pred_fallthru
      _
    // Predicated region
    $region50: #{tpu_custom_call.1} parent=1 // pred_check
      _
    $region51: #{tpu_custom_call.1} parent=1 // pred_check_branch
      %70 = sbr.rel (0) target = $region53
    $region52: #{tpu_custom_call.1} parent=1 // pred_region
      _
    $region53: #{tpu_custom_call.1} parent=1 // pred_fallthru
      _
    // Predicated region
    $region54: #{tpu_custom_call.1} parent=1 // pred_check
      _
    $region55: #{tpu_custom_call.1} parent=1 // pred_check_branch
      %72 = sbr.rel (0) target = $region57
    $region56: #{tpu_custom_call.1} parent=1 // pred_region
      _
    $region57: #{tpu_custom_call.1} parent=1 // pred_fallthru
      _
    // Predicated region
    $region58: #{tpu_custom_call.1} parent=1 // pred_check
      _
    $region59: #{tpu_custom_call.1} parent=1 // pred_check_branch
      %74 = sbr.rel (0) target = $region61
    $region60: #{tpu_custom_call.1} parent=1 // pred_region
      _
    $region61: #{tpu_custom_call.1} parent=1 // pred_fallthru
      _
    // Predicated region
    $region62: #{tpu_custom_call.1} parent=1 // pred_check
      _
    $region63: #{tpu_custom_call.1} parent=1 // pred_check_branch
      %76 = sbr.rel (0) target = $region65
    $region64: #{tpu_custom_call.1} parent=1 // pred_region
      _
    $region65: #{tpu_custom_call.1} parent=1 // pred_fallthru
      _
    // Predicated region
    $region66: #{tpu_custom_call.1} parent=1 // pred_check
      _
    $region67: #{tpu_custom_call.1} parent=1 // pred_check_branch
      %78 = sbr.rel (0) target = $region69
    $region68: #{tpu_custom_call.1} parent=1 // pred_region
      _
    $region69: #{tpu_custom_call.1} parent=1 // pred_fallthru
      _
    // Predicated region
    $region70: #{tpu_custom_call.1} parent=1 // pred_check
      _
    $region71: #{tpu_custom_call.1} parent=1 // pred_check_branch
      %80 = sbr.rel (0) target = $region73
    $region72: #{tpu_custom_call.1} parent=1 // pred_region
      %81 = dma.done [#allocation3], 256
    $region73: #{tpu_custom_call.1} parent=1 // pred_fallthru
      _
    // Predicated region
    $region74: #{tpu_custom_call.1} parent=1 // pred_check
      _
    $region75: #{tpu_custom_call.1} parent=1 // pred_check_branch
      %83 = sbr.rel (0) target = $region77
    $region76: #{tpu_custom_call.1} parent=1 // pred_region
      %84 = dma.done [#allocation6], 192
    $region77: #{tpu_custom_call.1} parent=1 // pred_fallthru
      _
    %v85 = vld [vmem:[%s0] sm:$0xff]
    %v86 = vld [vmem:[%s0 + $0x8] sm:$0xff]
    %v87 = vld [vmem:[%s2] sm:$0xff]
    %v88 = vadd.f32 %v85, %v87
    %v89 = vadd.f32 %v86, %v87
    %v90 = vld [vmem:[#allocation2] sm:$0xff]
    %v91 = vld [vmem:[#allocation2 + $0x8] sm:$0xff]
    %v92 = vsub.f32 0.0, %v90
    %v93 = vsub.f32 0.0, %v91
    %v94 = vmul.f32 %v92, 1.442695
    %v95 = vpow.pop %v94
    %v96 = vmul.f32 %v93, 1.442695
    %v97 = vpow.pop %v96
    %v98 = vadd.f32 %v95, 1.0
    %v99 = vadd.f32 %v97, 1.0
    %v100 = vrcp.pop %v98
    %v101 = vmul.f32 1.0, %v100
    %v102 = vrcp.pop %v99
    %v103 = vmul.f32 1.0, %v102
    %v104 = vmul.f32 %v90, %v101
    %v105 = vmul.f32 %v91, %v103
    %v106 = vld [vmem:[%s3] sm:$0xff]
    %v107 = vld [vmem:[%s3 + $0x8] sm:$0xff]
    %v108 = vld [vmem:[%s3 + $0x10] sm:$0xff]
    %v109 = vld [vmem:[%s3 + $0x18] sm:$0xff]
    %v110 = vld [vmem:[%s3 + $0x20] sm:$0xff]
    %v111 = vld [vmem:[%s3 + $0x28] sm:$0xff]
    %v112 = vld [vmem:[%s3 + $0x30] sm:$0xff]
    %v113 = vld [vmem:[%s3 + $0x38] sm:$0xff]
    %v114 = vld [vmem:[%s3 + $0x40] sm:$0xff]
    %v115 = vld [vmem:[%s3 + $0x48] sm:$0xff]
    %v116 = vld [vmem:[%s3 + $0x50] sm:$0xff]
    %v117 = vld [vmem:[%s3 + $0x58] sm:$0xff]
    %v118 = vld [vmem:[%s3 + $0x60] sm:$0xff]
    %v119 = vld [vmem:[%s3 + $0x68] sm:$0xff]
    %v120 = vld [vmem:[%s3 + $0x70] sm:$0xff]
    %v121 = vld [vmem:[%s3 + $0x78] sm:$0xff]
    %v122 = vld [vmem:[%s3 + $0x80] sm:$0xff]
    %v123 = vld [vmem:[%s3 + $0x88] sm:$0xff]
    %v124 = vld [vmem:[%s3 + $0x90] sm:$0xff]
    %v125 = vld [vmem:[%s3 + $0x98] sm:$0xff]
    %v126 = vld [vmem:[%s3 + $0xa0] sm:$0xff]
    %v127 = vld [vmem:[%s3 + $0xa8] sm:$0xff]
    %v128 = vld [vmem:[%s3 + $0xb0] sm:$0xff]
    %v129 = vld [vmem:[%s3 + $0xb8] sm:$0xff]
    %v130 = vld [vmem:[#allocation5] sm:$0x3f]
    %v132 = vlaneseq
    %v133 = vshrl.u32 %v132, 7
    %v134 = vsub.s32 0, %v133
    %v135 = vrot.slane %v130, %v134
    %v136 = vlaneseq
    %v137 = vshrl.u32 %v136, 7
    %v138 = vsub.s32 1, %v137
    %v139 = vrot.slane %v130, %v138
    %v140 = vlaneseq
    %v141 = vshrl.u32 %v140, 7
    %v142 = vsub.s32 2, %v141
    %v143 = vrot.slane %v130, %v142
    %v144 = vlaneseq
    %v145 = vshrl.u32 %v144, 7
    %v146 = vsub.s32 3, %v145
    %v147 = vrot.slane %v130, %v146
    %v148 = vlaneseq
    %v149 = vshrl.u32 %v148, 7
    %v150 = vsub.s32 4, %v149
    %v151 = vrot.slane %v130, %v150
    %v152 = vlaneseq
    %v153 = vshrl.u32 %v152, 7
    %v154 = vsub.s32 5, %v153
    %v155 = vrot.slane %v130, %v154
    %vm162 = vcmask 261120
    %v164 = vsel %vm162, %v104, 0
    %v167 = vsel %vm162, %v105, 0
    %169 = vmatprep.subr.mxu0 %v107
    %170 = vmatpush1.msra.mxu0 %v106
    %171 = vmatprep.subr.mxu0 %v113
    %172 = vmatpush1.msra.mxu0 %v112
    %173 = vmatprep.subr.mxu0 %v119
    %174 = vmatpush1.msra.mxu0 %v118
    %175 = vmatprep.subr.mxu0 %v125
    %176 = vmatpush1.msra.mxu0 %v124
    %177 = vmatprep.subr.mxu0 0.0
    %178 = vmatpush1.msra.mxu0 0.0
    %179 = vmatprep.subr.mxu0 0.0
    %180 = vmatpush1.msra.mxu0 0.0
    %181 = vmatprep.subr.mxu0 0.0
    %182 = vmatpush1.msra.mxu0 0.0
    %183 = vmatprep.subr.mxu0 0.0
    %184 = vmatpush1.msra.mxu0 0.0
    %185 = vmatprep.subr.mxu0 0.0
    %186 = vmatpush1.msra.mxu0 0.0
    %187 = vmatprep.subr.mxu0 0.0
    %188 = vmatpush1.msra.mxu0 0.0
    %189 = vmatprep.subr.mxu0 0.0
    %190 = vmatpush1.msra.mxu0 0.0
    %191 = vmatprep.subr.mxu0 0.0
    %192 = vmatpush1.msra.mxu0 0.0
    %193 = vmatprep.subr.mxu0 0.0
    %194 = vmatpush1.msra.mxu0 0.0
    %195 = vmatprep.subr.mxu0 0.0
    %196 = vmatpush1.msra.mxu0 0.0
    %197 = vmatprep.subr.mxu0 0.0
    %198 = vmatpush1.msra.mxu0 0.0
    %199 = vmatprep.subr.mxu0 0.0
    %200 = vmatpush1.msra.mxu0 0.0
    %201 = vmatprep.subr.mxu0 0.0
    %202 = vmatpush1.msra.mxu0 0.0
    %203 = vmatprep.subr.mxu0 0.0
    %204 = vmatpush1.msra.mxu0 0.0
    %205 = vmatprep.subr.mxu0 0.0
    %206 = vmatpush1.msra.mxu0 0.0
    %207 = vmatprep.subr.mxu0 0.0
    %208 = vmatpush1.msra.mxu0 0.0
    %209 = vmatprep.subr.mxu0 0.0
    %210 = vmatpush1.msra.mxu0 0.0
    %211 = vmatprep.subr.mxu0 0.0
    %212 = vmatpush1.msra.mxu0 0.0
    %213 = vmatprep.subr.mxu0 0.0
    %214 = vmatpush1.msra.mxu0 0.0
    %215 = vmatprep.subr.mxu0 0.0
    %216 = vmatpush1.msra.mxu0 0.0
    %217 = vmatprep.subr.mxu0 0.0
    %218 = vmatpush1.msra.mxu0 0.0
    %219 = vmatprep.subr.mxu0 0.0
    %220 = vmatpush1.msra.mxu0 0.0
    %221 = vmatprep.subr.mxu0 0.0
    %222 = vmatpush1.msra.mxu0 0.0
    %223 = vmatprep.subr.mxu0 0.0
    %224 = vmatpush1.msra.mxu0 0.0
    %225 = vmatprep.subr.mxu0 0.0
    %226 = vmatpush1.msra.mxu0 0.0
    %227 = vmatprep.subr.mxu0 0.0
    %228 = vmatpush1.msra.mxu0 0.0
    %229 = vmatprep.subr.mxu0 0.0
    %230 = vmatpush1.msra.mxu0 0.0
    %231 = vmatprep.subr.mxu0 0.0
    %232 = vmatpush1.msra.mxu0 0.0
    %233 = vmatprep.mubr.f32.mxu0 0.0
    %234 = vmatmul.mubr.f32.gmra.mrb[0].mxu0 %v164
    %v235 = vpop.f32.mrb[0].mxu0
    %v236 = vadd.f32 %v135, %v235
    %v237 = vpop.f32.mrb[0].mxu0
    %v238 = vadd.f32 %v139, %v237
    %239 = vmatprep.mubr.f32.mxu0 0.0
    %240 = vmatmul.mubr.f32.gmra.mrb[0].mxu0 %v167
    %v241 = vpop.f32.mrb[0].mxu0
    %v242 = vadd.f32 %v135, %v241
    %v243 = vpop.f32.mrb[0].mxu0
    %v244 = vadd.f32 %v139, %v243
    %245 = vdwg.mxu0
    %246 = vmatprep.subr.mxu0 %v109
    %247 = vmatpush1.msra.mxu0 %v108
    %248 = vmatprep.subr.mxu0 %v115
    %249 = vmatpush1.msra.mxu0 %v114
    %250 = vmatprep.subr.mxu0 %v121
    %251 = vmatpush1.msra.mxu0 %v120
    %252 = vmatprep.subr.mxu0 %v127
    %253 = vmatpush1.msra.mxu0 %v126
    %254 = vmatprep.subr.mxu0 0.0
    %255 = vmatpush1.msra.mxu0 0.0
    %256 = vmatprep.subr.mxu0 0.0
    %257 = vmatpush1.msra.mxu0 0.0
    %258 = vmatprep.subr.mxu0 0.0
    %259 = vmatpush1.msra.mxu0 0.0
    %260 = vmatprep.subr.mxu0 0.0
    %261 = vmatpush1.msra.mxu0 0.0
    %262 = vmatprep.subr.mxu0 0.0
    %263 = vmatpush1.msra.mxu0 0.0
    %264 = vmatprep.subr.mxu0 0.0
    %265 = vmatpush1.msra.mxu0 0.0
    %266 = vmatprep.subr.mxu0 0.0
    %267 = vmatpush1.msra.mxu0 0.0
    %268 = vmatprep.subr.mxu0 0.0
    %269 = vmatpush1.msra.mxu0 0.0
    %270 = vmatprep.subr.mxu0 0.0
    %271 = vmatpush1.msra.mxu0 0.0
    %272 = vmatprep.subr.mxu0 0.0
    %273 = vmatpush1.msra.mxu0 0.0
    %274 = vmatprep.subr.mxu0 0.0
    %275 = vmatpush1.msra.mxu0 0.0
    %276 = vmatprep.subr.mxu0 0.0
    %277 = vmatpush1.msra.mxu0 0.0
    %278 = vmatprep.subr.mxu0 0.0
    %279 = vmatpush1.msra.mxu0 0.0
    %280 = vmatprep.subr.mxu0 0.0
    %281 = vmatpush1.msra.mxu0 0.0
    %282 = vmatprep.subr.mxu0 0.0
    %283 = vmatpush1.msra.mxu0 0.0
    %284 = vmatprep.subr.mxu0 0.0
    %285 = vmatpush1.msra.mxu0 0.0
    %286 = vmatprep.subr.mxu0 0.0
    %287 = vmatpush1.msra.mxu0 0.0
    %288 = vmatprep.subr.mxu0 0.0
    %289 = vmatpush1.msra.mxu0 0.0
    %290 = vmatprep.subr.mxu0 0.0
    %291 = vmatpush1.msra.mxu0 0.0
    %292 = vmatprep.subr.mxu0 0.0
    %293 = vmatpush1.msra.mxu0 0.0
    %294 = vmatprep.subr.mxu0 0.0
    %295 = vmatpush1.msra.mxu0 0.0
    %296 = vmatprep.subr.mxu0 0.0
    %297 = vmatpush1.msra.mxu0 0.0
    %298 = vmatprep.subr.mxu0 0.0
    %299 = vmatpush1.msra.mxu0 0.0
    %300 = vmatprep.subr.mxu0 0.0
    %301 = vmatpush1.msra.mxu0 0.0
    %302 = vmatprep.subr.mxu0 0.0
    %303 = vmatpush1.msra.mxu0 0.0
    %304 = vmatprep.subr.mxu0 0.0
    %305 = vmatpush1.msra.mxu0 0.0
    %306 = vmatprep.subr.mxu0 0.0
    %307 = vmatpush1.msra.mxu0 0.0
    %308 = vmatprep.subr.mxu0 0.0
    %309 = vmatpush1.msra.mxu0 0.0
    %310 = vmatprep.mubr.f32.mxu0 0.0
    %311 = vmatmul.mubr.f32.gmra.mrb[0].mxu0 %v164
    %v312 = vpop.f32.mrb[0].mxu0
    %v313 = vadd.f32 %v143, %v312
    %v314 = vpop.f32.mrb[0].mxu0
    %v315 = vadd.f32 %v147, %v314
    %316 = vmatprep.mubr.f32.mxu0 0.0
    %317 = vmatmul.mubr.f32.gmra.mrb[0].mxu0 %v167
    %v318 = vpop.f32.mrb[0].mxu0
    %v319 = vadd.f32 %v143, %v318
    %v320 = vpop.f32.mrb[0].mxu0
    %v321 = vadd.f32 %v147, %v320
    %322 = vdwg.mxu0
    %323 = vmatprep.subr.mxu0 %v111
    %324 = vmatpush1.msra.mxu0 %v110
    %325 = vmatprep.subr.mxu0 %v117
    %326 = vmatpush1.msra.mxu0 %v116
    %327 = vmatprep.subr.mxu0 %v123
    %328 = vmatpush1.msra.mxu0 %v122
    %329 = vmatprep.subr.mxu0 %v129
    %330 = vmatpush1.msra.mxu0 %v128
    %331 = vmatprep.subr.mxu0 0.0
    %332 = vmatpush1.msra.mxu0 0.0
    %333 = vmatprep.subr.mxu0 0.0
    %334 = vmatpush1.msra.mxu0 0.0
    %335 = vmatprep.subr.mxu0 0.0
    %336 = vmatpush1.msra.mxu0 0.0
    %337 = vmatprep.subr.mxu0 0.0
    %338 = vmatpush1.msra.mxu0 0.0
    %339 = vmatprep.subr.mxu0 0.0
    %340 = vmatpush1.msra.mxu0 0.0
    %341 = vmatprep.subr.mxu0 0.0
    %342 = vmatpush1.msra.mxu0 0.0
    %343 = vmatprep.subr.mxu0 0.0
    %344 = vmatpush1.msra.mxu0 0.0
    %345 = vmatprep.subr.mxu0 0.0
    %346 = vmatpush1.msra.mxu0 0.0
    %347 = vmatprep.subr.mxu0 0.0
    %348 = vmatpush1.msra.mxu0 0.0
    %349 = vmatprep.subr.mxu0 0.0
    %350 = vmatpush1.msra.mxu0 0.0
    %351 = vmatprep.subr.mxu0 0.0
    %352 = vmatpush1.msra.mxu0 0.0
    %353 = vmatprep.subr.mxu0 0.0
    %354 = vmatpush1.msra.mxu0 0.0
    %355 = vmatprep.subr.mxu0 0.0
    %356 = vmatpush1.msra.mxu0 0.0
    %357 = vmatprep.subr.mxu0 0.0
    %358 = vmatpush1.msra.mxu0 0.0
    %359 = vmatprep.subr.mxu0 0.0
    %360 = vmatpush1.msra.mxu0 0.0
    %361 = vmatprep.subr.mxu0 0.0
    %362 = vmatpush1.msra.mxu0 0.0
    %363 = vmatprep.subr.mxu0 0.0
    %364 = vmatpush1.msra.mxu0 0.0
    %365 = vmatprep.subr.mxu0 0.0
    %366 = vmatpush1.msra.mxu0 0.0
    %367 = vmatprep.subr.mxu0 0.0
    %368 = vmatpush1.msra.mxu0 0.0
    %369 = vmatprep.subr.mxu0 0.0
    %370 = vmatpush1.msra.mxu0 0.0
    %371 = vmatprep.subr.mxu0 0.0
    %372 = vmatpush1.msra.mxu0 0.0
    %373 = vmatprep.subr.mxu0 0.0
    %374 = vmatpush1.msra.mxu0 0.0
    %375 = vmatprep.subr.mxu0 0.0
    %376 = vmatpush1.msra.mxu0 0.0
    %377 = vmatprep.subr.mxu0 0.0
    %378 = vmatpush1.msra.mxu0 0.0
    %379 = vmatprep.subr.mxu0 0.0
    %380 = vmatpush1.msra.mxu0 0.0
    %381 = vmatprep.subr.mxu0 0.0
    %382 = vmatpush1.msra.mxu0 0.0
    %383 = vmatprep.subr.mxu0 0.0
    %384 = vmatpush1.msra.mxu0 0.0
    %385 = vmatprep.subr.mxu0 0.0
    %386 = vmatpush1.msra.mxu0 0.0
    %387 = vmatprep.mubr.f32.mxu0 0.0
    %388 = vmatmul.mubr.f32.gmra.mrb[0].mxu0 %v164
    %v389 = vpop.f32.mrb[0].mxu0
    %v390 = vadd.f32 %v151, %v389
    %v391 = vpop.f32.mrb[0].mxu0
    %v392 = vadd.f32 %v155, %v391
    %393 = vmatprep.mubr.f32.mxu0 0.0
    %394 = vmatmul.mubr.f32.gmra.mrb[0].mxu0 %v167
    %v395 = vpop.f32.mrb[0].mxu0
    %v396 = vadd.f32 %v151, %v395
    %v397 = vpop.f32.mrb[0].mxu0
    %v398 = vadd.f32 %v155, %v397
    %399 = vdwg.mxu0
    %v400 = vsel %vm162, %v88, 0.0
    %401 = vadd.xlane.f32.xlu0 %v400
    %v402 = vpop.xlane.xlu0 %401
    %v403 = vsel %vm162, %v89, 0.0
    %404 = vadd.xlane.f32.xlu0 %v403
    %v405 = vpop.xlane.xlu0 %404
    %v406 = vrcp.pop 32.0
    %v407 = vmul.f32 %v402, %v406
    %v408 = vmul.f32 %v405, %v406
    %v409 = vsub.f32 %v88, %v407
    %v410 = vsub.f32 %v89, %v408
    %v411 = vmul.f32 %v409, %v409
    %v412 = vmul.f32 %v410, %v410
    %v413 = vsel %vm162, %v411, 0.0
    %414 = vadd.xlane.f32.xlu0 %v413
    %v415 = vpop.xlane.xlu0 %414
    %v416 = vsel %vm162, %v412, 0.0
    %417 = vadd.xlane.f32.xlu0 %v416
    %v418 = vpop.xlane.xlu0 %417
    %v419 = vmul.f32 %v415, %v406
    %v420 = vmul.f32 %v418, %v406
    %v421 = vadd.f32 %v419, 1e-06
    %v422 = vadd.f32 %v420, 1e-06
    %v423 = vrsqrt.pop %v421
    %v424 = vrsqrt.pop %v422
    %v425 = vmul.f32 %v409, %v423
    %v426 = vmul.f32 %v410, %v424
    %v427 = vadd.f32 %v238, 1.0
    %v428 = vadd.f32 %v244, 1.0
    %v429 = vmul.f32 %v425, %v427
    %v430 = vmul.f32 %v426, %v428
    %v431 = vadd.f32 %v429, %v236
    %v432 = vadd.f32 %v430, %v242
    %v433 = vld [vmem:[%s4] sm:$0xff]
    %v434 = vld [vmem:[%s4 + $0x8] sm:$0xff]
    %v435 = vld [vmem:[%s4 + $0x10] sm:$0xff]
    %v436 = vld [vmem:[%s4 + $0x18] sm:$0xff]
    %v437 = vld [vmem:[%s4 + $0x20] sm:$0xff]
    %v438 = vld [vmem:[%s4 + $0x28] sm:$0xff]
    %v439 = vld [vmem:[%s4 + $0x30] sm:$0xff]
    %v440 = vld [vmem:[%s4 + $0x38] sm:$0xff]
    %v441 = vld [vmem:[%s4 + $0x40] sm:$0xff]
    %v442 = vld [vmem:[%s4 + $0x48] sm:$0xff]
    %v443 = vld [vmem:[%s4 + $0x50] sm:$0xff]
    %v444 = vld [vmem:[%s4 + $0x58] sm:$0xff]
    %v445 = vld [vmem:[%s4 + $0x60] sm:$0xff]
    %v446 = vld [vmem:[%s4 + $0x68] sm:$0xff]
    %v447 = vld [vmem:[%s4 + $0x70] sm:$0xff]
    %v448 = vld [vmem:[%s4 + $0x78] sm:$0xff]
    %v449 = vld [vmem:[%s4 + $0x80] sm:$0xff]
    %v450 = vld [vmem:[%s4 + $0x88] sm:$0xff]
    %v451 = vld [vmem:[%s4 + $0x90] sm:$0xff]
    %v452 = vld [vmem:[%s4 + $0x98] sm:$0xff]
    %v453 = vld [vmem:[%s4 + $0xa0] sm:$0xff]
    %v454 = vld [vmem:[%s4 + $0xa8] sm:$0xff]
    %v455 = vld [vmem:[%s4 + $0xb0] sm:$0xff]
    %v456 = vld [vmem:[%s4 + $0xb8] sm:$0xff]
    %v457 = vld [vmem:[%s4 + $0xc0] sm:$0xff]
    %v458 = vld [vmem:[%s4 + $0xc8] sm:$0xff]
    %v459 = vld [vmem:[%s4 + $0xd0] sm:$0xff]
    %v460 = vld [vmem:[%s4 + $0xd8] sm:$0xff]
    %v461 = vld [vmem:[%s4 + $0xe0] sm:$0xff]
    %v462 = vld [vmem:[%s4 + $0xe8] sm:$0xff]
    %v463 = vld [vmem:[%s4 + $0xf0] sm:$0xff]
    %v464 = vld [vmem:[%s4 + $0xf8] sm:$0xff]
    %v465 = vld [vmem:[%s4 + $0x100] sm:$0xff]
    %v466 = vld [vmem:[%s4 + $0x108] sm:$0xff]
    %v467 = vld [vmem:[%s4 + $0x110] sm:$0xff]
    %v468 = vld [vmem:[%s4 + $0x118] sm:$0xff]
    %v469 = vld [vmem:[%s4 + $0x120] sm:$0xff]
    %v470 = vld [vmem:[%s4 + $0x128] sm:$0xff]
    %v471 = vld [vmem:[%s4 + $0x130] sm:$0xff]
    %v472 = vld [vmem:[%s4 + $0x138] sm:$0xff]
    %v473 = vld [vmem:[%s4 + $0x140] sm:$0xff]
    %v474 = vld [vmem:[%s4 + $0x148] sm:$0xff]
    %v475 = vld [vmem:[%s4 + $0x150] sm:$0xff]
    %v476 = vld [vmem:[%s4 + $0x158] sm:$0xff]
    %v477 = vld [vmem:[%s4 + $0x160] sm:$0xff]
    %v478 = vld [vmem:[%s4 + $0x168] sm:$0xff]
    %v479 = vld [vmem:[%s4 + $0x170] sm:$0xff]
    %v480 = vld [vmem:[%s4 + $0x178] sm:$0xff]
    %v481 = vld [vmem:[%s9] sm:$0xff]
    %v482 = vld [vmem:[%s9 + $0x8] sm:$0xf]
    %v485 = vlaneseq
    %v486 = vshrl.u32 %v485, 7
    %v487 = vsub.s32 0, %v486
    %v488 = vrot.slane %v481, %v487
    %v489 = vlaneseq
    %v490 = vshrl.u32 %v489, 7
    %v491 = vsub.s32 1, %v490
    %v492 = vrot.slane %v481, %v491
    %v493 = vlaneseq
    %v494 = vshrl.u32 %v493, 7
    %v495 = vsub.s32 2, %v494
    %v496 = vrot.slane %v481, %v495
    %v497 = vlaneseq
    %v498 = vshrl.u32 %v497, 7
    %v499 = vsub.s32 3, %v498
    %v500 = vrot.slane %v481, %v499
    %v501 = vlaneseq
    %v502 = vshrl.u32 %v501, 7
    %v503 = vsub.s32 4, %v502
    %v504 = vrot.slane %v481, %v503
    %v505 = vlaneseq
    %v506 = vshrl.u32 %v505, 7
    %v507 = vsub.s32 5, %v506
    %v508 = vrot.slane %v481, %v507
    %v509 = vlaneseq
    %v510 = vshrl.u32 %v509, 7
    %v511 = vsub.s32 6, %v510
    %v512 = vrot.slane %v481, %v511
    %v513 = vlaneseq
    %v514 = vshrl.u32 %v513, 7
    %v515 = vsub.s32 7, %v514
    %v516 = vrot.slane %v481, %v515
    %v517 = vlaneseq
    %v518 = vshrl.u32 %v517, 7
    %v519 = vsub.s32 0, %v518
    %v520 = vrot.slane %v482, %v519
    %v521 = vlaneseq
    %v522 = vshrl.u32 %v521, 7
    %v523 = vsub.s32 1, %v522
    %v524 = vrot.slane %v482, %v523
    %v525 = vlaneseq
    %v526 = vshrl.u32 %v525, 7
    %v527 = vsub.s32 2, %v526
    %v528 = vrot.slane %v482, %v527
    %v529 = vlaneseq
    %v530 = vshrl.u32 %v529, 7
    %v531 = vsub.s32 3, %v530
    %v532 = vrot.slane %v482, %v531
    %v546 = vsel %vm162, %v431, 0
    %v549 = vsel %vm162, %v432, 0
    %551 = vmatprep.subr.mxu0 %v434
    %552 = vmatpush1.msra.mxu0 %v433
    %553 = vmatprep.subr.mxu0 %v446
    %554 = vmatpush1.msra.mxu0 %v445
    %555 = vmatprep.subr.mxu0 %v458
    %556 = vmatpush1.msra.mxu0 %v457
    %557 = vmatprep.subr.mxu0 %v470
    %558 = vmatpush1.msra.mxu0 %v469
    %559 = vmatprep.subr.mxu0 0.0
    %560 = vmatpush1.msra.mxu0 0.0
    %561 = vmatprep.subr.mxu0 0.0
    %562 = vmatpush1.msra.mxu0 0.0
    %563 = vmatprep.subr.mxu0 0.0
    %564 = vmatpush1.msra.mxu0 0.0
    %565 = vmatprep.subr.mxu0 0.0
    %566 = vmatpush1.msra.mxu0 0.0
    %567 = vmatprep.subr.mxu0 0.0
    %568 = vmatpush1.msra.mxu0 0.0
    %569 = vmatprep.subr.mxu0 0.0
    %570 = vmatpush1.msra.mxu0 0.0
    %571 = vmatprep.subr.mxu0 0.0
    %572 = vmatpush1.msra.mxu0 0.0
    %573 = vmatprep.subr.mxu0 0.0
    %574 = vmatpush1.msra.mxu0 0.0
    %575 = vmatprep.subr.mxu0 0.0
    %576 = vmatpush1.msra.mxu0 0.0
    %577 = vmatprep.subr.mxu0 0.0
    %578 = vmatpush1.msra.mxu0 0.0
    %579 = vmatprep.subr.mxu0 0.0
    %580 = vmatpush1.msra.mxu0 0.0
    %581 = vmatprep.subr.mxu0 0.0
    %582 = vmatpush1.msra.mxu0 0.0
    %583 = vmatprep.subr.mxu0 0.0
    %584 = vmatpush1.msra.mxu0 0.0
    %585 = vmatprep.subr.mxu0 0.0
    %586 = vmatpush1.msra.mxu0 0.0
    %587 = vmatprep.subr.mxu0 0.0
    %588 = vmatpush1.msra.mxu0 0.0
    %589 = vmatprep.subr.mxu0 0.0
    %590 = vmatpush1.msra.mxu0 0.0
    %591 = vmatprep.subr.mxu0 0.0
    %592 = vmatpush1.msra.mxu0 0.0
    %593 = vmatprep.subr.mxu0 0.0
    %594 = vmatpush1.msra.mxu0 0.0
    %595 = vmatprep.subr.mxu0 0.0
    %596 = vmatpush1.msra.mxu0 0.0
    %597 = vmatprep.subr.mxu0 0.0
    %598 = vmatpush1.msra.mxu0 0.0
    %599 = vmatprep.subr.mxu0 0.0
    %600 = vmatpush1.msra.mxu0 0.0
    %601 = vmatprep.subr.mxu0 0.0
    %602 = vmatpush1.msra.mxu0 0.0
    %603 = vmatprep.subr.mxu0 0.0
    %604 = vmatpush1.msra.mxu0 0.0
    %605 = vmatprep.subr.mxu0 0.0
    %606 = vmatpush1.msra.mxu0 0.0
    %607 = vmatprep.subr.mxu0 0.0
    %608 = vmatpush1.msra.mxu0 0.0
    %609 = vmatprep.subr.mxu0 0.0
    %610 = vmatpush1.msra.mxu0 0.0
    %611 = vmatprep.subr.mxu0 0.0
    %612 = vmatpush1.msra.mxu0 0.0
    %613 = vmatprep.subr.mxu0 0.0
    %614 = vmatpush1.msra.mxu0 0.0
    %615 = vmatprep.mubr.f32.mxu0 0.0
    %616 = vmatmul.mubr.f32.gmra.mrb[0].mxu0 %v546
    %v617 = vpop.f32.mrb[0].mxu0
    %v618 = vadd.f32 %v488, %v617
    %v619 = vpop.f32.mrb[0].mxu0
    %v620 = vadd.f32 %v492, %v619
    %621 = vmatprep.mubr.f32.mxu0 0.0
    %622 = vmatmul.mubr.f32.gmra.mrb[0].mxu0 %v549
    %v623 = vpop.f32.mrb[0].mxu0
    %v624 = vadd.f32 %v488, %v623
    %v625 = vpop.f32.mrb[0].mxu0
    %v626 = vadd.f32 %v492, %v625
    %627 = vdwg.mxu0
    %628 = vmatprep.subr.mxu0 %v436
    %629 = vmatpush1.msra.mxu0 %v435
    %630 = vmatprep.subr.mxu0 %v448
    %631 = vmatpush1.msra.mxu0 %v447
    %632 = vmatprep.subr.mxu0 %v460
    %633 = vmatpush1.msra.mxu0 %v459
    %634 = vmatprep.subr.mxu0 %v472
    %635 = vmatpush1.msra.mxu0 %v471
    %636 = vmatprep.subr.mxu0 0.0
    %637 = vmatpush1.msra.mxu0 0.0
    %638 = vmatprep.subr.mxu0 0.0
    %639 = vmatpush1.msra.mxu0 0.0
    %640 = vmatprep.subr.mxu0 0.0
    %641 = vmatpush1.msra.mxu0 0.0
    %642 = vmatprep.subr.mxu0 0.0
    %643 = vmatpush1.msra.mxu0 0.0
    %644 = vmatprep.subr.mxu0 0.0
    %645 = vmatpush1.msra.mxu0 0.0
    %646 = vmatprep.subr.mxu0 0.0
    %647 = vmatpush1.msra.mxu0 0.0
    %648 = vmatprep.subr.mxu0 0.0
    %649 = vmatpush1.msra.mxu0 0.0
    %650 = vmatprep.subr.mxu0 0.0
    %651 = vmatpush1.msra.mxu0 0.0
    %652 = vmatprep.subr.mxu0 0.0
    %653 = vmatpush1.msra.mxu0 0.0
    %654 = vmatprep.subr.mxu0 0.0
    %655 = vmatpush1.msra.mxu0 0.0
    %656 = vmatprep.subr.mxu0 0.0
    %657 = vmatpush1.msra.mxu0 0.0
    %658 = vmatprep.subr.mxu0 0.0
    %659 = vmatpush1.msra.mxu0 0.0
    %660 = vmatprep.subr.mxu0 0.0
    %661 = vmatpush1.msra.mxu0 0.0
    %662 = vmatprep.subr.mxu0 0.0
    %663 = vmatpush1.msra.mxu0 0.0
    %664 = vmatprep.subr.mxu0 0.0
    %665 = vmatpush1.msra.mxu0 0.0
    %666 = vmatprep.subr.mxu0 0.0
    %667 = vmatpush1.msra.mxu0 0.0
    %668 = vmatprep.subr.mxu0 0.0
    %669 = vmatpush1.msra.mxu0 0.0
    %670 = vmatprep.subr.mxu0 0.0
    %671 = vmatpush1.msra.mxu0 0.0
    %672 = vmatprep.subr.mxu0 0.0
    %673 = vmatpush1.msra.mxu0 0.0
    %674 = vmatprep.subr.mxu0 0.0
    %675 = vmatpush1.msra.mxu0 0.0
    %676 = vmatprep.subr.mxu0 0.0
    %677 = vmatpush1.msra.mxu0 0.0
    %678 = vmatprep.subr.mxu0 0.0
    %679 = vmatpush1.msra.mxu0 0.0
    %680 = vmatprep.subr.mxu0 0.0
    %681 = vmatpush1.msra.mxu0 0.0
    %682 = vmatprep.subr.mxu0 0.0
    %683 = vmatpush1.msra.mxu0 0.0
    %684 = vmatprep.subr.mxu0 0.0
    %685 = vmatpush1.msra.mxu0 0.0
    %686 = vmatprep.subr.mxu0 0.0
    %687 = vmatpush1.msra.mxu0 0.0
    %688 = vmatprep.subr.mxu0 0.0
    %689 = vmatpush1.msra.mxu0 0.0
    %690 = vmatprep.subr.mxu0 0.0
    %691 = vmatpush1.msra.mxu0 0.0
    %692 = vmatprep.mubr.f32.mxu0 0.0
    %693 = vmatmul.mubr.f32.gmra.mrb[0].mxu0 %v546
    %v694 = vpop.f32.mrb[0].mxu0
    %v695 = vadd.f32 %v496, %v694
    %v696 = vpop.f32.mrb[0].mxu0
    %v697 = vadd.f32 %v500, %v696
    %698 = vmatprep.mubr.f32.mxu0 0.0
    %699 = vmatmul.mubr.f32.gmra.mrb[0].mxu0 %v549
    %v700 = vpop.f32.mrb[0].mxu0
    %v701 = vadd.f32 %v496, %v700
    %v702 = vpop.f32.mrb[0].mxu0
    %v703 = vadd.f32 %v500, %v702
    %704 = vdwg.mxu0
    %705 = vmatprep.subr.mxu0 %v438
    %706 = vmatpush1.msra.mxu0 %v437
    %707 = vmatprep.subr.mxu0 %v450
    %708 = vmatpush1.msra.mxu0 %v449
    %709 = vmatprep.subr.mxu0 %v462
    %710 = vmatpush1.msra.mxu0 %v461
    %711 = vmatprep.subr.mxu0 %v474
    %712 = vmatpush1.msra.mxu0 %v473
    %713 = vmatprep.subr.mxu0 0.0
    %714 = vmatpush1.msra.mxu0 0.0
    %715 = vmatprep.subr.mxu0 0.0
    %716 = vmatpush1.msra.mxu0 0.0
    %717 = vmatprep.subr.mxu0 0.0
    %718 = vmatpush1.msra.mxu0 0.0
    %719 = vmatprep.subr.mxu0 0.0
    %720 = vmatpush1.msra.mxu0 0.0
    %721 = vmatprep.subr.mxu0 0.0
    %722 = vmatpush1.msra.mxu0 0.0
    %723 = vmatprep.subr.mxu0 0.0
    %724 = vmatpush1.msra.mxu0 0.0
    %725 = vmatprep.subr.mxu0 0.0
    %726 = vmatpush1.msra.mxu0 0.0
    %727 = vmatprep.subr.mxu0 0.0
    %728 = vmatpush1.msra.mxu0 0.0
    %729 = vmatprep.subr.mxu0 0.0
    %730 = vmatpush1.msra.mxu0 0.0
    %731 = vmatprep.subr.mxu0 0.0
    %732 = vmatpush1.msra.mxu0 0.0
    %733 = vmatprep.subr.mxu0 0.0
    %734 = vmatpush1.msra.mxu0 0.0
    %735 = vmatprep.subr.mxu0 0.0
    %736 = vmatpush1.msra.mxu0 0.0
    %737 = vmatprep.subr.mxu0 0.0
    %738 = vmatpush1.msra.mxu0 0.0
    %739 = vmatprep.subr.mxu0 0.0
    %740 = vmatpush1.msra.mxu0 0.0
    %741 = vmatprep.subr.mxu0 0.0
    %742 = vmatpush1.msra.mxu0 0.0
    %743 = vmatprep.subr.mxu0 0.0
    %744 = vmatpush1.msra.mxu0 0.0
    %745 = vmatprep.subr.mxu0 0.0
    %746 = vmatpush1.msra.mxu0 0.0
    %747 = vmatprep.subr.mxu0 0.0
    %748 = vmatpush1.msra.mxu0 0.0
    %749 = vmatprep.subr.mxu0 0.0
    %750 = vmatpush1.msra.mxu0 0.0
    %751 = vmatprep.subr.mxu0 0.0
    %752 = vmatpush1.msra.mxu0 0.0
    %753 = vmatprep.subr.mxu0 0.0
    %754 = vmatpush1.msra.mxu0 0.0
    %755 = vmatprep.subr.mxu0 0.0
    %756 = vmatpush1.msra.mxu0 0.0
    %757 = vmatprep.subr.mxu0 0.0
    %758 = vmatpush1.msra.mxu0 0.0
    %759 = vmatprep.subr.mxu0 0.0
    %760 = vmatpush1.msra.mxu0 0.0
    %761 = vmatprep.subr.mxu0 0.0
    %762 = vmatpush1.msra.mxu0 0.0
    %763 = vmatprep.subr.mxu0 0.0
    %764 = vmatpush1.msra.mxu0 0.0
    %765 = vmatprep.subr.mxu0 0.0
    %766 = vmatpush1.msra.mxu0 0.0
    %767 = vmatprep.subr.mxu0 0.0
    %768 = vmatpush1.msra.mxu0 0.0
    %769 = vmatprep.mubr.f32.mxu0 0.0
    %770 = vmatmul.mubr.f32.gmra.mrb[0].mxu0 %v546
    %v771 = vpop.f32.mrb[0].mxu0
    %v772 = vadd.f32 %v504, %v771
    %v773 = vpop.f32.mrb[0].mxu0
    %v774 = vadd.f32 %v508, %v773
    %775 = vmatprep.mubr.f32.mxu0 0.0
    %776 = vmatmul.mubr.f32.gmra.mrb[0].mxu0 %v549
    %v777 = vpop.f32.mrb[0].mxu0
    %v778 = vadd.f32 %v504, %v777
    %v779 = vpop.f32.mrb[0].mxu0
    %v780 = vadd.f32 %v508, %v779
    %781 = vdwg.mxu0
    %782 = vmatprep.subr.mxu0 %v440
    %783 = vmatpush1.msra.mxu0 %v439
    %784 = vmatprep.subr.mxu0 %v452
    %785 = vmatpush1.msra.mxu0 %v451
    %786 = vmatprep.subr.mxu0 %v464
    %787 = vmatpush1.msra.mxu0 %v463
    %788 = vmatprep.subr.mxu0 %v476
    %789 = vmatpush1.msra.mxu0 %v475
    %790 = vmatprep.subr.mxu0 0.0
    %791 = vmatpush1.msra.mxu0 0.0
    %792 = vmatprep.subr.mxu0 0.0
    %793 = vmatpush1.msra.mxu0 0.0
    %794 = vmatprep.subr.mxu0 0.0
    %795 = vmatpush1.msra.mxu0 0.0
    %796 = vmatprep.subr.mxu0 0.0
    %797 = vmatpush1.msra.mxu0 0.0
    %798 = vmatprep.subr.mxu0 0.0
    %799 = vmatpush1.msra.mxu0 0.0
    %800 = vmatprep.subr.mxu0 0.0
    %801 = vmatpush1.msra.mxu0 0.0
    %802 = vmatprep.subr.mxu0 0.0
    %803 = vmatpush1.msra.mxu0 0.0
    %804 = vmatprep.subr.mxu0 0.0
    %805 = vmatpush1.msra.mxu0 0.0
    %806 = vmatprep.subr.mxu0 0.0
    %807 = vmatpush1.msra.mxu0 0.0
    %808 = vmatprep.subr.mxu0 0.0
    %809 = vmatpush1.msra.mxu0 0.0
    %810 = vmatprep.subr.mxu0 0.0
    %811 = vmatpush1.msra.mxu0 0.0
    %812 = vmatprep.subr.mxu0 0.0
    %813 = vmatpush1.msra.mxu0 0.0
    %814 = vmatprep.subr.mxu0 0.0
    %815 = vmatpush1.msra.mxu0 0.0
    %816 = vmatprep.subr.mxu0 0.0
    %817 = vmatpush1.msra.mxu0 0.0
    %818 = vmatprep.subr.mxu0 0.0
    %819 = vmatpush1.msra.mxu0 0.0
    %820 = vmatprep.subr.mxu0 0.0
    %821 = vmatpush1.msra.mxu0 0.0
    %822 = vmatprep.subr.mxu0 0.0
    %823 = vmatpush1.msra.mxu0 0.0
    %824 = vmatprep.subr.mxu0 0.0
    %825 = vmatpush1.msra.mxu0 0.0
    %826 = vmatprep.subr.mxu0 0.0
    %827 = vmatpush1.msra.mxu0 0.0
    %828 = vmatprep.subr.mxu0 0.0
    %829 = vmatpush1.msra.mxu0 0.0
    %830 = vmatprep.subr.mxu0 0.0
    %831 = vmatpush1.msra.mxu0 0.0
    %832 = vmatprep.subr.mxu0 0.0
    %833 = vmatpush1.msra.mxu0 0.0
    %834 = vmatprep.subr.mxu0 0.0
    %835 = vmatpush1.msra.mxu0 0.0
    %836 = vmatprep.subr.mxu0 0.0
    %837 = vmatpush1.msra.mxu0 0.0
    %838 = vmatprep.subr.mxu0 0.0
    %839 = vmatpush1.msra.mxu0 0.0
    %840 = vmatprep.subr.mxu0 0.0
    %841 = vmatpush1.msra.mxu0 0.0
    %842 = vmatprep.subr.mxu0 0.0
    %843 = vmatpush1.msra.mxu0 0.0
    %844 = vmatprep.subr.mxu0 0.0
    %845 = vmatpush1.msra.mxu0 0.0
    %846 = vmatprep.mubr.f32.mxu0 0.0
    %847 = vmatmul.mubr.f32.gmra.mrb[0].mxu0 %v546
    %v848 = vpop.f32.mrb[0].mxu0
    %v849 = vadd.f32 %v512, %v848
    %v850 = vpop.f32.mrb[0].mxu0
    %v851 = vadd.f32 %v516, %v850
    %852 = vmatprep.mubr.f32.mxu0 0.0
    %853 = vmatmul.mubr.f32.gmra.mrb[0].mxu0 %v549
    %v854 = vpop.f32.mrb[0].mxu0
    %v855 = vadd.f32 %v512, %v854
    %v856 = vpop.f32.mrb[0].mxu0
    %v857 = vadd.f32 %v516, %v856
    %858 = vdwg.mxu0
    %859 = vmatprep.subr.mxu0 %v442
    %860 = vmatpush1.msra.mxu0 %v441
    %861 = vmatprep.subr.mxu0 %v454
    %862 = vmatpush1.msra.mxu0 %v453
    %863 = vmatprep.subr.mxu0 %v466
    %864 = vmatpush1.msra.mxu0 %v465
    %865 = vmatprep.subr.mxu0 %v478
    %866 = vmatpush1.msra.mxu0 %v477
    %867 = vmatprep.subr.mxu0 0.0
    %868 = vmatpush1.msra.mxu0 0.0
    %869 = vmatprep.subr.mxu0 0.0
    %870 = vmatpush1.msra.mxu0 0.0
    %871 = vmatprep.subr.mxu0 0.0
    %872 = vmatpush1.msra.mxu0 0.0
    %873 = vmatprep.subr.mxu0 0.0
    %874 = vmatpush1.msra.mxu0 0.0
    %875 = vmatprep.subr.mxu0 0.0
    %876 = vmatpush1.msra.mxu0 0.0
    %877 = vmatprep.subr.mxu0 0.0
    %878 = vmatpush1.msra.mxu0 0.0
    %879 = vmatprep.subr.mxu0 0.0
    %880 = vmatpush1.msra.mxu0 0.0
    %881 = vmatprep.subr.mxu0 0.0
    %882 = vmatpush1.msra.mxu0 0.0
    %883 = vmatprep.subr.mxu0 0.0
    %884 = vmatpush1.msra.mxu0 0.0
    %885 = vmatprep.subr.mxu0 0.0
    %886 = vmatpush1.msra.mxu0 0.0
    %887 = vmatprep.subr.mxu0 0.0
    %888 = vmatpush1.msra.mxu0 0.0
    %889 = vmatprep.subr.mxu0 0.0
    %890 = vmatpush1.msra.mxu0 0.0
    %891 = vmatprep.subr.mxu0 0.0
    %892 = vmatpush1.msra.mxu0 0.0
    %893 = vmatprep.subr.mxu0 0.0
    %894 = vmatpush1.msra.mxu0 0.0
    %895 = vmatprep.subr.mxu0 0.0
    %896 = vmatpush1.msra.mxu0 0.0
    %897 = vmatprep.subr.mxu0 0.0
    %898 = vmatpush1.msra.mxu0 0.0
    %899 = vmatprep.subr.mxu0 0.0
    %900 = vmatpush1.msra.mxu0 0.0
    %901 = vmatprep.subr.mxu0 0.0
    %902 = vmatpush1.msra.mxu0 0.0
    %903 = vmatprep.subr.mxu0 0.0
    %904 = vmatpush1.msra.mxu0 0.0
    %905 = vmatprep.subr.mxu0 0.0
    %906 = vmatpush1.msra.mxu0 0.0
    %907 = vmatprep.subr.mxu0 0.0
    %908 = vmatpush1.msra.mxu0 0.0
    %909 = vmatprep.subr.mxu0 0.0
    %910 = vmatpush1.msra.mxu0 0.0
    %911 = vmatprep.subr.mxu0 0.0
    %912 = vmatpush1.msra.mxu0 0.0
    %913 = vmatprep.subr.mxu0 0.0
    %914 = vmatpush1.msra.mxu0 0.0
    %915 = vmatprep.subr.mxu0 0.0
    %916 = vmatpush1.msra.mxu0 0.0
    %917 = vmatprep.subr.mxu0 0.0
    %918 = vmatpush1.msra.mxu0 0.0
    %919 = vmatprep.subr.mxu0 0.0
    %920 = vmatpush1.msra.mxu0 0.0
    %921 = vmatprep.subr.mxu0 0.0
    %922 = vmatpush1.msra.mxu0 0.0
    %923 = vmatprep.mubr.f32.mxu0 0.0
    %924 = vmatmul.mubr.f32.gmra.mrb[0].mxu0 %v546
    %v925 = vpop.f32.mrb[0].mxu0
    %v926 = vadd.f32 %v520, %v925
    %v927 = vpop.f32.mrb[0].mxu0
    %v928 = vadd.f32 %v524, %v927
    %929 = vmatprep.mubr.f32.mxu0 0.0
    %930 = vmatmul.mubr.f32.gmra.mrb[0].mxu0 %v549
    %v931 = vpop.f32.mrb[0].mxu0
    %v932 = vadd.f32 %v520, %v931
    %v933 = vpop.f32.mrb[0].mxu0
    %v934 = vadd.f32 %v524, %v933
    %935 = vdwg.mxu0
    %936 = vmatprep.subr.mxu0 %v444
    %937 = vmatpush1.msra.mxu0 %v443
    %938 = vmatprep.subr.mxu0 %v456
    %939 = vmatpush1.msra.mxu0 %v455
    %940 = vmatprep.subr.mxu0 %v468
    %941 = vmatpush1.msra.mxu0 %v467
    %942 = vmatprep.subr.mxu0 %v480
    %943 = vmatpush1.msra.mxu0 %v479
    %944 = vmatprep.subr.mxu0 0.0
    %945 = vmatpush1.msra.mxu0 0.0
    %946 = vmatprep.subr.mxu0 0.0
    %947 = vmatpush1.msra.mxu0 0.0
    %948 = vmatprep.subr.mxu0 0.0
    %949 = vmatpush1.msra.mxu0 0.0
    %950 = vmatprep.subr.mxu0 0.0
    %951 = vmatpush1.msra.mxu0 0.0
    %952 = vmatprep.subr.mxu0 0.0
    %953 = vmatpush1.msra.mxu0 0.0
    %954 = vmatprep.subr.mxu0 0.0
    %955 = vmatpush1.msra.mxu0 0.0
    %956 = vmatprep.subr.mxu0 0.0
    %957 = vmatpush1.msra.mxu0 0.0
    %958 = vmatprep.subr.mxu0 0.0
    %959 = vmatpush1.msra.mxu0 0.0
    %960 = vmatprep.subr.mxu0 0.0
    %961 = vmatpush1.msra.mxu0 0.0
    %962 = vmatprep.subr.mxu0 0.0
    %963 = vmatpush1.msra.mxu0 0.0
    %964 = vmatprep.subr.mxu0 0.0
    %965 = vmatpush1.msra.mxu0 0.0
    %966 = vmatprep.subr.mxu0 0.0
    %967 = vmatpush1.msra.mxu0 0.0
    %968 = vmatprep.subr.mxu0 0.0
    %969 = vmatpush1.msra.mxu0 0.0
    %970 = vmatprep.subr.mxu0 0.0
    %971 = vmatpush1.msra.mxu0 0.0
    %972 = vmatprep.subr.mxu0 0.0
    %973 = vmatpush1.msra.mxu0 0.0
    %974 = vmatprep.subr.mxu0 0.0
    %975 = vmatpush1.msra.mxu0 0.0
    %976 = vmatprep.subr.mxu0 0.0
    %977 = vmatpush1.msra.mxu0 0.0
    %978 = vmatprep.subr.mxu0 0.0
    %979 = vmatpush1.msra.mxu0 0.0
    %980 = vmatprep.subr.mxu0 0.0
    %981 = vmatpush1.msra.mxu0 0.0
    %982 = vmatprep.subr.mxu0 0.0
    %983 = vmatpush1.msra.mxu0 0.0
    %984 = vmatprep.subr.mxu0 0.0
    %985 = vmatpush1.msra.mxu0 0.0
    %986 = vmatprep.subr.mxu0 0.0
    %987 = vmatpush1.msra.mxu0 0.0
    %988 = vmatprep.subr.mxu0 0.0
    %989 = vmatpush1.msra.mxu0 0.0
    %990 = vmatprep.subr.mxu0 0.0
    %991 = vmatpush1.msra.mxu0 0.0
    %992 = vmatprep.subr.mxu0 0.0
    %993 = vmatpush1.msra.mxu0 0.0
    %994 = vmatprep.subr.mxu0 0.0
    %995 = vmatpush1.msra.mxu0 0.0
    %996 = vmatprep.subr.mxu0 0.0
    %997 = vmatpush1.msra.mxu0 0.0
    %998 = vmatprep.subr.mxu0 0.0
    %999 = vmatpush1.msra.mxu0 0.0
    %1000 = vmatprep.mubr.f32.mxu0 0.0
    %1001 = vmatmul.mubr.f32.gmra.mrb[0].mxu0 %v546
    %v1002 = vpop.f32.mrb[0].mxu0
    %v1003 = vadd.f32 %v528, %v1002
    %v1004 = vpop.f32.mrb[0].mxu0
    %v1005 = vadd.f32 %v532, %v1004
    %1006 = vmatprep.mubr.f32.mxu0 0.0
    %1007 = vmatmul.mubr.f32.gmra.mrb[0].mxu0 %v549
    %v1008 = vpop.f32.mrb[0].mxu0
    %v1009 = vadd.f32 %v528, %v1008
    %v1010 = vpop.f32.mrb[0].mxu0
    %v1011 = vadd.f32 %v532, %v1010
    %1012 = vdwg.mxu0
    %v1013 = vld [vmem:[%s10] sm:$0x1]
    %v1015 = vlaneseq
    %v1016 = vshrl.u32 %v1015, 7
    %v1017 = vsub.s32 0, %v1016
    %v1018 = vrot.slane %v1013, %v1017
    %1020 = vmatprep.subr.mxu0 0.0
    %1021 = vmatpush1.xpose.msra.mxu0 %v772
    %1022 = vmatprep.subr.mxu0 0.0
    %1023 = vmatpush1.xpose.msra.mxu0 0.0
    %1024 = vmatprep.subr.mxu0 0.0
    %1025 = vmatpush1.xpose.msra.mxu0 0.0
    %1026 = vmatprep.subr.mxu0 0.0
    %1027 = vmatpush1.xpose.msra.mxu0 0.0
    %1028 = vmatprep.subr.mxu0 0.0
    %1029 = vmatpush1.xpose.msra.mxu0 0.0
    %1030 = vmatprep.subr.mxu0 0.0
    %1031 = vmatpush1.xpose.msra.mxu0 0.0
    %1032 = vmatprep.subr.mxu0 0.0
    %1033 = vmatpush1.xpose.msra.mxu0 0.0
    %1034 = vmatprep.subr.mxu0 0.0
    %1035 = vmatpush1.xpose.msra.mxu0 0.0
    %1036 = vmatprep.subr.mxu0 0.0
    %1037 = vmatpush1.xpose.msra.mxu0 0.0
    %1038 = vmatprep.subr.mxu0 0.0
    %1039 = vmatpush1.xpose.msra.mxu0 0.0
    %1040 = vmatprep.subr.mxu0 0.0
    %1041 = vmatpush1.xpose.msra.mxu0 0.0
    %1042 = vmatprep.subr.mxu0 0.0
    %1043 = vmatpush1.xpose.msra.mxu0 0.0
    %1044 = vmatprep.subr.mxu0 0.0
    %1045 = vmatpush1.xpose.msra.mxu0 0.0
    %1046 = vmatprep.subr.mxu0 0.0
    %1047 = vmatpush1.xpose.msra.mxu0 0.0
    %1048 = vmatprep.subr.mxu0 0.0
    %1049 = vmatpush1.xpose.msra.mxu0 0.0
    %1050 = vmatprep.subr.mxu0 0.0
    %1051 = vmatpush1.xpose.msra.mxu0 0.0
    %1052 = vmatprep.subr.mxu0 0.0
    %1053 = vmatpush1.xpose.msra.mxu0 0.0
    %1054 = vmatprep.subr.mxu0 0.0
    %1055 = vmatpush1.xpose.msra.mxu0 0.0
    %1056 = vmatprep.subr.mxu0 0.0
    %1057 = vmatpush1.xpose.msra.mxu0 0.0
    %1058 = vmatprep.subr.mxu0 0.0
    %1059 = vmatpush1.xpose.msra.mxu0 0.0
    %1060 = vmatprep.subr.mxu0 0.0
    %1061 = vmatpush1.xpose.msra.mxu0 0.0
    %1062 = vmatprep.subr.mxu0 0.0
    %1063 = vmatpush1.xpose.msra.mxu0 0.0
    %1064 = vmatprep.subr.mxu0 0.0
    %1065 = vmatpush1.xpose.msra.mxu0 0.0
    %1066 = vmatprep.subr.mxu0 0.0
    %1067 = vmatpush1.xpose.msra.mxu0 0.0
    %1068 = vmatprep.subr.mxu0 0.0
    %1069 = vmatpush1.xpose.msra.mxu0 0.0
    %1070 = vmatprep.subr.mxu0 0.0
    %1071 = vmatpush1.xpose.msra.mxu0 0.0
    %1072 = vmatprep.subr.mxu0 0.0
    %1073 = vmatpush1.xpose.msra.mxu0 0.0
    %1074 = vmatprep.subr.mxu0 0.0
    %1075 = vmatpush1.xpose.msra.mxu0 0.0
    %1076 = vmatprep.subr.mxu0 0.0
    %1077 = vmatpush1.xpose.msra.mxu0 0.0
    %1078 = vmatprep.subr.mxu0 0.0
    %1079 = vmatpush1.xpose.msra.mxu0 0.0
    %1080 = vmatprep.subr.mxu0 0.0
    %1081 = vmatpush1.xpose.msra.mxu0 0.0
    %1082 = vmatprep.subr.mxu0 0.0
    %1083 = vmatpush1.xpose.msra.mxu0 0.0
    %1084 = vmatprep.mubr.f32.mxu0 0.0
    %1085 = vmatmul.mubr.f32.gmra.mrb[0].mxu0 %v618
    %v1086 = vpop.f32.mrb[0].mxu0
    %v1087 = vadd.f32 0.0, %v1086
    %v1088 = vpop.f32.mrb[0].mxu0
    %1089 = vdwg.mxu0
    %1090 = vmatprep.subr.mxu0 0.0
    %1091 = vmatpush1.xpose.msra.mxu0 %v778
    %1092 = vmatprep.subr.mxu0 0.0
    %1093 = vmatpush1.xpose.msra.mxu0 0.0
    %1094 = vmatprep.subr.mxu0 0.0
    %1095 = vmatpush1.xpose.msra.mxu0 0.0
    %1096 = vmatprep.subr.mxu0 0.0
    %1097 = vmatpush1.xpose.msra.mxu0 0.0
    %1098 = vmatprep.subr.mxu0 0.0
    %1099 = vmatpush1.xpose.msra.mxu0 0.0
    %1100 = vmatprep.subr.mxu0 0.0
    %1101 = vmatpush1.xpose.msra.mxu0 0.0
    %1102 = vmatprep.subr.mxu0 0.0
    %1103 = vmatpush1.xpose.msra.mxu0 0.0
    %1104 = vmatprep.subr.mxu0 0.0
    %1105 = vmatpush1.xpose.msra.mxu0 0.0
    %1106 = vmatprep.subr.mxu0 0.0
    %1107 = vmatpush1.xpose.msra.mxu0 0.0
    %1108 = vmatprep.subr.mxu0 0.0
    %1109 = vmatpush1.xpose.msra.mxu0 0.0
    %1110 = vmatprep.subr.mxu0 0.0
    %1111 = vmatpush1.xpose.msra.mxu0 0.0
    %1112 = vmatprep.subr.mxu0 0.0
    %1113 = vmatpush1.xpose.msra.mxu0 0.0
    %1114 = vmatprep.subr.mxu0 0.0
    %1115 = vmatpush1.xpose.msra.mxu0 0.0
    %1116 = vmatprep.subr.mxu0 0.0
    %1117 = vmatpush1.xpose.msra.mxu0 0.0
    %1118 = vmatprep.subr.mxu0 0.0
    %1119 = vmatpush1.xpose.msra.mxu0 0.0
    %1120 = vmatprep.subr.mxu0 0.0
    %1121 = vmatpush1.xpose.msra.mxu0 0.0
    %1122 = vmatprep.subr.mxu0 0.0
    %1123 = vmatpush1.xpose.msra.mxu0 0.0
    %1124 = vmatprep.subr.mxu0 0.0
    %1125 = vmatpush1.xpose.msra.mxu0 0.0
    %1126 = vmatprep.subr.mxu0 0.0
    %1127 = vmatpush1.xpose.msra.mxu0 0.0
    %1128 = vmatprep.subr.mxu0 0.0
    %1129 = vmatpush1.xpose.msra.mxu0 0.0
    %1130 = vmatprep.subr.mxu0 0.0
    %1131 = vmatpush1.xpose.msra.mxu0 0.0
    %1132 = vmatprep.subr.mxu0 0.0
    %1133 = vmatpush1.xpose.msra.mxu0 0.0
    %1134 = vmatprep.subr.mxu0 0.0
    %1135 = vmatpush1.xpose.msra.mxu0 0.0
    %1136 = vmatprep.subr.mxu0 0.0
    %1137 = vmatpush1.xpose.msra.mxu0 0.0
    %1138 = vmatprep.subr.mxu0 0.0
    %1139 = vmatpush1.xpose.msra.mxu0 0.0
    %1140 = vmatprep.subr.mxu0 0.0
    %1141 = vmatpush1.xpose.msra.mxu0 0.0
    %1142 = vmatprep.subr.mxu0 0.0
    %1143 = vmatpush1.xpose.msra.mxu0 0.0
    %1144 = vmatprep.subr.mxu0 0.0
    %1145 = vmatpush1.xpose.msra.mxu0 0.0
    %1146 = vmatprep.subr.mxu0 0.0
    %1147 = vmatpush1.xpose.msra.mxu0 0.0
    %1148 = vmatprep.subr.mxu0 0.0
    %1149 = vmatpush1.xpose.msra.mxu0 0.0
    %1150 = vmatprep.subr.mxu0 0.0
    %1151 = vmatpush1.xpose.msra.mxu0 0.0
    %1152 = vmatprep.subr.mxu0 0.0
    %1153 = vmatpush1.xpose.msra.mxu0 0.0
    %1154 = vmatprep.mubr.f32.mxu0 0.0
    %1155 = vmatmul.mubr.f32.gmra.mrb[0].mxu0 %v624
    %v1156 = vpop.f32.mrb[0].mxu0
    %v1157 = vadd.f32 0.0, %v1156
    %v1158 = vpop.f32.mrb[0].mxu0
    %1159 = vdwg.mxu0
    %vm1160 = vcmask 64512
    %v1161 = vsel %vm1160, %v1087, -inf
    %1162 = vmax.xlane.f32.xlu0 %v1161
    %v1163 = vpop.xlane.xlu0 %1162
    %v1164 = vsel %vm1160, %v1157, -inf
    %1165 = vmax.xlane.f32.xlu0 %v1164
    %v1166 = vpop.xlane.xlu0 %1165
    %v1167 = vsub.f32 %v1087, %v1163
    %v1168 = vsub.f32 %v1157, %v1166
    %v1169 = vmul.f32 %v1167, 1.442695
    %v1170 = vpow.pop %v1169
    %v1171 = vmul.f32 %v1168, 1.442695
    %v1172 = vpow.pop %v1171
    %v1173 = vsel %vm1160, %v1170, 0.0
    %1174 = vadd.xlane.f32.xlu0 %v1173
    %v1175 = vpop.xlane.xlu0 %1174
    %v1176 = vsel %vm1160, %v1172, 0.0
    %1177 = vadd.xlane.f32.xlu0 %v1176
    %v1178 = vpop.xlane.xlu0 %1177
    %v1179 = vrcp.pop %v1175
    %v1180 = vrcp.pop %v1178
    %v1181 = vmul.f32 %v1170, %v1179
    %v1182 = vmul.f32 %v1172, %v1180
    %v1184 = vsel %vm1160, %v1181, 0
    %1186 = vmatprep.subr.mxu0 0.0
    %1187 = vmatpush1.msra.mxu0 %v926
    %1188 = vmatprep.subr.mxu0 0.0
    %1189 = vmatpush1.msra.mxu0 0.0
    %1190 = vmatprep.subr.mxu0 0.0
    %1191 = vmatpush1.msra.mxu0 0.0
    %1192 = vmatprep.subr.mxu0 0.0
    %1193 = vmatpush1.msra.mxu0 0.0
    %1194 = vmatprep.subr.mxu0 0.0
    %1195 = vmatpush1.msra.mxu0 0.0
    %1196 = vmatprep.subr.mxu0 0.0
    %1197 = vmatpush1.msra.mxu0 0.0
    %1198 = vmatprep.subr.mxu0 0.0
    %1199 = vmatpush1.msra.mxu0 0.0
    %1200 = vmatprep.subr.mxu0 0.0
    %1201 = vmatpush1.msra.mxu0 0.0
    %1202 = vmatprep.subr.mxu0 0.0
    %1203 = vmatpush1.msra.mxu0 0.0
    %1204 = vmatprep.subr.mxu0 0.0
    %1205 = vmatpush1.msra.mxu0 0.0
    %1206 = vmatprep.subr.mxu0 0.0
    %1207 = vmatpush1.msra.mxu0 0.0
    %1208 = vmatprep.subr.mxu0 0.0
    %1209 = vmatpush1.msra.mxu0 0.0
    %1210 = vmatprep.subr.mxu0 0.0
    %1211 = vmatpush1.msra.mxu0 0.0
    %1212 = vmatprep.subr.mxu0 0.0
    %1213 = vmatpush1.msra.mxu0 0.0
    %1214 = vmatprep.subr.mxu0 0.0
    %1215 = vmatpush1.msra.mxu0 0.0
    %1216 = vmatprep.subr.mxu0 0.0
    %1217 = vmatpush1.msra.mxu0 0.0
    %1218 = vmatprep.subr.mxu0 0.0
    %1219 = vmatpush1.msra.mxu0 0.0
    %1220 = vmatprep.subr.mxu0 0.0
    %1221 = vmatpush1.msra.mxu0 0.0
    %1222 = vmatprep.subr.mxu0 0.0
    %1223 = vmatpush1.msra.mxu0 0.0
    %1224 = vmatprep.subr.mxu0 0.0
    %1225 = vmatpush1.msra.mxu0 0.0
    %1226 = vmatprep.subr.mxu0 0.0
    %1227 = vmatpush1.msra.mxu0 0.0
    %1228 = vmatprep.subr.mxu0 0.0
    %1229 = vmatpush1.msra.mxu0 0.0
    %1230 = vmatprep.subr.mxu0 0.0
    %1231 = vmatpush1.msra.mxu0 0.0
    %1232 = vmatprep.subr.mxu0 0.0
    %1233 = vmatpush1.msra.mxu0 0.0
    %1234 = vmatprep.subr.mxu0 0.0
    %1235 = vmatpush1.msra.mxu0 0.0
    %1236 = vmatprep.subr.mxu0 0.0
    %1237 = vmatpush1.msra.mxu0 0.0
    %1238 = vmatprep.subr.mxu0 0.0
    %1239 = vmatpush1.msra.mxu0 0.0
    %1240 = vmatprep.subr.mxu0 0.0
    %1241 = vmatpush1.msra.mxu0 0.0
    %1242 = vmatprep.subr.mxu0 0.0
    %1243 = vmatpush1.msra.mxu0 0.0
    %1244 = vmatprep.subr.mxu0 0.0
    %1245 = vmatpush1.msra.mxu0 0.0
    %1246 = vmatprep.subr.mxu0 0.0
    %1247 = vmatpush1.msra.mxu0 0.0
    %1248 = vmatprep.subr.mxu0 0.0
    %1249 = vmatpush1.msra.mxu0 0.0
    %1250 = vmatprep.mubr.f32.mxu0 0.0
    %1251 = vmatmul.mubr.f32.gmra.mrb[0].mxu0 %v1184
    %v1252 = vpop.f32.mrb[0].mxu0
    %v1253 = vadd.f32 0.0, %v1252
    %v1254 = vpop.f32.mrb[0].mxu0
    %1255 = vdwg.mxu0
    %v1257 = vsel %vm1160, %v1182, 0
    %1259 = vmatprep.subr.mxu0 0.0
    %1260 = vmatpush1.msra.mxu0 %v932
    %1261 = vmatprep.subr.mxu0 0.0
    %1262 = vmatpush1.msra.mxu0 0.0
    %1263 = vmatprep.subr.mxu0 0.0
    %1264 = vmatpush1.msra.mxu0 0.0
    %1265 = vmatprep.subr.mxu0 0.0
    %1266 = vmatpush1.msra.mxu0 0.0
    %1267 = vmatprep.subr.mxu0 0.0
    %1268 = vmatpush1.msra.mxu0 0.0
    %1269 = vmatprep.subr.mxu0 0.0
    %1270 = vmatpush1.msra.mxu0 0.0
    %1271 = vmatprep.subr.mxu0 0.0
    %1272 = vmatpush1.msra.mxu0 0.0
    %1273 = vmatprep.subr.mxu0 0.0
    %1274 = vmatpush1.msra.mxu0 0.0
    %1275 = vmatprep.subr.mxu0 0.0
    %1276 = vmatpush1.msra.mxu0 0.0
    %1277 = vmatprep.subr.mxu0 0.0
    %1278 = vmatpush1.msra.mxu0 0.0
    %1279 = vmatprep.subr.mxu0 0.0
    %1280 = vmatpush1.msra.mxu0 0.0
    %1281 = vmatprep.subr.mxu0 0.0
    %1282 = vmatpush1.msra.mxu0 0.0
    %1283 = vmatprep.subr.mxu0 0.0
    %1284 = vmatpush1.msra.mxu0 0.0
    %1285 = vmatprep.subr.mxu0 0.0
    %1286 = vmatpush1.msra.mxu0 0.0
    %1287 = vmatprep.subr.mxu0 0.0
    %1288 = vmatpush1.msra.mxu0 0.0
    %1289 = vmatprep.subr.mxu0 0.0
    %1290 = vmatpush1.msra.mxu0 0.0
    %1291 = vmatprep.subr.mxu0 0.0
    %1292 = vmatpush1.msra.mxu0 0.0
    %1293 = vmatprep.subr.mxu0 0.0
    %1294 = vmatpush1.msra.mxu0 0.0
    %1295 = vmatprep.subr.mxu0 0.0
    %1296 = vmatpush1.msra.mxu0 0.0
    %1297 = vmatprep.subr.mxu0 0.0
    %1298 = vmatpush1.msra.mxu0 0.0
    %1299 = vmatprep.subr.mxu0 0.0
    %1300 = vmatpush1.msra.mxu0 0.0
    %1301 = vmatprep.subr.mxu0 0.0
    %1302 = vmatpush1.msra.mxu0 0.0
    %1303 = vmatprep.subr.mxu0 0.0
    %1304 = vmatpush1.msra.mxu0 0.0
    %1305 = vmatprep.subr.mxu0 0.0
    %1306 = vmatpush1.msra.mxu0 0.0
    %1307 = vmatprep.subr.mxu0 0.0
    %1308 = vmatpush1.msra.mxu0 0.0
    %1309 = vmatprep.subr.mxu0 0.0
    %1310 = vmatpush1.msra.mxu0 0.0
    %1311 = vmatprep.subr.mxu0 0.0
    %1312 = vmatpush1.msra.mxu0 0.0
    %1313 = vmatprep.subr.mxu0 0.0
    %1314 = vmatpush1.msra.mxu0 0.0
    %1315 = vmatprep.subr.mxu0 0.0
    %1316 = vmatpush1.msra.mxu0 0.0
    %1317 = vmatprep.subr.mxu0 0.0
    %1318 = vmatpush1.msra.mxu0 0.0
    %1319 = vmatprep.subr.mxu0 0.0
    %1320 = vmatpush1.msra.mxu0 0.0
    %1321 = vmatprep.subr.mxu0 0.0
    %1322 = vmatpush1.msra.mxu0 0.0
    %1323 = vmatprep.mubr.f32.mxu0 0.0
    %1324 = vmatmul.mubr.f32.gmra.mrb[0].mxu0 %v1257
    %v1325 = vpop.f32.mrb[0].mxu0
    %v1326 = vadd.f32 0.0, %v1325
    %v1327 = vpop.f32.mrb[0].mxu0
    %1328 = vdwg.mxu0
    %v1329 = vld [vmem:[%s5] sm:$0xff]
    %v1330 = vld [vmem:[%s5 + $0x8] sm:$0xff]
    %v1331 = vld [vmem:[%s5 + $0x10] sm:$0xff]
    %v1332 = vld [vmem:[%s5 + $0x18] sm:$0xff]
    %v1333 = vld [vmem:[%s5 + $0x20] sm:$0xff]
    %v1334 = vld [vmem:[%s5 + $0x28] sm:$0xff]
    %v1335 = vld [vmem:[%s5 + $0x30] sm:$0xff]
    %v1336 = vld [vmem:[%s5 + $0x38] sm:$0xff]
    %v1337 = vld [vmem:[%s5 + $0x40] sm:$0xff]
    %v1338 = vld [vmem:[%s5 + $0x48] sm:$0xff]
    %v1339 = vld [vmem:[%s5 + $0x50] sm:$0xff]
    %v1340 = vld [vmem:[%s5 + $0x58] sm:$0xff]
    %v1341 = vld [vmem:[%s5 + $0x60] sm:$0xff]
    %v1342 = vld [vmem:[%s5 + $0x68] sm:$0xff]
    %v1343 = vld [vmem:[%s5 + $0x70] sm:$0xff]
    %v1344 = vld [vmem:[%s5 + $0x78] sm:$0xff]
    %1345 = vmatprep.subr.mxu0 0.0
    %1346 = vmatpush1.msra.mxu0 %v1329
    %1347 = vmatprep.subr.mxu0 0.0
    %1348 = vmatpush1.msra.mxu0 %v1330
    %1349 = vmatprep.subr.mxu0 0.0
    %1350 = vmatpush1.msra.mxu0 %v1331
    %1351 = vmatprep.subr.mxu0 0.0
    %1352 = vmatpush1.msra.mxu0 %v1332
    %1353 = vmatprep.subr.mxu0 0.0
    %1354 = vmatpush1.msra.mxu0 %v1333
    %1355 = vmatprep.subr.mxu0 0.0
    %1356 = vmatpush1.msra.mxu0 %v1334
    %1357 = vmatprep.subr.mxu0 0.0
    %1358 = vmatpush1.msra.mxu0 %v1335
    %1359 = vmatprep.subr.mxu0 0.0
    %1360 = vmatpush1.msra.mxu0 %v1336
    %1361 = vmatprep.subr.mxu0 0.0
    %1362 = vmatpush1.msra.mxu0 %v1337
    %1363 = vmatprep.subr.mxu0 0.0
    %1364 = vmatpush1.msra.mxu0 %v1338
    %1365 = vmatprep.subr.mxu0 0.0
    %1366 = vmatpush1.msra.mxu0 %v1339
    %1367 = vmatprep.subr.mxu0 0.0
    %1368 = vmatpush1.msra.mxu0 %v1340
    %1369 = vmatprep.subr.mxu0 0.0
    %1370 = vmatpush1.msra.mxu0 %v1341
    %1371 = vmatprep.subr.mxu0 0.0
    %1372 = vmatpush1.msra.mxu0 %v1342
    %1373 = vmatprep.subr.mxu0 0.0
    %1374 = vmatpush1.msra.mxu0 %v1343
    %1375 = vmatprep.subr.mxu0 0.0
    %1376 = vmatpush1.msra.mxu0 %v1344
    %1377 = vmatprep.subr.mxu0 0.0
    %1378 = vmatpush1.msra.mxu0 0.0
    %1379 = vmatprep.subr.mxu0 0.0
    %1380 = vmatpush1.msra.mxu0 0.0
    %1381 = vmatprep.subr.mxu0 0.0
    %1382 = vmatpush1.msra.mxu0 0.0
    %1383 = vmatprep.subr.mxu0 0.0
    %1384 = vmatpush1.msra.mxu0 0.0
    %1385 = vmatprep.subr.mxu0 0.0
    %1386 = vmatpush1.msra.mxu0 0.0
    %1387 = vmatprep.subr.mxu0 0.0
    %1388 = vmatpush1.msra.mxu0 0.0
    %1389 = vmatprep.subr.mxu0 0.0
    %1390 = vmatpush1.msra.mxu0 0.0
    %1391 = vmatprep.subr.mxu0 0.0
    %1392 = vmatpush1.msra.mxu0 0.0
    %1393 = vmatprep.subr.mxu0 0.0
    %1394 = vmatpush1.msra.mxu0 0.0
    %1395 = vmatprep.subr.mxu0 0.0
    %1396 = vmatpush1.msra.mxu0 0.0
    %1397 = vmatprep.subr.mxu0 0.0
    %1398 = vmatpush1.msra.mxu0 0.0
    %1399 = vmatprep.subr.mxu0 0.0
    %1400 = vmatpush1.msra.mxu0 0.0
    %1401 = vmatprep.subr.mxu0 0.0
    %1402 = vmatpush1.msra.mxu0 0.0
    %1403 = vmatprep.subr.mxu0 0.0
    %1404 = vmatpush1.msra.mxu0 0.0
    %1405 = vmatprep.subr.mxu0 0.0
    %1406 = vmatpush1.msra.mxu0 0.0
    %1407 = vmatprep.subr.mxu0 0.0
    %1408 = vmatpush1.msra.mxu0 0.0
    %1409 = vmatprep.mubr.f32.mxu0 0.0
    %1410 = vmatmul.mubr.f32.gmra.mrb[0].mxu0 %v1253
    %v1411 = vpop.f32.mrb[0].mxu0
    %v1412 = vadd.f32 0.0, %v1411
    %v1413 = vpop.f32.mrb[0].mxu0
    %1414 = vmatprep.mubr.f32.mxu0 0.0
    %1415 = vmatmul.mubr.f32.gmra.mrb[0].mxu0 %v1326
    %v1416 = vpop.f32.mrb[0].mxu0
    %v1417 = vadd.f32 0.0, %v1416
    %v1418 = vpop.f32.mrb[0].mxu0
    %1419 = vdwg.mxu0
    %v1420 = vadd.f32 %v1018, %v1412
    %v1421 = vadd.f32 %v1018, %v1417
    %1422 = vmatprep.subr.mxu0 0.0
    %1423 = vmatpush1.xpose.msra.mxu0 %v774
    %1424 = vmatprep.subr.mxu0 0.0
    %1425 = vmatpush1.xpose.msra.mxu0 0.0
    %1426 = vmatprep.subr.mxu0 0.0
    %1427 = vmatpush1.xpose.msra.mxu0 0.0
    %1428 = vmatprep.subr.mxu0 0.0
    %1429 = vmatpush1.xpose.msra.mxu0 0.0
    %1430 = vmatprep.subr.mxu0 0.0
    %1431 = vmatpush1.xpose.msra.mxu0 0.0
    %1432 = vmatprep.subr.mxu0 0.0
    %1433 = vmatpush1.xpose.msra.mxu0 0.0
    %1434 = vmatprep.subr.mxu0 0.0
    %1435 = vmatpush1.xpose.msra.mxu0 0.0
    %1436 = vmatprep.subr.mxu0 0.0
    %1437 = vmatpush1.xpose.msra.mxu0 0.0
    %1438 = vmatprep.subr.mxu0 0.0
    %1439 = vmatpush1.xpose.msra.mxu0 0.0
    %1440 = vmatprep.subr.mxu0 0.0
    %1441 = vmatpush1.xpose.msra.mxu0 0.0
    %1442 = vmatprep.subr.mxu0 0.0
    %1443 = vmatpush1.xpose.msra.mxu0 0.0
    %1444 = vmatprep.subr.mxu0 0.0
    %1445 = vmatpush1.xpose.msra.mxu0 0.0
    %1446 = vmatprep.subr.mxu0 0.0
    %1447 = vmatpush1.xpose.msra.mxu0 0.0
    %1448 = vmatprep.subr.mxu0 0.0
    %1449 = vmatpush1.xpose.msra.mxu0 0.0
    %1450 = vmatprep.subr.mxu0 0.0
    %1451 = vmatpush1.xpose.msra.mxu0 0.0
    %1452 = vmatprep.subr.mxu0 0.0
    %1453 = vmatpush1.xpose.msra.mxu0 0.0
    %1454 = vmatprep.subr.mxu0 0.0
    %1455 = vmatpush1.xpose.msra.mxu0 0.0
    %1456 = vmatprep.subr.mxu0 0.0
    %1457 = vmatpush1.xpose.msra.mxu0 0.0
    %1458 = vmatprep.subr.mxu0 0.0
    %1459 = vmatpush1.xpose.msra.mxu0 0.0
    %1460 = vmatprep.subr.mxu0 0.0
    %1461 = vmatpush1.xpose.msra.mxu0 0.0
    %1462 = vmatprep.subr.mxu0 0.0
    %1463 = vmatpush1.xpose.msra.mxu0 0.0
    %1464 = vmatprep.subr.mxu0 0.0
    %1465 = vmatpush1.xpose.msra.mxu0 0.0
    %1466 = vmatprep.subr.mxu0 0.0
    %1467 = vmatpush1.xpose.msra.mxu0 0.0
    %1468 = vmatprep.subr.mxu0 0.0
    %1469 = vmatpush1.xpose.msra.mxu0 0.0
    %1470 = vmatprep.subr.mxu0 0.0
    %1471 = vmatpush1.xpose.msra.mxu0 0.0
    %1472 = vmatprep.subr.mxu0 0.0
    %1473 = vmatpush1.xpose.msra.mxu0 0.0
    %1474 = vmatprep.subr.mxu0 0.0
    %1475 = vmatpush1.xpose.msra.mxu0 0.0
    %1476 = vmatprep.subr.mxu0 0.0
    %1477 = vmatpush1.xpose.msra.mxu0 0.0
    %1478 = vmatprep.subr.mxu0 0.0
    %1479 = vmatpush1.xpose.msra.mxu0 0.0
    %1480 = vmatprep.subr.mxu0 0.0
    %1481 = vmatpush1.xpose.msra.mxu0 0.0
    %1482 = vmatprep.subr.mxu0 0.0
    %1483 = vmatpush1.xpose.msra.mxu0 0.0
    %1484 = vmatprep.subr.mxu0 0.0
    %1485 = vmatpush1.xpose.msra.mxu0 0.0
    %1486 = vmatprep.mubr.f32.mxu0 0.0
    %1487 = vmatmul.mubr.f32.gmra.mrb[0].mxu0 %v620
    %v1488 = vpop.f32.mrb[0].mxu0
    %v1489 = vadd.f32 0.0, %v1488
    %v1490 = vpop.f32.mrb[0].mxu0
    %1491 = vdwg.mxu0
    %1492 = vmatprep.subr.mxu0 0.0
    %1493 = vmatpush1.xpose.msra.mxu0 %v780
    %1494 = vmatprep.subr.mxu0 0.0
    %1495 = vmatpush1.xpose.msra.mxu0 0.0
    %1496 = vmatprep.subr.mxu0 0.0
    %1497 = vmatpush1.xpose.msra.mxu0 0.0
    %1498 = vmatprep.subr.mxu0 0.0
    %1499 = vmatpush1.xpose.msra.mxu0 0.0
    %1500 = vmatprep.subr.mxu0 0.0
    %1501 = vmatpush1.xpose.msra.mxu0 0.0
    %1502 = vmatprep.subr.mxu0 0.0
    %1503 = vmatpush1.xpose.msra.mxu0 0.0
    %1504 = vmatprep.subr.mxu0 0.0
    %1505 = vmatpush1.xpose.msra.mxu0 0.0
    %1506 = vmatprep.subr.mxu0 0.0
    %1507 = vmatpush1.xpose.msra.mxu0 0.0
    %1508 = vmatprep.subr.mxu0 0.0
    %1509 = vmatpush1.xpose.msra.mxu0 0.0
    %1510 = vmatprep.subr.mxu0 0.0
    %1511 = vmatpush1.xpose.msra.mxu0 0.0
    %1512 = vmatprep.subr.mxu0 0.0
    %1513 = vmatpush1.xpose.msra.mxu0 0.0
    %1514 = vmatprep.subr.mxu0 0.0
    %1515 = vmatpush1.xpose.msra.mxu0 0.0
    %1516 = vmatprep.subr.mxu0 0.0
    %1517 = vmatpush1.xpose.msra.mxu0 0.0
    %1518 = vmatprep.subr.mxu0 0.0
    %1519 = vmatpush1.xpose.msra.mxu0 0.0
    %1520 = vmatprep.subr.mxu0 0.0
    %1521 = vmatpush1.xpose.msra.mxu0 0.0
    %1522 = vmatprep.subr.mxu0 0.0
    %1523 = vmatpush1.xpose.msra.mxu0 0.0
    %1524 = vmatprep.subr.mxu0 0.0
    %1525 = vmatpush1.xpose.msra.mxu0 0.0
    %1526 = vmatprep.subr.mxu0 0.0
    %1527 = vmatpush1.xpose.msra.mxu0 0.0
    %1528 = vmatprep.subr.mxu0 0.0
    %1529 = vmatpush1.xpose.msra.mxu0 0.0
    %1530 = vmatprep.subr.mxu0 0.0
    %1531 = vmatpush1.xpose.msra.mxu0 0.0
    %1532 = vmatprep.subr.mxu0 0.0
    %1533 = vmatpush1.xpose.msra.mxu0 0.0
    %1534 = vmatprep.subr.mxu0 0.0
    %1535 = vmatpush1.xpose.msra.mxu0 0.0
    %1536 = vmatprep.subr.mxu0 0.0
    %1537 = vmatpush1.xpose.msra.mxu0 0.0
    %1538 = vmatprep.subr.mxu0 0.0
    %1539 = vmatpush1.xpose.msra.mxu0 0.0
    %1540 = vmatprep.subr.mxu0 0.0
    %1541 = vmatpush1.xpose.msra.mxu0 0.0
    %1542 = vmatprep.subr.mxu0 0.0
    %1543 = vmatpush1.xpose.msra.mxu0 0.0
    %1544 = vmatprep.subr.mxu0 0.0
    %1545 = vmatpush1.xpose.msra.mxu0 0.0
    %1546 = vmatprep.subr.mxu0 0.0
    %1547 = vmatpush1.xpose.msra.mxu0 0.0
    %1548 = vmatprep.subr.mxu0 0.0
    %1549 = vmatpush1.xpose.msra.mxu0 0.0
    %1550 = vmatprep.subr.mxu0 0.0
    %1551 = vmatpush1.xpose.msra.mxu0 0.0
    %1552 = vmatprep.subr.mxu0 0.0
    %1553 = vmatpush1.xpose.msra.mxu0 0.0
    %1554 = vmatprep.subr.mxu0 0.0
    %1555 = vmatpush1.xpose.msra.mxu0 0.0
    %1556 = vmatprep.mubr.f32.mxu0 0.0
    %1557 = vmatmul.mubr.f32.gmra.mrb[0].mxu0 %v626
    %v1558 = vpop.f32.mrb[0].mxu0
    %v1559 = vadd.f32 0.0, %v1558
    %v1560 = vpop.f32.mrb[0].mxu0
    %1561 = vdwg.mxu0
    %v1562 = vsel %vm1160, %v1489, -inf
    %1563 = vmax.xlane.f32.xlu0 %v1562
    %v1564 = vpop.xlane.xlu0 %1563
    %v1565 = vsel %vm1160, %v1559, -inf
    %1566 = vmax.xlane.f32.xlu0 %v1565
    %v1567 = vpop.xlane.xlu0 %1566
    %v1568 = vsub.f32 %v1489, %v1564
    %v1569 = vsub.f32 %v1559, %v1567
    %v1570 = vmul.f32 %v1568, 1.442695
    %v1571 = vpow.pop %v1570
    %v1572 = vmul.f32 %v1569, 1.442695
    %v1573 = vpow.pop %v1572
    %v1574 = vsel %vm1160, %v1571, 0.0
    %1575 = vadd.xlane.f32.xlu0 %v1574
    %v1576 = vpop.xlane.xlu0 %1575
    %v1577 = vsel %vm1160, %v1573, 0.0
    %1578 = vadd.xlane.f32.xlu0 %v1577
    %v1579 = vpop.xlane.xlu0 %1578
    %v1580 = vrcp.pop %v1576
    %v1581 = vrcp.pop %v1579
    %v1582 = vmul.f32 %v1571, %v1580
    %v1583 = vmul.f32 %v1573, %v1581
    %v1585 = vsel %vm1160, %v1582, 0
    %1587 = vmatprep.subr.mxu0 0.0
    %1588 = vmatpush1.msra.mxu0 %v928
    %1589 = vmatprep.subr.mxu0 0.0
    %1590 = vmatpush1.msra.mxu0 0.0
    %1591 = vmatprep.subr.mxu0 0.0
    %1592 = vmatpush1.msra.mxu0 0.0
    %1593 = vmatprep.subr.mxu0 0.0
    %1594 = vmatpush1.msra.mxu0 0.0
    %1595 = vmatprep.subr.mxu0 0.0
    %1596 = vmatpush1.msra.mxu0 0.0
    %1597 = vmatprep.subr.mxu0 0.0
    %1598 = vmatpush1.msra.mxu0 0.0
    %1599 = vmatprep.subr.mxu0 0.0
    %1600 = vmatpush1.msra.mxu0 0.0
    %1601 = vmatprep.subr.mxu0 0.0
    %1602 = vmatpush1.msra.mxu0 0.0
    %1603 = vmatprep.subr.mxu0 0.0
    %1604 = vmatpush1.msra.mxu0 0.0
    %1605 = vmatprep.subr.mxu0 0.0
    %1606 = vmatpush1.msra.mxu0 0.0
    %1607 = vmatprep.subr.mxu0 0.0
    %1608 = vmatpush1.msra.mxu0 0.0
    %1609 = vmatprep.subr.mxu0 0.0
    %1610 = vmatpush1.msra.mxu0 0.0
    %1611 = vmatprep.subr.mxu0 0.0
    %1612 = vmatpush1.msra.mxu0 0.0
    %1613 = vmatprep.subr.mxu0 0.0
    %1614 = vmatpush1.msra.mxu0 0.0
    %1615 = vmatprep.subr.mxu0 0.0
    %1616 = vmatpush1.msra.mxu0 0.0
    %1617 = vmatprep.subr.mxu0 0.0
    %1618 = vmatpush1.msra.mxu0 0.0
    %1619 = vmatprep.subr.mxu0 0.0
    %1620 = vmatpush1.msra.mxu0 0.0
    %1621 = vmatprep.subr.mxu0 0.0
    %1622 = vmatpush1.msra.mxu0 0.0
    %1623 = vmatprep.subr.mxu0 0.0
    %1624 = vmatpush1.msra.mxu0 0.0
    %1625 = vmatprep.subr.mxu0 0.0
    %1626 = vmatpush1.msra.mxu0 0.0
    %1627 = vmatprep.subr.mxu0 0.0
    %1628 = vmatpush1.msra.mxu0 0.0
    %1629 = vmatprep.subr.mxu0 0.0
    %1630 = vmatpush1.msra.mxu0 0.0
    %1631 = vmatprep.subr.mxu0 0.0
    %1632 = vmatpush1.msra.mxu0 0.0
    %1633 = vmatprep.subr.mxu0 0.0
    %1634 = vmatpush1.msra.mxu0 0.0
    %1635 = vmatprep.subr.mxu0 0.0
    %1636 = vmatpush1.msra.mxu0 0.0
    %1637 = vmatprep.subr.mxu0 0.0
    %1638 = vmatpush1.msra.mxu0 0.0
    %1639 = vmatprep.subr.mxu0 0.0
    %1640 = vmatpush1.msra.mxu0 0.0
    %1641 = vmatprep.subr.mxu0 0.0
    %1642 = vmatpush1.msra.mxu0 0.0
    %1643 = vmatprep.subr.mxu0 0.0
    %1644 = vmatpush1.msra.mxu0 0.0
    %1645 = vmatprep.subr.mxu0 0.0
    %1646 = vmatpush1.msra.mxu0 0.0
    %1647 = vmatprep.subr.mxu0 0.0
    %1648 = vmatpush1.msra.mxu0 0.0
    %1649 = vmatprep.subr.mxu0 0.0
    %1650 = vmatpush1.msra.mxu0 0.0
    %1651 = vmatprep.mubr.f32.mxu0 0.0
    %1652 = vmatmul.mubr.f32.gmra.mrb[0].mxu0 %v1585
    %v1653 = vpop.f32.mrb[0].mxu0
    %v1654 = vadd.f32 0.0, %v1653
    %v1655 = vpop.f32.mrb[0].mxu0
    %1656 = vdwg.mxu0
    %v1658 = vsel %vm1160, %v1583, 0
    %1660 = vmatprep.subr.mxu0 0.0
    %1661 = vmatpush1.msra.mxu0 %v934
    %1662 = vmatprep.subr.mxu0 0.0
    %1663 = vmatpush1.msra.mxu0 0.0
    %1664 = vmatprep.subr.mxu0 0.0
    %1665 = vmatpush1.msra.mxu0 0.0
    %1666 = vmatprep.subr.mxu0 0.0
    %1667 = vmatpush1.msra.mxu0 0.0
    %1668 = vmatprep.subr.mxu0 0.0
    %1669 = vmatpush1.msra.mxu0 0.0
    %1670 = vmatprep.subr.mxu0 0.0
    %1671 = vmatpush1.msra.mxu0 0.0
    %1672 = vmatprep.subr.mxu0 0.0
    %1673 = vmatpush1.msra.mxu0 0.0
    %1674 = vmatprep.subr.mxu0 0.0
    %1675 = vmatpush1.msra.mxu0 0.0
    %1676 = vmatprep.subr.mxu0 0.0
    %1677 = vmatpush1.msra.mxu0 0.0
    %1678 = vmatprep.subr.mxu0 0.0
    %1679 = vmatpush1.msra.mxu0 0.0
    %1680 = vmatprep.subr.mxu0 0.0
    %1681 = vmatpush1.msra.mxu0 0.0
    %1682 = vmatprep.subr.mxu0 0.0
    %1683 = vmatpush1.msra.mxu0 0.0
    %1684 = vmatprep.subr.mxu0 0.0
    %1685 = vmatpush1.msra.mxu0 0.0
    %1686 = vmatprep.subr.mxu0 0.0
    %1687 = vmatpush1.msra.mxu0 0.0
    %1688 = vmatprep.subr.mxu0 0.0
    %1689 = vmatpush1.msra.mxu0 0.0
    %1690 = vmatprep.subr.mxu0 0.0
    %1691 = vmatpush1.msra.mxu0 0.0
    %1692 = vmatprep.subr.mxu0 0.0
    %1693 = vmatpush1.msra.mxu0 0.0
    %1694 = vmatprep.subr.mxu0 0.0
    %1695 = vmatpush1.msra.mxu0 0.0
    %1696 = vmatprep.subr.mxu0 0.0
    %1697 = vmatpush1.msra.mxu0 0.0
    %1698 = vmatprep.subr.mxu0 0.0
    %1699 = vmatpush1.msra.mxu0 0.0
    %1700 = vmatprep.subr.mxu0 0.0
    %1701 = vmatpush1.msra.mxu0 0.0
    %1702 = vmatprep.subr.mxu0 0.0
    %1703 = vmatpush1.msra.mxu0 0.0
    %1704 = vmatprep.subr.mxu0 0.0
    %1705 = vmatpush1.msra.mxu0 0.0
    %1706 = vmatprep.subr.mxu0 0.0
    %1707 = vmatpush1.msra.mxu0 0.0
    %1708 = vmatprep.subr.mxu0 0.0
    %1709 = vmatpush1.msra.mxu0 0.0
    %1710 = vmatprep.subr.mxu0 0.0
    %1711 = vmatpush1.msra.mxu0 0.0
    %1712 = vmatprep.subr.mxu0 0.0
    %1713 = vmatpush1.msra.mxu0 0.0
    %1714 = vmatprep.subr.mxu0 0.0
    %1715 = vmatpush1.msra.mxu0 0.0
    %1716 = vmatprep.subr.mxu0 0.0
    %1717 = vmatpush1.msra.mxu0 0.0
    %1718 = vmatprep.subr.mxu0 0.0
    %1719 = vmatpush1.msra.mxu0 0.0
    %1720 = vmatprep.subr.mxu0 0.0
    %1721 = vmatpush1.msra.mxu0 0.0
    %1722 = vmatprep.subr.mxu0 0.0
    %1723 = vmatpush1.msra.mxu0 0.0
    %1724 = vmatprep.mubr.f32.mxu0 0.0
    %1725 = vmatmul.mubr.f32.gmra.mrb[0].mxu0 %v1658
    %v1726 = vpop.f32.mrb[0].mxu0
    %v1727 = vadd.f32 0.0, %v1726
    %v1728 = vpop.f32.mrb[0].mxu0
    %1729 = vdwg.mxu0
    %v1730 = vld [vmem:[%s5 + $0x80] sm:$0xff]
    %v1731 = vld [vmem:[%s5 + $0x88] sm:$0xff]
    %v1732 = vld [vmem:[%s5 + $0x90] sm:$0xff]
    %v1733 = vld [vmem:[%s5 + $0x98] sm:$0xff]
    %v1734 = vld [vmem:[%s5 + $0xa0] sm:$0xff]
    %v1735 = vld [vmem:[%s5 + $0xa8] sm:$0xff]
    %v1736 = vld [vmem:[%s5 + $0xb0] sm:$0xff]
    %v1737 = vld [vmem:[%s5 + $0xb8] sm:$0xff]
    %v1738 = vld [vmem:[%s5 + $0xc0] sm:$0xff]
    %v1739 = vld [vmem:[%s5 + $0xc8] sm:$0xff]
    %v1740 = vld [vmem:[%s5 + $0xd0] sm:$0xff]
    %v1741 = vld [vmem:[%s5 + $0xd8] sm:$0xff]
    %v1742 = vld [vmem:[%s5 + $0xe0] sm:$0xff]
    %v1743 = vld [vmem:[%s5 + $0xe8] sm:$0xff]
    %v1744 = vld [vmem:[%s5 + $0xf0] sm:$0xff]
    %v1745 = vld [vmem:[%s5 + $0xf8] sm:$0xff]
    %1746 = vmatprep.subr.mxu0 0.0
    %1747 = vmatpush1.msra.mxu0 %v1730
    %1748 = vmatprep.subr.mxu0 0.0
    %1749 = vmatpush1.msra.mxu0 %v1731
    %1750 = vmatprep.subr.mxu0 0.0
    %1751 = vmatpush1.msra.mxu0 %v1732
    %1752 = vmatprep.subr.mxu0 0.0
    %1753 = vmatpush1.msra.mxu0 %v1733
    %1754 = vmatprep.subr.mxu0 0.0
    %1755 = vmatpush1.msra.mxu0 %v1734
    %1756 = vmatprep.subr.mxu0 0.0
    %1757 = vmatpush1.msra.mxu0 %v1735
    %1758 = vmatprep.subr.mxu0 0.0
    %1759 = vmatpush1.msra.mxu0 %v1736
    %1760 = vmatprep.subr.mxu0 0.0
    %1761 = vmatpush1.msra.mxu0 %v1737
    %1762 = vmatprep.subr.mxu0 0.0
    %1763 = vmatpush1.msra.mxu0 %v1738
    %1764 = vmatprep.subr.mxu0 0.0
    %1765 = vmatpush1.msra.mxu0 %v1739
    %1766 = vmatprep.subr.mxu0 0.0
    %1767 = vmatpush1.msra.mxu0 %v1740
    %1768 = vmatprep.subr.mxu0 0.0
    %1769 = vmatpush1.msra.mxu0 %v1741
    %1770 = vmatprep.subr.mxu0 0.0
    %1771 = vmatpush1.msra.mxu0 %v1742
    %1772 = vmatprep.subr.mxu0 0.0
    %1773 = vmatpush1.msra.mxu0 %v1743
    %1774 = vmatprep.subr.mxu0 0.0
    %1775 = vmatpush1.msra.mxu0 %v1744
    %1776 = vmatprep.subr.mxu0 0.0
    %1777 = vmatpush1.msra.mxu0 %v1745
    %1778 = vmatprep.subr.mxu0 0.0
    %1779 = vmatpush1.msra.mxu0 0.0
    %1780 = vmatprep.subr.mxu0 0.0
    %1781 = vmatpush1.msra.mxu0 0.0
    %1782 = vmatprep.subr.mxu0 0.0
    %1783 = vmatpush1.msra.mxu0 0.0
    %1784 = vmatprep.subr.mxu0 0.0
    %1785 = vmatpush1.msra.mxu0 0.0
    %1786 = vmatprep.subr.mxu0 0.0
    %1787 = vmatpush1.msra.mxu0 0.0
    %1788 = vmatprep.subr.mxu0 0.0
    %1789 = vmatpush1.msra.mxu0 0.0
    %1790 = vmatprep.subr.mxu0 0.0
    %1791 = vmatpush1.msra.mxu0 0.0
    %1792 = vmatprep.subr.mxu0 0.0
    %1793 = vmatpush1.msra.mxu0 0.0
    %1794 = vmatprep.subr.mxu0 0.0
    %1795 = vmatpush1.msra.mxu0 0.0
    %1796 = vmatprep.subr.mxu0 0.0
    %1797 = vmatpush1.msra.mxu0 0.0
    %1798 = vmatprep.subr.mxu0 0.0
    %1799 = vmatpush1.msra.mxu0 0.0
    %1800 = vmatprep.subr.mxu0 0.0
    %1801 = vmatpush1.msra.mxu0 0.0
    %1802 = vmatprep.subr.mxu0 0.0
    %1803 = vmatpush1.msra.mxu0 0.0
    %1804 = vmatprep.subr.mxu0 0.0
    %1805 = vmatpush1.msra.mxu0 0.0
    %1806 = vmatprep.subr.mxu0 0.0
    %1807 = vmatpush1.msra.mxu0 0.0
    %1808 = vmatprep.subr.mxu0 0.0
    %1809 = vmatpush1.msra.mxu0 0.0
    %1810 = vmatprep.mubr.f32.mxu0 0.0
    %1811 = vmatmul.mubr.f32.gmra.mrb[0].mxu0 %v1654
    %v1812 = vpop.f32.mrb[0].mxu0
    %v1813 = vadd.f32 0.0, %v1812
    %v1814 = vpop.f32.mrb[0].mxu0
    %1815 = vmatprep.mubr.f32.mxu0 0.0
    %1816 = vmatmul.mubr.f32.gmra.mrb[0].mxu0 %v1727
    %v1817 = vpop.f32.mrb[0].mxu0
    %v1818 = vadd.f32 0.0, %v1817
    %v1819 = vpop.f32.mrb[0].mxu0
    %1820 = vdwg.mxu0
    %v1821 = vadd.f32 %v1420, %v1813
    %v1822 = vadd.f32 %v1421, %v1818
    %1823 = vmatprep.subr.mxu0 0.0
    %1824 = vmatpush1.xpose.msra.mxu0 %v849
    %1825 = vmatprep.subr.mxu0 0.0
    %1826 = vmatpush1.xpose.msra.mxu0 0.0
    %1827 = vmatprep.subr.mxu0 0.0
    %1828 = vmatpush1.xpose.msra.mxu0 0.0
    %1829 = vmatprep.subr.mxu0 0.0
    %1830 = vmatpush1.xpose.msra.mxu0 0.0
    %1831 = vmatprep.subr.mxu0 0.0
    %1832 = vmatpush1.xpose.msra.mxu0 0.0
    %1833 = vmatprep.subr.mxu0 0.0
    %1834 = vmatpush1.xpose.msra.mxu0 0.0
    %1835 = vmatprep.subr.mxu0 0.0
    %1836 = vmatpush1.xpose.msra.mxu0 0.0
    %1837 = vmatprep.subr.mxu0 0.0
    %1838 = vmatpush1.xpose.msra.mxu0 0.0
    %1839 = vmatprep.subr.mxu0 0.0
    %1840 = vmatpush1.xpose.msra.mxu0 0.0
    %1841 = vmatprep.subr.mxu0 0.0
    %1842 = vmatpush1.xpose.msra.mxu0 0.0
    %1843 = vmatprep.subr.mxu0 0.0
    %1844 = vmatpush1.xpose.msra.mxu0 0.0
    %1845 = vmatprep.subr.mxu0 0.0
    %1846 = vmatpush1.xpose.msra.mxu0 0.0
    %1847 = vmatprep.subr.mxu0 0.0
    %1848 = vmatpush1.xpose.msra.mxu0 0.0
    %1849 = vmatprep.subr.mxu0 0.0
    %1850 = vmatpush1.xpose.msra.mxu0 0.0
    %1851 = vmatprep.subr.mxu0 0.0
    %1852 = vmatpush1.xpose.msra.mxu0 0.0
    %1853 = vmatprep.subr.mxu0 0.0
    %1854 = vmatpush1.xpose.msra.mxu0 0.0
    %1855 = vmatprep.subr.mxu0 0.0
    %1856 = vmatpush1.xpose.msra.mxu0 0.0
    %1857 = vmatprep.subr.mxu0 0.0
    %1858 = vmatpush1.xpose.msra.mxu0 0.0
    %1859 = vmatprep.subr.mxu0 0.0
    %1860 = vmatpush1.xpose.msra.mxu0 0.0
    %1861 = vmatprep.subr.mxu0 0.0
    %1862 = vmatpush1.xpose.msra.mxu0 0.0
    %1863 = vmatprep.subr.mxu0 0.0
    %1864 = vmatpush1.xpose.msra.mxu0 0.0
    %1865 = vmatprep.subr.mxu0 0.0
    %1866 = vmatpush1.xpose.msra.mxu0 0.0
    %1867 = vmatprep.subr.mxu0 0.0
    %1868 = vmatpush1.xpose.msra.mxu0 0.0
    %1869 = vmatprep.subr.mxu0 0.0
    %1870 = vmatpush1.xpose.msra.mxu0 0.0
    %1871 = vmatprep.subr.mxu0 0.0
    %1872 = vmatpush1.xpose.msra.mxu0 0.0
    %1873 = vmatprep.subr.mxu0 0.0
    %1874 = vmatpush1.xpose.msra.mxu0 0.0
    %1875 = vmatprep.subr.mxu0 0.0
    %1876 = vmatpush1.xpose.msra.mxu0 0.0
    %1877 = vmatprep.subr.mxu0 0.0
    %1878 = vmatpush1.xpose.msra.mxu0 0.0
    %1879 = vmatprep.subr.mxu0 0.0
    %1880 = vmatpush1.xpose.msra.mxu0 0.0
    %1881 = vmatprep.subr.mxu0 0.0
    %1882 = vmatpush1.xpose.msra.mxu0 0.0
    %1883 = vmatprep.subr.mxu0 0.0
    %1884 = vmatpush1.xpose.msra.mxu0 0.0
    %1885 = vmatprep.subr.mxu0 0.0
    %1886 = vmatpush1.xpose.msra.mxu0 0.0
    %1887 = vmatprep.mubr.f32.mxu0 0.0
    %1888 = vmatmul.mubr.f32.gmra.mrb[0].mxu0 %v695
    %v1889 = vpop.f32.mrb[0].mxu0
    %v1890 = vadd.f32 0.0, %v1889
    %v1891 = vpop.f32.mrb[0].mxu0
    %1892 = vdwg.mxu0
    %1893 = vmatprep.subr.mxu0 0.0
    %1894 = vmatpush1.xpose.msra.mxu0 %v855
    %1895 = vmatprep.subr.mxu0 0.0
    %1896 = vmatpush1.xpose.msra.mxu0 0.0
    %1897 = vmatprep.subr.mxu0 0.0
    %1898 = vmatpush1.xpose.msra.mxu0 0.0
    %1899 = vmatprep.subr.mxu0 0.0
    %1900 = vmatpush1.xpose.msra.mxu0 0.0
    %1901 = vmatprep.subr.mxu0 0.0
    %1902 = vmatpush1.xpose.msra.mxu0 0.0
    %1903 = vmatprep.subr.mxu0 0.0
    %1904 = vmatpush1.xpose.msra.mxu0 0.0
    %1905 = vmatprep.subr.mxu0 0.0
    %1906 = vmatpush1.xpose.msra.mxu0 0.0
    %1907 = vmatprep.subr.mxu0 0.0
    %1908 = vmatpush1.xpose.msra.mxu0 0.0
    %1909 = vmatprep.subr.mxu0 0.0
    %1910 = vmatpush1.xpose.msra.mxu0 0.0
    %1911 = vmatprep.subr.mxu0 0.0
    %1912 = vmatpush1.xpose.msra.mxu0 0.0
    %1913 = vmatprep.subr.mxu0 0.0
    %1914 = vmatpush1.xpose.msra.mxu0 0.0
    %1915 = vmatprep.subr.mxu0 0.0
    %1916 = vmatpush1.xpose.msra.mxu0 0.0
    %1917 = vmatprep.subr.mxu0 0.0
    %1918 = vmatpush1.xpose.msra.mxu0 0.0
    %1919 = vmatprep.subr.mxu0 0.0
    %1920 = vmatpush1.xpose.msra.mxu0 0.0
    %1921 = vmatprep.subr.mxu0 0.0
    %1922 = vmatpush1.xpose.msra.mxu0 0.0
    %1923 = vmatprep.subr.mxu0 0.0
    %1924 = vmatpush1.xpose.msra.mxu0 0.0
    %1925 = vmatprep.subr.mxu0 0.0
    %1926 = vmatpush1.xpose.msra.mxu0 0.0
    %1927 = vmatprep.subr.mxu0 0.0
    %1928 = vmatpush1.xpose.msra.mxu0 0.0
    %1929 = vmatprep.subr.mxu0 0.0
    %1930 = vmatpush1.xpose.msra.mxu0 0.0
    %1931 = vmatprep.subr.mxu0 0.0
    %1932 = vmatpush1.xpose.msra.mxu0 0.0
    %1933 = vmatprep.subr.mxu0 0.0
    %1934 = vmatpush1.xpose.msra.mxu0 0.0
    %1935 = vmatprep.subr.mxu0 0.0
    %1936 = vmatpush1.xpose.msra.mxu0 0.0
    %1937 = vmatprep.subr.mxu0 0.0
    %1938 = vmatpush1.xpose.msra.mxu0 0.0
    %1939 = vmatprep.subr.mxu0 0.0
    %1940 = vmatpush1.xpose.msra.mxu0 0.0
    %1941 = vmatprep.subr.mxu0 0.0
    %1942 = vmatpush1.xpose.msra.mxu0 0.0
    %1943 = vmatprep.subr.mxu0 0.0
    %1944 = vmatpush1.xpose.msra.mxu0 0.0
    %1945 = vmatprep.subr.mxu0 0.0
    %1946 = vmatpush1.xpose.msra.mxu0 0.0
    %1947 = vmatprep.subr.mxu0 0.0
    %1948 = vmatpush1.xpose.msra.mxu0 0.0
    %1949 = vmatprep.subr.mxu0 0.0
    %1950 = vmatpush1.xpose.msra.mxu0 0.0
    %1951 = vmatprep.subr.mxu0 0.0
    %1952 = vmatpush1.xpose.msra.mxu0 0.0
    %1953 = vmatprep.subr.mxu0 0.0
    %1954 = vmatpush1.xpose.msra.mxu0 0.0
    %1955 = vmatprep.subr.mxu0 0.0
    %1956 = vmatpush1.xpose.msra.mxu0 0.0
    %1957 = vmatprep.mubr.f32.mxu0 0.0
    %1958 = vmatmul.mubr.f32.gmra.mrb[0].mxu0 %v701
    %v1959 = vpop.f32.mrb[0].mxu0
    %v1960 = vadd.f32 0.0, %v1959
    %v1961 = vpop.f32.mrb[0].mxu0
    %1962 = vdwg.mxu0
    %v1963 = vsel %vm1160, %v1890, -inf
    %1964 = vmax.xlane.f32.xlu0 %v1963
    %v1965 = vpop.xlane.xlu0 %1964
    %v1966 = vsel %vm1160, %v1960, -inf
    %1967 = vmax.xlane.f32.xlu0 %v1966
    %v1968 = vpop.xlane.xlu0 %1967
    %v1969 = vsub.f32 %v1890, %v1965
    %v1970 = vsub.f32 %v1960, %v1968
    %v1971 = vmul.f32 %v1969, 1.442695
    %v1972 = vpow.pop %v1971
    %v1973 = vmul.f32 %v1970, 1.442695
    %v1974 = vpow.pop %v1973
    %v1975 = vsel %vm1160, %v1972, 0.0
    %1976 = vadd.xlane.f32.xlu0 %v1975
    %v1977 = vpop.xlane.xlu0 %1976
    %v1978 = vsel %vm1160, %v1974, 0.0
    %1979 = vadd.xlane.f32.xlu0 %v1978
    %v1980 = vpop.xlane.xlu0 %1979
    %v1981 = vrcp.pop %v1977
    %v1982 = vrcp.pop %v1980
    %v1983 = vmul.f32 %v1972, %v1981
    %v1984 = vmul.f32 %v1974, %v1982
    %v1986 = vsel %vm1160, %v1983, 0
    %1988 = vmatprep.subr.mxu0 0.0
    %1989 = vmatpush1.msra.mxu0 %v1003
    %1990 = vmatprep.subr.mxu0 0.0
    %1991 = vmatpush1.msra.mxu0 0.0
    %1992 = vmatprep.subr.mxu0 0.0
    %1993 = vmatpush1.msra.mxu0 0.0
    %1994 = vmatprep.subr.mxu0 0.0
    %1995 = vmatpush1.msra.mxu0 0.0
    %1996 = vmatprep.subr.mxu0 0.0
    %1997 = vmatpush1.msra.mxu0 0.0
    %1998 = vmatprep.subr.mxu0 0.0
    %1999 = vmatpush1.msra.mxu0 0.0
    %2000 = vmatprep.subr.mxu0 0.0
    %2001 = vmatpush1.msra.mxu0 0.0
    %2002 = vmatprep.subr.mxu0 0.0
    %2003 = vmatpush1.msra.mxu0 0.0
    %2004 = vmatprep.subr.mxu0 0.0
    %2005 = vmatpush1.msra.mxu0 0.0
    %2006 = vmatprep.subr.mxu0 0.0
    %2007 = vmatpush1.msra.mxu0 0.0
    %2008 = vmatprep.subr.mxu0 0.0
    %2009 = vmatpush1.msra.mxu0 0.0
    %2010 = vmatprep.subr.mxu0 0.0
    %2011 = vmatpush1.msra.mxu0 0.0
    %2012 = vmatprep.subr.mxu0 0.0
    %2013 = vmatpush1.msra.mxu0 0.0
    %2014 = vmatprep.subr.mxu0 0.0
    %2015 = vmatpush1.msra.mxu0 0.0
    %2016 = vmatprep.subr.mxu0 0.0
    %2017 = vmatpush1.msra.mxu0 0.0
    %2018 = vmatprep.subr.mxu0 0.0
    %2019 = vmatpush1.msra.mxu0 0.0
    %2020 = vmatprep.subr.mxu0 0.0
    %2021 = vmatpush1.msra.mxu0 0.0
    %2022 = vmatprep.subr.mxu0 0.0
    %2023 = vmatpush1.msra.mxu0 0.0
    %2024 = vmatprep.subr.mxu0 0.0
    %2025 = vmatpush1.msra.mxu0 0.0
    %2026 = vmatprep.subr.mxu0 0.0
    %2027 = vmatpush1.msra.mxu0 0.0
    %2028 = vmatprep.subr.mxu0 0.0
    %2029 = vmatpush1.msra.mxu0 0.0
    %2030 = vmatprep.subr.mxu0 0.0
    %2031 = vmatpush1.msra.mxu0 0.0
    %2032 = vmatprep.subr.mxu0 0.0
    %2033 = vmatpush1.msra.mxu0 0.0
    %2034 = vmatprep.subr.mxu0 0.0
    %2035 = vmatpush1.msra.mxu0 0.0
    %2036 = vmatprep.subr.mxu0 0.0
    %2037 = vmatpush1.msra.mxu0 0.0
    %2038 = vmatprep.subr.mxu0 0.0
    %2039 = vmatpush1.msra.mxu0 0.0
    %2040 = vmatprep.subr.mxu0 0.0
    %2041 = vmatpush1.msra.mxu0 0.0
    %2042 = vmatprep.subr.mxu0 0.0
    %2043 = vmatpush1.msra.mxu0 0.0
    %2044 = vmatprep.subr.mxu0 0.0
    %2045 = vmatpush1.msra.mxu0 0.0
    %2046 = vmatprep.subr.mxu0 0.0
    %2047 = vmatpush1.msra.mxu0 0.0
    %2048 = vmatprep.subr.mxu0 0.0
    %2049 = vmatpush1.msra.mxu0 0.0
    %2050 = vmatprep.subr.mxu0 0.0
    %2051 = vmatpush1.msra.mxu0 0.0
    %2052 = vmatprep.mubr.f32.mxu0 0.0
    %2053 = vmatmul.mubr.f32.gmra.mrb[0].mxu0 %v1986
    %v2054 = vpop.f32.mrb[0].mxu0
    %v2055 = vadd.f32 0.0, %v2054
    %v2056 = vpop.f32.mrb[0].mxu0
    %2057 = vdwg.mxu0
    %v2059 = vsel %vm1160, %v1984, 0
    %2061 = vmatprep.subr.mxu0 0.0
    %2062 = vmatpush1.msra.mxu0 %v1009
    %2063 = vmatprep.subr.mxu0 0.0
    %2064 = vmatpush1.msra.mxu0 0.0
    %2065 = vmatprep.subr.mxu0 0.0
    %2066 = vmatpush1.msra.mxu0 0.0
    %2067 = vmatprep.subr.mxu0 0.0
    %2068 = vmatpush1.msra.mxu0 0.0
    %2069 = vmatprep.subr.mxu0 0.0
    %2070 = vmatpush1.msra.mxu0 0.0
    %2071 = vmatprep.subr.mxu0 0.0
    %2072 = vmatpush1.msra.mxu0 0.0
    %2073 = vmatprep.subr.mxu0 0.0
    %2074 = vmatpush1.msra.mxu0 0.0
    %2075 = vmatprep.subr.mxu0 0.0
    %2076 = vmatpush1.msra.mxu0 0.0
    %2077 = vmatprep.subr.mxu0 0.0
    %2078 = vmatpush1.msra.mxu0 0.0
    %2079 = vmatprep.subr.mxu0 0.0
    %2080 = vmatpush1.msra.mxu0 0.0
    %2081 = vmatprep.subr.mxu0 0.0
    %2082 = vmatpush1.msra.mxu0 0.0
    %2083 = vmatprep.subr.mxu0 0.0
    %2084 = vmatpush1.msra.mxu0 0.0
    %2085 = vmatprep.subr.mxu0 0.0
    %2086 = vmatpush1.msra.mxu0 0.0
    %2087 = vmatprep.subr.mxu0 0.0
    %2088 = vmatpush1.msra.mxu0 0.0
    %2089 = vmatprep.subr.mxu0 0.0
    %2090 = vmatpush1.msra.mxu0 0.0
    %2091 = vmatprep.subr.mxu0 0.0
    %2092 = vmatpush1.msra.mxu0 0.0
    %2093 = vmatprep.subr.mxu0 0.0
    %2094 = vmatpush1.msra.mxu0 0.0
    %2095 = vmatprep.subr.mxu0 0.0
    %2096 = vmatpush1.msra.mxu0 0.0
    %2097 = vmatprep.subr.mxu0 0.0
    %2098 = vmatpush1.msra.mxu0 0.0
    %2099 = vmatprep.subr.mxu0 0.0
    %2100 = vmatpush1.msra.mxu0 0.0
    %2101 = vmatprep.subr.mxu0 0.0
    %2102 = vmatpush1.msra.mxu0 0.0
    %2103 = vmatprep.subr.mxu0 0.0
    %2104 = vmatpush1.msra.mxu0 0.0
    %2105 = vmatprep.subr.mxu0 0.0
    %2106 = vmatpush1.msra.mxu0 0.0
    %2107 = vmatprep.subr.mxu0 0.0
    %2108 = vmatpush1.msra.mxu0 0.0
    %2109 = vmatprep.subr.mxu0 0.0
    %2110 = vmatpush1.msra.mxu0 0.0
    %2111 = vmatprep.subr.mxu0 0.0
    %2112 = vmatpush1.msra.mxu0 0.0
    %2113 = vmatprep.subr.mxu0 0.0
    %2114 = vmatpush1.msra.mxu0 0.0
    %2115 = vmatprep.subr.mxu0 0.0
    %2116 = vmatpush1.msra.mxu0 0.0
    %2117 = vmatprep.subr.mxu0 0.0
    %2118 = vmatpush1.msra.mxu0 0.0
    %2119 = vmatprep.subr.mxu0 0.0
    %2120 = vmatpush1.msra.mxu0 0.0
    %2121 = vmatprep.subr.mxu0 0.0
    %2122 = vmatpush1.msra.mxu0 0.0
    %2123 = vmatprep.subr.mxu0 0.0
    %2124 = vmatpush1.msra.mxu0 0.0
    %2125 = vmatprep.mubr.f32.mxu0 0.0
    %2126 = vmatmul.mubr.f32.gmra.mrb[0].mxu0 %v2059
    %v2127 = vpop.f32.mrb[0].mxu0
    %v2128 = vadd.f32 0.0, %v2127
    %v2129 = vpop.f32.mrb[0].mxu0
    %2130 = vdwg.mxu0
    %v2131 = vld [vmem:[%s5 + $0x100] sm:$0xff]
    %v2132 = vld [vmem:[%s5 + $0x108] sm:$0xff]
    %v2133 = vld [vmem:[%s5 + $0x110] sm:$0xff]
    %v2134 = vld [vmem:[%s5 + $0x118] sm:$0xff]
    %v2135 = vld [vmem:[%s5 + $0x120] sm:$0xff]
    %v2136 = vld [vmem:[%s5 + $0x128] sm:$0xff]
    %v2137 = vld [vmem:[%s5 + $0x130] sm:$0xff]
    %v2138 = vld [vmem:[%s5 + $0x138] sm:$0xff]
    %v2139 = vld [vmem:[%s5 + $0x140] sm:$0xff]
    %v2140 = vld [vmem:[%s5 + $0x148] sm:$0xff]
    %v2141 = vld [vmem:[%s5 + $0x150] sm:$0xff]
    %v2142 = vld [vmem:[%s5 + $0x158] sm:$0xff]
    %v2143 = vld [vmem:[%s5 + $0x160] sm:$0xff]
    %v2144 = vld [vmem:[%s5 + $0x168] sm:$0xff]
    %v2145 = vld [vmem:[%s5 + $0x170] sm:$0xff]
    %v2146 = vld [vmem:[%s5 + $0x178] sm:$0xff]
    %2147 = vmatprep.subr.mxu0 0.0
    %2148 = vmatpush1.msra.mxu0 %v2131
    %2149 = vmatprep.subr.mxu0 0.0
    %2150 = vmatpush1.msra.mxu0 %v2132
    %2151 = vmatprep.subr.mxu0 0.0
    %2152 = vmatpush1.msra.mxu0 %v2133
    %2153 = vmatprep.subr.mxu0 0.0
    %2154 = vmatpush1.msra.mxu0 %v2134
    %2155 = vmatprep.subr.mxu0 0.0
    %2156 = vmatpush1.msra.mxu0 %v2135
    %2157 = vmatprep.subr.mxu0 0.0
    %2158 = vmatpush1.msra.mxu0 %v2136
    %2159 = vmatprep.subr.mxu0 0.0
    %2160 = vmatpush1.msra.mxu0 %v2137
    %2161 = vmatprep.subr.mxu0 0.0
    %2162 = vmatpush1.msra.mxu0 %v2138
    %2163 = vmatprep.subr.mxu0 0.0
    %2164 = vmatpush1.msra.mxu0 %v2139
    %2165 = vmatprep.subr.mxu0 0.0
    %2166 = vmatpush1.msra.mxu0 %v2140
    %2167 = vmatprep.subr.mxu0 0.0
    %2168 = vmatpush1.msra.mxu0 %v2141
    %2169 = vmatprep.subr.mxu0 0.0
    %2170 = vmatpush1.msra.mxu0 %v2142
    %2171 = vmatprep.subr.mxu0 0.0
    %2172 = vmatpush1.msra.mxu0 %v2143
    %2173 = vmatprep.subr.mxu0 0.0
    %2174 = vmatpush1.msra.mxu0 %v2144
    %2175 = vmatprep.subr.mxu0 0.0
    %2176 = vmatpush1.msra.mxu0 %v2145
    %2177 = vmatprep.subr.mxu0 0.0
    %2178 = vmatpush1.msra.mxu0 %v2146
    %2179 = vmatprep.subr.mxu0 0.0
    %2180 = vmatpush1.msra.mxu0 0.0
    %2181 = vmatprep.subr.mxu0 0.0
    %2182 = vmatpush1.msra.mxu0 0.0
    %2183 = vmatprep.subr.mxu0 0.0
    %2184 = vmatpush1.msra.mxu0 0.0
    %2185 = vmatprep.subr.mxu0 0.0
    %2186 = vmatpush1.msra.mxu0 0.0
    %2187 = vmatprep.subr.mxu0 0.0
    %2188 = vmatpush1.msra.mxu0 0.0
    %2189 = vmatprep.subr.mxu0 0.0
    %2190 = vmatpush1.msra.mxu0 0.0
    %2191 = vmatprep.subr.mxu0 0.0
    %2192 = vmatpush1.msra.mxu0 0.0
    %2193 = vmatprep.subr.mxu0 0.0
    %2194 = vmatpush1.msra.mxu0 0.0
    %2195 = vmatprep.subr.mxu0 0.0
    %2196 = vmatpush1.msra.mxu0 0.0
    %2197 = vmatprep.subr.mxu0 0.0
    %2198 = vmatpush1.msra.mxu0 0.0
    %2199 = vmatprep.subr.mxu0 0.0
    %2200 = vmatpush1.msra.mxu0 0.0
    %2201 = vmatprep.subr.mxu0 0.0
    %2202 = vmatpush1.msra.mxu0 0.0
    %2203 = vmatprep.subr.mxu0 0.0
    %2204 = vmatpush1.msra.mxu0 0.0
    %2205 = vmatprep.subr.mxu0 0.0
    %2206 = vmatpush1.msra.mxu0 0.0
    %2207 = vmatprep.subr.mxu0 0.0
    %2208 = vmatpush1.msra.mxu0 0.0
    %2209 = vmatprep.subr.mxu0 0.0
    %2210 = vmatpush1.msra.mxu0 0.0
    %2211 = vmatprep.mubr.f32.mxu0 0.0
    %2212 = vmatmul.mubr.f32.gmra.mrb[0].mxu0 %v2055
    %v2213 = vpop.f32.mrb[0].mxu0
    %v2214 = vadd.f32 0.0, %v2213
    %v2215 = vpop.f32.mrb[0].mxu0
    %2216 = vmatprep.mubr.f32.mxu0 0.0
    %2217 = vmatmul.mubr.f32.gmra.mrb[0].mxu0 %v2128
    %v2218 = vpop.f32.mrb[0].mxu0
    %v2219 = vadd.f32 0.0, %v2218
    %v2220 = vpop.f32.mrb[0].mxu0
    %2221 = vdwg.mxu0
    %v2222 = vadd.f32 %v1821, %v2214
    %v2223 = vadd.f32 %v1822, %v2219
    %2224 = vmatprep.subr.mxu0 0.0
    %2225 = vmatpush1.xpose.msra.mxu0 %v851
    %2226 = vmatprep.subr.mxu0 0.0
    %2227 = vmatpush1.xpose.msra.mxu0 0.0
    %2228 = vmatprep.subr.mxu0 0.0
    %2229 = vmatpush1.xpose.msra.mxu0 0.0
    %2230 = vmatprep.subr.mxu0 0.0
    %2231 = vmatpush1.xpose.msra.mxu0 0.0
    %2232 = vmatprep.subr.mxu0 0.0
    %2233 = vmatpush1.xpose.msra.mxu0 0.0
    %2234 = vmatprep.subr.mxu0 0.0
    %2235 = vmatpush1.xpose.msra.mxu0 0.0
    %2236 = vmatprep.subr.mxu0 0.0
    %2237 = vmatpush1.xpose.msra.mxu0 0.0
    %2238 = vmatprep.subr.mxu0 0.0
    %2239 = vmatpush1.xpose.msra.mxu0 0.0
    %2240 = vmatprep.subr.mxu0 0.0
    %2241 = vmatpush1.xpose.msra.mxu0 0.0
    %2242 = vmatprep.subr.mxu0 0.0
    %2243 = vmatpush1.xpose.msra.mxu0 0.0
    %2244 = vmatprep.subr.mxu0 0.0
    %2245 = vmatpush1.xpose.msra.mxu0 0.0
    %2246 = vmatprep.subr.mxu0 0.0
    %2247 = vmatpush1.xpose.msra.mxu0 0.0
    %2248 = vmatprep.subr.mxu0 0.0
    %2249 = vmatpush1.xpose.msra.mxu0 0.0
    %2250 = vmatprep.subr.mxu0 0.0
    %2251 = vmatpush1.xpose.msra.mxu0 0.0
    %2252 = vmatprep.subr.mxu0 0.0
    %2253 = vmatpush1.xpose.msra.mxu0 0.0
    %2254 = vmatprep.subr.mxu0 0.0
    %2255 = vmatpush1.xpose.msra.mxu0 0.0
    %2256 = vmatprep.subr.mxu0 0.0
    %2257 = vmatpush1.xpose.msra.mxu0 0.0
    %2258 = vmatprep.subr.mxu0 0.0
    %2259 = vmatpush1.xpose.msra.mxu0 0.0
    %2260 = vmatprep.subr.mxu0 0.0
    %2261 = vmatpush1.xpose.msra.mxu0 0.0
    %2262 = vmatprep.subr.mxu0 0.0
    %2263 = vmatpush1.xpose.msra.mxu0 0.0
    %2264 = vmatprep.subr.mxu0 0.0
    %2265 = vmatpush1.xpose.msra.mxu0 0.0
    %2266 = vmatprep.subr.mxu0 0.0
    %2267 = vmatpush1.xpose.msra.mxu0 0.0
    %2268 = vmatprep.subr.mxu0 0.0
    %2269 = vmatpush1.xpose.msra.mxu0 0.0
    %2270 = vmatprep.subr.mxu0 0.0
    %2271 = vmatpush1.xpose.msra.mxu0 0.0
    %2272 = vmatprep.subr.mxu0 0.0
    %2273 = vmatpush1.xpose.msra.mxu0 0.0
    %2274 = vmatprep.subr.mxu0 0.0
    %2275 = vmatpush1.xpose.msra.mxu0 0.0
    %2276 = vmatprep.subr.mxu0 0.0
    %2277 = vmatpush1.xpose.msra.mxu0 0.0
    %2278 = vmatprep.subr.mxu0 0.0
    %2279 = vmatpush1.xpose.msra.mxu0 0.0
    %2280 = vmatprep.subr.mxu0 0.0
    %2281 = vmatpush1.xpose.msra.mxu0 0.0
    %2282 = vmatprep.subr.mxu0 0.0
    %2283 = vmatpush1.xpose.msra.mxu0 0.0
    %2284 = vmatprep.subr.mxu0 0.0
    %2285 = vmatpush1.xpose.msra.mxu0 0.0
    %2286 = vmatprep.subr.mxu0 0.0
    %2287 = vmatpush1.xpose.msra.mxu0 0.0
    %2288 = vmatprep.mubr.f32.mxu0 0.0
    %2289 = vmatmul.mubr.f32.gmra.mrb[0].mxu0 %v697
    %v2290 = vpop.f32.mrb[0].mxu0
    %v2291 = vadd.f32 0.0, %v2290
    %v2292 = vpop.f32.mrb[0].mxu0
    %2293 = vdwg.mxu0
    %2294 = vmatprep.subr.mxu0 0.0
    %2295 = vmatpush1.xpose.msra.mxu0 %v857
    %2296 = vmatprep.subr.mxu0 0.0
    %2297 = vmatpush1.xpose.msra.mxu0 0.0
    %2298 = vmatprep.subr.mxu0 0.0
    %2299 = vmatpush1.xpose.msra.mxu0 0.0
    %2300 = vmatprep.subr.mxu0 0.0
    %2301 = vmatpush1.xpose.msra.mxu0 0.0
    %2302 = vmatprep.subr.mxu0 0.0
    %2303 = vmatpush1.xpose.msra.mxu0 0.0
    %2304 = vmatprep.subr.mxu0 0.0
    %2305 = vmatpush1.xpose.msra.mxu0 0.0
    %2306 = vmatprep.subr.mxu0 0.0
    %2307 = vmatpush1.xpose.msra.mxu0 0.0
    %2308 = vmatprep.subr.mxu0 0.0
    %2309 = vmatpush1.xpose.msra.mxu0 0.0
    %2310 = vmatprep.subr.mxu0 0.0
    %2311 = vmatpush1.xpose.msra.mxu0 0.0
    %2312 = vmatprep.subr.mxu0 0.0
    %2313 = vmatpush1.xpose.msra.mxu0 0.0
    %2314 = vmatprep.subr.mxu0 0.0
    %2315 = vmatpush1.xpose.msra.mxu0 0.0
    %2316 = vmatprep.subr.mxu0 0.0
    %2317 = vmatpush1.xpose.msra.mxu0 0.0
    %2318 = vmatprep.subr.mxu0 0.0
    %2319 = vmatpush1.xpose.msra.mxu0 0.0
    %2320 = vmatprep.subr.mxu0 0.0
    %2321 = vmatpush1.xpose.msra.mxu0 0.0
    %2322 = vmatprep.subr.mxu0 0.0
    %2323 = vmatpush1.xpose.msra.mxu0 0.0
    %2324 = vmatprep.subr.mxu0 0.0
    %2325 = vmatpush1.xpose.msra.mxu0 0.0
    %2326 = vmatprep.subr.mxu0 0.0
    %2327 = vmatpush1.xpose.msra.mxu0 0.0
    %2328 = vmatprep.subr.mxu0 0.0
    %2329 = vmatpush1.xpose.msra.mxu0 0.0
    %2330 = vmatprep.subr.mxu0 0.0
    %2331 = vmatpush1.xpose.msra.mxu0 0.0
    %2332 = vmatprep.subr.mxu0 0.0
    %2333 = vmatpush1.xpose.msra.mxu0 0.0
    %2334 = vmatprep.subr.mxu0 0.0
    %2335 = vmatpush1.xpose.msra.mxu0 0.0
    %2336 = vmatprep.subr.mxu0 0.0
    %2337 = vmatpush1.xpose.msra.mxu0 0.0
    %2338 = vmatprep.subr.mxu0 0.0
    %2339 = vmatpush1.xpose.msra.mxu0 0.0
    %2340 = vmatprep.subr.mxu0 0.0
    %2341 = vmatpush1.xpose.msra.mxu0 0.0
    %2342 = vmatprep.subr.mxu0 0.0
    %2343 = vmatpush1.xpose.msra.mxu0 0.0
    %2344 = vmatprep.subr.mxu0 0.0
    %2345 = vmatpush1.xpose.msra.mxu0 0.0
    %2346 = vmatprep.subr.mxu0 0.0
    %2347 = vmatpush1.xpose.msra.mxu0 0.0
    %2348 = vmatprep.subr.mxu0 0.0
    %2349 = vmatpush1.xpose.msra.mxu0 0.0
    %2350 = vmatprep.subr.mxu0 0.0
    %2351 = vmatpush1.xpose.msra.mxu0 0.0
    %2352 = vmatprep.subr.mxu0 0.0
    %2353 = vmatpush1.xpose.msra.mxu0 0.0
    %2354 = vmatprep.subr.mxu0 0.0
    %2355 = vmatpush1.xpose.msra.mxu0 0.0
    %2356 = vmatprep.subr.mxu0 0.0
    %2357 = vmatpush1.xpose.msra.mxu0 0.0
    %2358 = vmatprep.mubr.f32.mxu0 0.0
    %2359 = vmatmul.mubr.f32.gmra.mrb[0].mxu0 %v703
    %v2360 = vpop.f32.mrb[0].mxu0
    %v2361 = vadd.f32 0.0, %v2360
    %v2362 = vpop.f32.mrb[0].mxu0
    %2363 = vdwg.mxu0
    %v2364 = vsel %vm1160, %v2291, -inf
    %2365 = vmax.xlane.f32.xlu0 %v2364
    %v2366 = vpop.xlane.xlu0 %2365
    %v2367 = vsel %vm1160, %v2361, -inf
    %2368 = vmax.xlane.f32.xlu0 %v2367
    %v2369 = vpop.xlane.xlu0 %2368
    %v2370 = vsub.f32 %v2291, %v2366
    %v2371 = vsub.f32 %v2361, %v2369
    %v2372 = vmul.f32 %v2370, 1.442695
    %v2373 = vpow.pop %v2372
    %v2374 = vmul.f32 %v2371, 1.442695
    %v2375 = vpow.pop %v2374
    %v2376 = vsel %vm1160, %v2373, 0.0
    %2377 = vadd.xlane.f32.xlu0 %v2376
    %v2378 = vpop.xlane.xlu0 %2377
    %v2379 = vsel %vm1160, %v2375, 0.0
    %2380 = vadd.xlane.f32.xlu0 %v2379
    %v2381 = vpop.xlane.xlu0 %2380
    %v2382 = vrcp.pop %v2378
    %v2383 = vrcp.pop %v2381
    %v2384 = vmul.f32 %v2373, %v2382
    %v2385 = vmul.f32 %v2375, %v2383
    %v2387 = vsel %vm1160, %v2384, 0
    %2389 = vmatprep.subr.mxu0 0.0
    %2390 = vmatpush1.msra.mxu0 %v1005
    %2391 = vmatprep.subr.mxu0 0.0
    %2392 = vmatpush1.msra.mxu0 0.0
    %2393 = vmatprep.subr.mxu0 0.0
    %2394 = vmatpush1.msra.mxu0 0.0
    %2395 = vmatprep.subr.mxu0 0.0
    %2396 = vmatpush1.msra.mxu0 0.0
    %2397 = vmatprep.subr.mxu0 0.0
    %2398 = vmatpush1.msra.mxu0 0.0
    %2399 = vmatprep.subr.mxu0 0.0
    %2400 = vmatpush1.msra.mxu0 0.0
    %2401 = vmatprep.subr.mxu0 0.0
    %2402 = vmatpush1.msra.mxu0 0.0
    %2403 = vmatprep.subr.mxu0 0.0
    %2404 = vmatpush1.msra.mxu0 0.0
    %2405 = vmatprep.subr.mxu0 0.0
    %2406 = vmatpush1.msra.mxu0 0.0
    %2407 = vmatprep.subr.mxu0 0.0
    %2408 = vmatpush1.msra.mxu0 0.0
    %2409 = vmatprep.subr.mxu0 0.0
    %2410 = vmatpush1.msra.mxu0 0.0
    %2411 = vmatprep.subr.mxu0 0.0
    %2412 = vmatpush1.msra.mxu0 0.0
    %2413 = vmatprep.subr.mxu0 0.0
    %2414 = vmatpush1.msra.mxu0 0.0
    %2415 = vmatprep.subr.mxu0 0.0
    %2416 = vmatpush1.msra.mxu0 0.0
    %2417 = vmatprep.subr.mxu0 0.0
    %2418 = vmatpush1.msra.mxu0 0.0
    %2419 = vmatprep.subr.mxu0 0.0
    %2420 = vmatpush1.msra.mxu0 0.0
    %2421 = vmatprep.subr.mxu0 0.0
    %2422 = vmatpush1.msra.mxu0 0.0
    %2423 = vmatprep.subr.mxu0 0.0
    %2424 = vmatpush1.msra.mxu0 0.0
    %2425 = vmatprep.subr.mxu0 0.0
    %2426 = vmatpush1.msra.mxu0 0.0
    %2427 = vmatprep.subr.mxu0 0.0
    %2428 = vmatpush1.msra.mxu0 0.0
    %2429 = vmatprep.subr.mxu0 0.0
    %2430 = vmatpush1.msra.mxu0 0.0
    %2431 = vmatprep.subr.mxu0 0.0
    %2432 = vmatpush1.msra.mxu0 0.0
    %2433 = vmatprep.subr.mxu0 0.0
    %2434 = vmatpush1.msra.mxu0 0.0
    %2435 = vmatprep.subr.mxu0 0.0
    %2436 = vmatpush1.msra.mxu0 0.0
    %2437 = vmatprep.subr.mxu0 0.0
    %2438 = vmatpush1.msra.mxu0 0.0
    %2439 = vmatprep.subr.mxu0 0.0
    %2440 = vmatpush1.msra.mxu0 0.0
    %2441 = vmatprep.subr.mxu0 0.0
    %2442 = vmatpush1.msra.mxu0 0.0
    %2443 = vmatprep.subr.mxu0 0.0
    %2444 = vmatpush1.msra.mxu0 0.0
    %2445 = vmatprep.subr.mxu0 0.0
    %2446 = vmatpush1.msra.mxu0 0.0
    %2447 = vmatprep.subr.mxu0 0.0
    %2448 = vmatpush1.msra.mxu0 0.0
    %2449 = vmatprep.subr.mxu0 0.0
    %2450 = vmatpush1.msra.mxu0 0.0
    %2451 = vmatprep.subr.mxu0 0.0
    %2452 = vmatpush1.msra.mxu0 0.0
    %2453 = vmatprep.mubr.f32.mxu0 0.0
    %2454 = vmatmul.mubr.f32.gmra.mrb[0].mxu0 %v2387
    %v2455 = vpop.f32.mrb[0].mxu0
    %v2456 = vadd.f32 0.0, %v2455
    %v2457 = vpop.f32.mrb[0].mxu0
    %2458 = vdwg.mxu0
    %v2460 = vsel %vm1160, %v2385, 0
    %2462 = vmatprep.subr.mxu0 0.0
    %2463 = vmatpush1.msra.mxu0 %v1011
    %2464 = vmatprep.subr.mxu0 0.0
    %2465 = vmatpush1.msra.mxu0 0.0
    %2466 = vmatprep.subr.mxu0 0.0
    %2467 = vmatpush1.msra.mxu0 0.0
    %2468 = vmatprep.subr.mxu0 0.0
    %2469 = vmatpush1.msra.mxu0 0.0
    %2470 = vmatprep.subr.mxu0 0.0
    %2471 = vmatpush1.msra.mxu0 0.0
    %2472 = vmatprep.subr.mxu0 0.0
    %2473 = vmatpush1.msra.mxu0 0.0
    %2474 = vmatprep.subr.mxu0 0.0
    %2475 = vmatpush1.msra.mxu0 0.0
    %2476 = vmatprep.subr.mxu0 0.0
    %2477 = vmatpush1.msra.mxu0 0.0
    %2478 = vmatprep.subr.mxu0 0.0
    %2479 = vmatpush1.msra.mxu0 0.0
    %2480 = vmatprep.subr.mxu0 0.0
    %2481 = vmatpush1.msra.mxu0 0.0
    %2482 = vmatprep.subr.mxu0 0.0
    %2483 = vmatpush1.msra.mxu0 0.0
    %2484 = vmatprep.subr.mxu0 0.0
    %2485 = vmatpush1.msra.mxu0 0.0
    %2486 = vmatprep.subr.mxu0 0.0
    %2487 = vmatpush1.msra.mxu0 0.0
    %2488 = vmatprep.subr.mxu0 0.0
    %2489 = vmatpush1.msra.mxu0 0.0
    %2490 = vmatprep.subr.mxu0 0.0
    %2491 = vmatpush1.msra.mxu0 0.0
    %2492 = vmatprep.subr.mxu0 0.0
    %2493 = vmatpush1.msra.mxu0 0.0
    %2494 = vmatprep.subr.mxu0 0.0
    %2495 = vmatpush1.msra.mxu0 0.0
    %2496 = vmatprep.subr.mxu0 0.0
    %2497 = vmatpush1.msra.mxu0 0.0
    %2498 = vmatprep.subr.mxu0 0.0
    %2499 = vmatpush1.msra.mxu0 0.0
    %2500 = vmatprep.subr.mxu0 0.0
    %2501 = vmatpush1.msra.mxu0 0.0
    %2502 = vmatprep.subr.mxu0 0.0
    %2503 = vmatpush1.msra.mxu0 0.0
    %2504 = vmatprep.subr.mxu0 0.0
    %2505 = vmatpush1.msra.mxu0 0.0
    %2506 = vmatprep.subr.mxu0 0.0
    %2507 = vmatpush1.msra.mxu0 0.0
    %2508 = vmatprep.subr.mxu0 0.0
    %2509 = vmatpush1.msra.mxu0 0.0
    %2510 = vmatprep.subr.mxu0 0.0
    %2511 = vmatpush1.msra.mxu0 0.0
    %2512 = vmatprep.subr.mxu0 0.0
    %2513 = vmatpush1.msra.mxu0 0.0
    %2514 = vmatprep.subr.mxu0 0.0
    %2515 = vmatpush1.msra.mxu0 0.0
    %2516 = vmatprep.subr.mxu0 0.0
    %2517 = vmatpush1.msra.mxu0 0.0
    %2518 = vmatprep.subr.mxu0 0.0
    %2519 = vmatpush1.msra.mxu0 0.0
    %2520 = vmatprep.subr.mxu0 0.0
    %2521 = vmatpush1.msra.mxu0 0.0
    %2522 = vmatprep.subr.mxu0 0.0
    %2523 = vmatpush1.msra.mxu0 0.0
    %2524 = vmatprep.subr.mxu0 0.0
    %2525 = vmatpush1.msra.mxu0 0.0
    %2526 = vmatprep.mubr.f32.mxu0 0.0
    %2527 = vmatmul.mubr.f32.gmra.mrb[0].mxu0 %v2460
    %v2528 = vpop.f32.mrb[0].mxu0
    %v2529 = vadd.f32 0.0, %v2528
    %v2530 = vpop.f32.mrb[0].mxu0
    %2531 = vdwg.mxu0
    %v2532 = vld [vmem:[%s5 + $0x180] sm:$0xff]
    %v2533 = vld [vmem:[%s5 + $0x188] sm:$0xff]
    %v2534 = vld [vmem:[%s5 + $0x190] sm:$0xff]
    %v2535 = vld [vmem:[%s5 + $0x198] sm:$0xff]
    %v2536 = vld [vmem:[%s5 + $0x1a0] sm:$0xff]
    %v2537 = vld [vmem:[%s5 + $0x1a8] sm:$0xff]
    %v2538 = vld [vmem:[%s5 + $0x1b0] sm:$0xff]
    %v2539 = vld [vmem:[%s5 + $0x1b8] sm:$0xff]
    %v2540 = vld [vmem:[%s5 + $0x1c0] sm:$0xff]
    %v2541 = vld [vmem:[%s5 + $0x1c8] sm:$0xff]
    %v2542 = vld [vmem:[%s5 + $0x1d0] sm:$0xff]
    %v2543 = vld [vmem:[%s5 + $0x1d8] sm:$0xff]
    %v2544 = vld [vmem:[%s5 + $0x1e0] sm:$0xff]
    %v2545 = vld [vmem:[%s5 + $0x1e8] sm:$0xff]
    %v2546 = vld [vmem:[%s5 + $0x1f0] sm:$0xff]
    %v2547 = vld [vmem:[%s5 + $0x1f8] sm:$0xff]
    %2548 = vmatprep.subr.mxu0 0.0
    %2549 = vmatpush1.msra.mxu0 %v2532
    %2550 = vmatprep.subr.mxu0 0.0
    %2551 = vmatpush1.msra.mxu0 %v2533
    %2552 = vmatprep.subr.mxu0 0.0
    %2553 = vmatpush1.msra.mxu0 %v2534
    %2554 = vmatprep.subr.mxu0 0.0
    %2555 = vmatpush1.msra.mxu0 %v2535
    %2556 = vmatprep.subr.mxu0 0.0
    %2557 = vmatpush1.msra.mxu0 %v2536
    %2558 = vmatprep.subr.mxu0 0.0
    %2559 = vmatpush1.msra.mxu0 %v2537
    %2560 = vmatprep.subr.mxu0 0.0
    %2561 = vmatpush1.msra.mxu0 %v2538
    %2562 = vmatprep.subr.mxu0 0.0
    %2563 = vmatpush1.msra.mxu0 %v2539
    %2564 = vmatprep.subr.mxu0 0.0
    %2565 = vmatpush1.msra.mxu0 %v2540
    %2566 = vmatprep.subr.mxu0 0.0
    %2567 = vmatpush1.msra.mxu0 %v2541
    %2568 = vmatprep.subr.mxu0 0.0
    %2569 = vmatpush1.msra.mxu0 %v2542
    %2570 = vmatprep.subr.mxu0 0.0
    %2571 = vmatpush1.msra.mxu0 %v2543
    %2572 = vmatprep.subr.mxu0 0.0
    %2573 = vmatpush1.msra.mxu0 %v2544
    %2574 = vmatprep.subr.mxu0 0.0
    %2575 = vmatpush1.msra.mxu0 %v2545
    %2576 = vmatprep.subr.mxu0 0.0
    %2577 = vmatpush1.msra.mxu0 %v2546
    %2578 = vmatprep.subr.mxu0 0.0
    %2579 = vmatpush1.msra.mxu0 %v2547
    %2580 = vmatprep.subr.mxu0 0.0
    %2581 = vmatpush1.msra.mxu0 0.0
    %2582 = vmatprep.subr.mxu0 0.0
    %2583 = vmatpush1.msra.mxu0 0.0
    %2584 = vmatprep.subr.mxu0 0.0
    %2585 = vmatpush1.msra.mxu0 0.0
    %2586 = vmatprep.subr.mxu0 0.0
    %2587 = vmatpush1.msra.mxu0 0.0
    %2588 = vmatprep.subr.mxu0 0.0
    %2589 = vmatpush1.msra.mxu0 0.0
    %2590 = vmatprep.subr.mxu0 0.0
    %2591 = vmatpush1.msra.mxu0 0.0
    %2592 = vmatprep.subr.mxu0 0.0
    %2593 = vmatpush1.msra.mxu0 0.0
    %2594 = vmatprep.subr.mxu0 0.0
    %2595 = vmatpush1.msra.mxu0 0.0
    %2596 = vmatprep.subr.mxu0 0.0
    %2597 = vmatpush1.msra.mxu0 0.0
    %2598 = vmatprep.subr.mxu0 0.0
    %2599 = vmatpush1.msra.mxu0 0.0
    %2600 = vmatprep.subr.mxu0 0.0
    %2601 = vmatpush1.msra.mxu0 0.0
    %2602 = vmatprep.subr.mxu0 0.0
    %2603 = vmatpush1.msra.mxu0 0.0
    %2604 = vmatprep.subr.mxu0 0.0
    %2605 = vmatpush1.msra.mxu0 0.0
    %2606 = vmatprep.subr.mxu0 0.0
    %2607 = vmatpush1.msra.mxu0 0.0
    %2608 = vmatprep.subr.mxu0 0.0
    %2609 = vmatpush1.msra.mxu0 0.0
    %2610 = vmatprep.subr.mxu0 0.0
    %2611 = vmatpush1.msra.mxu0 0.0
    %2612 = vmatprep.mubr.f32.mxu0 0.0
    %2613 = vmatmul.mubr.f32.gmra.mrb[0].mxu0 %v2456
    %v2614 = vpop.f32.mrb[0].mxu0
    %v2615 = vadd.f32 0.0, %v2614
    %v2616 = vpop.f32.mrb[0].mxu0
    %2617 = vmatprep.mubr.f32.mxu0 0.0
    %2618 = vmatmul.mubr.f32.gmra.mrb[0].mxu0 %v2529
    %v2619 = vpop.f32.mrb[0].mxu0
    %v2620 = vadd.f32 0.0, %v2619
    %v2621 = vpop.f32.mrb[0].mxu0
    %2622 = vdwg.mxu0
    %v2623 = vadd.f32 %v2222, %v2615
    %v2624 = vadd.f32 %v2223, %v2620
    %v2625 = vmul.f32 %v313, %v2623
    %v2626 = vmul.f32 %v319, %v2624
    %v2627 = vadd.f32 %v88, %v2625
    %v2628 = vadd.f32 %v89, %v2626
    %v2629 = vsel %vm162, %v2627, 0.0
    %2630 = vadd.xlane.f32.xlu0 %v2629
    %v2631 = vpop.xlane.xlu0 %2630
    %v2632 = vsel %vm162, %v2628, 0.0
    %2633 = vadd.xlane.f32.xlu0 %v2632
    %v2634 = vpop.xlane.xlu0 %2633
    %v2635 = vmul.f32 %v2631, %v406
    %v2636 = vmul.f32 %v2634, %v406
    %v2637 = vsub.f32 %v2627, %v2635
    %v2638 = vsub.f32 %v2628, %v2636
    %v2639 = vmul.f32 %v2637, %v2637
    %v2640 = vmul.f32 %v2638, %v2638
    %v2641 = vsel %vm162, %v2639, 0.0
    %2642 = vadd.xlane.f32.xlu0 %v2641
    %v2643 = vpop.xlane.xlu0 %2642
    %v2644 = vsel %vm162, %v2640, 0.0
    %2645 = vadd.xlane.f32.xlu0 %v2644
    %v2646 = vpop.xlane.xlu0 %2645
    %v2647 = vmul.f32 %v2643, %v406
    %v2648 = vmul.f32 %v2646, %v406
    %v2649 = vadd.f32 %v2647, 1e-06
    %v2650 = vadd.f32 %v2648, 1e-06
    %v2651 = vrsqrt.pop %v2649
    %v2652 = vrsqrt.pop %v2650
    %v2653 = vmul.f32 %v2637, %v2651
    %v2654 = vmul.f32 %v2638, %v2652
    %v2655 = vadd.f32 %v390, 1.0
    %v2656 = vadd.f32 %v396, 1.0
    %v2657 = vmul.f32 %v2653, %v2655
    %v2658 = vmul.f32 %v2654, %v2656
    %v2659 = vadd.f32 %v2657, %v315
    %v2660 = vadd.f32 %v2658, %v321
    %v2661 = vld [vmem:[%s6] sm:$0xff]
    %v2662 = vld [vmem:[%s6 + $0x8] sm:$0xff]
    %v2663 = vld [vmem:[%s6 + $0x10] sm:$0xff]
    %v2664 = vld [vmem:[%s6 + $0x18] sm:$0xff]
    %v2665 = vld [vmem:[%s11] sm:$0x1]
    %v2667 = vlaneseq
    %v2668 = vshrl.u32 %v2667, 7
    %v2669 = vsub.s32 0, %v2668
    %v2670 = vrot.slane %v2665, %v2669
    %v2673 = vsel %vm162, %v2659, 0
    %v2676 = vsel %vm162, %v2660, 0
    %2678 = vmatprep.subr.mxu0 0.0
    %2679 = vmatpush1.msra.mxu0 %v2661
    %2680 = vmatprep.subr.mxu0 0.0
    %2681 = vmatpush1.msra.mxu0 %v2662
    %2682 = vmatprep.subr.mxu0 0.0
    %2683 = vmatpush1.msra.mxu0 %v2663
    %2684 = vmatprep.subr.mxu0 0.0
    %2685 = vmatpush1.msra.mxu0 %v2664
    %2686 = vmatprep.subr.mxu0 0.0
    %2687 = vmatpush1.msra.mxu0 0.0
    %2688 = vmatprep.subr.mxu0 0.0
    %2689 = vmatpush1.msra.mxu0 0.0
    %2690 = vmatprep.subr.mxu0 0.0
    %2691 = vmatpush1.msra.mxu0 0.0
    %2692 = vmatprep.subr.mxu0 0.0
    %2693 = vmatpush1.msra.mxu0 0.0
    %2694 = vmatprep.subr.mxu0 0.0
    %2695 = vmatpush1.msra.mxu0 0.0
    %2696 = vmatprep.subr.mxu0 0.0
    %2697 = vmatpush1.msra.mxu0 0.0
    %2698 = vmatprep.subr.mxu0 0.0
    %2699 = vmatpush1.msra.mxu0 0.0
    %2700 = vmatprep.subr.mxu0 0.0
    %2701 = vmatpush1.msra.mxu0 0.0
    %2702 = vmatprep.subr.mxu0 0.0
    %2703 = vmatpush1.msra.mxu0 0.0
    %2704 = vmatprep.subr.mxu0 0.0
    %2705 = vmatpush1.msra.mxu0 0.0
    %2706 = vmatprep.subr.mxu0 0.0
    %2707 = vmatpush1.msra.mxu0 0.0
    %2708 = vmatprep.subr.mxu0 0.0
    %2709 = vmatpush1.msra.mxu0 0.0
    %2710 = vmatprep.subr.mxu0 0.0
    %2711 = vmatpush1.msra.mxu0 0.0
    %2712 = vmatprep.subr.mxu0 0.0
    %2713 = vmatpush1.msra.mxu0 0.0
    %2714 = vmatprep.subr.mxu0 0.0
    %2715 = vmatpush1.msra.mxu0 0.0
    %2716 = vmatprep.subr.mxu0 0.0
    %2717 = vmatpush1.msra.mxu0 0.0
    %2718 = vmatprep.subr.mxu0 0.0
    %2719 = vmatpush1.msra.mxu0 0.0
    %2720 = vmatprep.subr.mxu0 0.0
    %2721 = vmatpush1.msra.mxu0 0.0
    %2722 = vmatprep.subr.mxu0 0.0
    %2723 = vmatpush1.msra.mxu0 0.0
    %2724 = vmatprep.subr.mxu0 0.0
    %2725 = vmatpush1.msra.mxu0 0.0
    %2726 = vmatprep.subr.mxu0 0.0
    %2727 = vmatpush1.msra.mxu0 0.0
    %2728 = vmatprep.subr.mxu0 0.0
    %2729 = vmatpush1.msra.mxu0 0.0
    %2730 = vmatprep.subr.mxu0 0.0
    %2731 = vmatpush1.msra.mxu0 0.0
    %2732 = vmatprep.subr.mxu0 0.0
    %2733 = vmatpush1.msra.mxu0 0.0
    %2734 = vmatprep.subr.mxu0 0.0
    %2735 = vmatpush1.msra.mxu0 0.0
    %2736 = vmatprep.subr.mxu0 0.0
    %2737 = vmatpush1.msra.mxu0 0.0
    %2738 = vmatprep.subr.mxu0 0.0
    %2739 = vmatpush1.msra.mxu0 0.0
    %2740 = vmatprep.subr.mxu0 0.0
    %2741 = vmatpush1.msra.mxu0 0.0
    %2742 = vmatprep.mubr.f32.mxu0 0.0
    %2743 = vmatmul.mubr.f32.gmra.mrb[0].mxu0 %v2673
    %v2744 = vpop.f32.mrb[0].mxu0
    %v2745 = vadd.f32 %v2670, %v2744
    %v2746 = vpop.f32.mrb[0].mxu0
    %2747 = vmatprep.mubr.f32.mxu0 0.0
    %2748 = vmatmul.mubr.f32.gmra.mrb[0].mxu0 %v2676
    %v2749 = vpop.f32.mrb[0].mxu0
    %v2750 = vadd.f32 %v2670, %v2749
    %v2751 = vpop.f32.mrb[0].mxu0
    %2752 = vdwg.mxu0
    %v2753 = vmul.f32 %v2745, 0.5
    %v2754 = vmul.f32 %v2750, 0.5
    %v2755 = vmul.f32 %v2745, 0.044715
    %v2756 = vmul.f32 %v2750, 0.044715
    %v2757 = vmul.f32 %v2755, %v2745
    %v2758 = vmul.f32 %v2756, %v2750
    %v2759 = vmul.f32 %v2757, %v2745
    %v2760 = vmul.f32 %v2758, %v2750
    %v2761 = vadd.f32 %v2745, %v2759
    %v2762 = vadd.f32 %v2750, %v2760
    %v2763 = vmul.f32 %v2761, 0.7978846
    %v2764 = vmul.f32 %v2762, 0.7978846
    %v2765 = vtanh.pop %v2763
    %v2766 = vtanh.pop %v2764
    %v2767 = vadd.f32 %v2765, 1.0
    %v2768 = vadd.f32 %v2766, 1.0
    %v2769 = vmul.f32 %v2753, %v2767
    %v2770 = vmul.f32 %v2754, %v2768
    %v2771 = vld [vmem:[%s7] sm:$0xff]
    %v2772 = vld [vmem:[%s7 + $0x8] sm:$0xff]
    %v2773 = vld [vmem:[%s7 + $0x10] sm:$0xff]
    %v2774 = vld [vmem:[%s7 + $0x18] sm:$0xff]
    %v2775 = vld [vmem:[%s7 + $0x20] sm:$0xff]
    %v2776 = vld [vmem:[%s7 + $0x28] sm:$0xff]
    %v2777 = vld [vmem:[%s7 + $0x30] sm:$0xff]
    %v2778 = vld [vmem:[%s7 + $0x38] sm:$0xff]
    %v2779 = vld [vmem:[%s7 + $0x40] sm:$0xff]
    %v2780 = vld [vmem:[%s7 + $0x48] sm:$0xff]
    %v2781 = vld [vmem:[%s7 + $0x50] sm:$0xff]
    %v2782 = vld [vmem:[%s7 + $0x58] sm:$0xff]
    %v2783 = vld [vmem:[%s7 + $0x60] sm:$0xff]
    %v2784 = vld [vmem:[%s7 + $0x68] sm:$0xff]
    %v2785 = vld [vmem:[%s7 + $0x70] sm:$0xff]
    %v2786 = vld [vmem:[%s7 + $0x78] sm:$0xff]
    %v2787 = vld [vmem:[%s12] sm:$0x1]
    %v2789 = vlaneseq
    %v2790 = vshrl.u32 %v2789, 7
    %v2791 = vsub.s32 0, %v2790
    %v2792 = vrot.slane %v2787, %v2791
    %2794 = vmatprep.subr.mxu0 0.0
    %2795 = vmatpush1.msra.mxu0 %v2771
    %2796 = vmatprep.subr.mxu0 0.0
    %2797 = vmatpush1.msra.mxu0 %v2772
    %2798 = vmatprep.subr.mxu0 0.0
    %2799 = vmatpush1.msra.mxu0 %v2773
    %2800 = vmatprep.subr.mxu0 0.0
    %2801 = vmatpush1.msra.mxu0 %v2774
    %2802 = vmatprep.subr.mxu0 0.0
    %2803 = vmatpush1.msra.mxu0 %v2775
    %2804 = vmatprep.subr.mxu0 0.0
    %2805 = vmatpush1.msra.mxu0 %v2776
    %2806 = vmatprep.subr.mxu0 0.0
    %2807 = vmatpush1.msra.mxu0 %v2777
    %2808 = vmatprep.subr.mxu0 0.0
    %2809 = vmatpush1.msra.mxu0 %v2778
    %2810 = vmatprep.subr.mxu0 0.0
    %2811 = vmatpush1.msra.mxu0 %v2779
    %2812 = vmatprep.subr.mxu0 0.0
    %2813 = vmatpush1.msra.mxu0 %v2780
    %2814 = vmatprep.subr.mxu0 0.0
    %2815 = vmatpush1.msra.mxu0 %v2781
    %2816 = vmatprep.subr.mxu0 0.0
    %2817 = vmatpush1.msra.mxu0 %v2782
    %2818 = vmatprep.subr.mxu0 0.0
    %2819 = vmatpush1.msra.mxu0 %v2783
    %2820 = vmatprep.subr.mxu0 0.0
    %2821 = vmatpush1.msra.mxu0 %v2784
    %2822 = vmatprep.subr.mxu0 0.0
    %2823 = vmatpush1.msra.mxu0 %v2785
    %2824 = vmatprep.subr.mxu0 0.0
    %2825 = vmatpush1.msra.mxu0 %v2786
    %2826 = vmatprep.subr.mxu0 0.0
    %2827 = vmatpush1.msra.mxu0 0.0
    %2828 = vmatprep.subr.mxu0 0.0
    %2829 = vmatpush1.msra.mxu0 0.0
    %2830 = vmatprep.subr.mxu0 0.0
    %2831 = vmatpush1.msra.mxu0 0.0
    %2832 = vmatprep.subr.mxu0 0.0
    %2833 = vmatpush1.msra.mxu0 0.0
    %2834 = vmatprep.subr.mxu0 0.0
    %2835 = vmatpush1.msra.mxu0 0.0
    %2836 = vmatprep.subr.mxu0 0.0
    %2837 = vmatpush1.msra.mxu0 0.0
    %2838 = vmatprep.subr.mxu0 0.0
    %2839 = vmatpush1.msra.mxu0 0.0
    %2840 = vmatprep.subr.mxu0 0.0
    %2841 = vmatpush1.msra.mxu0 0.0
    %2842 = vmatprep.subr.mxu0 0.0
    %2843 = vmatpush1.msra.mxu0 0.0
    %2844 = vmatprep.subr.mxu0 0.0
    %2845 = vmatpush1.msra.mxu0 0.0
    %2846 = vmatprep.subr.mxu0 0.0
    %2847 = vmatpush1.msra.mxu0 0.0
    %2848 = vmatprep.subr.mxu0 0.0
    %2849 = vmatpush1.msra.mxu0 0.0
    %2850 = vmatprep.subr.mxu0 0.0
    %2851 = vmatpush1.msra.mxu0 0.0
    %2852 = vmatprep.subr.mxu0 0.0
    %2853 = vmatpush1.msra.mxu0 0.0
    %2854 = vmatprep.subr.mxu0 0.0
    %2855 = vmatpush1.msra.mxu0 0.0
    %2856 = vmatprep.subr.mxu0 0.0
    %2857 = vmatpush1.msra.mxu0 0.0
    %2858 = vmatprep.mubr.f32.mxu0 0.0
    %2859 = vmatmul.mubr.f32.gmra.mrb[0].mxu0 %v2769
    %v2860 = vpop.f32.mrb[0].mxu0
    %v2861 = vadd.f32 %v2792, %v2860
    %v2862 = vpop.f32.mrb[0].mxu0
    %2863 = vmatprep.mubr.f32.mxu0 0.0
    %2864 = vmatmul.mubr.f32.gmra.mrb[0].mxu0 %v2770
    %v2865 = vpop.f32.mrb[0].mxu0
    %v2866 = vadd.f32 %v2792, %v2865
    %v2867 = vpop.f32.mrb[0].mxu0
    %2868 = vdwg.mxu0
    %v2869 = vmul.f32 %v392, %v2861
    %v2870 = vmul.f32 %v398, %v2866
    %v2871 = vadd.f32 %v2627, %v2869
    %v2872 = vadd.f32 %v2628, %v2870
    %s2873 = scalar_lea.vmem %s3, 192
    %v2874 = vld [vmem:[%s2873] sm:$0xff]
    %v2875 = vld [vmem:[%s2873 + $0x8] sm:$0xff]
    %v2876 = vld [vmem:[%s2873 + $0x10] sm:$0xff]
    %v2877 = vld [vmem:[%s2873 + $0x18] sm:$0xff]
    %v2878 = vld [vmem:[%s2873 + $0x20] sm:$0xff]
    %v2879 = vld [vmem:[%s2873 + $0x28] sm:$0xff]
    %v2880 = vld [vmem:[%s2873 + $0x30] sm:$0xff]
    %v2881 = vld [vmem:[%s2873 + $0x38] sm:$0xff]
    %v2882 = vld [vmem:[%s2873 + $0x40] sm:$0xff]
    %v2883 = vld [vmem:[%s2873 + $0x48] sm:$0xff]
    %v2884 = vld [vmem:[%s2873 + $0x50] sm:$0xff]
    %v2885 = vld [vmem:[%s2873 + $0x58] sm:$0xff]
    %v2886 = vld [vmem:[%s2873 + $0x60] sm:$0xff]
    %v2887 = vld [vmem:[%s2873 + $0x68] sm:$0xff]
    %v2888 = vld [vmem:[%s2873 + $0x70] sm:$0xff]
    %v2889 = vld [vmem:[%s2873 + $0x78] sm:$0xff]
    %v2890 = vld [vmem:[%s2873 + $0x80] sm:$0xff]
    %v2891 = vld [vmem:[%s2873 + $0x88] sm:$0xff]
    %v2892 = vld [vmem:[%s2873 + $0x90] sm:$0xff]
    %v2893 = vld [vmem:[%s2873 + $0x98] sm:$0xff]
    %v2894 = vld [vmem:[%s2873 + $0xa0] sm:$0xff]
    %v2895 = vld [vmem:[%s2873 + $0xa8] sm:$0xff]
    %v2896 = vld [vmem:[%s2873 + $0xb0] sm:$0xff]
    %v2897 = vld [vmem:[%s2873 + $0xb8] sm:$0xff]
    %s2898 = scalar_lea.vmem [#allocation5], 6
    %v2899 = vld [vmem:[%s2898] sm:$0x3f]
    %v2901 = vlaneseq
    %v2902 = vshrl.u32 %v2901, 7
    %v2903 = vsub.s32 0, %v2902
    %v2904 = vrot.slane %v2899, %v2903
    %v2905 = vlaneseq
    %v2906 = vshrl.u32 %v2905, 7
    %v2907 = vsub.s32 1, %v2906
    %v2908 = vrot.slane %v2899, %v2907
    %v2909 = vlaneseq
    %v2910 = vshrl.u32 %v2909, 7
    %v2911 = vsub.s32 2, %v2910
    %v2912 = vrot.slane %v2899, %v2911
    %v2913 = vlaneseq
    %v2914 = vshrl.u32 %v2913, 7
    %v2915 = vsub.s32 3, %v2914
    %v2916 = vrot.slane %v2899, %v2915
    %v2917 = vlaneseq
    %v2918 = vshrl.u32 %v2917, 7
    %v2919 = vsub.s32 4, %v2918
    %v2920 = vrot.slane %v2899, %v2919
    %v2921 = vlaneseq
    %v2922 = vshrl.u32 %v2921, 7
    %v2923 = vsub.s32 5, %v2922
    %v2924 = vrot.slane %v2899, %v2923
    %2931 = vmatprep.subr.mxu0 %v2875
    %2932 = vmatpush1.msra.mxu0 %v2874
    %2933 = vmatprep.subr.mxu0 %v2881
    %2934 = vmatpush1.msra.mxu0 %v2880
    %2935 = vmatprep.subr.mxu0 %v2887
    %2936 = vmatpush1.msra.mxu0 %v2886
    %2937 = vmatprep.subr.mxu0 %v2893
    %2938 = vmatpush1.msra.mxu0 %v2892
    %2939 = vmatprep.subr.mxu0 0.0
    %2940 = vmatpush1.msra.mxu0 0.0
    %2941 = vmatprep.subr.mxu0 0.0
    %2942 = vmatpush1.msra.mxu0 0.0
    %2943 = vmatprep.subr.mxu0 0.0
    %2944 = vmatpush1.msra.mxu0 0.0
    %2945 = vmatprep.subr.mxu0 0.0
    %2946 = vmatpush1.msra.mxu0 0.0
    %2947 = vmatprep.subr.mxu0 0.0
    %2948 = vmatpush1.msra.mxu0 0.0
    %2949 = vmatprep.subr.mxu0 0.0
    %2950 = vmatpush1.msra.mxu0 0.0
    %2951 = vmatprep.subr.mxu0 0.0
    %2952 = vmatpush1.msra.mxu0 0.0
    %2953 = vmatprep.subr.mxu0 0.0
    %2954 = vmatpush1.msra.mxu0 0.0
    %2955 = vmatprep.subr.mxu0 0.0
    %2956 = vmatpush1.msra.mxu0 0.0
    %2957 = vmatprep.subr.mxu0 0.0
    %2958 = vmatpush1.msra.mxu0 0.0
    %2959 = vmatprep.subr.mxu0 0.0
    %2960 = vmatpush1.msra.mxu0 0.0
    %2961 = vmatprep.subr.mxu0 0.0
    %2962 = vmatpush1.msra.mxu0 0.0
    %2963 = vmatprep.subr.mxu0 0.0
    %2964 = vmatpush1.msra.mxu0 0.0
    %2965 = vmatprep.subr.mxu0 0.0
    %2966 = vmatpush1.msra.mxu0 0.0
    %2967 = vmatprep.subr.mxu0 0.0
    %2968 = vmatpush1.msra.mxu0 0.0
    %2969 = vmatprep.subr.mxu0 0.0
    %2970 = vmatpush1.msra.mxu0 0.0
    %2971 = vmatprep.subr.mxu0 0.0
    %2972 = vmatpush1.msra.mxu0 0.0
    %2973 = vmatprep.subr.mxu0 0.0
    %2974 = vmatpush1.msra.mxu0 0.0
    %2975 = vmatprep.subr.mxu0 0.0
    %2976 = vmatpush1.msra.mxu0 0.0
    %2977 = vmatprep.subr.mxu0 0.0
    %2978 = vmatpush1.msra.mxu0 0.0
    %2979 = vmatprep.subr.mxu0 0.0
    %2980 = vmatpush1.msra.mxu0 0.0
    %2981 = vmatprep.subr.mxu0 0.0
    %2982 = vmatpush1.msra.mxu0 0.0
    %2983 = vmatprep.subr.mxu0 0.0
    %2984 = vmatpush1.msra.mxu0 0.0
    %2985 = vmatprep.subr.mxu0 0.0
    %2986 = vmatpush1.msra.mxu0 0.0
    %2987 = vmatprep.subr.mxu0 0.0
    %2988 = vmatpush1.msra.mxu0 0.0
    %2989 = vmatprep.subr.mxu0 0.0
    %2990 = vmatpush1.msra.mxu0 0.0
    %2991 = vmatprep.subr.mxu0 0.0
    %2992 = vmatpush1.msra.mxu0 0.0
    %2993 = vmatprep.subr.mxu0 0.0
    %2994 = vmatpush1.msra.mxu0 0.0
    %2995 = vmatprep.mubr.f32.mxu0 0.0
    %2996 = vmatmul.mubr.f32.gmra.mrb[0].mxu0 %v164
    %v2997 = vpop.f32.mrb[0].mxu0
    %v2998 = vadd.f32 %v2904, %v2997
    %v2999 = vpop.f32.mrb[0].mxu0
    %v3000 = vadd.f32 %v2908, %v2999
    %3001 = vmatprep.mubr.f32.mxu0 0.0
    %3002 = vmatmul.mubr.f32.gmra.mrb[0].mxu0 %v167
    %v3003 = vpop.f32.mrb[0].mxu0
    %v3004 = vadd.f32 %v2904, %v3003
    %v3005 = vpop.f32.mrb[0].mxu0
    %v3006 = vadd.f32 %v2908, %v3005
    %3007 = vdwg.mxu0
    %3008 = vmatprep.subr.mxu0 %v2877
    %3009 = vmatpush1.msra.mxu0 %v2876
    %3010 = vmatprep.subr.mxu0 %v2883
    %3011 = vmatpush1.msra.mxu0 %v2882
    %3012 = vmatprep.subr.mxu0 %v2889
    %3013 = vmatpush1.msra.mxu0 %v2888
    %3014 = vmatprep.subr.mxu0 %v2895
    %3015 = vmatpush1.msra.mxu0 %v2894
    %3016 = vmatprep.subr.mxu0 0.0
    %3017 = vmatpush1.msra.mxu0 0.0
    %3018 = vmatprep.subr.mxu0 0.0
    %3019 = vmatpush1.msra.mxu0 0.0
    %3020 = vmatprep.subr.mxu0 0.0
    %3021 = vmatpush1.msra.mxu0 0.0
    %3022 = vmatprep.subr.mxu0 0.0
    %3023 = vmatpush1.msra.mxu0 0.0
    %3024 = vmatprep.subr.mxu0 0.0
    %3025 = vmatpush1.msra.mxu0 0.0
    %3026 = vmatprep.subr.mxu0 0.0
    %3027 = vmatpush1.msra.mxu0 0.0
    %3028 = vmatprep.subr.mxu0 0.0
    %3029 = vmatpush1.msra.mxu0 0.0
    %3030 = vmatprep.subr.mxu0 0.0
    %3031 = vmatpush1.msra.mxu0 0.0
    %3032 = vmatprep.subr.mxu0 0.0
    %3033 = vmatpush1.msra.mxu0 0.0
    %3034 = vmatprep.subr.mxu0 0.0
    %3035 = vmatpush1.msra.mxu0 0.0
    %3036 = vmatprep.subr.mxu0 0.0
    %3037 = vmatpush1.msra.mxu0 0.0
    %3038 = vmatprep.subr.mxu0 0.0
    %3039 = vmatpush1.msra.mxu0 0.0
    %3040 = vmatprep.subr.mxu0 0.0
    %3041 = vmatpush1.msra.mxu0 0.0
    %3042 = vmatprep.subr.mxu0 0.0
    %3043 = vmatpush1.msra.mxu0 0.0
    %3044 = vmatprep.subr.mxu0 0.0
    %3045 = vmatpush1.msra.mxu0 0.0
    %3046 = vmatprep.subr.mxu0 0.0
    %3047 = vmatpush1.msra.mxu0 0.0
    %3048 = vmatprep.subr.mxu0 0.0
    %3049 = vmatpush1.msra.mxu0 0.0
    %3050 = vmatprep.subr.mxu0 0.0
    %3051 = vmatpush1.msra.mxu0 0.0
    %3052 = vmatprep.subr.mxu0 0.0
    %3053 = vmatpush1.msra.mxu0 0.0
    %3054 = vmatprep.subr.mxu0 0.0
    %3055 = vmatpush1.msra.mxu0 0.0
    %3056 = vmatprep.subr.mxu0 0.0
    %3057 = vmatpush1.msra.mxu0 0.0
    %3058 = vmatprep.subr.mxu0 0.0
    %3059 = vmatpush1.msra.mxu0 0.0
    %3060 = vmatprep.subr.mxu0 0.0
    %3061 = vmatpush1.msra.mxu0 0.0
    %3062 = vmatprep.subr.mxu0 0.0
    %3063 = vmatpush1.msra.mxu0 0.0
    %3064 = vmatprep.subr.mxu0 0.0
    %3065 = vmatpush1.msra.mxu0 0.0
    %3066 = vmatprep.subr.mxu0 0.0
    %3067 = vmatpush1.msra.mxu0 0.0
    %3068 = vmatprep.subr.mxu0 0.0
    %3069 = vmatpush1.msra.mxu0 0.0
    %3070 = vmatprep.subr.mxu0 0.0
    %3071 = vmatpush1.msra.mxu0 0.0
    %3072 = vmatprep.mubr.f32.mxu0 0.0
    %3073 = vmatmul.mubr.f32.gmra.mrb[0].mxu0 %v164
    %v3074 = vpop.f32.mrb[0].mxu0
    %v3075 = vadd.f32 %v2912, %v3074
    %v3076 = vpop.f32.mrb[0].mxu0
    %v3077 = vadd.f32 %v2916, %v3076
    %3078 = vmatprep.mubr.f32.mxu0 0.0
    %3079 = vmatmul.mubr.f32.gmra.mrb[0].mxu0 %v167
    %v3080 = vpop.f32.mrb[0].mxu0
    %v3081 = vadd.f32 %v2912, %v3080
    %v3082 = vpop.f32.mrb[0].mxu0
    %v3083 = vadd.f32 %v2916, %v3082
    %3084 = vdwg.mxu0
    %3085 = vmatprep.subr.mxu0 %v2879
    %3086 = vmatpush1.msra.mxu0 %v2878
    %3087 = vmatprep.subr.mxu0 %v2885
    %3088 = vmatpush1.msra.mxu0 %v2884
    %3089 = vmatprep.subr.mxu0 %v2891
    %3090 = vmatpush1.msra.mxu0 %v2890
    %3091 = vmatprep.subr.mxu0 %v2897
    %3092 = vmatpush1.msra.mxu0 %v2896
    %3093 = vmatprep.subr.mxu0 0.0
    %3094 = vmatpush1.msra.mxu0 0.0
    %3095 = vmatprep.subr.mxu0 0.0
    %3096 = vmatpush1.msra.mxu0 0.0
    %3097 = vmatprep.subr.mxu0 0.0
    %3098 = vmatpush1.msra.mxu0 0.0
    %3099 = vmatprep.subr.mxu0 0.0
    %3100 = vmatpush1.msra.mxu0 0.0
    %3101 = vmatprep.subr.mxu0 0.0
    %3102 = vmatpush1.msra.mxu0 0.0
    %3103 = vmatprep.subr.mxu0 0.0
    %3104 = vmatpush1.msra.mxu0 0.0
    %3105 = vmatprep.subr.mxu0 0.0
    %3106 = vmatpush1.msra.mxu0 0.0
    %3107 = vmatprep.subr.mxu0 0.0
    %3108 = vmatpush1.msra.mxu0 0.0
    %3109 = vmatprep.subr.mxu0 0.0
    %3110 = vmatpush1.msra.mxu0 0.0
    %3111 = vmatprep.subr.mxu0 0.0
    %3112 = vmatpush1.msra.mxu0 0.0
    %3113 = vmatprep.subr.mxu0 0.0
    %3114 = vmatpush1.msra.mxu0 0.0
    %3115 = vmatprep.subr.mxu0 0.0
    %3116 = vmatpush1.msra.mxu0 0.0
    %3117 = vmatprep.subr.mxu0 0.0
    %3118 = vmatpush1.msra.mxu0 0.0
    %3119 = vmatprep.subr.mxu0 0.0
    %3120 = vmatpush1.msra.mxu0 0.0
    %3121 = vmatprep.subr.mxu0 0.0
    %3122 = vmatpush1.msra.mxu0 0.0
    %3123 = vmatprep.subr.mxu0 0.0
    %3124 = vmatpush1.msra.mxu0 0.0
    %3125 = vmatprep.subr.mxu0 0.0
    %3126 = vmatpush1.msra.mxu0 0.0
    %3127 = vmatprep.subr.mxu0 0.0
    %3128 = vmatpush1.msra.mxu0 0.0
    %3129 = vmatprep.subr.mxu0 0.0
    %3130 = vmatpush1.msra.mxu0 0.0
    %3131 = vmatprep.subr.mxu0 0.0
    %3132 = vmatpush1.msra.mxu0 0.0
    %3133 = vmatprep.subr.mxu0 0.0
    %3134 = vmatpush1.msra.mxu0 0.0
    %3135 = vmatprep.subr.mxu0 0.0
    %3136 = vmatpush1.msra.mxu0 0.0
    %3137 = vmatprep.subr.mxu0 0.0
    %3138 = vmatpush1.msra.mxu0 0.0
    %3139 = vmatprep.subr.mxu0 0.0
    %3140 = vmatpush1.msra.mxu0 0.0
    %3141 = vmatprep.subr.mxu0 0.0
    %3142 = vmatpush1.msra.mxu0 0.0
    %3143 = vmatprep.subr.mxu0 0.0
    %3144 = vmatpush1.msra.mxu0 0.0
    %3145 = vmatprep.subr.mxu0 0.0
    %3146 = vmatpush1.msra.mxu0 0.0
    %3147 = vmatprep.subr.mxu0 0.0
    %3148 = vmatpush1.msra.mxu0 0.0
    %3149 = vmatprep.mubr.f32.mxu0 0.0
    %3150 = vmatmul.mubr.f32.gmra.mrb[0].mxu0 %v164
    %v3151 = vpop.f32.mrb[0].mxu0
    %v3152 = vadd.f32 %v2920, %v3151
    %v3153 = vpop.f32.mrb[0].mxu0
    %v3154 = vadd.f32 %v2924, %v3153
    %3155 = vmatprep.mubr.f32.mxu0 0.0
    %3156 = vmatmul.mubr.f32.gmra.mrb[0].mxu0 %v167
    %v3157 = vpop.f32.mrb[0].mxu0
    %v3158 = vadd.f32 %v2920, %v3157
    %v3159 = vpop.f32.mrb[0].mxu0
    %v3160 = vadd.f32 %v2924, %v3159
    %3161 = vdwg.mxu0
    %v3162 = vsel %vm162, %v2871, 0.0
    %3163 = vadd.xlane.f32.xlu0 %v3162
    %v3164 = vpop.xlane.xlu0 %3163
    %v3165 = vsel %vm162, %v2872, 0.0
    %3166 = vadd.xlane.f32.xlu0 %v3165
    %v3167 = vpop.xlane.xlu0 %3166
    %v3168 = vmul.f32 %v3164, %v406
    %v3169 = vmul.f32 %v3167, %v406
    %v3170 = vsub.f32 %v2871, %v3168
    %v3171 = vsub.f32 %v2872, %v3169
    %v3172 = vmul.f32 %v3170, %v3170
    %v3173 = vmul.f32 %v3171, %v3171
    %v3174 = vsel %vm162, %v3172, 0.0
    %3175 = vadd.xlane.f32.xlu0 %v3174
    %v3176 = vpop.xlane.xlu0 %3175
    %v3177 = vsel %vm162, %v3173, 0.0
    %3178 = vadd.xlane.f32.xlu0 %v3177
    %v3179 = vpop.xlane.xlu0 %3178
    %v3180 = vmul.f32 %v3176, %v406
    %v3181 = vmul.f32 %v3179, %v406
    %v3182 = vadd.f32 %v3180, 1e-06
    %v3183 = vadd.f32 %v3181, 1e-06
    %v3184 = vrsqrt.pop %v3182
    %v3185 = vrsqrt.pop %v3183
    %v3186 = vmul.f32 %v3170, %v3184
    %v3187 = vmul.f32 %v3171, %v3185
    %v3188 = vadd.f32 %v3000, 1.0
    %v3189 = vadd.f32 %v3006, 1.0
    %v3190 = vmul.f32 %v3186, %v3188
    %v3191 = vmul.f32 %v3187, %v3189
    %v3192 = vadd.f32 %v3190, %v2998
    %v3193 = vadd.f32 %v3191, %v3004
    %s3194 = scalar_lea.vmem %s4, 384
    %v3195 = vld [vmem:[%s3194] sm:$0xff]
    %v3196 = vld [vmem:[%s3194 + $0x8] sm:$0xff]
    %v3197 = vld [vmem:[%s3194 + $0x10] sm:$0xff]
    %v3198 = vld [vmem:[%s3194 + $0x18] sm:$0xff]
    %v3199 = vld [vmem:[%s3194 + $0x20] sm:$0xff]
    %v3200 = vld [vmem:[%s3194 + $0x28] sm:$0xff]
    %v3201 = vld [vmem:[%s3194 + $0x30] sm:$0xff]
    %v3202 = vld [vmem:[%s3194 + $0x38] sm:$0xff]
    %v3203 = vld [vmem:[%s3194 + $0x40] sm:$0xff]
    %v3204 = vld [vmem:[%s3194 + $0x48] sm:$0xff]
    %v3205 = vld [vmem:[%s3194 + $0x50] sm:$0xff]
    %v3206 = vld [vmem:[%s3194 + $0x58] sm:$0xff]
    %v3207 = vld [vmem:[%s3194 + $0x60] sm:$0xff]
    %v3208 = vld [vmem:[%s3194 + $0x68] sm:$0xff]
    %v3209 = vld [vmem:[%s3194 + $0x70] sm:$0xff]
    %v3210 = vld [vmem:[%s3194 + $0x78] sm:$0xff]
    %v3211 = vld [vmem:[%s3194 + $0x80] sm:$0xff]
    %v3212 = vld [vmem:[%s3194 + $0x88] sm:$0xff]
    %v3213 = vld [vmem:[%s3194 + $0x90] sm:$0xff]
    %v3214 = vld [vmem:[%s3194 + $0x98] sm:$0xff]
    %v3215 = vld [vmem:[%s3194 + $0xa0] sm:$0xff]
    %v3216 = vld [vmem:[%s3194 + $0xa8] sm:$0xff]
    %v3217 = vld [vmem:[%s3194 + $0xb0] sm:$0xff]
    %v3218 = vld [vmem:[%s3194 + $0xb8] sm:$0xff]
    %v3219 = vld [vmem:[%s3194 + $0xc0] sm:$0xff]
    %v3220 = vld [vmem:[%s3194 + $0xc8] sm:$0xff]
    %v3221 = vld [vmem:[%s3194 + $0xd0] sm:$0xff]
    %v3222 = vld [vmem:[%s3194 + $0xd8] sm:$0xff]
    %v3223 = vld [vmem:[%s3194 + $0xe0] sm:$0xff]
    %v3224 = vld [vmem:[%s3194 + $0xe8] sm:$0xff]
    %v3225 = vld [vmem:[%s3194 + $0xf0] sm:$0xff]
    %v3226 = vld [vmem:[%s3194 + $0xf8] sm:$0xff]
    %v3227 = vld [vmem:[%s3194 + $0x100] sm:$0xff]
    %v3228 = vld [vmem:[%s3194 + $0x108] sm:$0xff]
    %v3229 = vld [vmem:[%s3194 + $0x110] sm:$0xff]
    %v3230 = vld [vmem:[%s3194 + $0x118] sm:$0xff]
    %v3231 = vld [vmem:[%s3194 + $0x120] sm:$0xff]
    %v3232 = vld [vmem:[%s3194 + $0x128] sm:$0xff]
    %v3233 = vld [vmem:[%s3194 + $0x130] sm:$0xff]
    %v3234 = vld [vmem:[%s3194 + $0x138] sm:$0xff]
    %v3235 = vld [vmem:[%s3194 + $0x140] sm:$0xff]
    %v3236 = vld [vmem:[%s3194 + $0x148] sm:$0xff]
    %v3237 = vld [vmem:[%s3194 + $0x150] sm:$0xff]
    %v3238 = vld [vmem:[%s3194 + $0x158] sm:$0xff]
    %v3239 = vld [vmem:[%s3194 + $0x160] sm:$0xff]
    %v3240 = vld [vmem:[%s3194 + $0x168] sm:$0xff]
    %v3241 = vld [vmem:[%s3194 + $0x170] sm:$0xff]
    %v3242 = vld [vmem:[%s3194 + $0x178] sm:$0xff]
    %s3243 = scalar_lea.vmem %s9, 12
    %v3244 = vld [vmem:[%s3243] sm:$0xff]
    %v3245 = vld [vmem:[%s3243 + $0x8] sm:$0xf]
    %v3248 = vlaneseq
    %v3249 = vshrl.u32 %v3248, 7
    %v3250 = vsub.s32 0, %v3249
    %v3251 = vrot.slane %v3244, %v3250
    %v3252 = vlaneseq
    %v3253 = vshrl.u32 %v3252, 7
    %v3254 = vsub.s32 1, %v3253
    %v3255 = vrot.slane %v3244, %v3254
    %v3256 = vlaneseq
    %v3257 = vshrl.u32 %v3256, 7
    %v3258 = vsub.s32 2, %v3257
    %v3259 = vrot.slane %v3244, %v3258
    %v3260 = vlaneseq
    %v3261 = vshrl.u32 %v3260, 7
    %v3262 = vsub.s32 3, %v3261
    %v3263 = vrot.slane %v3244, %v3262
    %v3264 = vlaneseq
    %v3265 = vshrl.u32 %v3264, 7
    %v3266 = vsub.s32 4, %v3265
    %v3267 = vrot.slane %v3244, %v3266
    %v3268 = vlaneseq
    %v3269 = vshrl.u32 %v3268, 7
    %v3270 = vsub.s32 5, %v3269
    %v3271 = vrot.slane %v3244, %v3270
    %v3272 = vlaneseq
    %v3273 = vshrl.u32 %v3272, 7
    %v3274 = vsub.s32 6, %v3273
    %v3275 = vrot.slane %v3244, %v3274
    %v3276 = vlaneseq
    %v3277 = vshrl.u32 %v3276, 7
    %v3278 = vsub.s32 7, %v3277
    %v3279 = vrot.slane %v3244, %v3278
    %v3280 = vlaneseq
    %v3281 = vshrl.u32 %v3280, 7
    %v3282 = vsub.s32 0, %v3281
    %v3283 = vrot.slane %v3245, %v3282
    %v3284 = vlaneseq
    %v3285 = vshrl.u32 %v3284, 7
    %v3286 = vsub.s32 1, %v3285
    %v3287 = vrot.slane %v3245, %v3286
    %v3288 = vlaneseq
    %v3289 = vshrl.u32 %v3288, 7
    %v3290 = vsub.s32 2, %v3289
    %v3291 = vrot.slane %v3245, %v3290
    %v3292 = vlaneseq
    %v3293 = vshrl.u32 %v3292, 7
    %v3294 = vsub.s32 3, %v3293
    %v3295 = vrot.slane %v3245, %v3294
    %v3309 = vsel %vm162, %v3192, 0
    %v3312 = vsel %vm162, %v3193, 0
    %3314 = vmatprep.subr.mxu0 %v3196
    %3315 = vmatpush1.msra.mxu0 %v3195
    %3316 = vmatprep.subr.mxu0 %v3208
    %3317 = vmatpush1.msra.mxu0 %v3207
    %3318 = vmatprep.subr.mxu0 %v3220
    %3319 = vmatpush1.msra.mxu0 %v3219
    %3320 = vmatprep.subr.mxu0 %v3232
    %3321 = vmatpush1.msra.mxu0 %v3231
    %3322 = vmatprep.subr.mxu0 0.0
    %3323 = vmatpush1.msra.mxu0 0.0
    %3324 = vmatprep.subr.mxu0 0.0
    %3325 = vmatpush1.msra.mxu0 0.0
    %3326 = vmatprep.subr.mxu0 0.0
    %3327 = vmatpush1.msra.mxu0 0.0
    %3328 = vmatprep.subr.mxu0 0.0
    %3329 = vmatpush1.msra.mxu0 0.0
    %3330 = vmatprep.subr.mxu0 0.0
    %3331 = vmatpush1.msra.mxu0 0.0
    %3332 = vmatprep.subr.mxu0 0.0
    %3333 = vmatpush1.msra.mxu0 0.0
    %3334 = vmatprep.subr.mxu0 0.0
    %3335 = vmatpush1.msra.mxu0 0.0
    %3336 = vmatprep.subr.mxu0 0.0
    %3337 = vmatpush1.msra.mxu0 0.0
    %3338 = vmatprep.subr.mxu0 0.0
    %3339 = vmatpush1.msra.mxu0 0.0
    %3340 = vmatprep.subr.mxu0 0.0
    %3341 = vmatpush1.msra.mxu0 0.0
    %3342 = vmatprep.subr.mxu0 0.0
    %3343 = vmatpush1.msra.mxu0 0.0
    %3344 = vmatprep.subr.mxu0 0.0
    %3345 = vmatpush1.msra.mxu0 0.0
    %3346 = vmatprep.subr.mxu0 0.0
    %3347 = vmatpush1.msra.mxu0 0.0
    %3348 = vmatprep.subr.mxu0 0.0
    %3349 = vmatpush1.msra.mxu0 0.0
    %3350 = vmatprep.subr.mxu0 0.0
    %3351 = vmatpush1.msra.mxu0 0.0
    %3352 = vmatprep.subr.mxu0 0.0
    %3353 = vmatpush1.msra.mxu0 0.0
    %3354 = vmatprep.subr.mxu0 0.0
    %3355 = vmatpush1.msra.mxu0 0.0
    %3356 = vmatprep.subr.mxu0 0.0
    %3357 = vmatpush1.msra.mxu0 0.0
    %3358 = vmatprep.subr.mxu0 0.0
    %3359 = vmatpush1.msra.mxu0 0.0
    %3360 = vmatprep.subr.mxu0 0.0
    %3361 = vmatpush1.msra.mxu0 0.0
    %3362 = vmatprep.subr.mxu0 0.0
    %3363 = vmatpush1.msra.mxu0 0.0
    %3364 = vmatprep.subr.mxu0 0.0
    %3365 = vmatpush1.msra.mxu0 0.0
    %3366 = vmatprep.subr.mxu0 0.0
    %3367 = vmatpush1.msra.mxu0 0.0
    %3368 = vmatprep.subr.mxu0 0.0
    %3369 = vmatpush1.msra.mxu0 0.0
    %3370 = vmatprep.subr.mxu0 0.0
    %3371 = vmatpush1.msra.mxu0 0.0
    %3372 = vmatprep.subr.mxu0 0.0
    %3373 = vmatpush1.msra.mxu0 0.0
    %3374 = vmatprep.subr.mxu0 0.0
    %3375 = vmatpush1.msra.mxu0 0.0
    %3376 = vmatprep.subr.mxu0 0.0
    %3377 = vmatpush1.msra.mxu0 0.0
    %3378 = vmatprep.mubr.f32.mxu0 0.0
    %3379 = vmatmul.mubr.f32.gmra.mrb[0].mxu0 %v3309
    %v3380 = vpop.f32.mrb[0].mxu0
    %v3381 = vadd.f32 %v3251, %v3380
    %v3382 = vpop.f32.mrb[0].mxu0
    %v3383 = vadd.f32 %v3255, %v3382
    %3384 = vmatprep.mubr.f32.mxu0 0.0
    %3385 = vmatmul.mubr.f32.gmra.mrb[0].mxu0 %v3312
    %v3386 = vpop.f32.mrb[0].mxu0
    %v3387 = vadd.f32 %v3251, %v3386
    %v3388 = vpop.f32.mrb[0].mxu0
    %v3389 = vadd.f32 %v3255, %v3388
    %3390 = vdwg.mxu0
    %3391 = vmatprep.subr.mxu0 %v3198
    %3392 = vmatpush1.msra.mxu0 %v3197
    %3393 = vmatprep.subr.mxu0 %v3210
    %3394 = vmatpush1.msra.mxu0 %v3209
    %3395 = vmatprep.subr.mxu0 %v3222
    %3396 = vmatpush1.msra.mxu0 %v3221
    %3397 = vmatprep.subr.mxu0 %v3234
    %3398 = vmatpush1.msra.mxu0 %v3233
    %3399 = vmatprep.subr.mxu0 0.0
    %3400 = vmatpush1.msra.mxu0 0.0
    %3401 = vmatprep.subr.mxu0 0.0
    %3402 = vmatpush1.msra.mxu0 0.0
    %3403 = vmatprep.subr.mxu0 0.0
    %3404 = vmatpush1.msra.mxu0 0.0
    %3405 = vmatprep.subr.mxu0 0.0
    %3406 = vmatpush1.msra.mxu0 0.0
    %3407 = vmatprep.subr.mxu0 0.0
    %3408 = vmatpush1.msra.mxu0 0.0
    %3409 = vmatprep.subr.mxu0 0.0
    %3410 = vmatpush1.msra.mxu0 0.0
    %3411 = vmatprep.subr.mxu0 0.0
    %3412 = vmatpush1.msra.mxu0 0.0
    %3413 = vmatprep.subr.mxu0 0.0
    %3414 = vmatpush1.msra.mxu0 0.0
    %3415 = vmatprep.subr.mxu0 0.0
    %3416 = vmatpush1.msra.mxu0 0.0
    %3417 = vmatprep.subr.mxu0 0.0
    %3418 = vmatpush1.msra.mxu0 0.0
    %3419 = vmatprep.subr.mxu0 0.0
    %3420 = vmatpush1.msra.mxu0 0.0
    %3421 = vmatprep.subr.mxu0 0.0
    %3422 = vmatpush1.msra.mxu0 0.0
    %3423 = vmatprep.subr.mxu0 0.0
    %3424 = vmatpush1.msra.mxu0 0.0
    %3425 = vmatprep.subr.mxu0 0.0
    %3426 = vmatpush1.msra.mxu0 0.0
    %3427 = vmatprep.subr.mxu0 0.0
    %3428 = vmatpush1.msra.mxu0 0.0
    %3429 = vmatprep.subr.mxu0 0.0
    %3430 = vmatpush1.msra.mxu0 0.0
    %3431 = vmatprep.subr.mxu0 0.0
    %3432 = vmatpush1.msra.mxu0 0.0
    %3433 = vmatprep.subr.mxu0 0.0
    %3434 = vmatpush1.msra.mxu0 0.0
    %3435 = vmatprep.subr.mxu0 0.0
    %3436 = vmatpush1.msra.mxu0 0.0
    %3437 = vmatprep.subr.mxu0 0.0
    %3438 = vmatpush1.msra.mxu0 0.0
    %3439 = vmatprep.subr.mxu0 0.0
    %3440 = vmatpush1.msra.mxu0 0.0
    %3441 = vmatprep.subr.mxu0 0.0
    %3442 = vmatpush1.msra.mxu0 0.0
    %3443 = vmatprep.subr.mxu0 0.0
    %3444 = vmatpush1.msra.mxu0 0.0
    %3445 = vmatprep.subr.mxu0 0.0
    %3446 = vmatpush1.msra.mxu0 0.0
    %3447 = vmatprep.subr.mxu0 0.0
    %3448 = vmatpush1.msra.mxu0 0.0
    %3449 = vmatprep.subr.mxu0 0.0
    %3450 = vmatpush1.msra.mxu0 0.0
    %3451 = vmatprep.subr.mxu0 0.0
    %3452 = vmatpush1.msra.mxu0 0.0
    %3453 = vmatprep.subr.mxu0 0.0
    %3454 = vmatpush1.msra.mxu0 0.0
    %3455 = vmatprep.mubr.f32.mxu0 0.0
    %3456 = vmatmul.mubr.f32.gmra.mrb[0].mxu0 %v3309
    %v3457 = vpop.f32.mrb[0].mxu0
    %v3458 = vadd.f32 %v3259, %v3457
    %v3459 = vpop.f32.mrb[0].mxu0
    %v3460 = vadd.f32 %v3263, %v3459
    %3461 = vmatprep.mubr.f32.mxu0 0.0
    %3462 = vmatmul.mubr.f32.gmra.mrb[0].mxu0 %v3312
    %v3463 = vpop.f32.mrb[0].mxu0
    %v3464 = vadd.f32 %v3259, %v3463
    %v3465 = vpop.f32.mrb[0].mxu0
    %v3466 = vadd.f32 %v3263, %v3465
    %3467 = vdwg.mxu0
    %3468 = vmatprep.subr.mxu0 %v3200
    %3469 = vmatpush1.msra.mxu0 %v3199
    %3470 = vmatprep.subr.mxu0 %v3212
    %3471 = vmatpush1.msra.mxu0 %v3211
    %3472 = vmatprep.subr.mxu0 %v3224
    %3473 = vmatpush1.msra.mxu0 %v3223
    %3474 = vmatprep.subr.mxu0 %v3236
    %3475 = vmatpush1.msra.mxu0 %v3235
    %3476 = vmatprep.subr.mxu0 0.0
    %3477 = vmatpush1.msra.mxu0 0.0
    %3478 = vmatprep.subr.mxu0 0.0
    %3479 = vmatpush1.msra.mxu0 0.0
    %3480 = vmatprep.subr.mxu0 0.0
    %3481 = vmatpush1.msra.mxu0 0.0
    %3482 = vmatprep.subr.mxu0 0.0
    %3483 = vmatpush1.msra.mxu0 0.0
    %3484 = vmatprep.subr.mxu0 0.0
    %3485 = vmatpush1.msra.mxu0 0.0
    %3486 = vmatprep.subr.mxu0 0.0
    %3487 = vmatpush1.msra.mxu0 0.0
    %3488 = vmatprep.subr.mxu0 0.0
    %3489 = vmatpush1.msra.mxu0 0.0
    %3490 = vmatprep.subr.mxu0 0.0
    %3491 = vmatpush1.msra.mxu0 0.0
    %3492 = vmatprep.subr.mxu0 0.0
    %3493 = vmatpush1.msra.mxu0 0.0
    %3494 = vmatprep.subr.mxu0 0.0
    %3495 = vmatpush1.msra.mxu0 0.0
    %3496 = vmatprep.subr.mxu0 0.0
    %3497 = vmatpush1.msra.mxu0 0.0
    %3498 = vmatprep.subr.mxu0 0.0
    %3499 = vmatpush1.msra.mxu0 0.0
    %3500 = vmatprep.subr.mxu0 0.0
    %3501 = vmatpush1.msra.mxu0 0.0
    %3502 = vmatprep.subr.mxu0 0.0
    %3503 = vmatpush1.msra.mxu0 0.0
    %3504 = vmatprep.subr.mxu0 0.0
    %3505 = vmatpush1.msra.mxu0 0.0
    %3506 = vmatprep.subr.mxu0 0.0
    %3507 = vmatpush1.msra.mxu0 0.0
    %3508 = vmatprep.subr.mxu0 0.0
    %3509 = vmatpush1.msra.mxu0 0.0
    %3510 = vmatprep.subr.mxu0 0.0
    %3511 = vmatpush1.msra.mxu0 0.0
    %3512 = vmatprep.subr.mxu0 0.0
    %3513 = vmatpush1.msra.mxu0 0.0
    %3514 = vmatprep.subr.mxu0 0.0
    %3515 = vmatpush1.msra.mxu0 0.0
    %3516 = vmatprep.subr.mxu0 0.0
    %3517 = vmatpush1.msra.mxu0 0.0
    %3518 = vmatprep.subr.mxu0 0.0
    %3519 = vmatpush1.msra.mxu0 0.0
    %3520 = vmatprep.subr.mxu0 0.0
    %3521 = vmatpush1.msra.mxu0 0.0
    %3522 = vmatprep.subr.mxu0 0.0
    %3523 = vmatpush1.msra.mxu0 0.0
    %3524 = vmatprep.subr.mxu0 0.0
    %3525 = vmatpush1.msra.mxu0 0.0
    %3526 = vmatprep.subr.mxu0 0.0
    %3527 = vmatpush1.msra.mxu0 0.0
    %3528 = vmatprep.subr.mxu0 0.0
    %3529 = vmatpush1.msra.mxu0 0.0
    %3530 = vmatprep.subr.mxu0 0.0
    %3531 = vmatpush1.msra.mxu0 0.0
    %3532 = vmatprep.mubr.f32.mxu0 0.0
    %3533 = vmatmul.mubr.f32.gmra.mrb[0].mxu0 %v3309
    %v3534 = vpop.f32.mrb[0].mxu0
    %v3535 = vadd.f32 %v3267, %v3534
    %v3536 = vpop.f32.mrb[0].mxu0
    %v3537 = vadd.f32 %v3271, %v3536
    %3538 = vmatprep.mubr.f32.mxu0 0.0
    %3539 = vmatmul.mubr.f32.gmra.mrb[0].mxu0 %v3312
    %v3540 = vpop.f32.mrb[0].mxu0
    %v3541 = vadd.f32 %v3267, %v3540
    %v3542 = vpop.f32.mrb[0].mxu0
    %v3543 = vadd.f32 %v3271, %v3542
    %3544 = vdwg.mxu0
    %3545 = vmatprep.subr.mxu0 %v3202
    %3546 = vmatpush1.msra.mxu0 %v3201
    %3547 = vmatprep.subr.mxu0 %v3214
    %3548 = vmatpush1.msra.mxu0 %v3213
    %3549 = vmatprep.subr.mxu0 %v3226
    %3550 = vmatpush1.msra.mxu0 %v3225
    %3551 = vmatprep.subr.mxu0 %v3238
    %3552 = vmatpush1.msra.mxu0 %v3237
    %3553 = vmatprep.subr.mxu0 0.0
    %3554 = vmatpush1.msra.mxu0 0.0
    %3555 = vmatprep.subr.mxu0 0.0
    %3556 = vmatpush1.msra.mxu0 0.0
    %3557 = vmatprep.subr.mxu0 0.0
    %3558 = vmatpush1.msra.mxu0 0.0
    %3559 = vmatprep.subr.mxu0 0.0
    %3560 = vmatpush1.msra.mxu0 0.0
    %3561 = vmatprep.subr.mxu0 0.0
    %3562 = vmatpush1.msra.mxu0 0.0
    %3563 = vmatprep.subr.mxu0 0.0
    %3564 = vmatpush1.msra.mxu0 0.0
    %3565 = vmatprep.subr.mxu0 0.0
    %3566 = vmatpush1.msra.mxu0 0.0
    %3567 = vmatprep.subr.mxu0 0.0
    %3568 = vmatpush1.msra.mxu0 0.0
    %3569 = vmatprep.subr.mxu0 0.0
    %3570 = vmatpush1.msra.mxu0 0.0
    %3571 = vmatprep.subr.mxu0 0.0
    %3572 = vmatpush1.msra.mxu0 0.0
    %3573 = vmatprep.subr.mxu0 0.0
    %3574 = vmatpush1.msra.mxu0 0.0
    %3575 = vmatprep.subr.mxu0 0.0
    %3576 = vmatpush1.msra.mxu0 0.0
    %3577 = vmatprep.subr.mxu0 0.0
    %3578 = vmatpush1.msra.mxu0 0.0
    %3579 = vmatprep.subr.mxu0 0.0
    %3580 = vmatpush1.msra.mxu0 0.0
    %3581 = vmatprep.subr.mxu0 0.0
    %3582 = vmatpush1.msra.mxu0 0.0
    %3583 = vmatprep.subr.mxu0 0.0
    %3584 = vmatpush1.msra.mxu0 0.0
    %3585 = vmatprep.subr.mxu0 0.0
    %3586 = vmatpush1.msra.mxu0 0.0
    %3587 = vmatprep.subr.mxu0 0.0
    %3588 = vmatpush1.msra.mxu0 0.0
    %3589 = vmatprep.subr.mxu0 0.0
    %3590 = vmatpush1.msra.mxu0 0.0
    %3591 = vmatprep.subr.mxu0 0.0
    %3592 = vmatpush1.msra.mxu0 0.0
    %3593 = vmatprep.subr.mxu0 0.0
    %3594 = vmatpush1.msra.mxu0 0.0
    %3595 = vmatprep.subr.mxu0 0.0
    %3596 = vmatpush1.msra.mxu0 0.0
    %3597 = vmatprep.subr.mxu0 0.0
    %3598 = vmatpush1.msra.mxu0 0.0
    %3599 = vmatprep.subr.mxu0 0.0
    %3600 = vmatpush1.msra.mxu0 0.0
    %3601 = vmatprep.subr.mxu0 0.0
    %3602 = vmatpush1.msra.mxu0 0.0
    %3603 = vmatprep.subr.mxu0 0.0
    %3604 = vmatpush1.msra.mxu0 0.0
    %3605 = vmatprep.subr.mxu0 0.0
    %3606 = vmatpush1.msra.mxu0 0.0
    %3607 = vmatprep.subr.mxu0 0.0
    %3608 = vmatpush1.msra.mxu0 0.0
    %3609 = vmatprep.mubr.f32.mxu0 0.0
    %3610 = vmatmul.mubr.f32.gmra.mrb[0].mxu0 %v3309
    %v3611 = vpop.f32.mrb[0].mxu0
    %v3612 = vadd.f32 %v3275, %v3611
    %v3613 = vpop.f32.mrb[0].mxu0
    %v3614 = vadd.f32 %v3279, %v3613
    %3615 = vmatprep.mubr.f32.mxu0 0.0
    %3616 = vmatmul.mubr.f32.gmra.mrb[0].mxu0 %v3312
    %v3617 = vpop.f32.mrb[0].mxu0
    %v3618 = vadd.f32 %v3275, %v3617
    %v3619 = vpop.f32.mrb[0].mxu0
    %v3620 = vadd.f32 %v3279, %v3619
    %3621 = vdwg.mxu0
    %3622 = vmatprep.subr.mxu0 %v3204
    %3623 = vmatpush1.msra.mxu0 %v3203
    %3624 = vmatprep.subr.mxu0 %v3216
    %3625 = vmatpush1.msra.mxu0 %v3215
    %3626 = vmatprep.subr.mxu0 %v3228
    %3627 = vmatpush1.msra.mxu0 %v3227
    %3628 = vmatprep.subr.mxu0 %v3240
    %3629 = vmatpush1.msra.mxu0 %v3239
    %3630 = vmatprep.subr.mxu0 0.0
    %3631 = vmatpush1.msra.mxu0 0.0
    %3632 = vmatprep.subr.mxu0 0.0
    %3633 = vmatpush1.msra.mxu0 0.0
    %3634 = vmatprep.subr.mxu0 0.0
    %3635 = vmatpush1.msra.mxu0 0.0
    %3636 = vmatprep.subr.mxu0 0.0
    %3637 = vmatpush1.msra.mxu0 0.0
    %3638 = vmatprep.subr.mxu0 0.0
    %3639 = vmatpush1.msra.mxu0 0.0
    %3640 = vmatprep.subr.mxu0 0.0
    %3641 = vmatpush1.msra.mxu0 0.0
    %3642 = vmatprep.subr.mxu0 0.0
    %3643 = vmatpush1.msra.mxu0 0.0
    %3644 = vmatprep.subr.mxu0 0.0
    %3645 = vmatpush1.msra.mxu0 0.0
    %3646 = vmatprep.subr.mxu0 0.0
    %3647 = vmatpush1.msra.mxu0 0.0
    %3648 = vmatprep.subr.mxu0 0.0
    %3649 = vmatpush1.msra.mxu0 0.0
    %3650 = vmatprep.subr.mxu0 0.0
    %3651 = vmatpush1.msra.mxu0 0.0
    %3652 = vmatprep.subr.mxu0 0.0
    %3653 = vmatpush1.msra.mxu0 0.0
    %3654 = vmatprep.subr.mxu0 0.0
    %3655 = vmatpush1.msra.mxu0 0.0
    %3656 = vmatprep.subr.mxu0 0.0
    %3657 = vmatpush1.msra.mxu0 0.0
    %3658 = vmatprep.subr.mxu0 0.0
    %3659 = vmatpush1.msra.mxu0 0.0
    %3660 = vmatprep.subr.mxu0 0.0
    %3661 = vmatpush1.msra.mxu0 0.0
    %3662 = vmatprep.subr.mxu0 0.0
    %3663 = vmatpush1.msra.mxu0 0.0
    %3664 = vmatprep.subr.mxu0 0.0
    %3665 = vmatpush1.msra.mxu0 0.0
    %3666 = vmatprep.subr.mxu0 0.0
    %3667 = vmatpush1.msra.mxu0 0.0
    %3668 = vmatprep.subr.mxu0 0.0
    %3669 = vmatpush1.msra.mxu0 0.0
    %3670 = vmatprep.subr.mxu0 0.0
    %3671 = vmatpush1.msra.mxu0 0.0
    %3672 = vmatprep.subr.mxu0 0.0
    %3673 = vmatpush1.msra.mxu0 0.0
    %3674 = vmatprep.subr.mxu0 0.0
    %3675 = vmatpush1.msra.mxu0 0.0
    %3676 = vmatprep.subr.mxu0 0.0
    %3677 = vmatpush1.msra.mxu0 0.0
    %3678 = vmatprep.subr.mxu0 0.0
    %3679 = vmatpush1.msra.mxu0 0.0
    %3680 = vmatprep.subr.mxu0 0.0
    %3681 = vmatpush1.msra.mxu0 0.0
    %3682 = vmatprep.subr.mxu0 0.0
    %3683 = vmatpush1.msra.mxu0 0.0
    %3684 = vmatprep.subr.mxu0 0.0
    %3685 = vmatpush1.msra.mxu0 0.0
    %3686 = vmatprep.mubr.f32.mxu0 0.0
    %3687 = vmatmul.mubr.f32.gmra.mrb[0].mxu0 %v3309
    %v3688 = vpop.f32.mrb[0].mxu0
    %v3689 = vadd.f32 %v3283, %v3688
    %v3690 = vpop.f32.mrb[0].mxu0
    %v3691 = vadd.f32 %v3287, %v3690
    %3692 = vmatprep.mubr.f32.mxu0 0.0
    %3693 = vmatmul.mubr.f32.gmra.mrb[0].mxu0 %v3312
    %v3694 = vpop.f32.mrb[0].mxu0
    %v3695 = vadd.f32 %v3283, %v3694
    %v3696 = vpop.f32.mrb[0].mxu0
    %v3697 = vadd.f32 %v3287, %v3696
    %3698 = vdwg.mxu0
    %3699 = vmatprep.subr.mxu0 %v3206
    %3700 = vmatpush1.msra.mxu0 %v3205
    %3701 = vmatprep.subr.mxu0 %v3218
    %3702 = vmatpush1.msra.mxu0 %v3217
    %3703 = vmatprep.subr.mxu0 %v3230
    %3704 = vmatpush1.msra.mxu0 %v3229
    %3705 = vmatprep.subr.mxu0 %v3242
    %3706 = vmatpush1.msra.mxu0 %v3241
    %3707 = vmatprep.subr.mxu0 0.0
    %3708 = vmatpush1.msra.mxu0 0.0
    %3709 = vmatprep.subr.mxu0 0.0
    %3710 = vmatpush1.msra.mxu0 0.0
    %3711 = vmatprep.subr.mxu0 0.0
    %3712 = vmatpush1.msra.mxu0 0.0
    %3713 = vmatprep.subr.mxu0 0.0
    %3714 = vmatpush1.msra.mxu0 0.0
    %3715 = vmatprep.subr.mxu0 0.0
    %3716 = vmatpush1.msra.mxu0 0.0
    %3717 = vmatprep.subr.mxu0 0.0
    %3718 = vmatpush1.msra.mxu0 0.0
    %3719 = vmatprep.subr.mxu0 0.0
    %3720 = vmatpush1.msra.mxu0 0.0
    %3721 = vmatprep.subr.mxu0 0.0
    %3722 = vmatpush1.msra.mxu0 0.0
    %3723 = vmatprep.subr.mxu0 0.0
    %3724 = vmatpush1.msra.mxu0 0.0
    %3725 = vmatprep.subr.mxu0 0.0
    %3726 = vmatpush1.msra.mxu0 0.0
    %3727 = vmatprep.subr.mxu0 0.0
    %3728 = vmatpush1.msra.mxu0 0.0
    %3729 = vmatprep.subr.mxu0 0.0
    %3730 = vmatpush1.msra.mxu0 0.0
    %3731 = vmatprep.subr.mxu0 0.0
    %3732 = vmatpush1.msra.mxu0 0.0
    %3733 = vmatprep.subr.mxu0 0.0
    %3734 = vmatpush1.msra.mxu0 0.0
    %3735 = vmatprep.subr.mxu0 0.0
    %3736 = vmatpush1.msra.mxu0 0.0
    %3737 = vmatprep.subr.mxu0 0.0
    %3738 = vmatpush1.msra.mxu0 0.0
    %3739 = vmatprep.subr.mxu0 0.0
    %3740 = vmatpush1.msra.mxu0 0.0
    %3741 = vmatprep.subr.mxu0 0.0
    %3742 = vmatpush1.msra.mxu0 0.0
    %3743 = vmatprep.subr.mxu0 0.0
    %3744 = vmatpush1.msra.mxu0 0.0
    %3745 = vmatprep.subr.mxu0 0.0
    %3746 = vmatpush1.msra.mxu0 0.0
    %3747 = vmatprep.subr.mxu0 0.0
    %3748 = vmatpush1.msra.mxu0 0.0
    %3749 = vmatprep.subr.mxu0 0.0
    %3750 = vmatpush1.msra.mxu0 0.0
    %3751 = vmatprep.subr.mxu0 0.0
    %3752 = vmatpush1.msra.mxu0 0.0
    %3753 = vmatprep.subr.mxu0 0.0
    %3754 = vmatpush1.msra.mxu0 0.0
    %3755 = vmatprep.subr.mxu0 0.0
    %3756 = vmatpush1.msra.mxu0 0.0
    %3757 = vmatprep.subr.mxu0 0.0
    %3758 = vmatpush1.msra.mxu0 0.0
    %3759 = vmatprep.subr.mxu0 0.0
    %3760 = vmatpush1.msra.mxu0 0.0
    %3761 = vmatprep.subr.mxu0 0.0
    %3762 = vmatpush1.msra.mxu0 0.0
    %3763 = vmatprep.mubr.f32.mxu0 0.0
    %3764 = vmatmul.mubr.f32.gmra.mrb[0].mxu0 %v3309
    %v3765 = vpop.f32.mrb[0].mxu0
    %v3766 = vadd.f32 %v3291, %v3765
    %v3767 = vpop.f32.mrb[0].mxu0
    %v3768 = vadd.f32 %v3295, %v3767
    %3769 = vmatprep.mubr.f32.mxu0 0.0
    %3770 = vmatmul.mubr.f32.gmra.mrb[0].mxu0 %v3312
    %v3771 = vpop.f32.mrb[0].mxu0
    %v3772 = vadd.f32 %v3291, %v3771
    %v3773 = vpop.f32.mrb[0].mxu0
    %v3774 = vadd.f32 %v3295, %v3773
    %3775 = vdwg.mxu0
    %s3776 = scalar_lea.vmem %s10, 1
    %v3777 = vld [vmem:[%s3776] sm:$0x1]
    %v3779 = vlaneseq
    %v3780 = vshrl.u32 %v3779, 7
    %v3781 = vsub.s32 0, %v3780
    %v3782 = vrot.slane %v3777, %v3781
    %3784 = vmatprep.subr.mxu0 0.0
    %3785 = vmatpush1.xpose.msra.mxu0 %v3535
    %3786 = vmatprep.subr.mxu0 0.0
    %3787 = vmatpush1.xpose.msra.mxu0 0.0
    %3788 = vmatprep.subr.mxu0 0.0
    %3789 = vmatpush1.xpose.msra.mxu0 0.0
    %3790 = vmatprep.subr.mxu0 0.0
    %3791 = vmatpush1.xpose.msra.mxu0 0.0
    %3792 = vmatprep.subr.mxu0 0.0
    %3793 = vmatpush1.xpose.msra.mxu0 0.0
    %3794 = vmatprep.subr.mxu0 0.0
    %3795 = vmatpush1.xpose.msra.mxu0 0.0
    %3796 = vmatprep.subr.mxu0 0.0
    %3797 = vmatpush1.xpose.msra.mxu0 0.0
    %3798 = vmatprep.subr.mxu0 0.0
    %3799 = vmatpush1.xpose.msra.mxu0 0.0
    %3800 = vmatprep.subr.mxu0 0.0
    %3801 = vmatpush1.xpose.msra.mxu0 0.0
    %3802 = vmatprep.subr.mxu0 0.0
    %3803 = vmatpush1.xpose.msra.mxu0 0.0
    %3804 = vmatprep.subr.mxu0 0.0
    %3805 = vmatpush1.xpose.msra.mxu0 0.0
    %3806 = vmatprep.subr.mxu0 0.0
    %3807 = vmatpush1.xpose.msra.mxu0 0.0
    %3808 = vmatprep.subr.mxu0 0.0
    %3809 = vmatpush1.xpose.msra.mxu0 0.0
    %3810 = vmatprep.subr.mxu0 0.0
    %3811 = vmatpush1.xpose.msra.mxu0 0.0
    %3812 = vmatprep.subr.mxu0 0.0
    %3813 = vmatpush1.xpose.msra.mxu0 0.0
    %3814 = vmatprep.subr.mxu0 0.0
    %3815 = vmatpush1.xpose.msra.mxu0 0.0
    %3816 = vmatprep.subr.mxu0 0.0
    %3817 = vmatpush1.xpose.msra.mxu0 0.0
    %3818 = vmatprep.subr.mxu0 0.0
    %3819 = vmatpush1.xpose.msra.mxu0 0.0
    %3820 = vmatprep.subr.mxu0 0.0
    %3821 = vmatpush1.xpose.msra.mxu0 0.0
    %3822 = vmatprep.subr.mxu0 0.0
    %3823 = vmatpush1.xpose.msra.mxu0 0.0
    %3824 = vmatprep.subr.mxu0 0.0
    %3825 = vmatpush1.xpose.msra.mxu0 0.0
    %3826 = vmatprep.subr.mxu0 0.0
    %3827 = vmatpush1.xpose.msra.mxu0 0.0
    %3828 = vmatprep.subr.mxu0 0.0
    %3829 = vmatpush1.xpose.msra.mxu0 0.0
    %3830 = vmatprep.subr.mxu0 0.0
    %3831 = vmatpush1.xpose.msra.mxu0 0.0
    %3832 = vmatprep.subr.mxu0 0.0
    %3833 = vmatpush1.xpose.msra.mxu0 0.0
    %3834 = vmatprep.subr.mxu0 0.0
    %3835 = vmatpush1.xpose.msra.mxu0 0.0
    %3836 = vmatprep.subr.mxu0 0.0
    %3837 = vmatpush1.xpose.msra.mxu0 0.0
    %3838 = vmatprep.subr.mxu0 0.0
    %3839 = vmatpush1.xpose.msra.mxu0 0.0
    %3840 = vmatprep.subr.mxu0 0.0
    %3841 = vmatpush1.xpose.msra.mxu0 0.0
    %3842 = vmatprep.subr.mxu0 0.0
    %3843 = vmatpush1.xpose.msra.mxu0 0.0
    %3844 = vmatprep.subr.mxu0 0.0
    %3845 = vmatpush1.xpose.msra.mxu0 0.0
    %3846 = vmatprep.subr.mxu0 0.0
    %3847 = vmatpush1.xpose.msra.mxu0 0.0
    %3848 = vmatprep.mubr.f32.mxu0 0.0
    %3849 = vmatmul.mubr.f32.gmra.mrb[0].mxu0 %v3381
    %v3850 = vpop.f32.mrb[0].mxu0
    %v3851 = vadd.f32 0.0, %v3850
    %v3852 = vpop.f32.mrb[0].mxu0
    %3853 = vdwg.mxu0
    %3854 = vmatprep.subr.mxu0 0.0
    %3855 = vmatpush1.xpose.msra.mxu0 %v3541
    %3856 = vmatprep.subr.mxu0 0.0
    %3857 = vmatpush1.xpose.msra.mxu0 0.0
    %3858 = vmatprep.subr.mxu0 0.0
    %3859 = vmatpush1.xpose.msra.mxu0 0.0
    %3860 = vmatprep.subr.mxu0 0.0
    %3861 = vmatpush1.xpose.msra.mxu0 0.0
    %3862 = vmatprep.subr.mxu0 0.0
    %3863 = vmatpush1.xpose.msra.mxu0 0.0
    %3864 = vmatprep.subr.mxu0 0.0
    %3865 = vmatpush1.xpose.msra.mxu0 0.0
    %3866 = vmatprep.subr.mxu0 0.0
    %3867 = vmatpush1.xpose.msra.mxu0 0.0
    %3868 = vmatprep.subr.mxu0 0.0
    %3869 = vmatpush1.xpose.msra.mxu0 0.0
    %3870 = vmatprep.subr.mxu0 0.0
    %3871 = vmatpush1.xpose.msra.mxu0 0.0
    %3872 = vmatprep.subr.mxu0 0.0
    %3873 = vmatpush1.xpose.msra.mxu0 0.0
    %3874 = vmatprep.subr.mxu0 0.0
    %3875 = vmatpush1.xpose.msra.mxu0 0.0
    %3876 = vmatprep.subr.mxu0 0.0
    %3877 = vmatpush1.xpose.msra.mxu0 0.0
    %3878 = vmatprep.subr.mxu0 0.0
    %3879 = vmatpush1.xpose.msra.mxu0 0.0
    %3880 = vmatprep.subr.mxu0 0.0
    %3881 = vmatpush1.xpose.msra.mxu0 0.0
    %3882 = vmatprep.subr.mxu0 0.0
    %3883 = vmatpush1.xpose.msra.mxu0 0.0
    %3884 = vmatprep.subr.mxu0 0.0
    %3885 = vmatpush1.xpose.msra.mxu0 0.0
    %3886 = vmatprep.subr.mxu0 0.0
    %3887 = vmatpush1.xpose.msra.mxu0 0.0
    %3888 = vmatprep.subr.mxu0 0.0
    %3889 = vmatpush1.xpose.msra.mxu0 0.0
    %3890 = vmatprep.subr.mxu0 0.0
    %3891 = vmatpush1.xpose.msra.mxu0 0.0
    %3892 = vmatprep.subr.mxu0 0.0
    %3893 = vmatpush1.xpose.msra.mxu0 0.0
    %3894 = vmatprep.subr.mxu0 0.0
    %3895 = vmatpush1.xpose.msra.mxu0 0.0
    %3896 = vmatprep.subr.mxu0 0.0
    %3897 = vmatpush1.xpose.msra.mxu0 0.0
    %3898 = vmatprep.subr.mxu0 0.0
    %3899 = vmatpush1.xpose.msra.mxu0 0.0
    %3900 = vmatprep.subr.mxu0 0.0
    %3901 = vmatpush1.xpose.msra.mxu0 0.0
    %3902 = vmatprep.subr.mxu0 0.0
    %3903 = vmatpush1.xpose.msra.mxu0 0.0
    %3904 = vmatprep.subr.mxu0 0.0
    %3905 = vmatpush1.xpose.msra.mxu0 0.0
    %3906 = vmatprep.subr.mxu0 0.0
    %3907 = vmatpush1.xpose.msra.mxu0 0.0
    %3908 = vmatprep.subr.mxu0 0.0
    %3909 = vmatpush1.xpose.msra.mxu0 0.0
    %3910 = vmatprep.subr.mxu0 0.0
    %3911 = vmatpush1.xpose.msra.mxu0 0.0
    %3912 = vmatprep.subr.mxu0 0.0
    %3913 = vmatpush1.xpose.msra.mxu0 0.0
    %3914 = vmatprep.subr.mxu0 0.0
    %3915 = vmatpush1.xpose.msra.mxu0 0.0
    %3916 = vmatprep.subr.mxu0 0.0
    %3917 = vmatpush1.xpose.msra.mxu0 0.0
    %3918 = vmatprep.mubr.f32.mxu0 0.0
    %3919 = vmatmul.mubr.f32.gmra.mrb[0].mxu0 %v3387
    %v3920 = vpop.f32.mrb[0].mxu0
    %v3921 = vadd.f32 0.0, %v3920
    %v3922 = vpop.f32.mrb[0].mxu0
    %3923 = vdwg.mxu0
    %v3924 = vsel %vm1160, %v3851, -inf
    %3925 = vmax.xlane.f32.xlu0 %v3924
    %v3926 = vpop.xlane.xlu0 %3925
    %v3927 = vsel %vm1160, %v3921, -inf
    %3928 = vmax.xlane.f32.xlu0 %v3927
    %v3929 = vpop.xlane.xlu0 %3928
    %v3930 = vsub.f32 %v3851, %v3926
    %v3931 = vsub.f32 %v3921, %v3929
    %v3932 = vmul.f32 %v3930, 1.442695
    %v3933 = vpow.pop %v3932
    %v3934 = vmul.f32 %v3931, 1.442695
    %v3935 = vpow.pop %v3934
    %v3936 = vsel %vm1160, %v3933, 0.0
    %3937 = vadd.xlane.f32.xlu0 %v3936
    %v3938 = vpop.xlane.xlu0 %3937
    %v3939 = vsel %vm1160, %v3935, 0.0
    %3940 = vadd.xlane.f32.xlu0 %v3939
    %v3941 = vpop.xlane.xlu0 %3940
    %v3942 = vrcp.pop %v3938
    %v3943 = vrcp.pop %v3941
    %v3944 = vmul.f32 %v3933, %v3942
    %v3945 = vmul.f32 %v3935, %v3943
    %v3947 = vsel %vm1160, %v3944, 0
    %3949 = vmatprep.subr.mxu0 0.0
    %3950 = vmatpush1.msra.mxu0 %v3689
    %3951 = vmatprep.subr.mxu0 0.0
    %3952 = vmatpush1.msra.mxu0 0.0
    %3953 = vmatprep.subr.mxu0 0.0
    %3954 = vmatpush1.msra.mxu0 0.0
    %3955 = vmatprep.subr.mxu0 0.0
    %3956 = vmatpush1.msra.mxu0 0.0
    %3957 = vmatprep.subr.mxu0 0.0
    %3958 = vmatpush1.msra.mxu0 0.0
    %3959 = vmatprep.subr.mxu0 0.0
    %3960 = vmatpush1.msra.mxu0 0.0
    %3961 = vmatprep.subr.mxu0 0.0
    %3962 = vmatpush1.msra.mxu0 0.0
    %3963 = vmatprep.subr.mxu0 0.0
    %3964 = vmatpush1.msra.mxu0 0.0
    %3965 = vmatprep.subr.mxu0 0.0
    %3966 = vmatpush1.msra.mxu0 0.0
    %3967 = vmatprep.subr.mxu0 0.0
    %3968 = vmatpush1.msra.mxu0 0.0
    %3969 = vmatprep.subr.mxu0 0.0
    %3970 = vmatpush1.msra.mxu0 0.0
    %3971 = vmatprep.subr.mxu0 0.0
    %3972 = vmatpush1.msra.mxu0 0.0
    %3973 = vmatprep.subr.mxu0 0.0
    %3974 = vmatpush1.msra.mxu0 0.0
    %3975 = vmatprep.subr.mxu0 0.0
    %3976 = vmatpush1.msra.mxu0 0.0
    %3977 = vmatprep.subr.mxu0 0.0
    %3978 = vmatpush1.msra.mxu0 0.0
    %3979 = vmatprep.subr.mxu0 0.0
    %3980 = vmatpush1.msra.mxu0 0.0
    %3981 = vmatprep.subr.mxu0 0.0
    %3982 = vmatpush1.msra.mxu0 0.0
    %3983 = vmatprep.subr.mxu0 0.0
    %3984 = vmatpush1.msra.mxu0 0.0
    %3985 = vmatprep.subr.mxu0 0.0
    %3986 = vmatpush1.msra.mxu0 0.0
    %3987 = vmatprep.subr.mxu0 0.0
    %3988 = vmatpush1.msra.mxu0 0.0
    %3989 = vmatprep.subr.mxu0 0.0
    %3990 = vmatpush1.msra.mxu0 0.0
    %3991 = vmatprep.subr.mxu0 0.0
    %3992 = vmatpush1.msra.mxu0 0.0
    %3993 = vmatprep.subr.mxu0 0.0
    %3994 = vmatpush1.msra.mxu0 0.0
    %3995 = vmatprep.subr.mxu0 0.0
    %3996 = vmatpush1.msra.mxu0 0.0
    %3997 = vmatprep.subr.mxu0 0.0
    %3998 = vmatpush1.msra.mxu0 0.0
    %3999 = vmatprep.subr.mxu0 0.0
    %4000 = vmatpush1.msra.mxu0 0.0
    %4001 = vmatprep.subr.mxu0 0.0
    %4002 = vmatpush1.msra.mxu0 0.0
    %4003 = vmatprep.subr.mxu0 0.0
    %4004 = vmatpush1.msra.mxu0 0.0
    %4005 = vmatprep.subr.mxu0 0.0
    %4006 = vmatpush1.msra.mxu0 0.0
    %4007 = vmatprep.subr.mxu0 0.0
    %4008 = vmatpush1.msra.mxu0 0.0
    %4009 = vmatprep.subr.mxu0 0.0
    %4010 = vmatpush1.msra.mxu0 0.0
    %4011 = vmatprep.subr.mxu0 0.0
    %4012 = vmatpush1.msra.mxu0 0.0
    %4013 = vmatprep.mubr.f32.mxu0 0.0
    %4014 = vmatmul.mubr.f32.gmra.mrb[0].mxu0 %v3947
    %v4015 = vpop.f32.mrb[0].mxu0
    %v4016 = vadd.f32 0.0, %v4015
    %v4017 = vpop.f32.mrb[0].mxu0
    %4018 = vdwg.mxu0
    %v4020 = vsel %vm1160, %v3945, 0
    %4022 = vmatprep.subr.mxu0 0.0
    %4023 = vmatpush1.msra.mxu0 %v3695
    %4024 = vmatprep.subr.mxu0 0.0
    %4025 = vmatpush1.msra.mxu0 0.0
    %4026 = vmatprep.subr.mxu0 0.0
    %4027 = vmatpush1.msra.mxu0 0.0
    %4028 = vmatprep.subr.mxu0 0.0
    %4029 = vmatpush1.msra.mxu0 0.0
    %4030 = vmatprep.subr.mxu0 0.0
    %4031 = vmatpush1.msra.mxu0 0.0
    %4032 = vmatprep.subr.mxu0 0.0
    %4033 = vmatpush1.msra.mxu0 0.0
    %4034 = vmatprep.subr.mxu0 0.0
    %4035 = vmatpush1.msra.mxu0 0.0
    %4036 = vmatprep.subr.mxu0 0.0
    %4037 = vmatpush1.msra.mxu0 0.0
    %4038 = vmatprep.subr.mxu0 0.0
    %4039 = vmatpush1.msra.mxu0 0.0
    %4040 = vmatprep.subr.mxu0 0.0
    %4041 = vmatpush1.msra.mxu0 0.0
    %4042 = vmatprep.subr.mxu0 0.0
    %4043 = vmatpush1.msra.mxu0 0.0
    %4044 = vmatprep.subr.mxu0 0.0
    %4045 = vmatpush1.msra.mxu0 0.0
    %4046 = vmatprep.subr.mxu0 0.0
    %4047 = vmatpush1.msra.mxu0 0.0
    %4048 = vmatprep.subr.mxu0 0.0
    %4049 = vmatpush1.msra.mxu0 0.0
    %4050 = vmatprep.subr.mxu0 0.0
    %4051 = vmatpush1.msra.mxu0 0.0
    %4052 = vmatprep.subr.mxu0 0.0
    %4053 = vmatpush1.msra.mxu0 0.0
    %4054 = vmatprep.subr.mxu0 0.0
    %4055 = vmatpush1.msra.mxu0 0.0
    %4056 = vmatprep.subr.mxu0 0.0
    %4057 = vmatpush1.msra.mxu0 0.0
    %4058 = vmatprep.subr.mxu0 0.0
    %4059 = vmatpush1.msra.mxu0 0.0
    %4060 = vmatprep.subr.mxu0 0.0
    %4061 = vmatpush1.msra.mxu0 0.0
    %4062 = vmatprep.subr.mxu0 0.0
    %4063 = vmatpush1.msra.mxu0 0.0
    %4064 = vmatprep.subr.mxu0 0.0
    %4065 = vmatpush1.msra.mxu0 0.0
    %4066 = vmatprep.subr.mxu0 0.0
    %4067 = vmatpush1.msra.mxu0 0.0
    %4068 = vmatprep.subr.mxu0 0.0
    %4069 = vmatpush1.msra.mxu0 0.0
    %4070 = vmatprep.subr.mxu0 0.0
    %4071 = vmatpush1.msra.mxu0 0.0
    %4072 = vmatprep.subr.mxu0 0.0
    %4073 = vmatpush1.msra.mxu0 0.0
    %4074 = vmatprep.subr.mxu0 0.0
    %4075 = vmatpush1.msra.mxu0 0.0
    %4076 = vmatprep.subr.mxu0 0.0
    %4077 = vmatpush1.msra.mxu0 0.0
    %4078 = vmatprep.subr.mxu0 0.0
    %4079 = vmatpush1.msra.mxu0 0.0
    %4080 = vmatprep.subr.mxu0 0.0
    %4081 = vmatpush1.msra.mxu0 0.0
    %4082 = vmatprep.subr.mxu0 0.0
    %4083 = vmatpush1.msra.mxu0 0.0
    %4084 = vmatprep.subr.mxu0 0.0
    %4085 = vmatpush1.msra.mxu0 0.0
    %4086 = vmatprep.mubr.f32.mxu0 0.0
    %4087 = vmatmul.mubr.f32.gmra.mrb[0].mxu0 %v4020
    %v4088 = vpop.f32.mrb[0].mxu0
    %v4089 = vadd.f32 0.0, %v4088
    %v4090 = vpop.f32.mrb[0].mxu0
    %4091 = vdwg.mxu0
    %s4092 = scalar_lea.vmem %s5, 512
    %v4093 = vld [vmem:[%s4092] sm:$0xff]
    %v4094 = vld [vmem:[%s4092 + $0x8] sm:$0xff]
    %v4095 = vld [vmem:[%s4092 + $0x10] sm:$0xff]
    %v4096 = vld [vmem:[%s4092 + $0x18] sm:$0xff]
    %v4097 = vld [vmem:[%s4092 + $0x20] sm:$0xff]
    %v4098 = vld [vmem:[%s4092 + $0x28] sm:$0xff]
    %v4099 = vld [vmem:[%s4092 + $0x30] sm:$0xff]
    %v4100 = vld [vmem:[%s4092 + $0x38] sm:$0xff]
    %v4101 = vld [vmem:[%s4092 + $0x40] sm:$0xff]
    %v4102 = vld [vmem:[%s4092 + $0x48] sm:$0xff]
    %v4103 = vld [vmem:[%s4092 + $0x50] sm:$0xff]
    %v4104 = vld [vmem:[%s4092 + $0x58] sm:$0xff]
    %v4105 = vld [vmem:[%s4092 + $0x60] sm:$0xff]
    %v4106 = vld [vmem:[%s4092 + $0x68] sm:$0xff]
    %v4107 = vld [vmem:[%s4092 + $0x70] sm:$0xff]
    %v4108 = vld [vmem:[%s4092 + $0x78] sm:$0xff]
    %4109 = vmatprep.subr.mxu0 0.0
    %4110 = vmatpush1.msra.mxu0 %v4093
    %4111 = vmatprep.subr.mxu0 0.0
    %4112 = vmatpush1.msra.mxu0 %v4094
    %4113 = vmatprep.subr.mxu0 0.0
    %4114 = vmatpush1.msra.mxu0 %v4095
    %4115 = vmatprep.subr.mxu0 0.0
    %4116 = vmatpush1.msra.mxu0 %v4096
    %4117 = vmatprep.subr.mxu0 0.0
    %4118 = vmatpush1.msra.mxu0 %v4097
    %4119 = vmatprep.subr.mxu0 0.0
    %4120 = vmatpush1.msra.mxu0 %v4098
    %4121 = vmatprep.subr.mxu0 0.0
    %4122 = vmatpush1.msra.mxu0 %v4099
    %4123 = vmatprep.subr.mxu0 0.0
    %4124 = vmatpush1.msra.mxu0 %v4100
    %4125 = vmatprep.subr.mxu0 0.0
    %4126 = vmatpush1.msra.mxu0 %v4101
    %4127 = vmatprep.subr.mxu0 0.0
    %4128 = vmatpush1.msra.mxu0 %v4102
    %4129 = vmatprep.subr.mxu0 0.0
    %4130 = vmatpush1.msra.mxu0 %v4103
    %4131 = vmatprep.subr.mxu0 0.0
    %4132 = vmatpush1.msra.mxu0 %v4104
    %4133 = vmatprep.subr.mxu0 0.0
    %4134 = vmatpush1.msra.mxu0 %v4105
    %4135 = vmatprep.subr.mxu0 0.0
    %4136 = vmatpush1.msra.mxu0 %v4106
    %4137 = vmatprep.subr.mxu0 0.0
    %4138 = vmatpush1.msra.mxu0 %v4107
    %4139 = vmatprep.subr.mxu0 0.0
    %4140 = vmatpush1.msra.mxu0 %v4108
    %4141 = vmatprep.subr.mxu0 0.0
    %4142 = vmatpush1.msra.mxu0 0.0
    %4143 = vmatprep.subr.mxu0 0.0
    %4144 = vmatpush1.msra.mxu0 0.0
    %4145 = vmatprep.subr.mxu0 0.0
    %4146 = vmatpush1.msra.mxu0 0.0
    %4147 = vmatprep.subr.mxu0 0.0
    %4148 = vmatpush1.msra.mxu0 0.0
    %4149 = vmatprep.subr.mxu0 0.0
    %4150 = vmatpush1.msra.mxu0 0.0
    %4151 = vmatprep.subr.mxu0 0.0
    %4152 = vmatpush1.msra.mxu0 0.0
    %4153 = vmatprep.subr.mxu0 0.0
    %4154 = vmatpush1.msra.mxu0 0.0
    %4155 = vmatprep.subr.mxu0 0.0
    %4156 = vmatpush1.msra.mxu0 0.0
    %4157 = vmatprep.subr.mxu0 0.0
    %4158 = vmatpush1.msra.mxu0 0.0
    %4159 = vmatprep.subr.mxu0 0.0
    %4160 = vmatpush1.msra.mxu0 0.0
    %4161 = vmatprep.subr.mxu0 0.0
    %4162 = vmatpush1.msra.mxu0 0.0
    %4163 = vmatprep.subr.mxu0 0.0
    %4164 = vmatpush1.msra.mxu0 0.0
    %4165 = vmatprep.subr.mxu0 0.0
    %4166 = vmatpush1.msra.mxu0 0.0
    %4167 = vmatprep.subr.mxu0 0.0
    %4168 = vmatpush1.msra.mxu0 0.0
    %4169 = vmatprep.subr.mxu0 0.0
    %4170 = vmatpush1.msra.mxu0 0.0
    %4171 = vmatprep.subr.mxu0 0.0
    %4172 = vmatpush1.msra.mxu0 0.0
    %4173 = vmatprep.mubr.f32.mxu0 0.0
    %4174 = vmatmul.mubr.f32.gmra.mrb[0].mxu0 %v4016
    %v4175 = vpop.f32.mrb[0].mxu0
    %v4176 = vadd.f32 0.0, %v4175
    %v4177 = vpop.f32.mrb[0].mxu0
    %4178 = vmatprep.mubr.f32.mxu0 0.0
    %4179 = vmatmul.mubr.f32.gmra.mrb[0].mxu0 %v4089
    %v4180 = vpop.f32.mrb[0].mxu0
    %v4181 = vadd.f32 0.0, %v4180
    %v4182 = vpop.f32.mrb[0].mxu0
    %4183 = vdwg.mxu0
    %v4184 = vadd.f32 %v3782, %v4176
    %v4185 = vadd.f32 %v3782, %v4181
    %4186 = vmatprep.subr.mxu0 0.0
    %4187 = vmatpush1.xpose.msra.mxu0 %v3537
    %4188 = vmatprep.subr.mxu0 0.0
    %4189 = vmatpush1.xpose.msra.mxu0 0.0
    %4190 = vmatprep.subr.mxu0 0.0
    %4191 = vmatpush1.xpose.msra.mxu0 0.0
    %4192 = vmatprep.subr.mxu0 0.0
    %4193 = vmatpush1.xpose.msra.mxu0 0.0
    %4194 = vmatprep.subr.mxu0 0.0
    %4195 = vmatpush1.xpose.msra.mxu0 0.0
    %4196 = vmatprep.subr.mxu0 0.0
    %4197 = vmatpush1.xpose.msra.mxu0 0.0
    %4198 = vmatprep.subr.mxu0 0.0
    %4199 = vmatpush1.xpose.msra.mxu0 0.0
    %4200 = vmatprep.subr.mxu0 0.0
    %4201 = vmatpush1.xpose.msra.mxu0 0.0
    %4202 = vmatprep.subr.mxu0 0.0
    %4203 = vmatpush1.xpose.msra.mxu0 0.0
    %4204 = vmatprep.subr.mxu0 0.0
    %4205 = vmatpush1.xpose.msra.mxu0 0.0
    %4206 = vmatprep.subr.mxu0 0.0
    %4207 = vmatpush1.xpose.msra.mxu0 0.0
    %4208 = vmatprep.subr.mxu0 0.0
    %4209 = vmatpush1.xpose.msra.mxu0 0.0
    %4210 = vmatprep.subr.mxu0 0.0
    %4211 = vmatpush1.xpose.msra.mxu0 0.0
    %4212 = vmatprep.subr.mxu0 0.0
    %4213 = vmatpush1.xpose.msra.mxu0 0.0
    %4214 = vmatprep.subr.mxu0 0.0
    %4215 = vmatpush1.xpose.msra.mxu0 0.0
    %4216 = vmatprep.subr.mxu0 0.0
    %4217 = vmatpush1.xpose.msra.mxu0 0.0
    %4218 = vmatprep.subr.mxu0 0.0
    %4219 = vmatpush1.xpose.msra.mxu0 0.0
    %4220 = vmatprep.subr.mxu0 0.0
    %4221 = vmatpush1.xpose.msra.mxu0 0.0
    %4222 = vmatprep.subr.mxu0 0.0
    %4223 = vmatpush1.xpose.msra.mxu0 0.0
    %4224 = vmatprep.subr.mxu0 0.0
    %4225 = vmatpush1.xpose.msra.mxu0 0.0
    %4226 = vmatprep.subr.mxu0 0.0
    %4227 = vmatpush1.xpose.msra.mxu0 0.0
    %4228 = vmatprep.subr.mxu0 0.0
    %4229 = vmatpush1.xpose.msra.mxu0 0.0
    %4230 = vmatprep.subr.mxu0 0.0
    %4231 = vmatpush1.xpose.msra.mxu0 0.0
    %4232 = vmatprep.subr.mxu0 0.0
    %4233 = vmatpush1.xpose.msra.mxu0 0.0
    %4234 = vmatprep.subr.mxu0 0.0
    %4235 = vmatpush1.xpose.msra.mxu0 0.0
    %4236 = vmatprep.subr.mxu0 0.0
    %4237 = vmatpush1.xpose.msra.mxu0 0.0
    %4238 = vmatprep.subr.mxu0 0.0
    %4239 = vmatpush1.xpose.msra.mxu0 0.0
    %4240 = vmatprep.subr.mxu0 0.0
    %4241 = vmatpush1.xpose.msra.mxu0 0.0
    %4242 = vmatprep.subr.mxu0 0.0
    %4243 = vmatpush1.xpose.msra.mxu0 0.0
    %4244 = vmatprep.subr.mxu0 0.0
    %4245 = vmatpush1.xpose.msra.mxu0 0.0
    %4246 = vmatprep.subr.mxu0 0.0
    %4247 = vmatpush1.xpose.msra.mxu0 0.0
    %4248 = vmatprep.subr.mxu0 0.0
    %4249 = vmatpush1.xpose.msra.mxu0 0.0
    %4250 = vmatprep.mubr.f32.mxu0 0.0
    %4251 = vmatmul.mubr.f32.gmra.mrb[0].mxu0 %v3383
    %v4252 = vpop.f32.mrb[0].mxu0
    %v4253 = vadd.f32 0.0, %v4252
    %v4254 = vpop.f32.mrb[0].mxu0
    %4255 = vdwg.mxu0
    %4256 = vmatprep.subr.mxu0 0.0
    %4257 = vmatpush1.xpose.msra.mxu0 %v3543
    %4258 = vmatprep.subr.mxu0 0.0
    %4259 = vmatpush1.xpose.msra.mxu0 0.0
    %4260 = vmatprep.subr.mxu0 0.0
    %4261 = vmatpush1.xpose.msra.mxu0 0.0
    %4262 = vmatprep.subr.mxu0 0.0
    %4263 = vmatpush1.xpose.msra.mxu0 0.0
    %4264 = vmatprep.subr.mxu0 0.0
    %4265 = vmatpush1.xpose.msra.mxu0 0.0
    %4266 = vmatprep.subr.mxu0 0.0
    %4267 = vmatpush1.xpose.msra.mxu0 0.0
    %4268 = vmatprep.subr.mxu0 0.0
    %4269 = vmatpush1.xpose.msra.mxu0 0.0
    %4270 = vmatprep.subr.mxu0 0.0
    %4271 = vmatpush1.xpose.msra.mxu0 0.0
    %4272 = vmatprep.subr.mxu0 0.0
    %4273 = vmatpush1.xpose.msra.mxu0 0.0
    %4274 = vmatprep.subr.mxu0 0.0
    %4275 = vmatpush1.xpose.msra.mxu0 0.0
    %4276 = vmatprep.subr.mxu0 0.0
    %4277 = vmatpush1.xpose.msra.mxu0 0.0
    %4278 = vmatprep.subr.mxu0 0.0
    %4279 = vmatpush1.xpose.msra.mxu0 0.0
    %4280 = vmatprep.subr.mxu0 0.0
    %4281 = vmatpush1.xpose.msra.mxu0 0.0
    %4282 = vmatprep.subr.mxu0 0.0
    %4283 = vmatpush1.xpose.msra.mxu0 0.0
    %4284 = vmatprep.subr.mxu0 0.0
    %4285 = vmatpush1.xpose.msra.mxu0 0.0
    %4286 = vmatprep.subr.mxu0 0.0
    %4287 = vmatpush1.xpose.msra.mxu0 0.0
    %4288 = vmatprep.subr.mxu0 0.0
    %4289 = vmatpush1.xpose.msra.mxu0 0.0
    %4290 = vmatprep.subr.mxu0 0.0
    %4291 = vmatpush1.xpose.msra.mxu0 0.0
    %4292 = vmatprep.subr.mxu0 0.0
    %4293 = vmatpush1.xpose.msra.mxu0 0.0
    %4294 = vmatprep.subr.mxu0 0.0
    %4295 = vmatpush1.xpose.msra.mxu0 0.0
    %4296 = vmatprep.subr.mxu0 0.0
    %4297 = vmatpush1.xpose.msra.mxu0 0.0
    %4298 = vmatprep.subr.mxu0 0.0
    %4299 = vmatpush1.xpose.msra.mxu0 0.0
    %4300 = vmatprep.subr.mxu0 0.0
    %4301 = vmatpush1.xpose.msra.mxu0 0.0
    %4302 = vmatprep.subr.mxu0 0.0
    %4303 = vmatpush1.xpose.msra.mxu0 0.0
    %4304 = vmatprep.subr.mxu0 0.0
    %4305 = vmatpush1.xpose.msra.mxu0 0.0
    %4306 = vmatprep.subr.mxu0 0.0
    %4307 = vmatpush1.xpose.msra.mxu0 0.0
    %4308 = vmatprep.subr.mxu0 0.0
    %4309 = vmatpush1.xpose.msra.mxu0 0.0
    %4310 = vmatprep.subr.mxu0 0.0
    %4311 = vmatpush1.xpose.msra.mxu0 0.0
    %4312 = vmatprep.subr.mxu0 0.0
    %4313 = vmatpush1.xpose.msra.mxu0 0.0
    %4314 = vmatprep.subr.mxu0 0.0
    %4315 = vmatpush1.xpose.msra.mxu0 0.0
    %4316 = vmatprep.subr.mxu0 0.0
    %4317 = vmatpush1.xpose.msra.mxu0 0.0
    %4318 = vmatprep.subr.mxu0 0.0
    %4319 = vmatpush1.xpose.msra.mxu0 0.0
    %4320 = vmatprep.mubr.f32.mxu0 0.0
    %4321 = vmatmul.mubr.f32.gmra.mrb[0].mxu0 %v3389
    %v4322 = vpop.f32.mrb[0].mxu0
    %v4323 = vadd.f32 0.0, %v4322
    %v4324 = vpop.f32.mrb[0].mxu0
    %4325 = vdwg.mxu0
    %v4326 = vsel %vm1160, %v4253, -inf
    %4327 = vmax.xlane.f32.xlu0 %v4326
    %v4328 = vpop.xlane.xlu0 %4327
    %v4329 = vsel %vm1160, %v4323, -inf
    %4330 = vmax.xlane.f32.xlu0 %v4329
    %v4331 = vpop.xlane.xlu0 %4330
    %v4332 = vsub.f32 %v4253, %v4328
    %v4333 = vsub.f32 %v4323, %v4331
    %v4334 = vmul.f32 %v4332, 1.442695
    %v4335 = vpow.pop %v4334
    %v4336 = vmul.f32 %v4333, 1.442695
    %v4337 = vpow.pop %v4336
    %v4338 = vsel %vm1160, %v4335, 0.0
    %4339 = vadd.xlane.f32.xlu0 %v4338
    %v4340 = vpop.xlane.xlu0 %4339
    %v4341 = vsel %vm1160, %v4337, 0.0
    %4342 = vadd.xlane.f32.xlu0 %v4341
    %v4343 = vpop.xlane.xlu0 %4342
    %v4344 = vrcp.pop %v4340
    %v4345 = vrcp.pop %v4343
    %v4346 = vmul.f32 %v4335, %v4344
    %v4347 = vmul.f32 %v4337, %v4345
    %v4349 = vsel %vm1160, %v4346, 0
    %4351 = vmatprep.subr.mxu0 0.0
    %4352 = vmatpush1.msra.mxu0 %v3691
    %4353 = vmatprep.subr.mxu0 0.0
    %4354 = vmatpush1.msra.mxu0 0.0
    %4355 = vmatprep.subr.mxu0 0.0
    %4356 = vmatpush1.msra.mxu0 0.0
    %4357 = vmatprep.subr.mxu0 0.0
    %4358 = vmatpush1.msra.mxu0 0.0
    %4359 = vmatprep.subr.mxu0 0.0
    %4360 = vmatpush1.msra.mxu0 0.0
    %4361 = vmatprep.subr.mxu0 0.0
    %4362 = vmatpush1.msra.mxu0 0.0
    %4363 = vmatprep.subr.mxu0 0.0
    %4364 = vmatpush1.msra.mxu0 0.0
    %4365 = vmatprep.subr.mxu0 0.0
    %4366 = vmatpush1.msra.mxu0 0.0
    %4367 = vmatprep.subr.mxu0 0.0
    %4368 = vmatpush1.msra.mxu0 0.0
    %4369 = vmatprep.subr.mxu0 0.0
    %4370 = vmatpush1.msra.mxu0 0.0
    %4371 = vmatprep.subr.mxu0 0.0
    %4372 = vmatpush1.msra.mxu0 0.0
    %4373 = vmatprep.subr.mxu0 0.0
    %4374 = vmatpush1.msra.mxu0 0.0
    %4375 = vmatprep.subr.mxu0 0.0
    %4376 = vmatpush1.msra.mxu0 0.0
    %4377 = vmatprep.subr.mxu0 0.0
    %4378 = vmatpush1.msra.mxu0 0.0
    %4379 = vmatprep.subr.mxu0 0.0
    %4380 = vmatpush1.msra.mxu0 0.0
    %4381 = vmatprep.subr.mxu0 0.0
    %4382 = vmatpush1.msra.mxu0 0.0
    %4383 = vmatprep.subr.mxu0 0.0
    %4384 = vmatpush1.msra.mxu0 0.0
    %4385 = vmatprep.subr.mxu0 0.0
    %4386 = vmatpush1.msra.mxu0 0.0
    %4387 = vmatprep.subr.mxu0 0.0
    %4388 = vmatpush1.msra.mxu0 0.0
    %4389 = vmatprep.subr.mxu0 0.0
    %4390 = vmatpush1.msra.mxu0 0.0
    %4391 = vmatprep.subr.mxu0 0.0
    %4392 = vmatpush1.msra.mxu0 0.0
    %4393 = vmatprep.subr.mxu0 0.0
    %4394 = vmatpush1.msra.mxu0 0.0
    %4395 = vmatprep.subr.mxu0 0.0
    %4396 = vmatpush1.msra.mxu0 0.0
    %4397 = vmatprep.subr.mxu0 0.0
    %4398 = vmatpush1.msra.mxu0 0.0
    %4399 = vmatprep.subr.mxu0 0.0
    %4400 = vmatpush1.msra.mxu0 0.0
    %4401 = vmatprep.subr.mxu0 0.0
    %4402 = vmatpush1.msra.mxu0 0.0
    %4403 = vmatprep.subr.mxu0 0.0
    %4404 = vmatpush1.msra.mxu0 0.0
    %4405 = vmatprep.subr.mxu0 0.0
    %4406 = vmatpush1.msra.mxu0 0.0
    %4407 = vmatprep.subr.mxu0 0.0
    %4408 = vmatpush1.msra.mxu0 0.0
    %4409 = vmatprep.subr.mxu0 0.0
    %4410 = vmatpush1.msra.mxu0 0.0
    %4411 = vmatprep.subr.mxu0 0.0
    %4412 = vmatpush1.msra.mxu0 0.0
    %4413 = vmatprep.subr.mxu0 0.0
    %4414 = vmatpush1.msra.mxu0 0.0
    %4415 = vmatprep.mubr.f32.mxu0 0.0
    %4416 = vmatmul.mubr.f32.gmra.mrb[0].mxu0 %v4349
    %v4417 = vpop.f32.mrb[0].mxu0
    %v4418 = vadd.f32 0.0, %v4417
    %v4419 = vpop.f32.mrb[0].mxu0
    %4420 = vdwg.mxu0
    %v4422 = vsel %vm1160, %v4347, 0
    %4424 = vmatprep.subr.mxu0 0.0
    %4425 = vmatpush1.msra.mxu0 %v3697
    %4426 = vmatprep.subr.mxu0 0.0
    %4427 = vmatpush1.msra.mxu0 0.0
    %4428 = vmatprep.subr.mxu0 0.0
    %4429 = vmatpush1.msra.mxu0 0.0
    %4430 = vmatprep.subr.mxu0 0.0
    %4431 = vmatpush1.msra.mxu0 0.0
    %4432 = vmatprep.subr.mxu0 0.0
    %4433 = vmatpush1.msra.mxu0 0.0
    %4434 = vmatprep.subr.mxu0 0.0
    %4435 = vmatpush1.msra.mxu0 0.0
    %4436 = vmatprep.subr.mxu0 0.0
    %4437 = vmatpush1.msra.mxu0 0.0
    %4438 = vmatprep.subr.mxu0 0.0
    %4439 = vmatpush1.msra.mxu0 0.0
    %4440 = vmatprep.subr.mxu0 0.0
    %4441 = vmatpush1.msra.mxu0 0.0
    %4442 = vmatprep.subr.mxu0 0.0
    %4443 = vmatpush1.msra.mxu0 0.0
    %4444 = vmatprep.subr.mxu0 0.0
    %4445 = vmatpush1.msra.mxu0 0.0
    %4446 = vmatprep.subr.mxu0 0.0
    %4447 = vmatpush1.msra.mxu0 0.0
    %4448 = vmatprep.subr.mxu0 0.0
    %4449 = vmatpush1.msra.mxu0 0.0
    %4450 = vmatprep.subr.mxu0 0.0
    %4451 = vmatpush1.msra.mxu0 0.0
    %4452 = vmatprep.subr.mxu0 0.0
    %4453 = vmatpush1.msra.mxu0 0.0
    %4454 = vmatprep.subr.mxu0 0.0
    %4455 = vmatpush1.msra.mxu0 0.0
    %4456 = vmatprep.subr.mxu0 0.0
    %4457 = vmatpush1.msra.mxu0 0.0
    %4458 = vmatprep.subr.mxu0 0.0
    %4459 = vmatpush1.msra.mxu0 0.0
    %4460 = vmatprep.subr.mxu0 0.0
    %4461 = vmatpush1.msra.mxu0 0.0
    %4462 = vmatprep.subr.mxu0 0.0
    %4463 = vmatpush1.msra.mxu0 0.0
    %4464 = vmatprep.subr.mxu0 0.0
    %4465 = vmatpush1.msra.mxu0 0.0
    %4466 = vmatprep.subr.mxu0 0.0
    %4467 = vmatpush1.msra.mxu0 0.0
    %4468 = vmatprep.subr.mxu0 0.0
    %4469 = vmatpush1.msra.mxu0 0.0
    %4470 = vmatprep.subr.mxu0 0.0
    %4471 = vmatpush1.msra.mxu0 0.0
    %4472 = vmatprep.subr.mxu0 0.0
    %4473 = vmatpush1.msra.mxu0 0.0
    %4474 = vmatprep.subr.mxu0 0.0
    %4475 = vmatpush1.msra.mxu0 0.0
    %4476 = vmatprep.subr.mxu0 0.0
    %4477 = vmatpush1.msra.mxu0 0.0
    %4478 = vmatprep.subr.mxu0 0.0
    %4479 = vmatpush1.msra.mxu0 0.0
    %4480 = vmatprep.subr.mxu0 0.0
    %4481 = vmatpush1.msra.mxu0 0.0
    %4482 = vmatprep.subr.mxu0 0.0
    %4483 = vmatpush1.msra.mxu0 0.0
    %4484 = vmatprep.subr.mxu0 0.0
    %4485 = vmatpush1.msra.mxu0 0.0
    %4486 = vmatprep.subr.mxu0 0.0
    %4487 = vmatpush1.msra.mxu0 0.0
    %4488 = vmatprep.mubr.f32.mxu0 0.0
    %4489 = vmatmul.mubr.f32.gmra.mrb[0].mxu0 %v4422
    %v4490 = vpop.f32.mrb[0].mxu0
    %v4491 = vadd.f32 0.0, %v4490
    %v4492 = vpop.f32.mrb[0].mxu0
    %4493 = vdwg.mxu0
    %v4494 = vld [vmem:[%s4092 + $0x80] sm:$0xff]
    %v4495 = vld [vmem:[%s4092 + $0x88] sm:$0xff]
    %v4496 = vld [vmem:[%s4092 + $0x90] sm:$0xff]
    %v4497 = vld [vmem:[%s4092 + $0x98] sm:$0xff]
    %v4498 = vld [vmem:[%s4092 + $0xa0] sm:$0xff]
    %v4499 = vld [vmem:[%s4092 + $0xa8] sm:$0xff]
    %v4500 = vld [vmem:[%s4092 + $0xb0] sm:$0xff]
    %v4501 = vld [vmem:[%s4092 + $0xb8] sm:$0xff]
    %v4502 = vld [vmem:[%s4092 + $0xc0] sm:$0xff]
    %v4503 = vld [vmem:[%s4092 + $0xc8] sm:$0xff]
    %v4504 = vld [vmem:[%s4092 + $0xd0] sm:$0xff]
    %v4505 = vld [vmem:[%s4092 + $0xd8] sm:$0xff]
    %v4506 = vld [vmem:[%s4092 + $0xe0] sm:$0xff]
    %v4507 = vld [vmem:[%s4092 + $0xe8] sm:$0xff]
    %v4508 = vld [vmem:[%s4092 + $0xf0] sm:$0xff]
    %v4509 = vld [vmem:[%s4092 + $0xf8] sm:$0xff]
    %4510 = vmatprep.subr.mxu0 0.0
    %4511 = vmatpush1.msra.mxu0 %v4494
    %4512 = vmatprep.subr.mxu0 0.0
    %4513 = vmatpush1.msra.mxu0 %v4495
    %4514 = vmatprep.subr.mxu0 0.0
    %4515 = vmatpush1.msra.mxu0 %v4496
    %4516 = vmatprep.subr.mxu0 0.0
    %4517 = vmatpush1.msra.mxu0 %v4497
    %4518 = vmatprep.subr.mxu0 0.0
    %4519 = vmatpush1.msra.mxu0 %v4498
    %4520 = vmatprep.subr.mxu0 0.0
    %4521 = vmatpush1.msra.mxu0 %v4499
    %4522 = vmatprep.subr.mxu0 0.0
    %4523 = vmatpush1.msra.mxu0 %v4500
    %4524 = vmatprep.subr.mxu0 0.0
    %4525 = vmatpush1.msra.mxu0 %v4501
    %4526 = vmatprep.subr.mxu0 0.0
    %4527 = vmatpush1.msra.mxu0 %v4502
    %4528 = vmatprep.subr.mxu0 0.0
    %4529 = vmatpush1.msra.mxu0 %v4503
    %4530 = vmatprep.subr.mxu0 0.0
    %4531 = vmatpush1.msra.mxu0 %v4504
    %4532 = vmatprep.subr.mxu0 0.0
    %4533 = vmatpush1.msra.mxu0 %v4505
    %4534 = vmatprep.subr.mxu0 0.0
    %4535 = vmatpush1.msra.mxu0 %v4506
    %4536 = vmatprep.subr.mxu0 0.0
    %4537 = vmatpush1.msra.mxu0 %v4507
    %4538 = vmatprep.subr.mxu0 0.0
    %4539 = vmatpush1.msra.mxu0 %v4508
    %4540 = vmatprep.subr.mxu0 0.0
    %4541 = vmatpush1.msra.mxu0 %v4509
    %4542 = vmatprep.subr.mxu0 0.0
    %4543 = vmatpush1.msra.mxu0 0.0
    %4544 = vmatprep.subr.mxu0 0.0
    %4545 = vmatpush1.msra.mxu0 0.0
    %4546 = vmatprep.subr.mxu0 0.0
    %4547 = vmatpush1.msra.mxu0 0.0
    %4548 = vmatprep.subr.mxu0 0.0
    %4549 = vmatpush1.msra.mxu0 0.0
    %4550 = vmatprep.subr.mxu0 0.0
    %4551 = vmatpush1.msra.mxu0 0.0
    %4552 = vmatprep.subr.mxu0 0.0
    %4553 = vmatpush1.msra.mxu0 0.0
    %4554 = vmatprep.subr.mxu0 0.0
    %4555 = vmatpush1.msra.mxu0 0.0
    %4556 = vmatprep.subr.mxu0 0.0
    %4557 = vmatpush1.msra.mxu0 0.0
    %4558 = vmatprep.subr.mxu0 0.0
    %4559 = vmatpush1.msra.mxu0 0.0
    %4560 = vmatprep.subr.mxu0 0.0
    %4561 = vmatpush1.msra.mxu0 0.0
    %4562 = vmatprep.subr.mxu0 0.0
    %4563 = vmatpush1.msra.mxu0 0.0
    %4564 = vmatprep.subr.mxu0 0.0
    %4565 = vmatpush1.msra.mxu0 0.0
    %4566 = vmatprep.subr.mxu0 0.0
    %4567 = vmatpush1.msra.mxu0 0.0
    %4568 = vmatprep.subr.mxu0 0.0
    %4569 = vmatpush1.msra.mxu0 0.0
    %4570 = vmatprep.subr.mxu0 0.0
    %4571 = vmatpush1.msra.mxu0 0.0
    %4572 = vmatprep.subr.mxu0 0.0
    %4573 = vmatpush1.msra.mxu0 0.0
    %4574 = vmatprep.mubr.f32.mxu0 0.0
    %4575 = vmatmul.mubr.f32.gmra.mrb[0].mxu0 %v4418
    %v4576 = vpop.f32.mrb[0].mxu0
    %v4577 = vadd.f32 0.0, %v4576
    %v4578 = vpop.f32.mrb[0].mxu0
    %4579 = vmatprep.mubr.f32.mxu0 0.0
    %4580 = vmatmul.mubr.f32.gmra.mrb[0].mxu0 %v4491
    %v4581 = vpop.f32.mrb[0].mxu0
    %v4582 = vadd.f32 0.0, %v4581
    %v4583 = vpop.f32.mrb[0].mxu0
    %4584 = vdwg.mxu0
    %v4585 = vadd.f32 %v4184, %v4577
    %v4586 = vadd.f32 %v4185, %v4582
    %4587 = vmatprep.subr.mxu0 0.0
    %4588 = vmatpush1.xpose.msra.mxu0 %v3612
    %4589 = vmatprep.subr.mxu0 0.0
    %4590 = vmatpush1.xpose.msra.mxu0 0.0
    %4591 = vmatprep.subr.mxu0 0.0
    %4592 = vmatpush1.xpose.msra.mxu0 0.0
    %4593 = vmatprep.subr.mxu0 0.0
    %4594 = vmatpush1.xpose.msra.mxu0 0.0
    %4595 = vmatprep.subr.mxu0 0.0
    %4596 = vmatpush1.xpose.msra.mxu0 0.0
    %4597 = vmatprep.subr.mxu0 0.0
    %4598 = vmatpush1.xpose.msra.mxu0 0.0
    %4599 = vmatprep.subr.mxu0 0.0
    %4600 = vmatpush1.xpose.msra.mxu0 0.0
    %4601 = vmatprep.subr.mxu0 0.0
    %4602 = vmatpush1.xpose.msra.mxu0 0.0
    %4603 = vmatprep.subr.mxu0 0.0
    %4604 = vmatpush1.xpose.msra.mxu0 0.0
    %4605 = vmatprep.subr.mxu0 0.0
    %4606 = vmatpush1.xpose.msra.mxu0 0.0
    %4607 = vmatprep.subr.mxu0 0.0
    %4608 = vmatpush1.xpose.msra.mxu0 0.0
    %4609 = vmatprep.subr.mxu0 0.0
    %4610 = vmatpush1.xpose.msra.mxu0 0.0
    %4611 = vmatprep.subr.mxu0 0.0
    %4612 = vmatpush1.xpose.msra.mxu0 0.0
    %4613 = vmatprep.subr.mxu0 0.0
    %4614 = vmatpush1.xpose.msra.mxu0 0.0
    %4615 = vmatprep.subr.mxu0 0.0
    %4616 = vmatpush1.xpose.msra.mxu0 0.0
    %4617 = vmatprep.subr.mxu0 0.0
    %4618 = vmatpush1.xpose.msra.mxu0 0.0
    %4619 = vmatprep.subr.mxu0 0.0
    %4620 = vmatpush1.xpose.msra.mxu0 0.0
    %4621 = vmatprep.subr.mxu0 0.0
    %4622 = vmatpush1.xpose.msra.mxu0 0.0
    %4623 = vmatprep.subr.mxu0 0.0
    %4624 = vmatpush1.xpose.msra.mxu0 0.0
    %4625 = vmatprep.subr.mxu0 0.0
    %4626 = vmatpush1.xpose.msra.mxu0 0.0
    %4627 = vmatprep.subr.mxu0 0.0
    %4628 = vmatpush1.xpose.msra.mxu0 0.0
    %4629 = vmatprep.subr.mxu0 0.0
    %4630 = vmatpush1.xpose.msra.mxu0 0.0
    %4631 = vmatprep.subr.mxu0 0.0
    %4632 = vmatpush1.xpose.msra.mxu0 0.0
    %4633 = vmatprep.subr.mxu0 0.0
    %4634 = vmatpush1.xpose.msra.mxu0 0.0
    %4635 = vmatprep.subr.mxu0 0.0
    %4636 = vmatpush1.xpose.msra.mxu0 0.0
    %4637 = vmatprep.subr.mxu0 0.0
    %4638 = vmatpush1.xpose.msra.mxu0 0.0
    %4639 = vmatprep.subr.mxu0 0.0
    %4640 = vmatpush1.xpose.msra.mxu0 0.0
    %4641 = vmatprep.subr.mxu0 0.0
    %4642 = vmatpush1.xpose.msra.mxu0 0.0
    %4643 = vmatprep.subr.mxu0 0.0
    %4644 = vmatpush1.xpose.msra.mxu0 0.0
    %4645 = vmatprep.subr.mxu0 0.0
    %4646 = vmatpush1.xpose.msra.mxu0 0.0
    %4647 = vmatprep.subr.mxu0 0.0
    %4648 = vmatpush1.xpose.msra.mxu0 0.0
    %4649 = vmatprep.subr.mxu0 0.0
    %4650 = vmatpush1.xpose.msra.mxu0 0.0
    %4651 = vmatprep.mubr.f32.mxu0 0.0
    %4652 = vmatmul.mubr.f32.gmra.mrb[0].mxu0 %v3458
    %v4653 = vpop.f32.mrb[0].mxu0
    %v4654 = vadd.f32 0.0, %v4653
    %v4655 = vpop.f32.mrb[0].mxu0
    %4656 = vdwg.mxu0
    %4657 = vmatprep.subr.mxu0 0.0
    %4658 = vmatpush1.xpose.msra.mxu0 %v3618
    %4659 = vmatprep.subr.mxu0 0.0
    %4660 = vmatpush1.xpose.msra.mxu0 0.0
    %4661 = vmatprep.subr.mxu0 0.0
    %4662 = vmatpush1.xpose.msra.mxu0 0.0
    %4663 = vmatprep.subr.mxu0 0.0
    %4664 = vmatpush1.xpose.msra.mxu0 0.0
    %4665 = vmatprep.subr.mxu0 0.0
    %4666 = vmatpush1.xpose.msra.mxu0 0.0
    %4667 = vmatprep.subr.mxu0 0.0
    %4668 = vmatpush1.xpose.msra.mxu0 0.0
    %4669 = vmatprep.subr.mxu0 0.0
    %4670 = vmatpush1.xpose.msra.mxu0 0.0
    %4671 = vmatprep.subr.mxu0 0.0
    %4672 = vmatpush1.xpose.msra.mxu0 0.0
    %4673 = vmatprep.subr.mxu0 0.0
    %4674 = vmatpush1.xpose.msra.mxu0 0.0
    %4675 = vmatprep.subr.mxu0 0.0
    %4676 = vmatpush1.xpose.msra.mxu0 0.0
    %4677 = vmatprep.subr.mxu0 0.0
    %4678 = vmatpush1.xpose.msra.mxu0 0.0
    %4679 = vmatprep.subr.mxu0 0.0
    %4680 = vmatpush1.xpose.msra.mxu0 0.0
    %4681 = vmatprep.subr.mxu0 0.0
    %4682 = vmatpush1.xpose.msra.mxu0 0.0
    %4683 = vmatprep.subr.mxu0 0.0
    %4684 = vmatpush1.xpose.msra.mxu0 0.0
    %4685 = vmatprep.subr.mxu0 0.0
    %4686 = vmatpush1.xpose.msra.mxu0 0.0
    %4687 = vmatprep.subr.mxu0 0.0
    %4688 = vmatpush1.xpose.msra.mxu0 0.0
    %4689 = vmatprep.subr.mxu0 0.0
    %4690 = vmatpush1.xpose.msra.mxu0 0.0
    %4691 = vmatprep.subr.mxu0 0.0
    %4692 = vmatpush1.xpose.msra.mxu0 0.0
    %4693 = vmatprep.subr.mxu0 0.0
    %4694 = vmatpush1.xpose.msra.mxu0 0.0
    %4695 = vmatprep.subr.mxu0 0.0
    %4696 = vmatpush1.xpose.msra.mxu0 0.0
    %4697 = vmatprep.subr.mxu0 0.0
    %4698 = vmatpush1.xpose.msra.mxu0 0.0
    %4699 = vmatprep.subr.mxu0 0.0
    %4700 = vmatpush1.xpose.msra.mxu0 0.0
    %4701 = vmatprep.subr.mxu0 0.0
    %4702 = vmatpush1.xpose.msra.mxu0 0.0
    %4703 = vmatprep.subr.mxu0 0.0
    %4704 = vmatpush1.xpose.msra.mxu0 0.0
    %4705 = vmatprep.subr.mxu0 0.0
    %4706 = vmatpush1.xpose.msra.mxu0 0.0
    %4707 = vmatprep.subr.mxu0 0.0
    %4708 = vmatpush1.xpose.msra.mxu0 0.0
    %4709 = vmatprep.subr.mxu0 0.0
    %4710 = vmatpush1.xpose.msra.mxu0 0.0
    %4711 = vmatprep.subr.mxu0 0.0
    %4712 = vmatpush1.xpose.msra.mxu0 0.0
    %4713 = vmatprep.subr.mxu0 0.0
    %4714 = vmatpush1.xpose.msra.mxu0 0.0
    %4715 = vmatprep.subr.mxu0 0.0
    %4716 = vmatpush1.xpose.msra.mxu0 0.0
    %4717 = vmatprep.subr.mxu0 0.0
    %4718 = vmatpush1.xpose.msra.mxu0 0.0
    %4719 = vmatprep.subr.mxu0 0.0
    %4720 = vmatpush1.xpose.msra.mxu0 0.0
    %4721 = vmatprep.mubr.f32.mxu0 0.0
    %4722 = vmatmul.mubr.f32.gmra.mrb[0].mxu0 %v3464
    %v4723 = vpop.f32.mrb[0].mxu0
    %v4724 = vadd.f32 0.0, %v4723
    %v4725 = vpop.f32.mrb[0].mxu0
    %4726 = vdwg.mxu0
    %v4727 = vsel %vm1160, %v4654, -inf
    %4728 = vmax.xlane.f32.xlu0 %v4727
    %v4729 = vpop.xlane.xlu0 %4728
    %v4730 = vsel %vm1160, %v4724, -inf
    %4731 = vmax.xlane.f32.xlu0 %v4730
    %v4732 = vpop.xlane.xlu0 %4731
    %v4733 = vsub.f32 %v4654, %v4729
    %v4734 = vsub.f32 %v4724, %v4732
    %v4735 = vmul.f32 %v4733, 1.442695
    %v4736 = vpow.pop %v4735
    %v4737 = vmul.f32 %v4734, 1.442695
    %v4738 = vpow.pop %v4737
    %v4739 = vsel %vm1160, %v4736, 0.0
    %4740 = vadd.xlane.f32.xlu0 %v4739
    %v4741 = vpop.xlane.xlu0 %4740
    %v4742 = vsel %vm1160, %v4738, 0.0
    %4743 = vadd.xlane.f32.xlu0 %v4742
    %v4744 = vpop.xlane.xlu0 %4743
    %v4745 = vrcp.pop %v4741
    %v4746 = vrcp.pop %v4744
    %v4747 = vmul.f32 %v4736, %v4745
    %v4748 = vmul.f32 %v4738, %v4746
    %v4750 = vsel %vm1160, %v4747, 0
    %4752 = vmatprep.subr.mxu0 0.0
    %4753 = vmatpush1.msra.mxu0 %v3766
    %4754 = vmatprep.subr.mxu0 0.0
    %4755 = vmatpush1.msra.mxu0 0.0
    %4756 = vmatprep.subr.mxu0 0.0
    %4757 = vmatpush1.msra.mxu0 0.0
    %4758 = vmatprep.subr.mxu0 0.0
    %4759 = vmatpush1.msra.mxu0 0.0
    %4760 = vmatprep.subr.mxu0 0.0
    %4761 = vmatpush1.msra.mxu0 0.0
    %4762 = vmatprep.subr.mxu0 0.0
    %4763 = vmatpush1.msra.mxu0 0.0
    %4764 = vmatprep.subr.mxu0 0.0
    %4765 = vmatpush1.msra.mxu0 0.0
    %4766 = vmatprep.subr.mxu0 0.0
    %4767 = vmatpush1.msra.mxu0 0.0
    %4768 = vmatprep.subr.mxu0 0.0
    %4769 = vmatpush1.msra.mxu0 0.0
    %4770 = vmatprep.subr.mxu0 0.0
    %4771 = vmatpush1.msra.mxu0 0.0
    %4772 = vmatprep.subr.mxu0 0.0
    %4773 = vmatpush1.msra.mxu0 0.0
    %4774 = vmatprep.subr.mxu0 0.0
    %4775 = vmatpush1.msra.mxu0 0.0
    %4776 = vmatprep.subr.mxu0 0.0
    %4777 = vmatpush1.msra.mxu0 0.0
    %4778 = vmatprep.subr.mxu0 0.0
    %4779 = vmatpush1.msra.mxu0 0.0
    %4780 = vmatprep.subr.mxu0 0.0
    %4781 = vmatpush1.msra.mxu0 0.0
    %4782 = vmatprep.subr.mxu0 0.0
    %4783 = vmatpush1.msra.mxu0 0.0
    %4784 = vmatprep.subr.mxu0 0.0
    %4785 = vmatpush1.msra.mxu0 0.0
    %4786 = vmatprep.subr.mxu0 0.0
    %4787 = vmatpush1.msra.mxu0 0.0
    %4788 = vmatprep.subr.mxu0 0.0
    %4789 = vmatpush1.msra.mxu0 0.0
    %4790 = vmatprep.subr.mxu0 0.0
    %4791 = vmatpush1.msra.mxu0 0.0
    %4792 = vmatprep.subr.mxu0 0.0
    %4793 = vmatpush1.msra.mxu0 0.0
    %4794 = vmatprep.subr.mxu0 0.0
    %4795 = vmatpush1.msra.mxu0 0.0
    %4796 = vmatprep.subr.mxu0 0.0
    %4797 = vmatpush1.msra.mxu0 0.0
    %4798 = vmatprep.subr.mxu0 0.0
    %4799 = vmatpush1.msra.mxu0 0.0
    %4800 = vmatprep.subr.mxu0 0.0
    %4801 = vmatpush1.msra.mxu0 0.0
    %4802 = vmatprep.subr.mxu0 0.0
    %4803 = vmatpush1.msra.mxu0 0.0
    %4804 = vmatprep.subr.mxu0 0.0
    %4805 = vmatpush1.msra.mxu0 0.0
    %4806 = vmatprep.subr.mxu0 0.0
    %4807 = vmatpush1.msra.mxu0 0.0
    %4808 = vmatprep.subr.mxu0 0.0
    %4809 = vmatpush1.msra.mxu0 0.0
    %4810 = vmatprep.subr.mxu0 0.0
    %4811 = vmatpush1.msra.mxu0 0.0
    %4812 = vmatprep.subr.mxu0 0.0
    %4813 = vmatpush1.msra.mxu0 0.0
    %4814 = vmatprep.subr.mxu0 0.0
    %4815 = vmatpush1.msra.mxu0 0.0
    %4816 = vmatprep.mubr.f32.mxu0 0.0
    %4817 = vmatmul.mubr.f32.gmra.mrb[0].mxu0 %v4750
    %v4818 = vpop.f32.mrb[0].mxu0
    %v4819 = vadd.f32 0.0, %v4818
    %v4820 = vpop.f32.mrb[0].mxu0
    %4821 = vdwg.mxu0
    %v4823 = vsel %vm1160, %v4748, 0
    %4825 = vmatprep.subr.mxu0 0.0
    %4826 = vmatpush1.msra.mxu0 %v3772
    %4827 = vmatprep.subr.mxu0 0.0
    %4828 = vmatpush1.msra.mxu0 0.0
    %4829 = vmatprep.subr.mxu0 0.0
    %4830 = vmatpush1.msra.mxu0 0.0
    %4831 = vmatprep.subr.mxu0 0.0
    %4832 = vmatpush1.msra.mxu0 0.0
    %4833 = vmatprep.subr.mxu0 0.0
    %4834 = vmatpush1.msra.mxu0 0.0
    %4835 = vmatprep.subr.mxu0 0.0
    %4836 = vmatpush1.msra.mxu0 0.0
    %4837 = vmatprep.subr.mxu0 0.0
    %4838 = vmatpush1.msra.mxu0 0.0
    %4839 = vmatprep.subr.mxu0 0.0
    %4840 = vmatpush1.msra.mxu0 0.0
    %4841 = vmatprep.subr.mxu0 0.0
    %4842 = vmatpush1.msra.mxu0 0.0
    %4843 = vmatprep.subr.mxu0 0.0
    %4844 = vmatpush1.msra.mxu0 0.0
    %4845 = vmatprep.subr.mxu0 0.0
    %4846 = vmatpush1.msra.mxu0 0.0
    %4847 = vmatprep.subr.mxu0 0.0
    %4848 = vmatpush1.msra.mxu0 0.0
    %4849 = vmatprep.subr.mxu0 0.0
    %4850 = vmatpush1.msra.mxu0 0.0
    %4851 = vmatprep.subr.mxu0 0.0
    %4852 = vmatpush1.msra.mxu0 0.0
    %4853 = vmatprep.subr.mxu0 0.0
    %4854 = vmatpush1.msra.mxu0 0.0
    %4855 = vmatprep.subr.mxu0 0.0
    %4856 = vmatpush1.msra.mxu0 0.0
    %4857 = vmatprep.subr.mxu0 0.0
    %4858 = vmatpush1.msra.mxu0 0.0
    %4859 = vmatprep.subr.mxu0 0.0
    %4860 = vmatpush1.msra.mxu0 0.0
    %4861 = vmatprep.subr.mxu0 0.0
    %4862 = vmatpush1.msra.mxu0 0.0
    %4863 = vmatprep.subr.mxu0 0.0
    %4864 = vmatpush1.msra.mxu0 0.0
    %4865 = vmatprep.subr.mxu0 0.0
    %4866 = vmatpush1.msra.mxu0 0.0
    %4867 = vmatprep.subr.mxu0 0.0
    %4868 = vmatpush1.msra.mxu0 0.0
    %4869 = vmatprep.subr.mxu0 0.0
    %4870 = vmatpush1.msra.mxu0 0.0
    %4871 = vmatprep.subr.mxu0 0.0
    %4872 = vmatpush1.msra.mxu0 0.0
    %4873 = vmatprep.subr.mxu0 0.0
    %4874 = vmatpush1.msra.mxu0 0.0
    %4875 = vmatprep.subr.mxu0 0.0
    %4876 = vmatpush1.msra.mxu0 0.0
    %4877 = vmatprep.subr.mxu0 0.0
    %4878 = vmatpush1.msra.mxu0 0.0
    %4879 = vmatprep.subr.mxu0 0.0
    %4880 = vmatpush1.msra.mxu0 0.0
    %4881 = vmatprep.subr.mxu0 0.0
    %4882 = vmatpush1.msra.mxu0 0.0
    %4883 = vmatprep.subr.mxu0 0.0
    %4884 = vmatpush1.msra.mxu0 0.0
    %4885 = vmatprep.subr.mxu0 0.0
    %4886 = vmatpush1.msra.mxu0 0.0
    %4887 = vmatprep.subr.mxu0 0.0
    %4888 = vmatpush1.msra.mxu0 0.0
    %4889 = vmatprep.mubr.f32.mxu0 0.0
    %4890 = vmatmul.mubr.f32.gmra.mrb[0].mxu0 %v4823
    %v4891 = vpop.f32.mrb[0].mxu0
    %v4892 = vadd.f32 0.0, %v4891
    %v4893 = vpop.f32.mrb[0].mxu0
    %4894 = vdwg.mxu0
    %v4895 = vld [vmem:[%s4092 + $0x100] sm:$0xff]
    %v4896 = vld [vmem:[%s4092 + $0x108] sm:$0xff]
    %v4897 = vld [vmem:[%s4092 + $0x110] sm:$0xff]
    %v4898 = vld [vmem:[%s4092 + $0x118] sm:$0xff]
    %v4899 = vld [vmem:[%s4092 + $0x120] sm:$0xff]
    %v4900 = vld [vmem:[%s4092 + $0x128] sm:$0xff]
    %v4901 = vld [vmem:[%s4092 + $0x130] sm:$0xff]
    %v4902 = vld [vmem:[%s4092 + $0x138] sm:$0xff]
    %v4903 = vld [vmem:[%s4092 + $0x140] sm:$0xff]
    %v4904 = vld [vmem:[%s4092 + $0x148] sm:$0xff]
    %v4905 = vld [vmem:[%s4092 + $0x150] sm:$0xff]
    %v4906 = vld [vmem:[%s4092 + $0x158] sm:$0xff]
    %v4907 = vld [vmem:[%s4092 + $0x160] sm:$0xff]
    %v4908 = vld [vmem:[%s4092 + $0x168] sm:$0xff]
    %v4909 = vld [vmem:[%s4092 + $0x170] sm:$0xff]
    %v4910 = vld [vmem:[%s4092 + $0x178] sm:$0xff]
    %4911 = vmatprep.subr.mxu0 0.0
    %4912 = vmatpush1.msra.mxu0 %v4895
    %4913 = vmatprep.subr.mxu0 0.0
    %4914 = vmatpush1.msra.mxu0 %v4896
    %4915 = vmatprep.subr.mxu0 0.0
    %4916 = vmatpush1.msra.mxu0 %v4897
    %4917 = vmatprep.subr.mxu0 0.0
    %4918 = vmatpush1.msra.mxu0 %v4898
    %4919 = vmatprep.subr.mxu0 0.0
    %4920 = vmatpush1.msra.mxu0 %v4899
    %4921 = vmatprep.subr.mxu0 0.0
    %4922 = vmatpush1.msra.mxu0 %v4900
    %4923 = vmatprep.subr.mxu0 0.0
    %4924 = vmatpush1.msra.mxu0 %v4901
    %4925 = vmatprep.subr.mxu0 0.0
    %4926 = vmatpush1.msra.mxu0 %v4902
    %4927 = vmatprep.subr.mxu0 0.0
    %4928 = vmatpush1.msra.mxu0 %v4903
    %4929 = vmatprep.subr.mxu0 0.0
    %4930 = vmatpush1.msra.mxu0 %v4904
    %4931 = vmatprep.subr.mxu0 0.0
    %4932 = vmatpush1.msra.mxu0 %v4905
    %4933 = vmatprep.subr.mxu0 0.0
    %4934 = vmatpush1.msra.mxu0 %v4906
    %4935 = vmatprep.subr.mxu0 0.0
    %4936 = vmatpush1.msra.mxu0 %v4907
    %4937 = vmatprep.subr.mxu0 0.0
    %4938 = vmatpush1.msra.mxu0 %v4908
    %4939 = vmatprep.subr.mxu0 0.0
    %4940 = vmatpush1.msra.mxu0 %v4909
    %4941 = vmatprep.subr.mxu0 0.0
    %4942 = vmatpush1.msra.mxu0 %v4910
    %4943 = vmatprep.subr.mxu0 0.0
    %4944 = vmatpush1.msra.mxu0 0.0
    %4945 = vmatprep.subr.mxu0 0.0
    %4946 = vmatpush1.msra.mxu0 0.0
    %4947 = vmatprep.subr.mxu0 0.0
    %4948 = vmatpush1.msra.mxu0 0.0
    %4949 = vmatprep.subr.mxu0 0.0
    %4950 = vmatpush1.msra.mxu0 0.0
    %4951 = vmatprep.subr.mxu0 0.0
    %4952 = vmatpush1.msra.mxu0 0.0
    %4953 = vmatprep.subr.mxu0 0.0
    %4954 = vmatpush1.msra.mxu0 0.0
    %4955 = vmatprep.subr.mxu0 0.0
    %4956 = vmatpush1.msra.mxu0 0.0
    %4957 = vmatprep.subr.mxu0 0.0
    %4958 = vmatpush1.msra.mxu0 0.0
    %4959 = vmatprep.subr.mxu0 0.0
    %4960 = vmatpush1.msra.mxu0 0.0
    %4961 = vmatprep.subr.mxu0 0.0
    %4962 = vmatpush1.msra.mxu0 0.0
    %4963 = vmatprep.subr.mxu0 0.0
    %4964 = vmatpush1.msra.mxu0 0.0
    %4965 = vmatprep.subr.mxu0 0.0
    %4966 = vmatpush1.msra.mxu0 0.0
    %4967 = vmatprep.subr.mxu0 0.0
    %4968 = vmatpush1.msra.mxu0 0.0
    %4969 = vmatprep.subr.mxu0 0.0
    %4970 = vmatpush1.msra.mxu0 0.0
    %4971 = vmatprep.subr.mxu0 0.0
    %4972 = vmatpush1.msra.mxu0 0.0
    %4973 = vmatprep.subr.mxu0 0.0
    %4974 = vmatpush1.msra.mxu0 0.0
    %4975 = vmatprep.mubr.f32.mxu0 0.0
    %4976 = vmatmul.mubr.f32.gmra.mrb[0].mxu0 %v4819
    %v4977 = vpop.f32.mrb[0].mxu0
    %v4978 = vadd.f32 0.0, %v4977
    %v4979 = vpop.f32.mrb[0].mxu0
    %4980 = vmatprep.mubr.f32.mxu0 0.0
    %4981 = vmatmul.mubr.f32.gmra.mrb[0].mxu0 %v4892
    %v4982 = vpop.f32.mrb[0].mxu0
    %v4983 = vadd.f32 0.0, %v4982
    %v4984 = vpop.f32.mrb[0].mxu0
    %4985 = vdwg.mxu0
    %v4986 = vadd.f32 %v4585, %v4978
    %v4987 = vadd.f32 %v4586, %v4983
    %4988 = vmatprep.subr.mxu0 0.0
    %4989 = vmatpush1.xpose.msra.mxu0 %v3614
    %4990 = vmatprep.subr.mxu0 0.0
    %4991 = vmatpush1.xpose.msra.mxu0 0.0
    %4992 = vmatprep.subr.mxu0 0.0
    %4993 = vmatpush1.xpose.msra.mxu0 0.0
    %4994 = vmatprep.subr.mxu0 0.0
    %4995 = vmatpush1.xpose.msra.mxu0 0.0
    %4996 = vmatprep.subr.mxu0 0.0
    %4997 = vmatpush1.xpose.msra.mxu0 0.0
    %4998 = vmatprep.subr.mxu0 0.0
    %4999 = vmatpush1.xpose.msra.mxu0 0.0
    %5000 = vmatprep.subr.mxu0 0.0
    %5001 = vmatpush1.xpose.msra.mxu0 0.0
    %5002 = vmatprep.subr.mxu0 0.0
    %5003 = vmatpush1.xpose.msra.mxu0 0.0
    %5004 = vmatprep.subr.mxu0 0.0
    %5005 = vmatpush1.xpose.msra.mxu0 0.0
    %5006 = vmatprep.subr.mxu0 0.0
    %5007 = vmatpush1.xpose.msra.mxu0 0.0
    %5008 = vmatprep.subr.mxu0 0.0
    %5009 = vmatpush1.xpose.msra.mxu0 0.0
    %5010 = vmatprep.subr.mxu0 0.0
    %5011 = vmatpush1.xpose.msra.mxu0 0.0
    %5012 = vmatprep.subr.mxu0 0.0
    %5013 = vmatpush1.xpose.msra.mxu0 0.0
    %5014 = vmatprep.subr.mxu0 0.0
    %5015 = vmatpush1.xpose.msra.mxu0 0.0
    %5016 = vmatprep.subr.mxu0 0.0
    %5017 = vmatpush1.xpose.msra.mxu0 0.0
    %5018 = vmatprep.subr.mxu0 0.0
    %5019 = vmatpush1.xpose.msra.mxu0 0.0
    %5020 = vmatprep.subr.mxu0 0.0
    %5021 = vmatpush1.xpose.msra.mxu0 0.0
    %5022 = vmatprep.subr.mxu0 0.0
    %5023 = vmatpush1.xpose.msra.mxu0 0.0
    %5024 = vmatprep.subr.mxu0 0.0
    %5025 = vmatpush1.xpose.msra.mxu0 0.0
    %5026 = vmatprep.subr.mxu0 0.0
    %5027 = vmatpush1.xpose.msra.mxu0 0.0
    %5028 = vmatprep.subr.mxu0 0.0
    %5029 = vmatpush1.xpose.msra.mxu0 0.0
    %5030 = vmatprep.subr.mxu0 0.0
    %5031 = vmatpush1.xpose.msra.mxu0 0.0
    %5032 = vmatprep.subr.mxu0 0.0
    %5033 = vmatpush1.xpose.msra.mxu0 0.0
    %5034 = vmatprep.subr.mxu0 0.0
    %5035 = vmatpush1.xpose.msra.mxu0 0.0
    %5036 = vmatprep.subr.mxu0 0.0
    %5037 = vmatpush1.xpose.msra.mxu0 0.0
    %5038 = vmatprep.subr.mxu0 0.0
    %5039 = vmatpush1.xpose.msra.mxu0 0.0
    %5040 = vmatprep.subr.mxu0 0.0
    %5041 = vmatpush1.xpose.msra.mxu0 0.0
    %5042 = vmatprep.subr.mxu0 0.0
    %5043 = vmatpush1.xpose.msra.mxu0 0.0
    %5044 = vmatprep.subr.mxu0 0.0
    %5045 = vmatpush1.xpose.msra.mxu0 0.0
    %5046 = vmatprep.subr.mxu0 0.0
    %5047 = vmatpush1.xpose.msra.mxu0 0.0
    %5048 = vmatprep.subr.mxu0 0.0
    %5049 = vmatpush1.xpose.msra.mxu0 0.0
    %5050 = vmatprep.subr.mxu0 0.0
    %5051 = vmatpush1.xpose.msra.mxu0 0.0
    %5052 = vmatprep.mubr.f32.mxu0 0.0
    %5053 = vmatmul.mubr.f32.gmra.mrb[0].mxu0 %v3460
    %v5054 = vpop.f32.mrb[0].mxu0
    %v5055 = vadd.f32 0.0, %v5054
    %v5056 = vpop.f32.mrb[0].mxu0
    %5057 = vdwg.mxu0
    %5058 = vmatprep.subr.mxu0 0.0
    %5059 = vmatpush1.xpose.msra.mxu0 %v3620
    %5060 = vmatprep.subr.mxu0 0.0
    %5061 = vmatpush1.xpose.msra.mxu0 0.0
    %5062 = vmatprep.subr.mxu0 0.0
    %5063 = vmatpush1.xpose.msra.mxu0 0.0
    %5064 = vmatprep.subr.mxu0 0.0
    %5065 = vmatpush1.xpose.msra.mxu0 0.0
    %5066 = vmatprep.subr.mxu0 0.0
    %5067 = vmatpush1.xpose.msra.mxu0 0.0
    %5068 = vmatprep.subr.mxu0 0.0
    %5069 = vmatpush1.xpose.msra.mxu0 0.0
    %5070 = vmatprep.subr.mxu0 0.0
    %5071 = vmatpush1.xpose.msra.mxu0 0.0
    %5072 = vmatprep.subr.mxu0 0.0
    %5073 = vmatpush1.xpose.msra.mxu0 0.0
    %5074 = vmatprep.subr.mxu0 0.0
    %5075 = vmatpush1.xpose.msra.mxu0 0.0
    %5076 = vmatprep.subr.mxu0 0.0
    %5077 = vmatpush1.xpose.msra.mxu0 0.0
    %5078 = vmatprep.subr.mxu0 0.0
    %5079 = vmatpush1.xpose.msra.mxu0 0.0
    %5080 = vmatprep.subr.mxu0 0.0
    %5081 = vmatpush1.xpose.msra.mxu0 0.0
    %5082 = vmatprep.subr.mxu0 0.0
    %5083 = vmatpush1.xpose.msra.mxu0 0.0
    %5084 = vmatprep.subr.mxu0 0.0
    %5085 = vmatpush1.xpose.msra.mxu0 0.0
    %5086 = vmatprep.subr.mxu0 0.0
    %5087 = vmatpush1.xpose.msra.mxu0 0.0
    %5088 = vmatprep.subr.mxu0 0.0
    %5089 = vmatpush1.xpose.msra.mxu0 0.0
    %5090 = vmatprep.subr.mxu0 0.0
    %5091 = vmatpush1.xpose.msra.mxu0 0.0
    %5092 = vmatprep.subr.mxu0 0.0
    %5093 = vmatpush1.xpose.msra.mxu0 0.0
    %5094 = vmatprep.subr.mxu0 0.0
    %5095 = vmatpush1.xpose.msra.mxu0 0.0
    %5096 = vmatprep.subr.mxu0 0.0
    %5097 = vmatpush1.xpose.msra.mxu0 0.0
    %5098 = vmatprep.subr.mxu0 0.0
    %5099 = vmatpush1.xpose.msra.mxu0 0.0
    %5100 = vmatprep.subr.mxu0 0.0
    %5101 = vmatpush1.xpose.msra.mxu0 0.0
    %5102 = vmatprep.subr.mxu0 0.0
    %5103 = vmatpush1.xpose.msra.mxu0 0.0
    %5104 = vmatprep.subr.mxu0 0.0
    %5105 = vmatpush1.xpose.msra.mxu0 0.0
    %5106 = vmatprep.subr.mxu0 0.0
    %5107 = vmatpush1.xpose.msra.mxu0 0.0
    %5108 = vmatprep.subr.mxu0 0.0
    %5109 = vmatpush1.xpose.msra.mxu0 0.0
    %5110 = vmatprep.subr.mxu0 0.0
    %5111 = vmatpush1.xpose.msra.mxu0 0.0
    %5112 = vmatprep.subr.mxu0 0.0
    %5113 = vmatpush1.xpose.msra.mxu0 0.0
    %5114 = vmatprep.subr.mxu0 0.0
    %5115 = vmatpush1.xpose.msra.mxu0 0.0
    %5116 = vmatprep.subr.mxu0 0.0
    %5117 = vmatpush1.xpose.msra.mxu0 0.0
    %5118 = vmatprep.subr.mxu0 0.0
    %5119 = vmatpush1.xpose.msra.mxu0 0.0
    %5120 = vmatprep.subr.mxu0 0.0
    %5121 = vmatpush1.xpose.msra.mxu0 0.0
    %5122 = vmatprep.mubr.f32.mxu0 0.0
    %5123 = vmatmul.mubr.f32.gmra.mrb[0].mxu0 %v3466
    %v5124 = vpop.f32.mrb[0].mxu0
    %v5125 = vadd.f32 0.0, %v5124
    %v5126 = vpop.f32.mrb[0].mxu0
    %5127 = vdwg.mxu0
    %v5128 = vsel %vm1160, %v5055, -inf
    %5129 = vmax.xlane.f32.xlu0 %v5128
    %v5130 = vpop.xlane.xlu0 %5129
    %v5131 = vsel %vm1160, %v5125, -inf
    %5132 = vmax.xlane.f32.xlu0 %v5131
    %v5133 = vpop.xlane.xlu0 %5132
    %v5134 = vsub.f32 %v5055, %v5130
    %v5135 = vsub.f32 %v5125, %v5133
    %v5136 = vmul.f32 %v5134, 1.442695
    %v5137 = vpow.pop %v5136
    %v5138 = vmul.f32 %v5135, 1.442695
    %v5139 = vpow.pop %v5138
    %v5140 = vsel %vm1160, %v5137, 0.0
    %5141 = vadd.xlane.f32.xlu0 %v5140
    %v5142 = vpop.xlane.xlu0 %5141
    %v5143 = vsel %vm1160, %v5139, 0.0
    %5144 = vadd.xlane.f32.xlu0 %v5143
    %v5145 = vpop.xlane.xlu0 %5144
    %v5146 = vrcp.pop %v5142
    %v5147 = vrcp.pop %v5145
    %v5148 = vmul.f32 %v5137, %v5146
    %v5149 = vmul.f32 %v5139, %v5147
    %v5151 = vsel %vm1160, %v5148, 0
    %5153 = vmatprep.subr.mxu0 0.0
    %5154 = vmatpush1.msra.mxu0 %v3768
    %5155 = vmatprep.subr.mxu0 0.0
    %5156 = vmatpush1.msra.mxu0 0.0
    %5157 = vmatprep.subr.mxu0 0.0
    %5158 = vmatpush1.msra.mxu0 0.0
    %5159 = vmatprep.subr.mxu0 0.0
    %5160 = vmatpush1.msra.mxu0 0.0
    %5161 = vmatprep.subr.mxu0 0.0
    %5162 = vmatpush1.msra.mxu0 0.0
    %5163 = vmatprep.subr.mxu0 0.0
    %5164 = vmatpush1.msra.mxu0 0.0
    %5165 = vmatprep.subr.mxu0 0.0
    %5166 = vmatpush1.msra.mxu0 0.0
    %5167 = vmatprep.subr.mxu0 0.0
    %5168 = vmatpush1.msra.mxu0 0.0
    %5169 = vmatprep.subr.mxu0 0.0
    %5170 = vmatpush1.msra.mxu0 0.0
    %5171 = vmatprep.subr.mxu0 0.0
    %5172 = vmatpush1.msra.mxu0 0.0
    %5173 = vmatprep.subr.mxu0 0.0
    %5174 = vmatpush1.msra.mxu0 0.0
    %5175 = vmatprep.subr.mxu0 0.0
    %5176 = vmatpush1.msra.mxu0 0.0
    %5177 = vmatprep.subr.mxu0 0.0
    %5178 = vmatpush1.msra.mxu0 0.0
    %5179 = vmatprep.subr.mxu0 0.0
    %5180 = vmatpush1.msra.mxu0 0.0
    %5181 = vmatprep.subr.mxu0 0.0
    %5182 = vmatpush1.msra.mxu0 0.0
    %5183 = vmatprep.subr.mxu0 0.0
    %5184 = vmatpush1.msra.mxu0 0.0
    %5185 = vmatprep.subr.mxu0 0.0
    %5186 = vmatpush1.msra.mxu0 0.0
    %5187 = vmatprep.subr.mxu0 0.0
    %5188 = vmatpush1.msra.mxu0 0.0
    %5189 = vmatprep.subr.mxu0 0.0
    %5190 = vmatpush1.msra.mxu0 0.0
    %5191 = vmatprep.subr.mxu0 0.0
    %5192 = vmatpush1.msra.mxu0 0.0
    %5193 = vmatprep.subr.mxu0 0.0
    %5194 = vmatpush1.msra.mxu0 0.0
    %5195 = vmatprep.subr.mxu0 0.0
    %5196 = vmatpush1.msra.mxu0 0.0
    %5197 = vmatprep.subr.mxu0 0.0
    %5198 = vmatpush1.msra.mxu0 0.0
    %5199 = vmatprep.subr.mxu0 0.0
    %5200 = vmatpush1.msra.mxu0 0.0
    %5201 = vmatprep.subr.mxu0 0.0
    %5202 = vmatpush1.msra.mxu0 0.0
    %5203 = vmatprep.subr.mxu0 0.0
    %5204 = vmatpush1.msra.mxu0 0.0
    %5205 = vmatprep.subr.mxu0 0.0
    %5206 = vmatpush1.msra.mxu0 0.0
    %5207 = vmatprep.subr.mxu0 0.0
    %5208 = vmatpush1.msra.mxu0 0.0
    %5209 = vmatprep.subr.mxu0 0.0
    %5210 = vmatpush1.msra.mxu0 0.0
    %5211 = vmatprep.subr.mxu0 0.0
    %5212 = vmatpush1.msra.mxu0 0.0
    %5213 = vmatprep.subr.mxu0 0.0
    %5214 = vmatpush1.msra.mxu0 0.0
    %5215 = vmatprep.subr.mxu0 0.0
    %5216 = vmatpush1.msra.mxu0 0.0
    %5217 = vmatprep.mubr.f32.mxu0 0.0
    %5218 = vmatmul.mubr.f32.gmra.mrb[0].mxu0 %v5151
    %v5219 = vpop.f32.mrb[0].mxu0
    %v5220 = vadd.f32 0.0, %v5219
    %v5221 = vpop.f32.mrb[0].mxu0
    %5222 = vdwg.mxu0
    %v5224 = vsel %vm1160, %v5149, 0
    %5226 = vmatprep.subr.mxu0 0.0
    %5227 = vmatpush1.msra.mxu0 %v3774
    %5228 = vmatprep.subr.mxu0 0.0
    %5229 = vmatpush1.msra.mxu0 0.0
    %5230 = vmatprep.subr.mxu0 0.0
    %5231 = vmatpush1.msra.mxu0 0.0
    %5232 = vmatprep.subr.mxu0 0.0
    %5233 = vmatpush1.msra.mxu0 0.0
    %5234 = vmatprep.subr.mxu0 0.0
    %5235 = vmatpush1.msra.mxu0 0.0
    %5236 = vmatprep.subr.mxu0 0.0
    %5237 = vmatpush1.msra.mxu0 0.0
    %5238 = vmatprep.subr.mxu0 0.0
    %5239 = vmatpush1.msra.mxu0 0.0
    %5240 = vmatprep.subr.mxu0 0.0
    %5241 = vmatpush1.msra.mxu0 0.0
    %5242 = vmatprep.subr.mxu0 0.0
    %5243 = vmatpush1.msra.mxu0 0.0
    %5244 = vmatprep.subr.mxu0 0.0
    %5245 = vmatpush1.msra.mxu0 0.0
    %5246 = vmatprep.subr.mxu0 0.0
    %5247 = vmatpush1.msra.mxu0 0.0
    %5248 = vmatprep.subr.mxu0 0.0
    %5249 = vmatpush1.msra.mxu0 0.0
    %5250 = vmatprep.subr.mxu0 0.0
    %5251 = vmatpush1.msra.mxu0 0.0
    %5252 = vmatprep.subr.mxu0 0.0
    %5253 = vmatpush1.msra.mxu0 0.0
    %5254 = vmatprep.subr.mxu0 0.0
    %5255 = vmatpush1.msra.mxu0 0.0
    %5256 = vmatprep.subr.mxu0 0.0
    %5257 = vmatpush1.msra.mxu0 0.0
    %5258 = vmatprep.subr.mxu0 0.0
    %5259 = vmatpush1.msra.mxu0 0.0
    %5260 = vmatprep.subr.mxu0 0.0
    %5261 = vmatpush1.msra.mxu0 0.0
    %5262 = vmatprep.subr.mxu0 0.0
    %5263 = vmatpush1.msra.mxu0 0.0
    %5264 = vmatprep.subr.mxu0 0.0
    %5265 = vmatpush1.msra.mxu0 0.0
    %5266 = vmatprep.subr.mxu0 0.0
    %5267 = vmatpush1.msra.mxu0 0.0
    %5268 = vmatprep.subr.mxu0 0.0
    %5269 = vmatpush1.msra.mxu0 0.0
    %5270 = vmatprep.subr.mxu0 0.0
    %5271 = vmatpush1.msra.mxu0 0.0
    %5272 = vmatprep.subr.mxu0 0.0
    %5273 = vmatpush1.msra.mxu0 0.0
    %5274 = vmatprep.subr.mxu0 0.0
    %5275 = vmatpush1.msra.mxu0 0.0
    %5276 = vmatprep.subr.mxu0 0.0
    %5277 = vmatpush1.msra.mxu0 0.0
    %5278 = vmatprep.subr.mxu0 0.0
    %5279 = vmatpush1.msra.mxu0 0.0
    %5280 = vmatprep.subr.mxu0 0.0
    %5281 = vmatpush1.msra.mxu0 0.0
    %5282 = vmatprep.subr.mxu0 0.0
    %5283 = vmatpush1.msra.mxu0 0.0
    %5284 = vmatprep.subr.mxu0 0.0
    %5285 = vmatpush1.msra.mxu0 0.0
    %5286 = vmatprep.subr.mxu0 0.0
    %5287 = vmatpush1.msra.mxu0 0.0
    %5288 = vmatprep.subr.mxu0 0.0
    %5289 = vmatpush1.msra.mxu0 0.0
    %5290 = vmatprep.mubr.f32.mxu0 0.0
    %5291 = vmatmul.mubr.f32.gmra.mrb[0].mxu0 %v5224
    %v5292 = vpop.f32.mrb[0].mxu0
    %v5293 = vadd.f32 0.0, %v5292
    %v5294 = vpop.f32.mrb[0].mxu0
    %5295 = vdwg.mxu0
    %v5296 = vld [vmem:[%s4092 + $0x180] sm:$0xff]
    %v5297 = vld [vmem:[%s4092 + $0x188] sm:$0xff]
    %v5298 = vld [vmem:[%s4092 + $0x190] sm:$0xff]
    %v5299 = vld [vmem:[%s4092 + $0x198] sm:$0xff]
    %v5300 = vld [vmem:[%s4092 + $0x1a0] sm:$0xff]
    %v5301 = vld [vmem:[%s4092 + $0x1a8] sm:$0xff]
    %v5302 = vld [vmem:[%s4092 + $0x1b0] sm:$0xff]
    %v5303 = vld [vmem:[%s4092 + $0x1b8] sm:$0xff]
    %v5304 = vld [vmem:[%s4092 + $0x1c0] sm:$0xff]
    %v5305 = vld [vmem:[%s4092 + $0x1c8] sm:$0xff]
    %v5306 = vld [vmem:[%s4092 + $0x1d0] sm:$0xff]
    %v5307 = vld [vmem:[%s4092 + $0x1d8] sm:$0xff]
    %v5308 = vld [vmem:[%s4092 + $0x1e0] sm:$0xff]
    %v5309 = vld [vmem:[%s4092 + $0x1e8] sm:$0xff]
    %v5310 = vld [vmem:[%s4092 + $0x1f0] sm:$0xff]
    %v5311 = vld [vmem:[%s4092 + $0x1f8] sm:$0xff]
    %5312 = vmatprep.subr.mxu0 0.0
    %5313 = vmatpush1.msra.mxu0 %v5296
    %5314 = vmatprep.subr.mxu0 0.0
    %5315 = vmatpush1.msra.mxu0 %v5297
    %5316 = vmatprep.subr.mxu0 0.0
    %5317 = vmatpush1.msra.mxu0 %v5298
    %5318 = vmatprep.subr.mxu0 0.0
    %5319 = vmatpush1.msra.mxu0 %v5299
    %5320 = vmatprep.subr.mxu0 0.0
    %5321 = vmatpush1.msra.mxu0 %v5300
    %5322 = vmatprep.subr.mxu0 0.0
    %5323 = vmatpush1.msra.mxu0 %v5301
    %5324 = vmatprep.subr.mxu0 0.0
    %5325 = vmatpush1.msra.mxu0 %v5302
    %5326 = vmatprep.subr.mxu0 0.0
    %5327 = vmatpush1.msra.mxu0 %v5303
    %5328 = vmatprep.subr.mxu0 0.0
    %5329 = vmatpush1.msra.mxu0 %v5304
    %5330 = vmatprep.subr.mxu0 0.0
    %5331 = vmatpush1.msra.mxu0 %v5305
    %5332 = vmatprep.subr.mxu0 0.0
    %5333 = vmatpush1.msra.mxu0 %v5306
    %5334 = vmatprep.subr.mxu0 0.0
    %5335 = vmatpush1.msra.mxu0 %v5307
    %5336 = vmatprep.subr.mxu0 0.0
    %5337 = vmatpush1.msra.mxu0 %v5308
    %5338 = vmatprep.subr.mxu0 0.0
    %5339 = vmatpush1.msra.mxu0 %v5309
    %5340 = vmatprep.subr.mxu0 0.0
    %5341 = vmatpush1.msra.mxu0 %v5310
    %5342 = vmatprep.subr.mxu0 0.0
    %5343 = vmatpush1.msra.mxu0 %v5311
    %5344 = vmatprep.subr.mxu0 0.0
    %5345 = vmatpush1.msra.mxu0 0.0
    %5346 = vmatprep.subr.mxu0 0.0
    %5347 = vmatpush1.msra.mxu0 0.0
    %5348 = vmatprep.subr.mxu0 0.0
    %5349 = vmatpush1.msra.mxu0 0.0
    %5350 = vmatprep.subr.mxu0 0.0
    %5351 = vmatpush1.msra.mxu0 0.0
    %5352 = vmatprep.subr.mxu0 0.0
    %5353 = vmatpush1.msra.mxu0 0.0
    %5354 = vmatprep.subr.mxu0 0.0
    %5355 = vmatpush1.msra.mxu0 0.0
    %5356 = vmatprep.subr.mxu0 0.0
    %5357 = vmatpush1.msra.mxu0 0.0
    %5358 = vmatprep.subr.mxu0 0.0
    %5359 = vmatpush1.msra.mxu0 0.0
    %5360 = vmatprep.subr.mxu0 0.0
    %5361 = vmatpush1.msra.mxu0 0.0
    %5362 = vmatprep.subr.mxu0 0.0
    %5363 = vmatpush1.msra.mxu0 0.0
    %5364 = vmatprep.subr.mxu0 0.0
    %5365 = vmatpush1.msra.mxu0 0.0
    %5366 = vmatprep.subr.mxu0 0.0
    %5367 = vmatpush1.msra.mxu0 0.0
    %5368 = vmatprep.subr.mxu0 0.0
    %5369 = vmatpush1.msra.mxu0 0.0
    %5370 = vmatprep.subr.mxu0 0.0
    %5371 = vmatpush1.msra.mxu0 0.0
    %5372 = vmatprep.subr.mxu0 0.0
    %5373 = vmatpush1.msra.mxu0 0.0
    %5374 = vmatprep.subr.mxu0 0.0
    %5375 = vmatpush1.msra.mxu0 0.0
    %5376 = vmatprep.mubr.f32.mxu0 0.0
    %5377 = vmatmul.mubr.f32.gmra.mrb[0].mxu0 %v5220
    %v5378 = vpop.f32.mrb[0].mxu0
    %v5379 = vadd.f32 0.0, %v5378
    %v5380 = vpop.f32.mrb[0].mxu0
    %5381 = vmatprep.mubr.f32.mxu0 0.0
    %5382 = vmatmul.mubr.f32.gmra.mrb[0].mxu0 %v5293
    %v5383 = vpop.f32.mrb[0].mxu0
    %v5384 = vadd.f32 0.0, %v5383
    %v5385 = vpop.f32.mrb[0].mxu0
    %5386 = vdwg.mxu0
    %v5387 = vadd.f32 %v4986, %v5379
    %v5388 = vadd.f32 %v4987, %v5384
    %v5389 = vmul.f32 %v3075, %v5387
    %v5390 = vmul.f32 %v3081, %v5388
    %v5391 = vadd.f32 %v2871, %v5389
    %v5392 = vadd.f32 %v2872, %v5390
    %v5393 = vsel %vm162, %v5391, 0.0
    %5394 = vadd.xlane.f32.xlu0 %v5393
    %v5395 = vpop.xlane.xlu0 %5394
    %v5396 = vsel %vm162, %v5392, 0.0
    %5397 = vadd.xlane.f32.xlu0 %v5396
    %v5398 = vpop.xlane.xlu0 %5397
    %v5399 = vmul.f32 %v5395, %v406
    %v5400 = vmul.f32 %v5398, %v406
    %v5401 = vsub.f32 %v5391, %v5399
    %v5402 = vsub.f32 %v5392, %v5400
    %v5403 = vmul.f32 %v5401, %v5401
    %v5404 = vmul.f32 %v5402, %v5402
    %v5405 = vsel %vm162, %v5403, 0.0
    %5406 = vadd.xlane.f32.xlu0 %v5405
    %v5407 = vpop.xlane.xlu0 %5406
    %v5408 = vsel %vm162, %v5404, 0.0
    %5409 = vadd.xlane.f32.xlu0 %v5408
    %v5410 = vpop.xlane.xlu0 %5409
    %v5411 = vmul.f32 %v5407, %v406
    %v5412 = vmul.f32 %v5410, %v406
    %v5413 = vadd.f32 %v5411, 1e-06
    %v5414 = vadd.f32 %v5412, 1e-06
    %v5415 = vrsqrt.pop %v5413
    %v5416 = vrsqrt.pop %v5414
    %v5417 = vmul.f32 %v5401, %v5415
    %v5418 = vmul.f32 %v5402, %v5416
    %v5419 = vadd.f32 %v3152, 1.0
    %v5420 = vadd.f32 %v3158, 1.0
    %v5421 = vmul.f32 %v5417, %v5419
    %v5422 = vmul.f32 %v5418, %v5420
    %v5423 = vadd.f32 %v5421, %v3077
    %v5424 = vadd.f32 %v5422, %v3083
    %s5425 = scalar_lea.vmem %s6, 32
    %v5426 = vld [vmem:[%s5425] sm:$0xff]
    %v5427 = vld [vmem:[%s5425 + $0x8] sm:$0xff]
    %v5428 = vld [vmem:[%s5425 + $0x10] sm:$0xff]
    %v5429 = vld [vmem:[%s5425 + $0x18] sm:$0xff]
    %s5430 = scalar_lea.vmem %s11, 1
    %v5431 = vld [vmem:[%s5430] sm:$0x1]
    %v5433 = vlaneseq
    %v5434 = vshrl.u32 %v5433, 7
    %v5435 = vsub.s32 0, %v5434
    %v5436 = vrot.slane %v5431, %v5435
    %v5439 = vsel %vm162, %v5423, 0
    %v5442 = vsel %vm162, %v5424, 0
    %5444 = vmatprep.subr.mxu0 0.0
    %5445 = vmatpush1.msra.mxu0 %v5426
    %5446 = vmatprep.subr.mxu0 0.0
    %5447 = vmatpush1.msra.mxu0 %v5427
    %5448 = vmatprep.subr.mxu0 0.0
    %5449 = vmatpush1.msra.mxu0 %v5428
    %5450 = vmatprep.subr.mxu0 0.0
    %5451 = vmatpush1.msra.mxu0 %v5429
    %5452 = vmatprep.subr.mxu0 0.0
    %5453 = vmatpush1.msra.mxu0 0.0
    %5454 = vmatprep.subr.mxu0 0.0
    %5455 = vmatpush1.msra.mxu0 0.0
    %5456 = vmatprep.subr.mxu0 0.0
    %5457 = vmatpush1.msra.mxu0 0.0
    %5458 = vmatprep.subr.mxu0 0.0
    %5459 = vmatpush1.msra.mxu0 0.0
    %5460 = vmatprep.subr.mxu0 0.0
    %5461 = vmatpush1.msra.mxu0 0.0
    %5462 = vmatprep.subr.mxu0 0.0
    %5463 = vmatpush1.msra.mxu0 0.0
    %5464 = vmatprep.subr.mxu0 0.0
    %5465 = vmatpush1.msra.mxu0 0.0
    %5466 = vmatprep.subr.mxu0 0.0
    %5467 = vmatpush1.msra.mxu0 0.0
    %5468 = vmatprep.subr.mxu0 0.0
    %5469 = vmatpush1.msra.mxu0 0.0
    %5470 = vmatprep.subr.mxu0 0.0
    %5471 = vmatpush1.msra.mxu0 0.0
    %5472 = vmatprep.subr.mxu0 0.0
    %5473 = vmatpush1.msra.mxu0 0.0
    %5474 = vmatprep.subr.mxu0 0.0
    %5475 = vmatpush1.msra.mxu0 0.0
    %5476 = vmatprep.subr.mxu0 0.0
    %5477 = vmatpush1.msra.mxu0 0.0
    %5478 = vmatprep.subr.mxu0 0.0
    %5479 = vmatpush1.msra.mxu0 0.0
    %5480 = vmatprep.subr.mxu0 0.0
    %5481 = vmatpush1.msra.mxu0 0.0
    %5482 = vmatprep.subr.mxu0 0.0
    %5483 = vmatpush1.msra.mxu0 0.0
    %5484 = vmatprep.subr.mxu0 0.0
    %5485 = vmatpush1.msra.mxu0 0.0
    %5486 = vmatprep.subr.mxu0 0.0
    %5487 = vmatpush1.msra.mxu0 0.0
    %5488 = vmatprep.subr.mxu0 0.0
    %5489 = vmatpush1.msra.mxu0 0.0
    %5490 = vmatprep.subr.mxu0 0.0
    %5491 = vmatpush1.msra.mxu0 0.0
    %5492 = vmatprep.subr.mxu0 0.0
    %5493 = vmatpush1.msra.mxu0 0.0
    %5494 = vmatprep.subr.mxu0 0.0
    %5495 = vmatpush1.msra.mxu0 0.0
    %5496 = vmatprep.subr.mxu0 0.0
    %5497 = vmatpush1.msra.mxu0 0.0
    %5498 = vmatprep.subr.mxu0 0.0
    %5499 = vmatpush1.msra.mxu0 0.0
    %5500 = vmatprep.subr.mxu0 0.0
    %5501 = vmatpush1.msra.mxu0 0.0
    %5502 = vmatprep.subr.mxu0 0.0
    %5503 = vmatpush1.msra.mxu0 0.0
    %5504 = vmatprep.subr.mxu0 0.0
    %5505 = vmatpush1.msra.mxu0 0.0
    %5506 = vmatprep.subr.mxu0 0.0
    %5507 = vmatpush1.msra.mxu0 0.0
    %5508 = vmatprep.mubr.f32.mxu0 0.0
    %5509 = vmatmul.mubr.f32.gmra.mrb[0].mxu0 %v5439
    %v5510 = vpop.f32.mrb[0].mxu0
    %v5511 = vadd.f32 %v5436, %v5510
    %v5512 = vpop.f32.mrb[0].mxu0
    %5513 = vmatprep.mubr.f32.mxu0 0.0
    %5514 = vmatmul.mubr.f32.gmra.mrb[0].mxu0 %v5442
    %v5515 = vpop.f32.mrb[0].mxu0
    %v5516 = vadd.f32 %v5436, %v5515
    %v5517 = vpop.f32.mrb[0].mxu0
    %5518 = vdwg.mxu0
    %v5519 = vmul.f32 %v5511, 0.5
    %v5520 = vmul.f32 %v5516, 0.5
    %v5521 = vmul.f32 %v5511, 0.044715
    %v5522 = vmul.f32 %v5516, 0.044715
    %v5523 = vmul.f32 %v5521, %v5511
    %v5524 = vmul.f32 %v5522, %v5516
    %v5525 = vmul.f32 %v5523, %v5511
    %v5526 = vmul.f32 %v5524, %v5516
    %v5527 = vadd.f32 %v5511, %v5525
    %v5528 = vadd.f32 %v5516, %v5526
    %v5529 = vmul.f32 %v5527, 0.7978846
    %v5530 = vmul.f32 %v5528, 0.7978846
    %v5531 = vtanh.pop %v5529
    %v5532 = vtanh.pop %v5530
    %v5533 = vadd.f32 %v5531, 1.0
    %v5534 = vadd.f32 %v5532, 1.0
    %v5535 = vmul.f32 %v5519, %v5533
    %v5536 = vmul.f32 %v5520, %v5534
    %s5537 = scalar_lea.vmem %s7, 128
    %v5538 = vld [vmem:[%s5537] sm:$0xff]
    %v5539 = vld [vmem:[%s5537 + $0x8] sm:$0xff]
    %v5540 = vld [vmem:[%s5537 + $0x10] sm:$0xff]
    %v5541 = vld [vmem:[%s5537 + $0x18] sm:$0xff]
    %v5542 = vld [vmem:[%s5537 + $0x20] sm:$0xff]
    %v5543 = vld [vmem:[%s5537 + $0x28] sm:$0xff]
    %v5544 = vld [vmem:[%s5537 + $0x30] sm:$0xff]
    %v5545 = vld [vmem:[%s5537 + $0x38] sm:$0xff]
    %v5546 = vld [vmem:[%s5537 + $0x40] sm:$0xff]
    %v5547 = vld [vmem:[%s5537 + $0x48] sm:$0xff]
    %v5548 = vld [vmem:[%s5537 + $0x50] sm:$0xff]
    %v5549 = vld [vmem:[%s5537 + $0x58] sm:$0xff]
    %v5550 = vld [vmem:[%s5537 + $0x60] sm:$0xff]
    %v5551 = vld [vmem:[%s5537 + $0x68] sm:$0xff]
    %v5552 = vld [vmem:[%s5537 + $0x70] sm:$0xff]
    %v5553 = vld [vmem:[%s5537 + $0x78] sm:$0xff]
    %s5554 = scalar_lea.vmem %s12, 1
    %v5555 = vld [vmem:[%s5554] sm:$0x1]
    %v5557 = vlaneseq
    %v5558 = vshrl.u32 %v5557, 7
    %v5559 = vsub.s32 0, %v5558
    %v5560 = vrot.slane %v5555, %v5559
    %5562 = vmatprep.subr.mxu0 0.0
    %5563 = vmatpush1.msra.mxu0 %v5538
    %5564 = vmatprep.subr.mxu0 0.0
    %5565 = vmatpush1.msra.mxu0 %v5539
    %5566 = vmatprep.subr.mxu0 0.0
    %5567 = vmatpush1.msra.mxu0 %v5540
    %5568 = vmatprep.subr.mxu0 0.0
    %5569 = vmatpush1.msra.mxu0 %v5541
    %5570 = vmatprep.subr.mxu0 0.0
    %5571 = vmatpush1.msra.mxu0 %v5542
    %5572 = vmatprep.subr.mxu0 0.0
    %5573 = vmatpush1.msra.mxu0 %v5543
    %5574 = vmatprep.subr.mxu0 0.0
    %5575 = vmatpush1.msra.mxu0 %v5544
    %5576 = vmatprep.subr.mxu0 0.0
    %5577 = vmatpush1.msra.mxu0 %v5545
    %5578 = vmatprep.subr.mxu0 0.0
    %5579 = vmatpush1.msra.mxu0 %v5546
    %5580 = vmatprep.subr.mxu0 0.0
    %5581 = vmatpush1.msra.mxu0 %v5547
    %5582 = vmatprep.subr.mxu0 0.0
    %5583 = vmatpush1.msra.mxu0 %v5548
    %5584 = vmatprep.subr.mxu0 0.0
    %5585 = vmatpush1.msra.mxu0 %v5549
    %5586 = vmatprep.subr.mxu0 0.0
    %5587 = vmatpush1.msra.mxu0 %v5550
    %5588 = vmatprep.subr.mxu0 0.0
    %5589 = vmatpush1.msra.mxu0 %v5551
    %5590 = vmatprep.subr.mxu0 0.0
    %5591 = vmatpush1.msra.mxu0 %v5552
    %5592 = vmatprep.subr.mxu0 0.0
    %5593 = vmatpush1.msra.mxu0 %v5553
    %5594 = vmatprep.subr.mxu0 0.0
    %5595 = vmatpush1.msra.mxu0 0.0
    %5596 = vmatprep.subr.mxu0 0.0
    %5597 = vmatpush1.msra.mxu0 0.0
    %5598 = vmatprep.subr.mxu0 0.0
    %5599 = vmatpush1.msra.mxu0 0.0
    %5600 = vmatprep.subr.mxu0 0.0
    %5601 = vmatpush1.msra.mxu0 0.0
    %5602 = vmatprep.subr.mxu0 0.0
    %5603 = vmatpush1.msra.mxu0 0.0
    %5604 = vmatprep.subr.mxu0 0.0
    %5605 = vmatpush1.msra.mxu0 0.0
    %5606 = vmatprep.subr.mxu0 0.0
    %5607 = vmatpush1.msra.mxu0 0.0
    %5608 = vmatprep.subr.mxu0 0.0
    %5609 = vmatpush1.msra.mxu0 0.0
    %5610 = vmatprep.subr.mxu0 0.0
    %5611 = vmatpush1.msra.mxu0 0.0
    %5612 = vmatprep.subr.mxu0 0.0
    %5613 = vmatpush1.msra.mxu0 0.0
    %5614 = vmatprep.subr.mxu0 0.0
    %5615 = vmatpush1.msra.mxu0 0.0
    %5616 = vmatprep.subr.mxu0 0.0
    %5617 = vmatpush1.msra.mxu0 0.0
    %5618 = vmatprep.subr.mxu0 0.0
    %5619 = vmatpush1.msra.mxu0 0.0
    %5620 = vmatprep.subr.mxu0 0.0
    %5621 = vmatpush1.msra.mxu0 0.0
    %5622 = vmatprep.subr.mxu0 0.0
    %5623 = vmatpush1.msra.mxu0 0.0
    %5624 = vmatprep.subr.mxu0 0.0
    %5625 = vmatpush1.msra.mxu0 0.0
    %5626 = vmatprep.mubr.f32.mxu0 0.0
    %5627 = vmatmul.mubr.f32.gmra.mrb[0].mxu0 %v5535
    %v5628 = vpop.f32.mrb[0].mxu0
    %v5629 = vadd.f32 %v5560, %v5628
    %v5630 = vpop.f32.mrb[0].mxu0
    %5631 = vmatprep.mubr.f32.mxu0 0.0
    %5632 = vmatmul.mubr.f32.gmra.mrb[0].mxu0 %v5536
    %v5633 = vpop.f32.mrb[0].mxu0
    %v5634 = vadd.f32 %v5560, %v5633
    %v5635 = vpop.f32.mrb[0].mxu0
    %5636 = vdwg.mxu0
    %v5637 = vmul.f32 %v3154, %v5629
    %v5638 = vmul.f32 %v3160, %v5634
    %v5639 = vadd.f32 %v5391, %v5637
    %v5640 = vadd.f32 %v5392, %v5638
    %v5641 = vld [vmem:[%s13] sm:$0xff]
    %v5642 = vld [vmem:[%s13 + $0x8] sm:$0xff]
    %v5643 = vld [vmem:[%s13 + $0x10] sm:$0xff]
    %v5644 = vld [vmem:[%s13 + $0x18] sm:$0xff]
    %v5645 = vld [vmem:[%s13 + $0x20] sm:$0xff]
    %v5646 = vld [vmem:[%s13 + $0x28] sm:$0xff]
    %v5647 = vld [vmem:[%s13 + $0x30] sm:$0xff]
    %v5648 = vld [vmem:[%s13 + $0x38] sm:$0xff]
    %v5649 = vld [vmem:[%s14] sm:$0x3]
    %v5651 = vlaneseq
    %v5652 = vshrl.u32 %v5651, 7
    %v5653 = vsub.s32 0, %v5652
    %v5654 = vrot.slane %v5649, %v5653
    %v5655 = vlaneseq
    %v5656 = vshrl.u32 %v5655, 7
    %v5657 = vsub.s32 1, %v5656
    %v5658 = vrot.slane %v5649, %v5657
    %5661 = vmatprep.subr.mxu0 %v5642
    %5662 = vmatpush1.msra.mxu0 %v5641
    %5663 = vmatprep.subr.mxu0 %v5644
    %5664 = vmatpush1.msra.mxu0 %v5643
    %5665 = vmatprep.subr.mxu0 %v5646
    %5666 = vmatpush1.msra.mxu0 %v5645
    %5667 = vmatprep.subr.mxu0 %v5648
    %5668 = vmatpush1.msra.mxu0 %v5647
    %5669 = vmatprep.subr.mxu0 0.0
    %5670 = vmatpush1.msra.mxu0 0.0
    %5671 = vmatprep.subr.mxu0 0.0
    %5672 = vmatpush1.msra.mxu0 0.0
    %5673 = vmatprep.subr.mxu0 0.0
    %5674 = vmatpush1.msra.mxu0 0.0
    %5675 = vmatprep.subr.mxu0 0.0
    %5676 = vmatpush1.msra.mxu0 0.0
    %5677 = vmatprep.subr.mxu0 0.0
    %5678 = vmatpush1.msra.mxu0 0.0
    %5679 = vmatprep.subr.mxu0 0.0
    %5680 = vmatpush1.msra.mxu0 0.0
    %5681 = vmatprep.subr.mxu0 0.0
    %5682 = vmatpush1.msra.mxu0 0.0
    %5683 = vmatprep.subr.mxu0 0.0
    %5684 = vmatpush1.msra.mxu0 0.0
    %5685 = vmatprep.subr.mxu0 0.0
    %5686 = vmatpush1.msra.mxu0 0.0
    %5687 = vmatprep.subr.mxu0 0.0
    %5688 = vmatpush1.msra.mxu0 0.0
    %5689 = vmatprep.subr.mxu0 0.0
    %5690 = vmatpush1.msra.mxu0 0.0
    %5691 = vmatprep.subr.mxu0 0.0
    %5692 = vmatpush1.msra.mxu0 0.0
    %5693 = vmatprep.subr.mxu0 0.0
    %5694 = vmatpush1.msra.mxu0 0.0
    %5695 = vmatprep.subr.mxu0 0.0
    %5696 = vmatpush1.msra.mxu0 0.0
    %5697 = vmatprep.subr.mxu0 0.0
    %5698 = vmatpush1.msra.mxu0 0.0
    %5699 = vmatprep.subr.mxu0 0.0
    %5700 = vmatpush1.msra.mxu0 0.0
    %5701 = vmatprep.subr.mxu0 0.0
    %5702 = vmatpush1.msra.mxu0 0.0
    %5703 = vmatprep.subr.mxu0 0.0
    %5704 = vmatpush1.msra.mxu0 0.0
    %5705 = vmatprep.subr.mxu0 0.0
    %5706 = vmatpush1.msra.mxu0 0.0
    %5707 = vmatprep.subr.mxu0 0.0
    %5708 = vmatpush1.msra.mxu0 0.0
    %5709 = vmatprep.subr.mxu0 0.0
    %5710 = vmatpush1.msra.mxu0 0.0
    %5711 = vmatprep.subr.mxu0 0.0
    %5712 = vmatpush1.msra.mxu0 0.0
    %5713 = vmatprep.subr.mxu0 0.0
    %5714 = vmatpush1.msra.mxu0 0.0
    %5715 = vmatprep.subr.mxu0 0.0
    %5716 = vmatpush1.msra.mxu0 0.0
    %5717 = vmatprep.subr.mxu0 0.0
    %5718 = vmatpush1.msra.mxu0 0.0
    %5719 = vmatprep.subr.mxu0 0.0
    %5720 = vmatpush1.msra.mxu0 0.0
    %5721 = vmatprep.subr.mxu0 0.0
    %5722 = vmatpush1.msra.mxu0 0.0
    %5723 = vmatprep.subr.mxu0 0.0
    %5724 = vmatpush1.msra.mxu0 0.0
    %5725 = vmatprep.mubr.f32.mxu0 0.0
    %5726 = vmatmul.mubr.f32.gmra.mrb[0].mxu0 %v164
    %v5727 = vpop.f32.mrb[0].mxu0
    %v5728 = vadd.f32 %v5654, %v5727
    %v5729 = vpop.f32.mrb[0].mxu0
    %v5730 = vadd.f32 %v5658, %v5729
    %5731 = vmatprep.mubr.f32.mxu0 0.0
    %5732 = vmatmul.mubr.f32.gmra.mrb[0].mxu0 %v167
    %v5733 = vpop.f32.mrb[0].mxu0
    %v5734 = vadd.f32 %v5654, %v5733
    %v5735 = vpop.f32.mrb[0].mxu0
    %v5736 = vadd.f32 %v5658, %v5735
    %5737 = vdwg.mxu0
    %v5738 = vsel %vm162, %v5639, 0.0
    %5739 = vadd.xlane.f32.xlu0 %v5738
    %v5740 = vpop.xlane.xlu0 %5739
    %v5741 = vsel %vm162, %v5640, 0.0
    %5742 = vadd.xlane.f32.xlu0 %v5741
    %v5743 = vpop.xlane.xlu0 %5742
    %v5744 = vmul.f32 %v5740, %v406
    %v5745 = vmul.f32 %v5743, %v406
    %v5746 = vsub.f32 %v5639, %v5744
    %v5747 = vsub.f32 %v5640, %v5745
    %v5748 = vmul.f32 %v5746, %v5746
    %v5749 = vmul.f32 %v5747, %v5747
    %v5750 = vsel %vm162, %v5748, 0.0
    %5751 = vadd.xlane.f32.xlu0 %v5750
    %v5752 = vpop.xlane.xlu0 %5751
    %v5753 = vsel %vm162, %v5749, 0.0
    %5754 = vadd.xlane.f32.xlu0 %v5753
    %v5755 = vpop.xlane.xlu0 %5754
    %v5756 = vmul.f32 %v5752, %v406
    %v5757 = vmul.f32 %v5755, %v406
    %v5758 = vadd.f32 %v5756, 1e-06
    %v5759 = vadd.f32 %v5757, 1e-06
    %v5760 = vrsqrt.pop %v5758
    %v5761 = vrsqrt.pop %v5759
    %v5762 = vmul.f32 %v5746, %v5760
    %v5763 = vmul.f32 %v5747, %v5761
    %v5764 = vadd.f32 %v5730, 1.0
    %v5765 = vadd.f32 %v5736, 1.0
    %v5766 = vmul.f32 %v5762, %v5764
    %v5767 = vmul.f32 %v5763, %v5765
    %v5768 = vadd.f32 %v5766, %v5728
    %v5769 = vadd.f32 %v5767, %v5734
    %v5770 = vld [vmem:[%s15] sm:$0xff]
    %v5771 = vld [vmem:[%s15 + $0x8] sm:$0xff]
    %v5772 = vld [vmem:[%s15 + $0x10] sm:$0xff]
    %v5773 = vld [vmem:[%s15 + $0x18] sm:$0xff]
    %v5774 = vld [vmem:[%s16] sm:$0x1]
    %v5776 = vlaneseq
    %v5777 = vshrl.u32 %v5776, 7
    %v5778 = vsub.s32 0, %v5777
    %v5779 = vrot.slane %v5774, %v5778
    %v5782 = vsel %vm162, %v5768, 0
    %v5785 = vsel %vm162, %v5769, 0
    %5787 = vmatprep.subr.mxu0 0.0
    %5788 = vmatpush1.msra.mxu0 %v5770
    %5789 = vmatprep.subr.mxu0 0.0
    %5790 = vmatpush1.msra.mxu0 %v5771
    %5791 = vmatprep.subr.mxu0 0.0
    %5792 = vmatpush1.msra.mxu0 %v5772
    %5793 = vmatprep.subr.mxu0 0.0
    %5794 = vmatpush1.msra.mxu0 %v5773
    %5795 = vmatprep.subr.mxu0 0.0
    %5796 = vmatpush1.msra.mxu0 0.0
    %5797 = vmatprep.subr.mxu0 0.0
    %5798 = vmatpush1.msra.mxu0 0.0
    %5799 = vmatprep.subr.mxu0 0.0
    %5800 = vmatpush1.msra.mxu0 0.0
    %5801 = vmatprep.subr.mxu0 0.0
    %5802 = vmatpush1.msra.mxu0 0.0
    %5803 = vmatprep.subr.mxu0 0.0
    %5804 = vmatpush1.msra.mxu0 0.0
    %5805 = vmatprep.subr.mxu0 0.0
    %5806 = vmatpush1.msra.mxu0 0.0
    %5807 = vmatprep.subr.mxu0 0.0
    %5808 = vmatpush1.msra.mxu0 0.0
    %5809 = vmatprep.subr.mxu0 0.0
    %5810 = vmatpush1.msra.mxu0 0.0
    %5811 = vmatprep.subr.mxu0 0.0
    %5812 = vmatpush1.msra.mxu0 0.0
    %5813 = vmatprep.subr.mxu0 0.0
    %5814 = vmatpush1.msra.mxu0 0.0
    %5815 = vmatprep.subr.mxu0 0.0
    %5816 = vmatpush1.msra.mxu0 0.0
    %5817 = vmatprep.subr.mxu0 0.0
    %5818 = vmatpush1.msra.mxu0 0.0
    %5819 = vmatprep.subr.mxu0 0.0
    %5820 = vmatpush1.msra.mxu0 0.0
    %5821 = vmatprep.subr.mxu0 0.0
    %5822 = vmatpush1.msra.mxu0 0.0
    %5823 = vmatprep.subr.mxu0 0.0
    %5824 = vmatpush1.msra.mxu0 0.0
    %5825 = vmatprep.subr.mxu0 0.0
    %5826 = vmatpush1.msra.mxu0 0.0
    %5827 = vmatprep.subr.mxu0 0.0
    %5828 = vmatpush1.msra.mxu0 0.0
    %5829 = vmatprep.subr.mxu0 0.0
    %5830 = vmatpush1.msra.mxu0 0.0
    %5831 = vmatprep.subr.mxu0 0.0
    %5832 = vmatpush1.msra.mxu0 0.0
    %5833 = vmatprep.subr.mxu0 0.0
    %5834 = vmatpush1.msra.mxu0 0.0
    %5835 = vmatprep.subr.mxu0 0.0
    %5836 = vmatpush1.msra.mxu0 0.0
    %5837 = vmatprep.subr.mxu0 0.0
    %5838 = vmatpush1.msra.mxu0 0.0
    %5839 = vmatprep.subr.mxu0 0.0
    %5840 = vmatpush1.msra.mxu0 0.0
    %5841 = vmatprep.subr.mxu0 0.0
    %5842 = vmatpush1.msra.mxu0 0.0
    %5843 = vmatprep.subr.mxu0 0.0
    %5844 = vmatpush1.msra.mxu0 0.0
    %5845 = vmatprep.subr.mxu0 0.0
    %5846 = vmatpush1.msra.mxu0 0.0
    %5847 = vmatprep.subr.mxu0 0.0
    %5848 = vmatpush1.msra.mxu0 0.0
    %5849 = vmatprep.subr.mxu0 0.0
    %5850 = vmatpush1.msra.mxu0 0.0
    %5851 = vmatprep.mubr.f32.mxu0 0.0
    %5852 = vmatmul.mubr.f32.gmra.mrb[0].mxu0 %v5782
    %v5853 = vpop.f32.mrb[0].mxu0
    %v5854 = vadd.f32 %v5779, %v5853
    %v5855 = vpop.f32.mrb[0].mxu0
    %5856 = vmatprep.mubr.f32.mxu0 0.0
    %5857 = vmatmul.mubr.f32.gmra.mrb[0].mxu0 %v5785
    %v5858 = vpop.f32.mrb[0].mxu0
    %v5859 = vadd.f32 %v5779, %v5858
    %v5860 = vpop.f32.mrb[0].mxu0
    %5861 = vdwg.mxu0
    %5862 = vst [vmem:[#allocation7] sm:$0xff] %v5854
    %5863 = vst [vmem:[#allocation7 + $0x8] sm:$0xff] %v5859
    // Predicated region
    $region78: #{tpu_custom_call.1} parent=1 // pred_check
      _
    $region79: #{tpu_custom_call.1} parent=1 // pred_check_branch
      %5865 = sbr.rel (0) target = $region81
    $region80: #{tpu_custom_call.1} parent=1 // pred_region
      %s5867 = ssub.s32 256, 256
      %5868 = vsyncadd [#allocation4], %s5867
      %s5869 = sshll.u32 [#allocation7], 4
      %s5870 = int_to_ptr.vmem [resolvable:$true] %s5869
      %5875 = dma.vmem_to_hbm [thread:$0]  %s5870, 256, %s17, [#allocation4], 128, 128, 8
    $region81: #{tpu_custom_call.1} parent=1 // pred_fallthru
      _
    // Predicated region
    $region82: #{tpu_custom_call.1} parent=1 // pred_check
      _
    $region83: #{tpu_custom_call.1} parent=1 // pred_check_branch
      %5877 = sbr.rel (0) target = $region85
    $region84: #{tpu_custom_call.1} parent=1 // pred_region
      %5878 = dma.done [#allocation4], 256
    $region85: #{tpu_custom_call.1} parent=1 // pred_fallthru
      _
    %5879 = vsyncpa [#allocation3], 1
    %5880 = vsyncpa [#allocation6], 1
    %5881 = vsyncpa [#allocation4], 1

</llo_original>
